<compile_context>
chip_gen: v7x
topology: tpu7x:2x2x1
jax: 0.10.0
libtpu: 0.0.40
codegen_flags: <defaults>
</compile_context>

<pallas_src>
import functools
import math

import jax
import jax.numpy as jnp
from jax.experimental import pallas as pl
from jax.experimental.pallas import tpu as pltpu


_TAPS_3X3 = tuple((dy, dx) for dy in (-1, 0, 1) for dx in (-1, 0, 1))   # stride-1 3x3, pad 1
_TAPS_2X2 = ((-1, -1), (-1, 0), (0, -1), (0, 0))                        # stride-2 via s2d


# ----------------------------- Pallas kernel -----------------------------

def _build_im2col(src_view, col_ref, taps, cch, Ho, Wo):
    """Fill col_ref (Ho, Wo, len(taps)*cch) with shifted tap blocks of src_view (Ho, Wo, cch).

    Zero padding is produced by zeroing only the 1-pixel border FRAME of the buffer (4
    lane-dense stores); every in-range tap region is rewritten afterwards, so the zeros that
    survive are exactly the out-of-range (padded) positions.  Done every grid step, so it is
    correct under any megacore grid partitioning.
    """
    K = len(taps) * cch
    zrow = jnp.zeros((1, Wo, K), jnp.bfloat16)
    zcol = jnp.zeros((Ho, 1, K), jnp.bfloat16)
    col_ref[0:1, :, :] = zrow
    col_ref[Ho - 1:Ho, :, :] = zrow
    col_ref[:, 0:1, :] = zcol
    col_ref[:, Wo - 1:Wo, :] = zcol
    for t, (oy, ox) in enumerate(taps):
        dr0, dr1 = max(0, -oy), Ho - max(0, oy)
        dc0, dc1 = max(0, -ox), Wo - max(0, ox)
        col_ref[dr0:dr1, dc0:dc1, t * cch:(t + 1) * cch] = \
            src_view[dr0 + oy:dr1 + oy, dc0 + ox:dc1 + ox, :]


def _basic_block_kernel(*refs, taps1, project):
    """Fused BasicBlock: conv1+bn1+relu1 -> conv2+bn2 -> +shortcut -> relu2, one image per step.

    Ref order:
      project=False: x, w1, b1, w2, b2,            o,  col1, h, col2
      project=True:  x, w1, b1, w2, b2, ws, bs,    o,  col1, h, col2
    """
    if project:
        (x_ref, w1_ref, b1_ref, w2_ref, b2_ref, ws_ref, bs_ref,
         o_ref, col1_ref, h_ref, col2_ref) = refs
    else:
        (x_ref, w1_ref, b1_ref, w2_ref, b2_ref,
         o_ref, col1_ref, h_ref, col2_ref) = refs
        ws_ref = bs_ref = None

    Ho, Wo, C = o_ref.shape[1], o_ref.shape[2], o_ref.shape[3]
    Ci = x_ref.shape[3]
    x_view = x_ref.at[0]                       # (Ho, Wo, Ci) ref-view, zero cost

    # ---- conv1 (+ folded BN1 bias) + ReLU : a single big-K MXU matmul -------
    _build_im2col(x_view, col1_ref, taps1, Ci, Ho, Wo)
    h = jnp.dot(col1_ref[...].reshape(Ho * Wo, len(taps1) * Ci), w1_ref[...],
                preferred_element_type=jnp.float32)            # f32 acc in regs/MRB
    h = jnp.maximum(h + b1_ref[...], 0.0)
    h_ref[...] = h.astype(jnp.bfloat16).reshape(Ho, Wo, C)     # stays in VMEM

    # ---- conv2 (+ folded BN2 bias), fused shortcut + ReLU --------------------
    _build_im2col(h_ref, col2_ref, _TAPS_3X3, C, Ho, Wo)
    out = jnp.dot(col2_ref[...].reshape(Ho * Wo, 9 * C), w2_ref[...],
                  preferred_element_type=jnp.float32) + b2_ref[...]

    x_flat = x_view[...].reshape(Ho * Wo, Ci)
    if project:                                 # fused 1x1-conv + BN projection shortcut
        out = out + jnp.dot(x_flat, ws_ref[...],
                            preferred_element_type=jnp.float32) + bs_ref[...]
    else:                                       # identity shortcut
        out = out + x_flat.astype(jnp.float32)

    o_ref[0] = jnp.maximum(out, 0.0).reshape(Ho, Wo, C).astype(o_ref.dtype)


# ----------------------------- BN folding & weight prep -----------------------------

def fold_bn(w, gamma, beta, mean, var, eps=1e-5):
    """Fold inference-mode BatchNorm into the (bias-free) conv weights (scale over Cout)."""
    scale = gamma / jnp.sqrt(var + eps)                       # (Cout,)
    return (w * scale).astype(jnp.bfloat16), (beta - mean * scale).astype(jnp.float32)


def _stride2_space_to_depth(x):
    """(N, H, W, C) -> (N, H//2, W//2, 4*C), channel order (p, q, c) for sub-pixel (p, q)."""
    N, H, W, C = x.shape
    x = x.reshape(N, H // 2, 2, W // 2, 2, C)
    x = jnp.transpose(x, (0, 1, 3, 2, 4, 5))
    return x.reshape(N, H // 2, W // 2, 4 * C)


def _stride2_weight(w3x3):
    """(3,3,Cin,Cout) stride-2 conv weight -> (16*Cin, Cout) matrix matching the
    space-to-depth input and the 2x2 tap order (-1,-1),(-1,0),(0,-1),(0,0)."""
    Cin, Cout = w3x3.shape[2], w3x3.shape[3]
    w = jnp.zeros((2, 2, 2, 2, Cin, Cout), w3x3.dtype)
    for a in range(2):
        for b in range(2):
            for p in range(2):
                for q in range(2):
                    dy = 2 * (a - 1) + p + 1
                    dx = 2 * (b - 1) + q + 1
                    if 0 <= dy < 3 and 0 <= dx < 3:
                        w = w.at[a, b, p, q].set(w3x3[dy, dx])
    return w.reshape(16 * Cin, Cout)


def _bn_params(key, c):
    k1, k2, k3, k4 = jax.random.split(key, 4)
    gamma = 1.0 + 0.1 * jax.random.normal(k1, (c,), jnp.float32)
    beta = 0.1 * jax.random.normal(k2, (c,), jnp.float32)
    mean = 0.1 * jax.random.normal(k3, (c,), jnp.float32)
    var = jax.random.uniform(k4, (c,), jnp.float32, minval=0.5, maxval=1.5)
    return (gamma, beta, mean, var)


def init_block_params(key, in_planes, planes, stride):
    """Synthetic deterministic weights mirroring BasicBlock.__init__ (expansion = 1)."""
    keys = jax.random.split(key, 6)
    std3 = math.sqrt(2.0 / (planes * 9))
    p = {
        "conv1_w": jax.random.normal(keys[0], (3, 3, in_planes, planes), jnp.float32) * std3,
        "bn1": _bn_params(keys[1], planes),
        "conv2_w": jax.random.normal(keys[2], (3, 3, planes, planes), jnp.float32) * std3,
        "bn2": _bn_params(keys[3], planes),
    }
    if stride != 1 or in_planes != planes:
        p["short_w"] = jax.random.normal(keys[4], (in_planes, planes), jnp.float32) * \
            math.sqrt(2.0 / planes)
        p["bn_s"] = _bn_params(keys[5], planes)
    return p


# ----------------------------- Forward pass -----------------------------

def basic_block_forward(params, x_nchw, *, stride):
    """BasicBlock.forward.  x_nchw: (N, in_planes, H, W) f32 (PyTorch layout)."""
    assert stride in (1, 2)   # TODO(synk): general stride via space-to-depth(s).
    in_planes = params["conv1_w"].shape[2]
    planes = params["conv2_w"].shape[3]

    # Cast to bf16 BEFORE the layout transpose -> half the relayout HBM traffic.
    x = jnp.transpose(x_nchw.astype(jnp.bfloat16), (0, 2, 3, 1))          # NHWC bf16
    N, H, W, _ = x.shape

    w1f, b1f = fold_bn(params["conv1_w"], *params["bn1"])
    w2f, b2f = fold_bn(params["conv2_w"], *params["bn2"])

    if stride == 1:
        x_in = x
        taps1 = _TAPS_3X3
        w1_mat = w1f.reshape(9 * in_planes, planes)
    else:
        assert H % 2 == 0 and W % 2 == 0
        x_in = _stride2_space_to_depth(x)          # stride-2 3x3 == stride-1 2x2 conv on this
        taps1 = _TAPS_2X2
        w1_mat = _stride2_weight(w1f)

    _, Ho, Wo, Ci = x_in.shape
    project = (stride != 1) or (in_planes != planes)

    inputs = [x_in, w1_mat, b1f.reshape(1, planes),
              w2f.reshape(9 * planes, planes), b2f.reshape(1, planes)]
    in_specs = [
        pl.BlockSpec((1, Ho, Wo, Ci), lambda n: (n, 0, 0, 0)),
        pl.BlockSpec(w1_mat.shape, lambda n: (0, 0)),          # weights stay VMEM-resident
        pl.BlockSpec((1, planes), lambda n: (0, 0)),
        pl.BlockSpec((9 * planes, planes), lambda n: (0, 0)),
        pl.BlockSpec((1, planes), lambda n: (0, 0)),
    ]
    if project:
        ws, bs = fold_bn(params["short_w"], *params["bn_s"])   # (in_planes, planes) bf16
        # The 1x1 stride-s shortcut reads sub-pixel (0,0) of the (s2d) input -> pad rows with 0.
        ws_pad = jnp.zeros((Ci, planes), ws.dtype).at[:in_planes].set(ws)
        inputs += [ws_pad, bs.reshape(1, planes)]
        in_specs += [pl.BlockSpec((Ci, planes), lambda n: (0, 0)),
                     pl.BlockSpec((1, planes), lambda n: (0, 0))]

    out = pl.pallas_call(
        functools.partial(_basic_block_kernel, taps1=taps1, project=project),
        out_shape=jax.ShapeDtypeStruct((N, Ho, Wo, planes), jnp.bfloat16),
        grid=(N,),
        in_specs=in_specs,
        out_specs=pl.BlockSpec((1, Ho, Wo, planes), lambda n: (n, 0, 0, 0)),
        scratch_shapes=[
            pltpu.VMEM((Ho, Wo, len(taps1) * Ci), jnp.bfloat16),   # conv1 im2col (big-K lhs)
            pltpu.VMEM((Ho, Wo, planes), jnp.bfloat16),            # intermediate h (never to HBM)
            pltpu.VMEM((Ho, Wo, 9 * planes), jnp.bfloat16),        # conv2 im2col
        ],
        compiler_params=pltpu.CompilerParams(
            dimension_semantics=("parallel",),                     # batch axis -> megacore
            vmem_limit_bytes=64 * 1024 * 1024),
    )(*inputs)
    # TODO(synk): for large feature maps, add a spatial row-band grid axis (with 1-row halo)
    # so v7x gets >1 pipelined step per core and VMEM stays bounded at 56-112 spatial sizes.

    return jnp.transpose(out, (0, 3, 1, 2)).astype(jnp.float32)           # back to NCHW, f32


# ----------------------------- Pure-JAX reference -----------------------------

def reference_block(params, x_nchw, stride):
    """Plain-XLA reference mirroring the kernel's bf16 quantization points."""
    f32 = jnp.float32
    x = jnp.transpose(x_nchw.astype(jnp.bfloat16), (0, 2, 3, 1)).astype(f32)
    w1f, b1f = fold_bn(params["conv1_w"], *params["bn1"])
    w2f, b2f = fold_bn(params["conv2_w"], *params["bn2"])

    def conv(a, w, s):
        return jax.lax.conv_general_dilated(
            a, w.astype(f32), window_strides=(s, s), padding=((1, 1), (1, 1)),
            dimension_numbers=("NHWC", "HWIO", "NHWC"))

    h = jnp.maximum(conv(x, w1f, stride) + b1f, 0.0)
    h = h.astype(jnp.bfloat16).astype(f32)
    out = conv(h, w2f, 1) + b2f

    in_planes = params["conv1_w"].shape[2]
    planes = params["conv2_w"].shape[3]
    if stride != 1 or in_planes != planes:
        ws, bs = fold_bn(params["short_w"], *params["bn_s"])
        sc = x[:, ::stride, ::stride, :] @ ws.astype(f32) + bs
    else:
        sc = x
    out = jnp.maximum(out + sc, 0.0).astype(jnp.bfloat16).astype(f32)
    return jnp.transpose(out, (0, 3, 1, 2))


# ----------------------------- Main -----------------------------

if __name__ == "__main__":
    key = jax.random.PRNGKey(0)
    k_p1, k_p2, k_x = jax.random.split(key, 3)

    in_planes = 64
    x = jax.random.normal(k_x, (2, in_planes, 16, 16), jnp.float32)   # NCHW like PyTorch

    # Block 1: stride=1, same planes -> identity shortcut path.
    params1 = init_block_params(k_p1, in_planes, in_planes, stride=1)
    fwd1 = jax.jit(functools.partial(basic_block_forward, stride=1))
    out1 = jax.block_until_ready(fwd1(params1, x))
    assert out1.shape == (2, in_planes, 16, 16), out1.shape
    assert bool(jnp.all(jnp.isfinite(out1)))
    err1 = float(jnp.max(jnp.abs(out1 - reference_block(params1, x, 1))))
    assert err1 < 5e-2, f"block1 mismatch vs reference: {err1}"

    # Block 2: stride=2, channel expansion -> projected (1x1 conv + BN) shortcut path.
    planes2 = 128
    params2 = init_block_params(k_p2, in_planes, planes2, stride=2)
    fwd2 = jax.jit(functools.partial(basic_block_forward, stride=2))
    out2 = jax.block_until_ready(fwd2(params2, x))
    assert out2.shape == (2, planes2, 8, 8), out2.shape
    assert bool(jnp.all(jnp.isfinite(out2)))
    err2 = float(jnp.max(jnp.abs(out2 - reference_block(params2, x, 2))))
    assert err2 < 5e-2, f"block2 mismatch vs reference: {err2}"

    print("KERNEL_OK")
</pallas_src>

<mosaic_0001>
module attributes {stable_mosaic.version = 11 : i64} {
  func.func @_basic_block_kernel(%arg0: i32, %arg1: memref<1x16x16x64xbf16, #tpu.memory_space<vmem>>, %arg2: memref<576x64xbf16, #tpu.memory_space<vmem>>, %arg3: memref<1x64xf32, #tpu.memory_space<vmem>>, %arg4: memref<576x64xbf16, #tpu.memory_space<vmem>>, %arg5: memref<1x64xf32, #tpu.memory_space<vmem>>, %arg6: memref<1x16x16x64xbf16, #tpu.memory_space<vmem>>, %arg7: memref<16x16x576xbf16, #tpu.memory_space<vmem>>, %arg8: memref<16x16x64xbf16, #tpu.memory_space<vmem>>, %arg9: memref<16x16x576xbf16, #tpu.memory_space<vmem>>) attributes {dimension_semantics = [#tpu.dimension_semantics<parallel>], iteration_bounds = array<i64: 2>, scalar_prefetch = 0 : i64, scratch_operands = 3 : i64, tpu.core_type = #tpu.core_type<tc>, window_params = [{transform_indices = @transform_0, window_bounds = array<i64: 1, 16, 16, 64>}, {pipeline_mode = #tpu.pipeline_mode<synchronous>, transform_indices = @transform_1, window_bounds = array<i64: 576, 64>}, {pipeline_mode = #tpu.pipeline_mode<synchronous>, transform_indices = @transform_2, window_bounds = array<i64: 1, 64>}, {pipeline_mode = #tpu.pipeline_mode<synchronous>, transform_indices = @transform_3, window_bounds = array<i64: 576, 64>}, {pipeline_mode = #tpu.pipeline_mode<synchronous>, transform_indices = @transform_4, window_bounds = array<i64: 1, 64>}, {transform_indices = @transform_5, window_bounds = array<i64: 1, 16, 16, 64>}]} {
    %cst = arith.constant 0.000000e+00 : bf16
    %0 = vector.broadcast %cst : bf16 to vector<1x16x576xbf16>
    %cst_0 = arith.constant 0.000000e+00 : bf16
    %1 = vector.broadcast %cst_0 : bf16 to vector<16x1x576xbf16>
    %c0 = arith.constant 0 : index
    %c0_1 = arith.constant 0 : index
    %c0_2 = arith.constant 0 : index
    %2 = vector.load %arg7[%c0, %c0_1, %c0_2] : memref<16x16x576xbf16, #tpu.memory_space<vmem>>, vector<1x16x576xbf16>
    tpu.vector_store %arg7[%c0, %c0_1, %c0_2], %0 {strides = array<i32>} : memref<16x16x576xbf16, #tpu.memory_space<vmem>>, vector<1x16x576xbf16>,
    %c15 = arith.constant 15 : index
    %c0_3 = arith.constant 0 : index
    %c0_4 = arith.constant 0 : index
    %3 = vector.load %arg7[%c15, %c0_3, %c0_4] : memref<16x16x576xbf16, #tpu.memory_space<vmem>>, vector<1x16x576xbf16>
    tpu.vector_store %arg7[%c15, %c0_3, %c0_4], %0 {strides = array<i32>} : memref<16x16x576xbf16, #tpu.memory_space<vmem>>, vector<1x16x576xbf16>,
    %c0_5 = arith.constant 0 : index
    %c0_6 = arith.constant 0 : index
    %c0_7 = arith.constant 0 : index
    %4 = vector.load %arg7[%c0_5, %c0_6, %c0_7] : memref<16x16x576xbf16, #tpu.memory_space<vmem>>, vector<16x1x576xbf16>
    tpu.vector_store %arg7[%c0_5, %c0_6, %c0_7], %1 {strides = array<i32>} : memref<16x16x576xbf16, #tpu.memory_space<vmem>>, vector<16x1x576xbf16>,
    %c0_8 = arith.constant 0 : index
    %c15_9 = arith.constant 15 : index
    %c0_10 = arith.constant 0 : index
    %5 = vector.load %arg7[%c0_8, %c15_9, %c0_10] : memref<16x16x576xbf16, #tpu.memory_space<vmem>>, vector<16x1x576xbf16>
    tpu.vector_store %arg7[%c0_8, %c15_9, %c0_10], %1 {strides = array<i32>} : memref<16x16x576xbf16, #tpu.memory_space<vmem>>, vector<16x1x576xbf16>,
    %c0_i32 = arith.constant 0 : i32
    %c0_i32_11 = arith.constant 0 : i32
    %c0_i32_12 = arith.constant 0 : i32
    %c0_i32_13 = arith.constant 0 : i32
    %6 = tpu.memref_slice %arg1[%c0_i32, %c0_i32_11, %c0_i32_12, %c0_i32_13] : memref<1x16x16x64xbf16, #tpu.memory_space<vmem>> -> memref<1x16x16x64xbf16, #tpu.memory_space<vmem>>
    %7 = tpu.memref_squeeze %6 : memref<1x16x16x64xbf16, #tpu.memory_space<vmem>> -> memref<16x16x64xbf16, #tpu.memory_space<vmem>>
    %c0_14 = arith.constant 0 : index
    %c0_15 = arith.constant 0 : index
    %c0_16 = arith.constant 0 : index
    %8 = vector.load %7[%c0_14, %c0_15, %c0_16] : memref<16x16x64xbf16, #tpu.memory_space<vmem>>, vector<15x15x64xbf16>
    %c1 = arith.constant 1 : index
    %c1_17 = arith.constant 1 : index
    %c0_18 = arith.constant 0 : index
    %9 = vector.load %arg7[%c1, %c1_17, %c0_18] : memref<16x16x576xbf16, #tpu.memory_space<vmem>>, vector<15x15x64xbf16>
    tpu.vector_store %arg7[%c1, %c1_17, %c0_18], %8 {strides = array<i32>} : memref<16x16x576xbf16, #tpu.memory_space<vmem>>, vector<15x15x64xbf16>,
    %c0_i32_19 = arith.constant 0 : i32
    %c0_i32_20 = arith.constant 0 : i32
    %c0_i32_21 = arith.constant 0 : i32
    %c0_i32_22 = arith.constant 0 : i32
    %10 = tpu.memref_slice %arg1[%c0_i32_19, %c0_i32_20, %c0_i32_21, %c0_i32_22] : memref<1x16x16x64xbf16, #tpu.memory_space<vmem>> -> memref<1x16x16x64xbf16, #tpu.memory_space<vmem>>
    %11 = tpu.memref_squeeze %10 : memref<1x16x16x64xbf16, #tpu.memory_space<vmem>> -> memref<16x16x64xbf16, #tpu.memory_space<vmem>>
    %c0_23 = arith.constant 0 : index
    %c0_24 = arith.constant 0 : index
    %c0_25 = arith.constant 0 : index
    %12 = vector.load %11[%c0_23, %c0_24, %c0_25] : memref<16x16x64xbf16, #tpu.memory_space<vmem>>, vector<15x16x64xbf16>
    %c1_26 = arith.constant 1 : index
    %c0_27 = arith.constant 0 : index
    %c64 = arith.constant 64 : index
    %13 = vector.load %arg7[%c1_26, %c0_27, %c64] : memref<16x16x576xbf16, #tpu.memory_space<vmem>>, vector<15x16x64xbf16>
    tpu.vector_store %arg7[%c1_26, %c0_27, %c64], %12 {strides = array<i32>} : memref<16x16x576xbf16, #tpu.memory_space<vmem>>, vector<15x16x64xbf16>,
    %c0_i32_28 = arith.constant 0 : i32
    %c0_i32_29 = arith.constant 0 : i32
    %c0_i32_30 = arith.constant 0 : i32
    %c0_i32_31 = arith.constant 0 : i32
    %14 = tpu.memref_slice %arg1[%c0_i32_28, %c0_i32_29, %c0_i32_30, %c0_i32_31] : memref<1x16x16x64xbf16, #tpu.memory_space<vmem>> -> memref<1x16x16x64xbf16, #tpu.memory_space<vmem>>
    %15 = tpu.memref_squeeze %14 : memref<1x16x16x64xbf16, #tpu.memory_space<vmem>> -> memref<16x16x64xbf16, #tpu.memory_space<vmem>>
    %c0_32 = arith.constant 0 : index
    %c1_33 = arith.constant 1 : index
    %c0_34 = arith.constant 0 : index
    %16 = vector.load %15[%c0_32, %c1_33, %c0_34] : memref<16x16x64xbf16, #tpu.memory_space<vmem>>, vector<15x15x64xbf16>
    %c1_35 = arith.constant 1 : index
    %c0_36 = arith.constant 0 : index
    %c128 = arith.constant 128 : index
    %17 = vector.load %arg7[%c1_35, %c0_36, %c128] : memref<16x16x576xbf16, #tpu.memory_space<vmem>>, vector<15x15x64xbf16>
    tpu.vector_store %arg7[%c1_35, %c0_36, %c128], %16 {strides = array<i32>} : memref<16x16x576xbf16, #tpu.memory_space<vmem>>, vector<15x15x64xbf16>,
    %c0_i32_37 = arith.constant 0 : i32
    %c0_i32_38 = arith.constant 0 : i32
    %c0_i32_39 = arith.constant 0 : i32
    %c0_i32_40 = arith.constant 0 : i32
    %18 = tpu.memref_slice %arg1[%c0_i32_37, %c0_i32_38, %c0_i32_39, %c0_i32_40] : memref<1x16x16x64xbf16, #tpu.memory_space<vmem>> -> memref<1x16x16x64xbf16, #tpu.memory_space<vmem>>
    %19 = tpu.memref_squeeze %18 : memref<1x16x16x64xbf16, #tpu.memory_space<vmem>> -> memref<16x16x64xbf16, #tpu.memory_space<vmem>>
    %c0_41 = arith.constant 0 : index
    %c0_42 = arith.constant 0 : index
    %c0_43 = arith.constant 0 : index
    %20 = vector.load %19[%c0_41, %c0_42, %c0_43] : memref<16x16x64xbf16, #tpu.memory_space<vmem>>, vector<16x15x64xbf16>
    %c0_44 = arith.constant 0 : index
    %c1_45 = arith.constant 1 : index
    %c192 = arith.constant 192 : index
    %21 = vector.load %arg7[%c0_44, %c1_45, %c192] : memref<16x16x576xbf16, #tpu.memory_space<vmem>>, vector<16x15x64xbf16>
    tpu.vector_store %arg7[%c0_44, %c1_45, %c192], %20 {strides = array<i32>} : memref<16x16x576xbf16, #tpu.memory_space<vmem>>, vector<16x15x64xbf16>,
    %c0_i32_46 = arith.constant 0 : i32
    %c0_i32_47 = arith.constant 0 : i32
    %c0_i32_48 = arith.constant 0 : i32
    %c0_i32_49 = arith.constant 0 : i32
    %22 = tpu.memref_slice %arg1[%c0_i32_46, %c0_i32_47, %c0_i32_48, %c0_i32_49] : memref<1x16x16x64xbf16, #tpu.memory_space<vmem>> -> memref<1x16x16x64xbf16, #tpu.memory_space<vmem>>
    %23 = tpu.memref_squeeze %22 : memref<1x16x16x64xbf16, #tpu.memory_space<vmem>> -> memref<16x16x64xbf16, #tpu.memory_space<vmem>>
    %c0_50 = arith.constant 0 : index
    %c0_51 = arith.constant 0 : index
    %c0_52 = arith.constant 0 : index
    %24 = vector.load %23[%c0_50, %c0_51, %c0_52] : memref<16x16x64xbf16, #tpu.memory_space<vmem>>, vector<16x16x64xbf16>
    %c0_53 = arith.constant 0 : index
    %c0_54 = arith.constant 0 : index
    %c256 = arith.constant 256 : index
    %25 = vector.load %arg7[%c0_53, %c0_54, %c256] : memref<16x16x576xbf16, #tpu.memory_space<vmem>>, vector<16x16x64xbf16>
    tpu.vector_store %arg7[%c0_53, %c0_54, %c256], %24 {strides = array<i32>} : memref<16x16x576xbf16, #tpu.memory_space<vmem>>, vector<16x16x64xbf16>,
    %c0_i32_55 = arith.constant 0 : i32
    %c0_i32_56 = arith.constant 0 : i32
    %c0_i32_57 = arith.constant 0 : i32
    %c0_i32_58 = arith.constant 0 : i32
    %26 = tpu.memref_slice %arg1[%c0_i32_55, %c0_i32_56, %c0_i32_57, %c0_i32_58] : memref<1x16x16x64xbf16, #tpu.memory_space<vmem>> -> memref<1x16x16x64xbf16, #tpu.memory_space<vmem>>
    %27 = tpu.memref_squeeze %26 : memref<1x16x16x64xbf16, #tpu.memory_space<vmem>> -> memref<16x16x64xbf16, #tpu.memory_space<vmem>>
    %c0_59 = arith.constant 0 : index
    %c1_60 = arith.constant 1 : index
    %c0_61 = arith.constant 0 : index
    %28 = vector.load %27[%c0_59, %c1_60, %c0_61] : memref<16x16x64xbf16, #tpu.memory_space<vmem>>, vector<16x15x64xbf16>
    %c0_62 = arith.constant 0 : index
    %c0_63 = arith.constant 0 : index
    %c320 = arith.constant 320 : index
    %29 = vector.load %arg7[%c0_62, %c0_63, %c320] : memref<16x16x576xbf16, #tpu.memory_space<vmem>>, vector<16x15x64xbf16>
    tpu.vector_store %arg7[%c0_62, %c0_63, %c320], %28 {strides = array<i32>} : memref<16x16x576xbf16, #tpu.memory_space<vmem>>, vector<16x15x64xbf16>,
    %c0_i32_64 = arith.constant 0 : i32
    %c0_i32_65 = arith.constant 0 : i32
    %c0_i32_66 = arith.constant 0 : i32
    %c0_i32_67 = arith.constant 0 : i32
    %30 = tpu.memref_slice %arg1[%c0_i32_64, %c0_i32_65, %c0_i32_66, %c0_i32_67] : memref<1x16x16x64xbf16, #tpu.memory_space<vmem>> -> memref<1x16x16x64xbf16, #tpu.memory_space<vmem>>
    %31 = tpu.memref_squeeze %30 : memref<1x16x16x64xbf16, #tpu.memory_space<vmem>> -> memref<16x16x64xbf16, #tpu.memory_space<vmem>>
    %c1_68 = arith.constant 1 : index
    %c0_69 = arith.constant 0 : index
    %c0_70 = arith.constant 0 : index
    %32 = vector.load %31[%c1_68, %c0_69, %c0_70] : memref<16x16x64xbf16, #tpu.memory_space<vmem>>, vector<15x15x64xbf16>
    %c0_71 = arith.constant 0 : index
    %c1_72 = arith.constant 1 : index
    %c384 = arith.constant 384 : index
    %33 = vector.load %arg7[%c0_71, %c1_72, %c384] : memref<16x16x576xbf16, #tpu.memory_space<vmem>>, vector<15x15x64xbf16>
    tpu.vector_store %arg7[%c0_71, %c1_72, %c384], %32 {strides = array<i32>} : memref<16x16x576xbf16, #tpu.memory_space<vmem>>, vector<15x15x64xbf16>,
    %c0_i32_73 = arith.constant 0 : i32
    %c0_i32_74 = arith.constant 0 : i32
    %c0_i32_75 = arith.constant 0 : i32
    %c0_i32_76 = arith.constant 0 : i32
    %34 = tpu.memref_slice %arg1[%c0_i32_73, %c0_i32_74, %c0_i32_75, %c0_i32_76] : memref<1x16x16x64xbf16, #tpu.memory_space<vmem>> -> memref<1x16x16x64xbf16, #tpu.memory_space<vmem>>
    %35 = tpu.memref_squeeze %34 : memref<1x16x16x64xbf16, #tpu.memory_space<vmem>> -> memref<16x16x64xbf16, #tpu.memory_space<vmem>>
    %c1_77 = arith.constant 1 : index
    %c0_78 = arith.constant 0 : index
    %c0_79 = arith.constant 0 : index
    %36 = vector.load %35[%c1_77, %c0_78, %c0_79] : memref<16x16x64xbf16, #tpu.memory_space<vmem>>, vector<15x16x64xbf16>
    %c0_80 = arith.constant 0 : index
    %c0_81 = arith.constant 0 : index
    %c448 = arith.constant 448 : index
    %37 = vector.load %arg7[%c0_80, %c0_81, %c448] : memref<16x16x576xbf16, #tpu.memory_space<vmem>>, vector<15x16x64xbf16>
    tpu.vector_store %arg7[%c0_80, %c0_81, %c448], %36 {strides = array<i32>} : memref<16x16x576xbf16, #tpu.memory_space<vmem>>, vector<15x16x64xbf16>,
    %c0_i32_82 = arith.constant 0 : i32
    %c0_i32_83 = arith.constant 0 : i32
    %c0_i32_84 = arith.constant 0 : i32
    %c0_i32_85 = arith.constant 0 : i32
    %38 = tpu.memref_slice %arg1[%c0_i32_82, %c0_i32_83, %c0_i32_84, %c0_i32_85] : memref<1x16x16x64xbf16, #tpu.memory_space<vmem>> -> memref<1x16x16x64xbf16, #tpu.memory_space<vmem>>
    %39 = tpu.memref_squeeze %38 : memref<1x16x16x64xbf16, #tpu.memory_space<vmem>> -> memref<16x16x64xbf16, #tpu.memory_space<vmem>>
    %c1_86 = arith.constant 1 : index
    %c1_87 = arith.constant 1 : index
    %c0_88 = arith.constant 0 : index
    %40 = vector.load %39[%c1_86, %c1_87, %c0_88] : memref<16x16x64xbf16, #tpu.memory_space<vmem>>, vector<15x15x64xbf16>
    %c0_89 = arith.constant 0 : index
    %c0_90 = arith.constant 0 : index
    %c512 = arith.constant 512 : index
    %41 = vector.load %arg7[%c0_89, %c0_90, %c512] : memref<16x16x576xbf16, #tpu.memory_space<vmem>>, vector<15x15x64xbf16>
    tpu.vector_store %arg7[%c0_89, %c0_90, %c512], %40 {strides = array<i32>} : memref<16x16x576xbf16, #tpu.memory_space<vmem>>, vector<15x15x64xbf16>,
    %c0_91 = arith.constant 0 : index
    %c0_92 = arith.constant 0 : index
    %c0_93 = arith.constant 0 : index
    %42 = vector.load %arg7[%c0_91, %c0_92, %c0_93] : memref<16x16x576xbf16, #tpu.memory_space<vmem>>, vector<16x16x576xbf16>
    %43 = vector.shape_cast %42 : vector<16x16x576xbf16> to vector<256x576xbf16>
    %c0_94 = arith.constant 0 : index
    %c0_95 = arith.constant 0 : index
    %44 = vector.load %arg2[%c0_94, %c0_95] : memref<576x64xbf16, #tpu.memory_space<vmem>>, vector<576x64xbf16>
    %cst_96 = arith.constant dense<0.000000e+00> : vector<256x64xf32>
    %45 = tpu.matmul %43, %44, %cst_96 {dimension_numbers = #tpu.dot_dimension_numbers<[1], [0], [0], [1], [0, 0, 1, 1], [], []>} : vector<256x576xbf16>, vector<576x64xbf16>, vector<256x64xf32> -> vector<256x64xf32>
    %c0_97 = arith.constant 0 : index
    %c0_98 = arith.constant 0 : index
    %46 = vector.load %arg3[%c0_97, %c0_98] : memref<1x64xf32, #tpu.memory_space<vmem>>, vector<1x64xf32>
    %47 = vector.broadcast %46 : vector<1x64xf32> to vector<256x64xf32>
    %48 = arith.addf %45, %47 : vector<256x64xf32>
    %cst_99 = arith.constant 0.000000e+00 : f32
    %49 = vector.broadcast %cst_99 : f32 to vector<256x64xf32>
    %50 = arith.maximumf %48, %49 : vector<256x64xf32>
    %51 = arith.truncf %50 : vector<256x64xf32> to vector<256x64xbf16>
    %52 = vector.shape_cast %51 : vector<256x64xbf16> to vector<16x16x64xbf16>
    %c0_100 = arith.constant 0 : index
    %c0_101 = arith.constant 0 : index
    %c0_102 = arith.constant 0 : index
    %53 = vector.load %arg8[%c0_100, %c0_101, %c0_102] : memref<16x16x64xbf16, #tpu.memory_space<vmem>>, vector<16x16x64xbf16>
    tpu.vector_store %arg8[%c0_100, %c0_101, %c0_102], %52 {strides = array<i32>} : memref<16x16x64xbf16, #tpu.memory_space<vmem>>, vector<16x16x64xbf16>,
    %cst_103 = arith.constant 0.000000e+00 : bf16
    %54 = vector.broadcast %cst_103 : bf16 to vector<1x16x576xbf16>
    %cst_104 = arith.constant 0.000000e+00 : bf16
    %55 = vector.broadcast %cst_104 : bf16 to vector<16x1x576xbf16>
    %c0_105 = arith.constant 0 : index
    %c0_106 = arith.constant 0 : index
    %c0_107 = arith.constant 0 : index
    %56 = vector.load %arg9[%c0_105, %c0_106, %c0_107] : memref<16x16x576xbf16, #tpu.memory_space<vmem>>, vector<1x16x576xbf16>
    tpu.vector_store %arg9[%c0_105, %c0_106, %c0_107], %54 {strides = array<i32>} : memref<16x16x576xbf16, #tpu.memory_space<vmem>>, vector<1x16x576xbf16>,
    %c15_108 = arith.constant 15 : index
    %c0_109 = arith.constant 0 : index
    %c0_110 = arith.constant 0 : index
    %57 = vector.load %arg9[%c15_108, %c0_109, %c0_110] : memref<16x16x576xbf16, #tpu.memory_space<vmem>>, vector<1x16x576xbf16>
    tpu.vector_store %arg9[%c15_108, %c0_109, %c0_110], %54 {strides = array<i32>} : memref<16x16x576xbf16, #tpu.memory_space<vmem>>, vector<1x16x576xbf16>,
    %c0_111 = arith.constant 0 : index
    %c0_112 = arith.constant 0 : index
    %c0_113 = arith.constant 0 : index
    %58 = vector.load %arg9[%c0_111, %c0_112, %c0_113] : memref<16x16x576xbf16, #tpu.memory_space<vmem>>, vector<16x1x576xbf16>
    tpu.vector_store %arg9[%c0_111, %c0_112, %c0_113], %55 {strides = array<i32>} : memref<16x16x576xbf16, #tpu.memory_space<vmem>>, vector<16x1x576xbf16>,
    %c0_114 = arith.constant 0 : index
    %c15_115 = arith.constant 15 : index
    %c0_116 = arith.constant 0 : index
    %59 = vector.load %arg9[%c0_114, %c15_115, %c0_116] : memref<16x16x576xbf16, #tpu.memory_space<vmem>>, vector<16x1x576xbf16>
    tpu.vector_store %arg9[%c0_114, %c15_115, %c0_116], %55 {strides = array<i32>} : memref<16x16x576xbf16, #tpu.memory_space<vmem>>, vector<16x1x576xbf16>,
    %c0_117 = arith.constant 0 : index
    %c0_118 = arith.constant 0 : index
    %c0_119 = arith.constant 0 : index
    %60 = vector.load %arg8[%c0_117, %c0_118, %c0_119] : memref<16x16x64xbf16, #tpu.memory_space<vmem>>, vector<15x15x64xbf16>
    %c1_120 = arith.constant 1 : index
    %c1_121 = arith.constant 1 : index
    %c0_122 = arith.constant 0 : index
    %61 = vector.load %arg9[%c1_120, %c1_121, %c0_122] : memref<16x16x576xbf16, #tpu.memory_space<vmem>>, vector<15x15x64xbf16>
    tpu.vector_store %arg9[%c1_120, %c1_121, %c0_122], %60 {strides = array<i32>} : memref<16x16x576xbf16, #tpu.memory_space<vmem>>, vector<15x15x64xbf16>,
    %c0_123 = arith.constant 0 : index
    %c0_124 = arith.constant 0 : index
    %c0_125 = arith.constant 0 : index
    %62 = vector.load %arg8[%c0_123, %c0_124, %c0_125] : memref<16x16x64xbf16, #tpu.memory_space<vmem>>, vector<15x16x64xbf16>
    %c1_126 = arith.constant 1 : index
    %c0_127 = arith.constant 0 : index
    %c64_128 = arith.constant 64 : index
    %63 = vector.load %arg9[%c1_126, %c0_127, %c64_128] : memref<16x16x576xbf16, #tpu.memory_space<vmem>>, vector<15x16x64xbf16>
    tpu.vector_store %arg9[%c1_126, %c0_127, %c64_128], %62 {strides = array<i32>} : memref<16x16x576xbf16, #tpu.memory_space<vmem>>, vector<15x16x64xbf16>,
    %c0_129 = arith.constant 0 : index
    %c1_130 = arith.constant 1 : index
    %c0_131 = arith.constant 0 : index
    %64 = vector.load %arg8[%c0_129, %c1_130, %c0_131] : memref<16x16x64xbf16, #tpu.memory_space<vmem>>, vector<15x15x64xbf16>
    %c1_132 = arith.constant 1 : index
    %c0_133 = arith.constant 0 : index
    %c128_134 = arith.constant 128 : index
    %65 = vector.load %arg9[%c1_132, %c0_133, %c128_134] : memref<16x16x576xbf16, #tpu.memory_space<vmem>>, vector<15x15x64xbf16>
    tpu.vector_store %arg9[%c1_132, %c0_133, %c128_134], %64 {strides = array<i32>} : memref<16x16x576xbf16, #tpu.memory_space<vmem>>, vector<15x15x64xbf16>,
    %c0_135 = arith.constant 0 : index
    %c0_136 = arith.constant 0 : index
    %c0_137 = arith.constant 0 : index
    %66 = vector.load %arg8[%c0_135, %c0_136, %c0_137] : memref<16x16x64xbf16, #tpu.memory_space<vmem>>, vector<16x15x64xbf16>
    %c0_138 = arith.constant 0 : index
    %c1_139 = arith.constant 1 : index
    %c192_140 = arith.constant 192 : index
    %67 = vector.load %arg9[%c0_138, %c1_139, %c192_140] : memref<16x16x576xbf16, #tpu.memory_space<vmem>>, vector<16x15x64xbf16>
    tpu.vector_store %arg9[%c0_138, %c1_139, %c192_140], %66 {strides = array<i32>} : memref<16x16x576xbf16, #tpu.memory_space<vmem>>, vector<16x15x64xbf16>,
    %c0_141 = arith.constant 0 : index
    %c0_142 = arith.constant 0 : index
    %c0_143 = arith.constant 0 : index
    %68 = vector.load %arg8[%c0_141, %c0_142, %c0_143] : memref<16x16x64xbf16, #tpu.memory_space<vmem>>, vector<16x16x64xbf16>
    %c0_144 = arith.constant 0 : index
    %c0_145 = arith.constant 0 : index
    %c256_146 = arith.constant 256 : index
    %69 = vector.load %arg9[%c0_144, %c0_145, %c256_146] : memref<16x16x576xbf16, #tpu.memory_space<vmem>>, vector<16x16x64xbf16>
    tpu.vector_store %arg9[%c0_144, %c0_145, %c256_146], %68 {strides = array<i32>} : memref<16x16x576xbf16, #tpu.memory_space<vmem>>, vector<16x16x64xbf16>,
    %c0_147 = arith.constant 0 : index
    %c1_148 = arith.constant 1 : index
    %c0_149 = arith.constant 0 : index
    %70 = vector.load %arg8[%c0_147, %c1_148, %c0_149] : memref<16x16x64xbf16, #tpu.memory_space<vmem>>, vector<16x15x64xbf16>
    %c0_150 = arith.constant 0 : index
    %c0_151 = arith.constant 0 : index
    %c320_152 = arith.constant 320 : index
    %71 = vector.load %arg9[%c0_150, %c0_151, %c320_152] : memref<16x16x576xbf16, #tpu.memory_space<vmem>>, vector<16x15x64xbf16>
    tpu.vector_store %arg9[%c0_150, %c0_151, %c320_152], %70 {strides = array<i32>} : memref<16x16x576xbf16, #tpu.memory_space<vmem>>, vector<16x15x64xbf16>,
    %c1_153 = arith.constant 1 : index
    %c0_154 = arith.constant 0 : index
    %c0_155 = arith.constant 0 : index
    %72 = vector.load %arg8[%c1_153, %c0_154, %c0_155] : memref<16x16x64xbf16, #tpu.memory_space<vmem>>, vector<15x15x64xbf16>
    %c0_156 = arith.constant 0 : index
    %c1_157 = arith.constant 1 : index
    %c384_158 = arith.constant 384 : index
    %73 = vector.load %arg9[%c0_156, %c1_157, %c384_158] : memref<16x16x576xbf16, #tpu.memory_space<vmem>>, vector<15x15x64xbf16>
    tpu.vector_store %arg9[%c0_156, %c1_157, %c384_158], %72 {strides = array<i32>} : memref<16x16x576xbf16, #tpu.memory_space<vmem>>, vector<15x15x64xbf16>,
    %c1_159 = arith.constant 1 : index
    %c0_160 = arith.constant 0 : index
    %c0_161 = arith.constant 0 : index
    %74 = vector.load %arg8[%c1_159, %c0_160, %c0_161] : memref<16x16x64xbf16, #tpu.memory_space<vmem>>, vector<15x16x64xbf16>
    %c0_162 = arith.constant 0 : index
    %c0_163 = arith.constant 0 : index
    %c448_164 = arith.constant 448 : index
    %75 = vector.load %arg9[%c0_162, %c0_163, %c448_164] : memref<16x16x576xbf16, #tpu.memory_space<vmem>>, vector<15x16x64xbf16>
    tpu.vector_store %arg9[%c0_162, %c0_163, %c448_164], %74 {strides = array<i32>} : memref<16x16x576xbf16, #tpu.memory_space<vmem>>, vector<15x16x64xbf16>,
    %c1_165 = arith.constant 1 : index
    %c1_166 = arith.constant 1 : index
    %c0_167 = arith.constant 0 : index
    %76 = vector.load %arg8[%c1_165, %c1_166, %c0_167] : memref<16x16x64xbf16, #tpu.memory_space<vmem>>, vector<15x15x64xbf16>
    %c0_168 = arith.constant 0 : index
    %c0_169 = arith.constant 0 : index
    %c512_170 = arith.constant 512 : index
    %77 = vector.load %arg9[%c0_168, %c0_169, %c512_170] : memref<16x16x576xbf16, #tpu.memory_space<vmem>>, vector<15x15x64xbf16>
    tpu.vector_store %arg9[%c0_168, %c0_169, %c512_170], %76 {strides = array<i32>} : memref<16x16x576xbf16, #tpu.memory_space<vmem>>, vector<15x15x64xbf16>,
    %c0_171 = arith.constant 0 : index
    %c0_172 = arith.constant 0 : index
    %c0_173 = arith.constant 0 : index
    %78 = vector.load %arg9[%c0_171, %c0_172, %c0_173] : memref<16x16x576xbf16, #tpu.memory_space<vmem>>, vector<16x16x576xbf16>
    %79 = vector.shape_cast %78 : vector<16x16x576xbf16> to vector<256x576xbf16>
    %c0_174 = arith.constant 0 : index
    %c0_175 = arith.constant 0 : index
    %80 = vector.load %arg4[%c0_174, %c0_175] : memref<576x64xbf16, #tpu.memory_space<vmem>>, vector<576x64xbf16>
    %cst_176 = arith.constant dense<0.000000e+00> : vector<256x64xf32>
    %81 = tpu.matmul %79, %80, %cst_176 {dimension_numbers = #tpu.dot_dimension_numbers<[1], [0], [0], [1], [0, 0, 1, 1], [], []>} : vector<256x576xbf16>, vector<576x64xbf16>, vector<256x64xf32> -> vector<256x64xf32>
    %c0_177 = arith.constant 0 : index
    %c0_178 = arith.constant 0 : index
    %82 = vector.load %arg5[%c0_177, %c0_178] : memref<1x64xf32, #tpu.memory_space<vmem>>, vector<1x64xf32>
    %83 = vector.broadcast %82 : vector<1x64xf32> to vector<256x64xf32>
    %84 = arith.addf %81, %83 : vector<256x64xf32>
    %c0_179 = arith.constant 0 : index
    %c0_180 = arith.constant 0 : index
    %c0_181 = arith.constant 0 : index
    %c0_182 = arith.constant 0 : index
    %85 = vector.load %arg1[%c0_179, %c0_180, %c0_181, %c0_182] : memref<1x16x16x64xbf16, #tpu.memory_space<vmem>>, vector<1x16x16x64xbf16>
    %86 = vector.shape_cast %85 : vector<1x16x16x64xbf16> to vector<16x16x64xbf16>
    %87 = vector.shape_cast %86 : vector<16x16x64xbf16> to vector<256x64xbf16>
    %88 = arith.extf %87 : vector<256x64xbf16> to vector<256x64xf32>
    %89 = arith.addf %84, %88 : vector<256x64xf32>
    %cst_183 = arith.constant 0.000000e+00 : f32
    %90 = vector.broadcast %cst_183 : f32 to vector<256x64xf32>
    %91 = arith.maximumf %89, %90 : vector<256x64xf32>
    %92 = vector.shape_cast %91 : vector<256x64xf32> to vector<16x16x64xf32>
    %93 = arith.truncf %92 : vector<16x16x64xf32> to vector<16x16x64xbf16>
    %c0_184 = arith.constant 0 : index
    %c0_185 = arith.constant 0 : index
    %c0_186 = arith.constant 0 : index
    %c0_187 = arith.constant 0 : index
    %94 = vector.load %arg6[%c0_184, %c0_185, %c0_186, %c0_187] : memref<1x16x16x64xbf16, #tpu.memory_space<vmem>>, vector<1x16x16x64xbf16>
    %95 = vector.shape_cast %94 : vector<1x16x16x64xbf16> to vector<16x16x64xbf16>
    %96 = vector.shape_cast %93 : vector<16x16x64xbf16> to vector<1x16x16x64xbf16>
    tpu.vector_store %arg6[%c0_184, %c0_185, %c0_186, %c0_187], %96 {strides = array<i32>} : memref<1x16x16x64xbf16, #tpu.memory_space<vmem>>, vector<1x16x16x64xbf16>,
    return
  }
  func.func @transform_0(%arg0: i32) -> (i32, i32, i32, i32) {
    %c0_i32 = arith.constant 0 : i32
    %c0_i32_0 = arith.constant 0 : i32
    %c0_i32_1 = arith.constant 0 : i32
    %c0_i32_2 = arith.constant 0 : i32
    return %arg0, %c0_i32, %c0_i32_0, %c0_i32_1 : i32, i32, i32, i32
  }
  func.func @transform_1(%arg0: i32) -> (i32, i32) {
    %c0_i32 = arith.constant 0 : i32
    %c0_i32_0 = arith.constant 0 : i32
    %c0_i32_1 = arith.constant 0 : i32
    return %c0_i32, %c0_i32_0 : i32, i32
  }
  func.func @transform_2(%arg0: i32) -> (i32, i32) {
    %c0_i32 = arith.constant 0 : i32
    %c0_i32_0 = arith.constant 0 : i32
    %c0_i32_1 = arith.constant 0 : i32
    return %c0_i32, %c0_i32_0 : i32, i32
  }
  func.func @transform_3(%arg0: i32) -> (i32, i32) {
    %c0_i32 = arith.constant 0 : i32
    %c0_i32_0 = arith.constant 0 : i32
    %c0_i32_1 = arith.constant 0 : i32
    return %c0_i32, %c0_i32_0 : i32, i32
  }
  func.func @transform_4(%arg0: i32) -> (i32, i32) {
    %c0_i32 = arith.constant 0 : i32
    %c0_i32_0 = arith.constant 0 : i32
    %c0_i32_1 = arith.constant 0 : i32
    return %c0_i32, %c0_i32_0 : i32, i32
  }
  func.func @transform_5(%arg0: i32) -> (i32, i32, i32, i32) {
    %c0_i32 = arith.constant 0 : i32
    %c0_i32_0 = arith.constant 0 : i32
    %c0_i32_1 = arith.constant 0 : i32
    %c0_i32_2 = arith.constant 0 : i32
    return %arg0, %c0_i32, %c0_i32_0, %c0_i32_1 : i32, i32, i32, i32
  }
}

</mosaic_0001>

<llo_original>
// kernel: basic_block_forward.1
$region0: #{basic_block_forward.1}
  #allocation0 [shape = 'u32[]', space=smem, size = 0x4, offset = 0x4, fixed_abs, tag = 'smem constant byte address 0x4 - core index']
  #allocation1 [shape = 'u32[144,128]{1,0:T(1,128)}', space=vmem, size = 0x12000, scoped, tag = 'internal scratch']
  #allocation2 [shape = 'bf16[16,16,576]{2,1,0:T(16,128)(2,1)}', space=vmem, size = 0x50000, scoped, tag = 'scratch operand']
  #allocation3 [shape = 'bf16[16,16,64]{2,1,0:T(16,128)(2,1)}', space=vmem, size = 0x10000, scoped, tag = 'scratch operand']
  #allocation4 [shape = 'bf16[16,16,576]{2,1,0:T(16,128)(2,1)}', space=vmem, size = 0x50000, scoped, tag = 'scratch operand']
  %s0 = inlined_call_operand.hbm [shape: bf16[2,16,16,64], index: 0, kind: input, shape index: {}]
  %s1 = inlined_call_operand.hbm [shape: bf16[576,64], index: 1, kind: input, shape index: {}]
  %s2 = inlined_call_operand.hbm [shape: f32[1,64], index: 2, kind: input, shape index: {}]
  %s3 = inlined_call_operand.hbm [shape: bf16[576,64], index: 3, kind: input, shape index: {}]
  %s4 = inlined_call_operand.hbm [shape: f32[1,64], index: 4, kind: input, shape index: {}]
  %s5 = inlined_call_operand.hbm [shape: bf16[2,16,16,64], index: 5, kind: output, shape index: {}]
  %s6 = sld [smem:[#allocation0]]
  $region73: #{basic_block_forward.1} parent=0
    _
  %s8 = ssub.s32 1, %s6
  %s9 = scalar_select 0, %s8, %s6
  $region1: #{basic_block_forward.1} parent=0
    #allocation5 [shape = 'u8[131072]{0}', space=vmem, size = 0x20000, scoped, tag = 'input window, operand 0']
    #allocation6 [shape = 's32[2]{0}', space=sflag, size = 0x8, scoped, tag = 'scoped memory for basic_block_forward.1']
    #allocation7 [shape = 's32[2]{0}', space=sflag, size = 0x8, scoped, tag = 'scoped memory for basic_block_forward.1']
    #allocation8 [shape = 'u8[147456]{0}', space=vmem, size = 0x24000, scoped, tag = 'input window, operand 1, single buffered']
    #allocation9 [shape = 's32[1]{0}', space=sflag, size = 0x4, scoped, tag = 'scoped memory for basic_block_forward.1']
    #allocation10 [shape = 'u8[512]{0}', space=vmem, size = 0x400, scoped, tag = 'input window, operand 2, single buffered']
    #allocation11 [shape = 'u8[147456]{0}', space=vmem, size = 0x24000, scoped, tag = 'input window, operand 3, single buffered']
    #allocation12 [shape = 's32[1]{0}', space=sflag, size = 0x4, scoped, tag = 'scoped memory for basic_block_forward.1']
    #allocation13 [shape = 'u8[512]{0}', space=vmem, size = 0x400, scoped, tag = 'input window, operand 4, single buffered']
    #allocation14 [shape = 'u8[131072]{0}', space=vmem, size = 0x20000, scoped, tag = 'output window, operand 0']
    %10 = vsyncpa [#allocation6], 0
    %s11 = scalar_lea.sflag [#allocation6], 1
    %12 = vsyncpa %s11, 0
    %13 = vsyncpa [#allocation9], 0
    %14 = vsyncpa [#allocation12], 0
    %15 = vsyncpa [#allocation7], 0
    %s16 = scalar_lea.sflag [#allocation7], 1
    %17 = vsyncpa %s16, 0
    loop: start=0, step=1, limit=4
    $region2: #{basic_block_forward.1} parent=1 // loop_pre_header
      _
    $region3: #{basic_block_forward.1} parent=1 // loop_header
      %s19 = sphi 0, %s23
      %p20 = scmp.ge.s32.totalorder %s19, 4
      %s29 = sphi 0, %s31
      %s32 = sphi 0, %s29
      %s33 = sphi 0, %s32
      %s49 = sphi 0, %s33
      %s53 = sphi 0, %s53
      %s55 = sphi 0, %s53
      %s56 = sphi 0, %s55
      %s70 = sphi 0, %s56
      %s74 = sphi 0, %s74
      %s76 = sphi 0, %s74
      %s77 = sphi 0, %s76
      %s91 = sphi 0, %s77
      %s95 = sphi 0, %s95
      %s97 = sphi 0, %s95
      %s98 = sphi 0, %s97
      %s112 = sphi 0, %s98
      %s116 = sphi 0, %s116
      %s118 = sphi 0, %s116
      %s119 = sphi 0, %s118
      %s133 = sphi 0, %s119
      %s139 = sphi 0, %s141
      %s142 = sphi 0, %s139
      %s143 = sphi 0, %s142
      %s159 = sphi 0, %s143
    $region4: #{basic_block_forward.1} parent=1 // loop_header_branch
      %22 = sbr.rel (%p20) target = $region8
    $region5: #{basic_block_forward.1} parent=1 // loop_body
      %s24 = ssub.s32 %s19, 1
      %s25 = ssub.s32 %s19, 2
      %s26 = sadd.s32 %s19, 1
      %s27 = ssub.s32 %s19, %s26
      %p28 = scmp.eq.s32.totalorder %s27, 0
      %s30 = sadd.s32 %s29, 1
      %s31 = scalar_select %p28, %s29, %s30
      %p34 = pneg %p28
      %p35 = scmp.eq.s32.totalorder %s19, 1
      %p36 = por %p34, %p35
      %p37 = scmp.ne.s32.totalorder %s29, %s32
      %p38 = scmp.eq.s32.totalorder %s19, 0
      %p39 = por %p37, %p38
      %p40 = scmp.ne.s32.totalorder %s29, %s32
      %p41 = scmp.eq.s32.totalorder %s24, 1
      %p42 = por %p40, %p41
      %p43 = scmp.ne.s32.totalorder %s32, %s33
      %p44 = scmp.eq.s32.totalorder %s24, 0
      %p45 = por %p43, %p44
      %p46 = scmp.ne.s32.totalorder %s32, %s33
      %p47 = scmp.eq.s32.totalorder %s25, 1
      %p48 = por %p46, %p47
      %p50 = scmp.ne.s32.totalorder %s33, %s49
      %p51 = scmp.eq.s32.totalorder %s25, 0
      %p52 = por %p50, %p51
      %s54 = sadd.s32 %s53, 1
      %p57 = scmp.eq.s32.totalorder %s19, 1
      %p58 = scmp.ne.s32.totalorder %s53, %s55
      %p59 = scmp.eq.s32.totalorder %s19, 0
      %p60 = por %p58, %p59
      %p61 = scmp.ne.s32.totalorder %s53, %s55
      %p62 = scmp.eq.s32.totalorder %s24, 1
      %p63 = por %p61, %p62
      %p64 = scmp.ne.s32.totalorder %s55, %s56
      %p65 = scmp.eq.s32.totalorder %s24, 0
      %p66 = por %p64, %p65
      %p67 = scmp.ne.s32.totalorder %s55, %s56
      %p68 = scmp.eq.s32.totalorder %s25, 1
      %p69 = por %p67, %p68
      %p71 = scmp.ne.s32.totalorder %s56, %s70
      %p72 = scmp.eq.s32.totalorder %s25, 0
      %p73 = por %p71, %p72
      %s75 = sadd.s32 %s74, 1
      %p78 = scmp.eq.s32.totalorder %s19, 1
      %p79 = scmp.ne.s32.totalorder %s74, %s76
      %p80 = scmp.eq.s32.totalorder %s19, 0
      %p81 = por %p79, %p80
      %p82 = scmp.ne.s32.totalorder %s74, %s76
      %p83 = scmp.eq.s32.totalorder %s24, 1
      %p84 = por %p82, %p83
      %p85 = scmp.ne.s32.totalorder %s76, %s77
      %p86 = scmp.eq.s32.totalorder %s24, 0
      %p87 = por %p85, %p86
      %p88 = scmp.ne.s32.totalorder %s76, %s77
      %p89 = scmp.eq.s32.totalorder %s25, 1
      %p90 = por %p88, %p89
      %p92 = scmp.ne.s32.totalorder %s77, %s91
      %p93 = scmp.eq.s32.totalorder %s25, 0
      %p94 = por %p92, %p93
      %s96 = sadd.s32 %s95, 1
      %p99 = scmp.eq.s32.totalorder %s19, 1
      %p100 = scmp.ne.s32.totalorder %s95, %s97
      %p101 = scmp.eq.s32.totalorder %s19, 0
      %p102 = por %p100, %p101
      %p103 = scmp.ne.s32.totalorder %s95, %s97
      %p104 = scmp.eq.s32.totalorder %s24, 1
      %p105 = por %p103, %p104
      %p106 = scmp.ne.s32.totalorder %s97, %s98
      %p107 = scmp.eq.s32.totalorder %s24, 0
      %p108 = por %p106, %p107
      %p109 = scmp.ne.s32.totalorder %s97, %s98
      %p110 = scmp.eq.s32.totalorder %s25, 1
      %p111 = por %p109, %p110
      %p113 = scmp.ne.s32.totalorder %s98, %s112
      %p114 = scmp.eq.s32.totalorder %s25, 0
      %p115 = por %p113, %p114
      %s117 = sadd.s32 %s116, 1
      %p120 = scmp.eq.s32.totalorder %s19, 1
      %p121 = scmp.ne.s32.totalorder %s116, %s118
      %p122 = scmp.eq.s32.totalorder %s19, 0
      %p123 = por %p121, %p122
      %p124 = scmp.ne.s32.totalorder %s116, %s118
      %p125 = scmp.eq.s32.totalorder %s24, 1
      %p126 = por %p124, %p125
      %p127 = scmp.ne.s32.totalorder %s118, %s119
      %p128 = scmp.eq.s32.totalorder %s24, 0
      %p129 = por %p127, %p128
      %p130 = scmp.ne.s32.totalorder %s118, %s119
      %p131 = scmp.eq.s32.totalorder %s25, 1
      %p132 = por %p130, %p131
      %p134 = scmp.ne.s32.totalorder %s119, %s133
      %p135 = scmp.eq.s32.totalorder %s25, 0
      %p136 = por %p134, %p135
      %s137 = ssub.s32 %s19, %s26
      %p138 = scmp.eq.s32.totalorder %s137, 0
      %s140 = sadd.s32 %s139, 1
      %s141 = scalar_select %p138, %s139, %s140
      %p144 = pneg %p138
      %p145 = scmp.eq.s32.totalorder %s19, 1
      %p146 = por %p144, %p145
      %p147 = scmp.ne.s32.totalorder %s139, %s142
      %p148 = scmp.eq.s32.totalorder %s19, 0
      %p149 = por %p147, %p148
      %p150 = scmp.ne.s32.totalorder %s139, %s142
      %p151 = scmp.eq.s32.totalorder %s24, 1
      %p152 = por %p150, %p151
      %p153 = scmp.ne.s32.totalorder %s142, %s143
      %p154 = scmp.eq.s32.totalorder %s24, 0
      %p155 = por %p153, %p154
      %p156 = scmp.ne.s32.totalorder %s142, %s143
      %p157 = scmp.eq.s32.totalorder %s25, 1
      %p158 = por %p156, %p157
      %p160 = scmp.ne.s32.totalorder %s143, %s159
      %p161 = scmp.eq.s32.totalorder %s25, 0
      %p162 = por %p160, %p161
      %p163 = scmp.le.s32.totalorder 1, %s19
      %p164 = scmp.lt.s32.totalorder %s19, 3
      %p165 = pnand %p163, %p164
      %p166 = pneg %p165
      // Predicated region
      $region9: #{basic_block_forward.1} parent=5 // pred_check
        _
      $region10: #{basic_block_forward.1} parent=5 // pred_check_branch
        %168 = sbr.rel (%p165) target = $region12
      $region11: #{basic_block_forward.1} parent=5 // pred_region
        %s169 = ssub.s32 %s19, 1
        // Predicated region
        $region13: #{basic_block_forward.1} parent=11 // pred_check
          %p170 = pneg %p66
        $region14: #{basic_block_forward.1} parent=11 // pred_check_branch
          %172 = sbr.rel (%p170) target = $region16
        $region15: #{basic_block_forward.1} parent=11 // pred_region
          %s174 = ssub.s32 4608, 4608
          %175 = vsyncadd [#allocation9], %s174
          %s176 = sshll.u32 [#allocation8], 4
          %s177 = int_to_ptr.vmem [resolvable:$true] %s176
          %182 = dma.hbm_to_vmem [thread:$0]  %s1, 4608, %s177, [#allocation9], 64, 64, 4
        $region16: #{basic_block_forward.1} parent=11 // pred_fallthru
          _
        // Predicated region
        $region17: #{basic_block_forward.1} parent=11 // pred_check
          %p183 = pneg %p87
        $region18: #{basic_block_forward.1} parent=11 // pred_check_branch
          %185 = sbr.rel (%p183) target = $region20
        $region19: #{basic_block_forward.1} parent=11 // pred_region
          %s187 = ssub.s32 16, 16
          %188 = vsyncadd [#allocation9], %s187
          %s190 = sshll.u32 [#allocation10], 4
          %s191 = int_to_ptr.vmem [resolvable:$true] %s190
          %193 = dma.hbm_to_vmem [thread:$0]  %s2, 16, %s191, [#allocation9]
        $region20: #{basic_block_forward.1} parent=11 // pred_fallthru
          _
        // Predicated region
        $region21: #{basic_block_forward.1} parent=11 // pred_check
          %p194 = pneg %p108
        $region22: #{basic_block_forward.1} parent=11 // pred_check_branch
          %196 = sbr.rel (%p194) target = $region24
        $region23: #{basic_block_forward.1} parent=11 // pred_region
          %s198 = ssub.s32 4608, 4608
          %199 = vsyncadd [#allocation12], %s198
          %s200 = sshll.u32 [#allocation11], 4
          %s201 = int_to_ptr.vmem [resolvable:$true] %s200
          %206 = dma.hbm_to_vmem [thread:$0]  %s3, 4608, %s201, [#allocation12], 64, 64, 4
        $region24: #{basic_block_forward.1} parent=11 // pred_fallthru
          _
        // Predicated region
        $region25: #{basic_block_forward.1} parent=11 // pred_check
          %p207 = pneg %p129
        $region26: #{basic_block_forward.1} parent=11 // pred_check_branch
          %209 = sbr.rel (%p207) target = $region28
        $region27: #{basic_block_forward.1} parent=11 // pred_region
          %s211 = ssub.s32 16, 16
          %212 = vsyncadd [#allocation12], %s211
          %s214 = sshll.u32 [#allocation13], 4
          %s215 = int_to_ptr.vmem [resolvable:$true] %s214
          %217 = dma.hbm_to_vmem [thread:$0]  %s4, 16, %s215, [#allocation12]
        $region28: #{basic_block_forward.1} parent=11 // pred_fallthru
          _
      $region12: #{basic_block_forward.1} parent=5 // pred_fallthru
        _
      %p218 = scmp.lt.s32.totalorder %s19, 2
      // Predicated region
      $region29: #{basic_block_forward.1} parent=5 // pred_check
        %p219 = pneg %p218
      $region30: #{basic_block_forward.1} parent=5 // pred_check_branch
        %221 = sbr.rel (%p219) target = $region32
      $region31: #{basic_block_forward.1} parent=5 // pred_region
        // Predicated region
        $region33: #{basic_block_forward.1} parent=31 // pred_check
          %p222 = pneg %p39
        $region34: #{basic_block_forward.1} parent=31 // pred_check_branch
          %224 = sbr.rel (%p222) target = $region36
        $region35: #{basic_block_forward.1} parent=31 // pred_region
          %s225 = sand.u32 %s29, 1
          %s226 = scalar_lea.sflag [#allocation6], %s225
          %s227 = sand.u32 %s29, 1
          %s228 = smul.addr %s227, 128
          %s229 = scalar_lea.vmem [#allocation5], %s228
          %s231 = ssub.s32 2048, 2048
          %232 = vsyncadd %s226, %s231
          %s233 = smul.addr %s19, 32
          %s234 = smul.addr %s233, 64
          %s235 = scalar_lea.hbm %s0, %s234
          %s236 = sshll.u32 %s229, 4
          %s237 = int_to_ptr.vmem [resolvable:$true] %s236
          %242 = dma.hbm_to_vmem [thread:$0]  %s235, 2048, %s237, %s226, 64, 64, 4
        $region36: #{basic_block_forward.1} parent=31 // pred_fallthru
          _
      $region32: #{basic_block_forward.1} parent=5 // pred_fallthru
        _
      %p243 = scmp.le.s32.totalorder 1, %s19
      %p244 = scmp.lt.s32.totalorder %s19, 3
      %p245 = pnand %p243, %p244
      %p246 = pneg %p245
      // Predicated region
      $region37: #{basic_block_forward.1} parent=5 // pred_check
        _
      $region38: #{basic_block_forward.1} parent=5 // pred_check_branch
        %248 = sbr.rel (%p245) target = $region40
      $region39: #{basic_block_forward.1} parent=5 // pred_region
        %s249 = ssub.s32 %s19, 1
        %s250 = sand.u32 %s32, 1
        %s251 = scalar_lea.sflag [#allocation6], %s250
        %s252 = sand.u32 %s32, 1
        %s253 = smul.addr %s252, 128
        %s254 = scalar_lea.vmem [#allocation5], %s253
        // Predicated region
        $region41: #{basic_block_forward.1} parent=39 // pred_check
          %p255 = pneg %p45
        $region42: #{basic_block_forward.1} parent=39 // pred_check_branch
          %257 = sbr.rel (%p255) target = $region44
        $region43: #{basic_block_forward.1} parent=39 // pred_region
          %258 = dma.done %s251, 2048
        $region44: #{basic_block_forward.1} parent=39 // pred_fallthru
          _
        // Predicated region
        $region45: #{basic_block_forward.1} parent=39 // pred_check
          %p259 = pneg %p66
        $region46: #{basic_block_forward.1} parent=39 // pred_check_branch
          %261 = sbr.rel (%p259) target = $region48
        $region47: #{basic_block_forward.1} parent=39 // pred_region
          %262 = dma.done [#allocation9], 4608
        $region48: #{basic_block_forward.1} parent=39 // pred_fallthru
          _
        // Predicated region
        $region49: #{basic_block_forward.1} parent=39 // pred_check
          %p263 = pneg %p87
        $region50: #{basic_block_forward.1} parent=39 // pred_check_branch
          %265 = sbr.rel (%p263) target = $region52
        $region51: #{basic_block_forward.1} parent=39 // pred_region
          %266 = dma.done [#allocation9], 16
        $region52: #{basic_block_forward.1} parent=39 // pred_fallthru
          _
        // Predicated region
        $region53: #{basic_block_forward.1} parent=39 // pred_check
          %p267 = pneg %p108
        $region54: #{basic_block_forward.1} parent=39 // pred_check_branch
          %269 = sbr.rel (%p267) target = $region56
        $region55: #{basic_block_forward.1} parent=39 // pred_region
          %270 = dma.done [#allocation12], 4608
        $region56: #{basic_block_forward.1} parent=39 // pred_fallthru
          _
        // Predicated region
        $region57: #{basic_block_forward.1} parent=39 // pred_check
          %p271 = pneg %p129
        $region58: #{basic_block_forward.1} parent=39 // pred_check_branch
          %273 = sbr.rel (%p271) target = $region60
        $region59: #{basic_block_forward.1} parent=39 // pred_region
          %274 = dma.done [#allocation12], 16
        $region60: #{basic_block_forward.1} parent=39 // pred_fallthru
          _
        %s275 = sand.u32 %s32, 1
        %s276 = scalar_lea.sflag [#allocation6], %s275
        %s277 = sand.u32 %s32, 1
        %s278 = smul.addr %s277, 128
        %s279 = scalar_lea.vmem [#allocation5], %s278
        %p280 = pneg %p45
        %p281 = pneg %p42
        %p282 = pneg %p66
        %p283 = pneg %p63
        %p284 = pneg %p87
        %p285 = pneg %p84
        %p286 = pneg %p108
        %p287 = pneg %p105
        %p288 = pneg %p129
        %p289 = pneg %p126
        %p290 = pneg %p155
        %p291 = pneg %p152
        %s292 = sand.u32 %s142, 1
        %s293 = scalar_lea.sflag [#allocation7], %s292
        %s294 = sand.u32 %s142, 1
        %s295 = smul.addr %s294, 128
        %s296 = scalar_lea.vmem [#allocation14], %s295
        %298 = vst [vmem:[#allocation2] sm:$0xff] 0
        %299 = vst [vmem:[#allocation2 + $0x8] sm:$0xff] 0
        %300 = vst [vmem:[#allocation2 + $0x10] sm:$0xff] 0
        %301 = vst [vmem:[#allocation2 + $0x18] sm:$0xff] 0
        %vm302 = vcmask 523264
        %303 = vst.msk [vmem:[#allocation2 + $0x20] sm:$0xff] %vm302, 0
        %s304 = scalar_lea.vmem [#allocation2], 600
        %305 = vst [vmem:[%s304] sm:$0xff] 0
        %306 = vst [vmem:[%s304 + $0x8] sm:$0xff] 0
        %307 = vst [vmem:[%s304 + $0x10] sm:$0xff] 0
        %308 = vst [vmem:[%s304 + $0x18] sm:$0xff] 0
        %309 = vst.msk [vmem:[%s304 + $0x20] sm:$0xff] %vm302, 0
        %vm310 = vcmask 1040384
        %vm311 = vsmask.f32 256
        %vm312 = vmand %vm310, %vm311
        %v313 = vld [vmem:[#allocation2] sm:$0x1]
        %v314 = vsel %vm312, 0, %v313
        %315 = vst [vmem:[#allocation2] sm:$0x1] %v314
        %v316 = vld [vmem:[#allocation2 + $0x8] sm:$0x1]
        %v317 = vsel %vm312, 0, %v316
        %318 = vst [vmem:[#allocation2 + $0x8] sm:$0x1] %v317
        %v319 = vld [vmem:[#allocation2 + $0x10] sm:$0x1]
        %v320 = vsel %vm312, 0, %v319
        %321 = vst [vmem:[#allocation2 + $0x10] sm:$0x1] %v320
        %v322 = vld [vmem:[#allocation2 + $0x18] sm:$0x1]
        %v323 = vsel %vm312, 0, %v322
        %324 = vst [vmem:[#allocation2 + $0x18] sm:$0x1] %v323
        %vm325 = vcmask 516096
        %vm326 = vmand %vm325, %vm311
        %v327 = vld [vmem:[#allocation2 + $0x20] sm:$0x1]
        %v328 = vsel %vm326, 0, %v327
        %329 = vst [vmem:[#allocation2 + $0x20] sm:$0x1] %v328
        %v330 = vld [vmem:[#allocation2 + $0x28] sm:$0x1]
        %v331 = vsel %vm312, 0, %v330
        %332 = vst [vmem:[#allocation2 + $0x28] sm:$0x1] %v331
        %v333 = vld [vmem:[#allocation2 + $0x30] sm:$0x1]
        %v334 = vsel %vm312, 0, %v333
        %335 = vst [vmem:[#allocation2 + $0x30] sm:$0x1] %v334
        %v336 = vld [vmem:[#allocation2 + $0x38] sm:$0x1]
        %v337 = vsel %vm312, 0, %v336
        %338 = vst [vmem:[#allocation2 + $0x38] sm:$0x1] %v337
        %v339 = vld [vmem:[#allocation2 + $0x40] sm:$0x1]
        %v340 = vsel %vm312, 0, %v339
        %341 = vst [vmem:[#allocation2 + $0x40] sm:$0x1] %v340
        %v342 = vld [vmem:[#allocation2 + $0x48] sm:$0x1]
        %v343 = vsel %vm326, 0, %v342
        %344 = vst [vmem:[#allocation2 + $0x48] sm:$0x1] %v343
        %v345 = vld [vmem:[#allocation2 + $0x50] sm:$0x1]
        %v346 = vsel %vm312, 0, %v345
        %347 = vst [vmem:[#allocation2 + $0x50] sm:$0x1] %v346
        %v348 = vld [vmem:[#allocation2 + $0x58] sm:$0x1]
        %v349 = vsel %vm312, 0, %v348
        %350 = vst [vmem:[#allocation2 + $0x58] sm:$0x1] %v349
        %v351 = vld [vmem:[#allocation2 + $0x60] sm:$0x1]
        %v352 = vsel %vm312, 0, %v351
        %353 = vst [vmem:[#allocation2 + $0x60] sm:$0x1] %v352
        %v354 = vld [vmem:[#allocation2 + $0x68] sm:$0x1]
        %v355 = vsel %vm312, 0, %v354
        %356 = vst [vmem:[#allocation2 + $0x68] sm:$0x1] %v355
        %v357 = vld [vmem:[#allocation2 + $0x70] sm:$0x1]
        %v358 = vsel %vm326, 0, %v357
        %359 = vst [vmem:[#allocation2 + $0x70] sm:$0x1] %v358
        %v360 = vld [vmem:[#allocation2 + $0x78] sm:$0x1]
        %v361 = vsel %vm312, 0, %v360
        %362 = vst [vmem:[#allocation2 + $0x78] sm:$0x1] %v361
        %v363 = vld [vmem:[#allocation2 + $0x80] sm:$0x1]
        %v364 = vsel %vm312, 0, %v363
        %365 = vst [vmem:[#allocation2 + $0x80] sm:$0x1] %v364
        %v366 = vld [vmem:[#allocation2 + $0x88] sm:$0x1]
        %v367 = vsel %vm312, 0, %v366
        %368 = vst [vmem:[#allocation2 + $0x88] sm:$0x1] %v367
        %v369 = vld [vmem:[#allocation2 + $0x90] sm:$0x1]
        %v370 = vsel %vm312, 0, %v369
        %371 = vst [vmem:[#allocation2 + $0x90] sm:$0x1] %v370
        %v372 = vld [vmem:[#allocation2 + $0x98] sm:$0x1]
        %v373 = vsel %vm326, 0, %v372
        %374 = vst [vmem:[#allocation2 + $0x98] sm:$0x1] %v373
        %v375 = vld [vmem:[#allocation2 + $0xa0] sm:$0x1]
        %v376 = vsel %vm312, 0, %v375
        %377 = vst [vmem:[#allocation2 + $0xa0] sm:$0x1] %v376
        %v378 = vld [vmem:[#allocation2 + $0xa8] sm:$0x1]
        %v379 = vsel %vm312, 0, %v378
        %380 = vst [vmem:[#allocation2 + $0xa8] sm:$0x1] %v379
        %v381 = vld [vmem:[#allocation2 + $0xb0] sm:$0x1]
        %v382 = vsel %vm312, 0, %v381
        %383 = vst [vmem:[#allocation2 + $0xb0] sm:$0x1] %v382
        %v384 = vld [vmem:[#allocation2 + $0xb8] sm:$0x1]
        %v385 = vsel %vm312, 0, %v384
        %386 = vst [vmem:[#allocation2 + $0xb8] sm:$0x1] %v385
        %v387 = vld [vmem:[#allocation2 + $0xc0] sm:$0x1]
        %v388 = vsel %vm326, 0, %v387
        %389 = vst [vmem:[#allocation2 + $0xc0] sm:$0x1] %v388
        %v390 = vld [vmem:[#allocation2 + $0xc8] sm:$0x1]
        %v391 = vsel %vm312, 0, %v390
        %392 = vst [vmem:[#allocation2 + $0xc8] sm:$0x1] %v391
        %v393 = vld [vmem:[#allocation2 + $0xd0] sm:$0x1]
        %v394 = vsel %vm312, 0, %v393
        %395 = vst [vmem:[#allocation2 + $0xd0] sm:$0x1] %v394
        %v396 = vld [vmem:[#allocation2 + $0xd8] sm:$0x1]
        %v397 = vsel %vm312, 0, %v396
        %398 = vst [vmem:[#allocation2 + $0xd8] sm:$0x1] %v397
        %v399 = vld [vmem:[#allocation2 + $0xe0] sm:$0x1]
        %v400 = vsel %vm312, 0, %v399
        %401 = vst [vmem:[#allocation2 + $0xe0] sm:$0x1] %v400
        %v402 = vld [vmem:[#allocation2 + $0xe8] sm:$0x1]
        %v403 = vsel %vm326, 0, %v402
        %404 = vst [vmem:[#allocation2 + $0xe8] sm:$0x1] %v403
        %v405 = vld [vmem:[#allocation2 + $0xf0] sm:$0x1]
        %v406 = vsel %vm312, 0, %v405
        %407 = vst [vmem:[#allocation2 + $0xf0] sm:$0x1] %v406
        %v408 = vld [vmem:[#allocation2 + $0xf8] sm:$0x1]
        %v409 = vsel %vm312, 0, %v408
        %410 = vst [vmem:[#allocation2 + $0xf8] sm:$0x1] %v409
        %v411 = vld [vmem:[#allocation2 + $0x100] sm:$0x1]
        %v412 = vsel %vm312, 0, %v411
        %413 = vst [vmem:[#allocation2 + $0x100] sm:$0x1] %v412
        %v414 = vld [vmem:[#allocation2 + $0x108] sm:$0x1]
        %v415 = vsel %vm312, 0, %v414
        %416 = vst [vmem:[#allocation2 + $0x108] sm:$0x1] %v415
        %v417 = vld [vmem:[#allocation2 + $0x110] sm:$0x1]
        %v418 = vsel %vm326, 0, %v417
        %419 = vst [vmem:[#allocation2 + $0x110] sm:$0x1] %v418
        %v420 = vld [vmem:[#allocation2 + $0x118] sm:$0x1]
        %v421 = vsel %vm312, 0, %v420
        %422 = vst [vmem:[#allocation2 + $0x118] sm:$0x1] %v421
        %v423 = vld [vmem:[#allocation2 + $0x120] sm:$0x1]
        %v424 = vsel %vm312, 0, %v423
        %425 = vst [vmem:[#allocation2 + $0x120] sm:$0x1] %v424
        %v426 = vld [vmem:[#allocation2 + $0x128] sm:$0x1]
        %v427 = vsel %vm312, 0, %v426
        %428 = vst [vmem:[#allocation2 + $0x128] sm:$0x1] %v427
        %v429 = vld [vmem:[#allocation2 + $0x130] sm:$0x1]
        %v430 = vsel %vm312, 0, %v429
        %431 = vst [vmem:[#allocation2 + $0x130] sm:$0x1] %v430
        %v432 = vld [vmem:[#allocation2 + $0x138] sm:$0x1]
        %v433 = vsel %vm326, 0, %v432
        %434 = vst [vmem:[#allocation2 + $0x138] sm:$0x1] %v433
        %v435 = vld [vmem:[#allocation2 + $0x140] sm:$0x1]
        %v436 = vsel %vm312, 0, %v435
        %437 = vst [vmem:[#allocation2 + $0x140] sm:$0x1] %v436
        %v438 = vld [vmem:[#allocation2 + $0x148] sm:$0x1]
        %v439 = vsel %vm312, 0, %v438
        %440 = vst [vmem:[#allocation2 + $0x148] sm:$0x1] %v439
        %v441 = vld [vmem:[#allocation2 + $0x150] sm:$0x1]
        %v442 = vsel %vm312, 0, %v441
        %443 = vst [vmem:[#allocation2 + $0x150] sm:$0x1] %v442
        %v444 = vld [vmem:[#allocation2 + $0x158] sm:$0x1]
        %v445 = vsel %vm312, 0, %v444
        %446 = vst [vmem:[#allocation2 + $0x158] sm:$0x1] %v445
        %v447 = vld [vmem:[#allocation2 + $0x160] sm:$0x1]
        %v448 = vsel %vm326, 0, %v447
        %449 = vst [vmem:[#allocation2 + $0x160] sm:$0x1] %v448
        %v450 = vld [vmem:[#allocation2 + $0x168] sm:$0x1]
        %v451 = vsel %vm312, 0, %v450
        %452 = vst [vmem:[#allocation2 + $0x168] sm:$0x1] %v451
        %v453 = vld [vmem:[#allocation2 + $0x170] sm:$0x1]
        %v454 = vsel %vm312, 0, %v453
        %455 = vst [vmem:[#allocation2 + $0x170] sm:$0x1] %v454
        %v456 = vld [vmem:[#allocation2 + $0x178] sm:$0x1]
        %v457 = vsel %vm312, 0, %v456
        %458 = vst [vmem:[#allocation2 + $0x178] sm:$0x1] %v457
        %v459 = vld [vmem:[#allocation2 + $0x180] sm:$0x1]
        %v460 = vsel %vm312, 0, %v459
        %461 = vst [vmem:[#allocation2 + $0x180] sm:$0x1] %v460
        %v462 = vld [vmem:[#allocation2 + $0x188] sm:$0x1]
        %v463 = vsel %vm326, 0, %v462
        %464 = vst [vmem:[#allocation2 + $0x188] sm:$0x1] %v463
        %v465 = vld [vmem:[#allocation2 + $0x190] sm:$0x1]
        %v466 = vsel %vm312, 0, %v465
        %467 = vst [vmem:[#allocation2 + $0x190] sm:$0x1] %v466
        %v468 = vld [vmem:[#allocation2 + $0x198] sm:$0x1]
        %v469 = vsel %vm312, 0, %v468
        %470 = vst [vmem:[#allocation2 + $0x198] sm:$0x1] %v469
        %v471 = vld [vmem:[#allocation2 + $0x1a0] sm:$0x1]
        %v472 = vsel %vm312, 0, %v471
        %473 = vst [vmem:[#allocation2 + $0x1a0] sm:$0x1] %v472
        %v474 = vld [vmem:[#allocation2 + $0x1a8] sm:$0x1]
        %v475 = vsel %vm312, 0, %v474
        %476 = vst [vmem:[#allocation2 + $0x1a8] sm:$0x1] %v475
        %v477 = vld [vmem:[#allocation2 + $0x1b0] sm:$0x1]
        %v478 = vsel %vm326, 0, %v477
        %479 = vst [vmem:[#allocation2 + $0x1b0] sm:$0x1] %v478
        %v480 = vld [vmem:[#allocation2 + $0x1b8] sm:$0x1]
        %v481 = vsel %vm312, 0, %v480
        %482 = vst [vmem:[#allocation2 + $0x1b8] sm:$0x1] %v481
        %v483 = vld [vmem:[#allocation2 + $0x1c0] sm:$0x1]
        %v484 = vsel %vm312, 0, %v483
        %485 = vst [vmem:[#allocation2 + $0x1c0] sm:$0x1] %v484
        %v486 = vld [vmem:[#allocation2 + $0x1c8] sm:$0x1]
        %v487 = vsel %vm312, 0, %v486
        %488 = vst [vmem:[#allocation2 + $0x1c8] sm:$0x1] %v487
        %v489 = vld [vmem:[#allocation2 + $0x1d0] sm:$0x1]
        %v490 = vsel %vm312, 0, %v489
        %491 = vst [vmem:[#allocation2 + $0x1d0] sm:$0x1] %v490
        %v492 = vld [vmem:[#allocation2 + $0x1d8] sm:$0x1]
        %v493 = vsel %vm326, 0, %v492
        %494 = vst [vmem:[#allocation2 + $0x1d8] sm:$0x1] %v493
        %v495 = vld [vmem:[#allocation2 + $0x1e0] sm:$0x1]
        %v496 = vsel %vm312, 0, %v495
        %497 = vst [vmem:[#allocation2 + $0x1e0] sm:$0x1] %v496
        %v498 = vld [vmem:[#allocation2 + $0x1e8] sm:$0x1]
        %v499 = vsel %vm312, 0, %v498
        %500 = vst [vmem:[#allocation2 + $0x1e8] sm:$0x1] %v499
        %v501 = vld [vmem:[#allocation2 + $0x1f0] sm:$0x1]
        %v502 = vsel %vm312, 0, %v501
        %503 = vst [vmem:[#allocation2 + $0x1f0] sm:$0x1] %v502
        %v504 = vld [vmem:[#allocation2 + $0x1f8] sm:$0x1]
        %v505 = vsel %vm312, 0, %v504
        %506 = vst [vmem:[#allocation2 + $0x1f8] sm:$0x1] %v505
        %v507 = vld [vmem:[#allocation2 + $0x200] sm:$0x1]
        %v508 = vsel %vm326, 0, %v507
        %509 = vst [vmem:[#allocation2 + $0x200] sm:$0x1] %v508
        %v510 = vld [vmem:[#allocation2 + $0x208] sm:$0x1]
        %v511 = vsel %vm312, 0, %v510
        %512 = vst [vmem:[#allocation2 + $0x208] sm:$0x1] %v511
        %v513 = vld [vmem:[#allocation2 + $0x210] sm:$0x1]
        %v514 = vsel %vm312, 0, %v513
        %515 = vst [vmem:[#allocation2 + $0x210] sm:$0x1] %v514
        %v516 = vld [vmem:[#allocation2 + $0x218] sm:$0x1]
        %v517 = vsel %vm312, 0, %v516
        %518 = vst [vmem:[#allocation2 + $0x218] sm:$0x1] %v517
        %v519 = vld [vmem:[#allocation2 + $0x220] sm:$0x1]
        %v520 = vsel %vm312, 0, %v519
        %521 = vst [vmem:[#allocation2 + $0x220] sm:$0x1] %v520
        %v522 = vld [vmem:[#allocation2 + $0x228] sm:$0x1]
        %v523 = vsel %vm326, 0, %v522
        %524 = vst [vmem:[#allocation2 + $0x228] sm:$0x1] %v523
        %v525 = vld [vmem:[#allocation2 + $0x230] sm:$0x1]
        %v526 = vsel %vm312, 0, %v525
        %527 = vst [vmem:[#allocation2 + $0x230] sm:$0x1] %v526
        %v528 = vld [vmem:[#allocation2 + $0x238] sm:$0x1]
        %v529 = vsel %vm312, 0, %v528
        %530 = vst [vmem:[#allocation2 + $0x238] sm:$0x1] %v529
        %v531 = vld [vmem:[#allocation2 + $0x240] sm:$0x1]
        %v532 = vsel %vm312, 0, %v531
        %533 = vst [vmem:[#allocation2 + $0x240] sm:$0x1] %v532
        %v534 = vld [vmem:[#allocation2 + $0x248] sm:$0x1]
        %v535 = vsel %vm312, 0, %v534
        %536 = vst [vmem:[#allocation2 + $0x248] sm:$0x1] %v535
        %v537 = vld [vmem:[#allocation2 + $0x250] sm:$0x1]
        %v538 = vsel %vm326, 0, %v537
        %539 = vst [vmem:[#allocation2 + $0x250] sm:$0x1] %v538
        %v540 = vld [vmem:[#allocation2 + $0x258] sm:$0x1]
        %v541 = vsel %vm312, 0, %v540
        %542 = vst [vmem:[#allocation2 + $0x258] sm:$0x1] %v541
        %v543 = vld [vmem:[#allocation2 + $0x260] sm:$0x1]
        %v544 = vsel %vm312, 0, %v543
        %545 = vst [vmem:[#allocation2 + $0x260] sm:$0x1] %v544
        %v546 = vld [vmem:[#allocation2 + $0x268] sm:$0x1]
        %v547 = vsel %vm312, 0, %v546
        %548 = vst [vmem:[#allocation2 + $0x268] sm:$0x1] %v547
        %v549 = vld [vmem:[#allocation2 + $0x270] sm:$0x1]
        %v550 = vsel %vm312, 0, %v549
        %551 = vst [vmem:[#allocation2 + $0x270] sm:$0x1] %v550
        %v552 = vld [vmem:[#allocation2 + $0x278] sm:$0x1]
        %v553 = vsel %vm326, 0, %v552
        %554 = vst [vmem:[#allocation2 + $0x278] sm:$0x1] %v553
        %vm555 = vcmask 1047559
        %vm556 = vsmask.f32 7966
        %vm557 = vmand %vm555, %vm556
        %v558 = vld [vmem:[#allocation2] sm:$0x80]
        %v559 = vsel %vm557, 0, %v558
        %560 = vst [vmem:[#allocation2] sm:$0x80] %v559
        %v561 = vld [vmem:[#allocation2 + $0x8] sm:$0x80]
        %v562 = vsel %vm557, 0, %v561
        %563 = vst [vmem:[#allocation2 + $0x8] sm:$0x80] %v562
        %v564 = vld [vmem:[#allocation2 + $0x10] sm:$0x80]
        %v565 = vsel %vm557, 0, %v564
        %566 = vst [vmem:[#allocation2 + $0x10] sm:$0x80] %v565
        %v567 = vld [vmem:[#allocation2 + $0x18] sm:$0x80]
        %v568 = vsel %vm557, 0, %v567
        %569 = vst [vmem:[#allocation2 + $0x18] sm:$0x80] %v568
        %vm570 = vcmask 523271
        %vm571 = vmand %vm570, %vm556
        %v572 = vld [vmem:[#allocation2 + $0x20] sm:$0x80]
        %v573 = vsel %vm571, 0, %v572
        %574 = vst [vmem:[#allocation2 + $0x20] sm:$0x80] %v573
        %v575 = vld [vmem:[#allocation2 + $0x28] sm:$0x80]
        %v576 = vsel %vm557, 0, %v575
        %577 = vst [vmem:[#allocation2 + $0x28] sm:$0x80] %v576
        %v578 = vld [vmem:[#allocation2 + $0x30] sm:$0x80]
        %v579 = vsel %vm557, 0, %v578
        %580 = vst [vmem:[#allocation2 + $0x30] sm:$0x80] %v579
        %v581 = vld [vmem:[#allocation2 + $0x38] sm:$0x80]
        %v582 = vsel %vm557, 0, %v581
        %583 = vst [vmem:[#allocation2 + $0x38] sm:$0x80] %v582
        %v584 = vld [vmem:[#allocation2 + $0x40] sm:$0x80]
        %v585 = vsel %vm557, 0, %v584
        %586 = vst [vmem:[#allocation2 + $0x40] sm:$0x80] %v585
        %v587 = vld [vmem:[#allocation2 + $0x48] sm:$0x80]
        %v588 = vsel %vm571, 0, %v587
        %589 = vst [vmem:[#allocation2 + $0x48] sm:$0x80] %v588
        %v590 = vld [vmem:[#allocation2 + $0x50] sm:$0x80]
        %v591 = vsel %vm557, 0, %v590
        %592 = vst [vmem:[#allocation2 + $0x50] sm:$0x80] %v591
        %v593 = vld [vmem:[#allocation2 + $0x58] sm:$0x80]
        %v594 = vsel %vm557, 0, %v593
        %595 = vst [vmem:[#allocation2 + $0x58] sm:$0x80] %v594
        %v596 = vld [vmem:[#allocation2 + $0x60] sm:$0x80]
        %v597 = vsel %vm557, 0, %v596
        %598 = vst [vmem:[#allocation2 + $0x60] sm:$0x80] %v597
        %v599 = vld [vmem:[#allocation2 + $0x68] sm:$0x80]
        %v600 = vsel %vm557, 0, %v599
        %601 = vst [vmem:[#allocation2 + $0x68] sm:$0x80] %v600
        %v602 = vld [vmem:[#allocation2 + $0x70] sm:$0x80]
        %v603 = vsel %vm571, 0, %v602
        %604 = vst [vmem:[#allocation2 + $0x70] sm:$0x80] %v603
        %v605 = vld [vmem:[#allocation2 + $0x78] sm:$0x80]
        %v606 = vsel %vm557, 0, %v605
        %607 = vst [vmem:[#allocation2 + $0x78] sm:$0x80] %v606
        %v608 = vld [vmem:[#allocation2 + $0x80] sm:$0x80]
        %v609 = vsel %vm557, 0, %v608
        %610 = vst [vmem:[#allocation2 + $0x80] sm:$0x80] %v609
        %v611 = vld [vmem:[#allocation2 + $0x88] sm:$0x80]
        %v612 = vsel %vm557, 0, %v611
        %613 = vst [vmem:[#allocation2 + $0x88] sm:$0x80] %v612
        %v614 = vld [vmem:[#allocation2 + $0x90] sm:$0x80]
        %v615 = vsel %vm557, 0, %v614
        %616 = vst [vmem:[#allocation2 + $0x90] sm:$0x80] %v615
        %v617 = vld [vmem:[#allocation2 + $0x98] sm:$0x80]
        %v618 = vsel %vm571, 0, %v617
        %619 = vst [vmem:[#allocation2 + $0x98] sm:$0x80] %v618
        %v620 = vld [vmem:[#allocation2 + $0xa0] sm:$0x80]
        %v621 = vsel %vm557, 0, %v620
        %622 = vst [vmem:[#allocation2 + $0xa0] sm:$0x80] %v621
        %v623 = vld [vmem:[#allocation2 + $0xa8] sm:$0x80]
        %v624 = vsel %vm557, 0, %v623
        %625 = vst [vmem:[#allocation2 + $0xa8] sm:$0x80] %v624
        %v626 = vld [vmem:[#allocation2 + $0xb0] sm:$0x80]
        %v627 = vsel %vm557, 0, %v626
        %628 = vst [vmem:[#allocation2 + $0xb0] sm:$0x80] %v627
        %v629 = vld [vmem:[#allocation2 + $0xb8] sm:$0x80]
        %v630 = vsel %vm557, 0, %v629
        %631 = vst [vmem:[#allocation2 + $0xb8] sm:$0x80] %v630
        %v632 = vld [vmem:[#allocation2 + $0xc0] sm:$0x80]
        %v633 = vsel %vm571, 0, %v632
        %634 = vst [vmem:[#allocation2 + $0xc0] sm:$0x80] %v633
        %v635 = vld [vmem:[#allocation2 + $0xc8] sm:$0x80]
        %v636 = vsel %vm557, 0, %v635
        %637 = vst [vmem:[#allocation2 + $0xc8] sm:$0x80] %v636
        %v638 = vld [vmem:[#allocation2 + $0xd0] sm:$0x80]
        %v639 = vsel %vm557, 0, %v638
        %640 = vst [vmem:[#allocation2 + $0xd0] sm:$0x80] %v639
        %v641 = vld [vmem:[#allocation2 + $0xd8] sm:$0x80]
        %v642 = vsel %vm557, 0, %v641
        %643 = vst [vmem:[#allocation2 + $0xd8] sm:$0x80] %v642
        %v644 = vld [vmem:[#allocation2 + $0xe0] sm:$0x80]
        %v645 = vsel %vm557, 0, %v644
        %646 = vst [vmem:[#allocation2 + $0xe0] sm:$0x80] %v645
        %v647 = vld [vmem:[#allocation2 + $0xe8] sm:$0x80]
        %v648 = vsel %vm571, 0, %v647
        %649 = vst [vmem:[#allocation2 + $0xe8] sm:$0x80] %v648
        %v650 = vld [vmem:[#allocation2 + $0xf0] sm:$0x80]
        %v651 = vsel %vm557, 0, %v650
        %652 = vst [vmem:[#allocation2 + $0xf0] sm:$0x80] %v651
        %v653 = vld [vmem:[#allocation2 + $0xf8] sm:$0x80]
        %v654 = vsel %vm557, 0, %v653
        %655 = vst [vmem:[#allocation2 + $0xf8] sm:$0x80] %v654
        %v656 = vld [vmem:[#allocation2 + $0x100] sm:$0x80]
        %v657 = vsel %vm557, 0, %v656
        %658 = vst [vmem:[#allocation2 + $0x100] sm:$0x80] %v657
        %v659 = vld [vmem:[#allocation2 + $0x108] sm:$0x80]
        %v660 = vsel %vm557, 0, %v659
        %661 = vst [vmem:[#allocation2 + $0x108] sm:$0x80] %v660
        %v662 = vld [vmem:[#allocation2 + $0x110] sm:$0x80]
        %v663 = vsel %vm571, 0, %v662
        %664 = vst [vmem:[#allocation2 + $0x110] sm:$0x80] %v663
        %v665 = vld [vmem:[#allocation2 + $0x118] sm:$0x80]
        %v666 = vsel %vm557, 0, %v665
        %667 = vst [vmem:[#allocation2 + $0x118] sm:$0x80] %v666
        %v668 = vld [vmem:[#allocation2 + $0x120] sm:$0x80]
        %v669 = vsel %vm557, 0, %v668
        %670 = vst [vmem:[#allocation2 + $0x120] sm:$0x80] %v669
        %v671 = vld [vmem:[#allocation2 + $0x128] sm:$0x80]
        %v672 = vsel %vm557, 0, %v671
        %673 = vst [vmem:[#allocation2 + $0x128] sm:$0x80] %v672
        %v674 = vld [vmem:[#allocation2 + $0x130] sm:$0x80]
        %v675 = vsel %vm557, 0, %v674
        %676 = vst [vmem:[#allocation2 + $0x130] sm:$0x80] %v675
        %v677 = vld [vmem:[#allocation2 + $0x138] sm:$0x80]
        %v678 = vsel %vm571, 0, %v677
        %679 = vst [vmem:[#allocation2 + $0x138] sm:$0x80] %v678
        %v680 = vld [vmem:[#allocation2 + $0x140] sm:$0x80]
        %v681 = vsel %vm557, 0, %v680
        %682 = vst [vmem:[#allocation2 + $0x140] sm:$0x80] %v681
        %v683 = vld [vmem:[#allocation2 + $0x148] sm:$0x80]
        %v684 = vsel %vm557, 0, %v683
        %685 = vst [vmem:[#allocation2 + $0x148] sm:$0x80] %v684
        %v686 = vld [vmem:[#allocation2 + $0x150] sm:$0x80]
        %v687 = vsel %vm557, 0, %v686
        %688 = vst [vmem:[#allocation2 + $0x150] sm:$0x80] %v687
        %v689 = vld [vmem:[#allocation2 + $0x158] sm:$0x80]
        %v690 = vsel %vm557, 0, %v689
        %691 = vst [vmem:[#allocation2 + $0x158] sm:$0x80] %v690
        %v692 = vld [vmem:[#allocation2 + $0x160] sm:$0x80]
        %v693 = vsel %vm571, 0, %v692
        %694 = vst [vmem:[#allocation2 + $0x160] sm:$0x80] %v693
        %v695 = vld [vmem:[#allocation2 + $0x168] sm:$0x80]
        %v696 = vsel %vm557, 0, %v695
        %697 = vst [vmem:[#allocation2 + $0x168] sm:$0x80] %v696
        %v698 = vld [vmem:[#allocation2 + $0x170] sm:$0x80]
        %v699 = vsel %vm557, 0, %v698
        %700 = vst [vmem:[#allocation2 + $0x170] sm:$0x80] %v699
        %v701 = vld [vmem:[#allocation2 + $0x178] sm:$0x80]
        %v702 = vsel %vm557, 0, %v701
        %703 = vst [vmem:[#allocation2 + $0x178] sm:$0x80] %v702
        %v704 = vld [vmem:[#allocation2 + $0x180] sm:$0x80]
        %v705 = vsel %vm557, 0, %v704
        %706 = vst [vmem:[#allocation2 + $0x180] sm:$0x80] %v705
        %v707 = vld [vmem:[#allocation2 + $0x188] sm:$0x80]
        %v708 = vsel %vm571, 0, %v707
        %709 = vst [vmem:[#allocation2 + $0x188] sm:$0x80] %v708
        %v710 = vld [vmem:[#allocation2 + $0x190] sm:$0x80]
        %v711 = vsel %vm557, 0, %v710
        %712 = vst [vmem:[#allocation2 + $0x190] sm:$0x80] %v711
        %v713 = vld [vmem:[#allocation2 + $0x198] sm:$0x80]
        %v714 = vsel %vm557, 0, %v713
        %715 = vst [vmem:[#allocation2 + $0x198] sm:$0x80] %v714
        %v716 = vld [vmem:[#allocation2 + $0x1a0] sm:$0x80]
        %v717 = vsel %vm557, 0, %v716
        %718 = vst [vmem:[#allocation2 + $0x1a0] sm:$0x80] %v717
        %v719 = vld [vmem:[#allocation2 + $0x1a8] sm:$0x80]
        %v720 = vsel %vm557, 0, %v719
        %721 = vst [vmem:[#allocation2 + $0x1a8] sm:$0x80] %v720
        %v722 = vld [vmem:[#allocation2 + $0x1b0] sm:$0x80]
        %v723 = vsel %vm571, 0, %v722
        %724 = vst [vmem:[#allocation2 + $0x1b0] sm:$0x80] %v723
        %v725 = vld [vmem:[#allocation2 + $0x1b8] sm:$0x80]
        %v726 = vsel %vm557, 0, %v725
        %727 = vst [vmem:[#allocation2 + $0x1b8] sm:$0x80] %v726
        %v728 = vld [vmem:[#allocation2 + $0x1c0] sm:$0x80]
        %v729 = vsel %vm557, 0, %v728
        %730 = vst [vmem:[#allocation2 + $0x1c0] sm:$0x80] %v729
        %v731 = vld [vmem:[#allocation2 + $0x1c8] sm:$0x80]
        %v732 = vsel %vm557, 0, %v731
        %733 = vst [vmem:[#allocation2 + $0x1c8] sm:$0x80] %v732
        %v734 = vld [vmem:[#allocation2 + $0x1d0] sm:$0x80]
        %v735 = vsel %vm557, 0, %v734
        %736 = vst [vmem:[#allocation2 + $0x1d0] sm:$0x80] %v735
        %v737 = vld [vmem:[#allocation2 + $0x1d8] sm:$0x80]
        %v738 = vsel %vm571, 0, %v737
        %739 = vst [vmem:[#allocation2 + $0x1d8] sm:$0x80] %v738
        %v740 = vld [vmem:[#allocation2 + $0x1e0] sm:$0x80]
        %v741 = vsel %vm557, 0, %v740
        %742 = vst [vmem:[#allocation2 + $0x1e0] sm:$0x80] %v741
        %v743 = vld [vmem:[#allocation2 + $0x1e8] sm:$0x80]
        %v744 = vsel %vm557, 0, %v743
        %745 = vst [vmem:[#allocation2 + $0x1e8] sm:$0x80] %v744
        %v746 = vld [vmem:[#allocation2 + $0x1f0] sm:$0x80]
        %v747 = vsel %vm557, 0, %v746
        %748 = vst [vmem:[#allocation2 + $0x1f0] sm:$0x80] %v747
        %v749 = vld [vmem:[#allocation2 + $0x1f8] sm:$0x80]
        %v750 = vsel %vm557, 0, %v749
        %751 = vst [vmem:[#allocation2 + $0x1f8] sm:$0x80] %v750
        %v752 = vld [vmem:[#allocation2 + $0x200] sm:$0x80]
        %v753 = vsel %vm571, 0, %v752
        %754 = vst [vmem:[#allocation2 + $0x200] sm:$0x80] %v753
        %v755 = vld [vmem:[#allocation2 + $0x208] sm:$0x80]
        %v756 = vsel %vm557, 0, %v755
        %757 = vst [vmem:[#allocation2 + $0x208] sm:$0x80] %v756
        %v758 = vld [vmem:[#allocation2 + $0x210] sm:$0x80]
        %v759 = vsel %vm557, 0, %v758
        %760 = vst [vmem:[#allocation2 + $0x210] sm:$0x80] %v759
        %v761 = vld [vmem:[#allocation2 + $0x218] sm:$0x80]
        %v762 = vsel %vm557, 0, %v761
        %763 = vst [vmem:[#allocation2 + $0x218] sm:$0x80] %v762
        %v764 = vld [vmem:[#allocation2 + $0x220] sm:$0x80]
        %v765 = vsel %vm557, 0, %v764
        %766 = vst [vmem:[#allocation2 + $0x220] sm:$0x80] %v765
        %v767 = vld [vmem:[#allocation2 + $0x228] sm:$0x80]
        %v768 = vsel %vm571, 0, %v767
        %769 = vst [vmem:[#allocation2 + $0x228] sm:$0x80] %v768
        %v770 = vld [vmem:[#allocation2 + $0x230] sm:$0x80]
        %v771 = vsel %vm557, 0, %v770
        %772 = vst [vmem:[#allocation2 + $0x230] sm:$0x80] %v771
        %v773 = vld [vmem:[#allocation2 + $0x238] sm:$0x80]
        %v774 = vsel %vm557, 0, %v773
        %775 = vst [vmem:[#allocation2 + $0x238] sm:$0x80] %v774
        %v776 = vld [vmem:[#allocation2 + $0x240] sm:$0x80]
        %v777 = vsel %vm557, 0, %v776
        %778 = vst [vmem:[#allocation2 + $0x240] sm:$0x80] %v777
        %v779 = vld [vmem:[#allocation2 + $0x248] sm:$0x80]
        %v780 = vsel %vm557, 0, %v779
        %781 = vst [vmem:[#allocation2 + $0x248] sm:$0x80] %v780
        %v782 = vld [vmem:[#allocation2 + $0x250] sm:$0x80]
        %v783 = vsel %vm571, 0, %v782
        %784 = vst [vmem:[#allocation2 + $0x250] sm:$0x80] %v783
        %v785 = vld [vmem:[#allocation2 + $0x258] sm:$0x80]
        %v786 = vsel %vm557, 0, %v785
        %787 = vst [vmem:[#allocation2 + $0x258] sm:$0x80] %v786
        %v788 = vld [vmem:[#allocation2 + $0x260] sm:$0x80]
        %v789 = vsel %vm557, 0, %v788
        %790 = vst [vmem:[#allocation2 + $0x260] sm:$0x80] %v789
        %v791 = vld [vmem:[#allocation2 + $0x268] sm:$0x80]
        %v792 = vsel %vm557, 0, %v791
        %793 = vst [vmem:[#allocation2 + $0x268] sm:$0x80] %v792
        %v794 = vld [vmem:[#allocation2 + $0x270] sm:$0x80]
        %v795 = vsel %vm557, 0, %v794
        %796 = vst [vmem:[#allocation2 + $0x270] sm:$0x80] %v795
        %v797 = vld [vmem:[#allocation2 + $0x278] sm:$0x80]
        %v798 = vsel %vm571, 0, %v797
        %799 = vst [vmem:[#allocation2 + $0x278] sm:$0x80] %v798
        %v800 = vld [vmem:[%s254] sm:$0xf]
        %v801 = vld [vmem:[%s254 + $0x4] sm:$0xf]
        %v802 = vld [vmem:[%s254 + $0x8] sm:$0xf]
        %v803 = vld [vmem:[%s254 + $0xc] sm:$0xf]
        %v804 = vld [vmem:[%s254 + $0x10] sm:$0xf]
        %v805 = vld [vmem:[%s254 + $0x14] sm:$0xf]
        %v806 = vld [vmem:[%s254 + $0x18] sm:$0xf]
        %v807 = vld [vmem:[%s254 + $0x1c] sm:$0xf]
        %v808 = vld [vmem:[%s254 + $0x20] sm:$0xf]
        %v809 = vld [vmem:[%s254 + $0x24] sm:$0xf]
        %v810 = vld [vmem:[%s254 + $0x28] sm:$0xf]
        %v811 = vld [vmem:[%s254 + $0x2c] sm:$0xf]
        %v812 = vld [vmem:[%s254 + $0x30] sm:$0xf]
        %v813 = vld [vmem:[%s254 + $0x34] sm:$0xf]
        %v814 = vld [vmem:[%s254 + $0x38] sm:$0xf]
        %v815 = vld [vmem:[%s254 + $0x3c] sm:$0xf]
        %v816 = vld [vmem:[%s254 + $0x40] sm:$0xf]
        %v817 = vld [vmem:[%s254 + $0x44] sm:$0xf]
        %v818 = vld [vmem:[%s254 + $0x48] sm:$0xf]
        %v819 = vld [vmem:[%s254 + $0x4c] sm:$0xf]
        %v820 = vld [vmem:[%s254 + $0x50] sm:$0xf]
        %v821 = vld [vmem:[%s254 + $0x54] sm:$0xf]
        %v822 = vld [vmem:[%s254 + $0x58] sm:$0xf]
        %v823 = vld [vmem:[%s254 + $0x5c] sm:$0xf]
        %v824 = vld [vmem:[%s254 + $0x60] sm:$0xf]
        %v825 = vld [vmem:[%s254 + $0x64] sm:$0xf]
        %v826 = vld [vmem:[%s254 + $0x68] sm:$0xf]
        %v827 = vld [vmem:[%s254 + $0x6c] sm:$0xf]
        %v828 = vld [vmem:[%s254 + $0x70] sm:$0xf]
        %v829 = vld [vmem:[%s254 + $0x74] sm:$0xf]
        %v860 = vunpack.c.l.b16 %v800
        %v861 = vunpack.c.l.b16 %v801
        %v862 = vunpack.c.l.b16 %v802
        %v863 = vunpack.c.l.b16 %v803
        %v864 = vunpack.c.l.b16 %v804
        %v865 = vunpack.c.l.b16 %v805
        %v866 = vunpack.c.l.b16 %v806
        %v867 = vunpack.c.l.b16 %v807
        %v868 = vunpack.c.l.b16 %v808
        %v869 = vunpack.c.l.b16 %v809
        %v870 = vunpack.c.l.b16 %v810
        %v871 = vunpack.c.l.b16 %v811
        %v872 = vunpack.c.l.b16 %v812
        %v873 = vunpack.c.l.b16 %v813
        %v874 = vunpack.c.l.b16 %v814
        %v875 = vunpack.c.l.b16 %v815
        %v876 = vunpack.c.l.b16 %v816
        %v877 = vunpack.c.l.b16 %v817
        %v878 = vunpack.c.l.b16 %v818
        %v879 = vunpack.c.l.b16 %v819
        %v880 = vunpack.c.l.b16 %v820
        %v881 = vunpack.c.l.b16 %v821
        %v882 = vunpack.c.l.b16 %v822
        %v883 = vunpack.c.l.b16 %v823
        %v884 = vunpack.c.l.b16 %v824
        %v885 = vunpack.c.l.b16 %v825
        %v886 = vunpack.c.l.b16 %v826
        %v887 = vunpack.c.l.b16 %v827
        %v888 = vunpack.c.l.b16 %v828
        %v889 = vunpack.c.l.b16 %v829
        %v890 = vpack.c.b16 %v861, %v860
        %v891 = vpack.c.b16 %v863, %v862
        %v892 = vpack.c.b16 %v865, %v864
        %v893 = vpack.c.b16 %v867, %v866
        %v894 = vpack.c.b16 %v869, %v868
        %v895 = vpack.c.b16 %v871, %v870
        %v896 = vpack.c.b16 %v873, %v872
        %v897 = vpack.c.b16 %v875, %v874
        %v898 = vpack.c.b16 %v877, %v876
        %v899 = vpack.c.b16 %v879, %v878
        %v900 = vpack.c.b16 %v881, %v880
        %v901 = vpack.c.b16 %v883, %v882
        %v902 = vpack.c.b16 %v885, %v884
        %v903 = vpack.c.b16 %v887, %v886
        %v904 = vpack.c.b16 %v889, %v888
        %v906 = vshrl.u32 %v890, 16
        %v908 = vrot.slane %v906, 7
        %v909 = vshll.u32 %v890, 16
        %v911 = vor.u32 %v908, %v909
        %v913 = vshrl.u32 %v891, 16
        %v915 = vrot.slane %v913, 7
        %v916 = vshll.u32 %v891, 16
        %v918 = vor.u32 %v915, %v916
        %v920 = vshrl.u32 %v892, 16
        %v922 = vrot.slane %v920, 7
        %v923 = vshll.u32 %v892, 16
        %v925 = vor.u32 %v922, %v923
        %v927 = vshrl.u32 %v893, 16
        %v929 = vrot.slane %v927, 7
        %v930 = vshll.u32 %v893, 16
        %v932 = vor.u32 %v929, %v930
        %v934 = vshrl.u32 %v894, 16
        %v936 = vrot.slane %v934, 7
        %v937 = vshll.u32 %v894, 16
        %v939 = vor.u32 %v936, %v937
        %v941 = vshrl.u32 %v895, 16
        %v943 = vrot.slane %v941, 7
        %v944 = vshll.u32 %v895, 16
        %v946 = vor.u32 %v943, %v944
        %v948 = vshrl.u32 %v896, 16
        %v950 = vrot.slane %v948, 7
        %v951 = vshll.u32 %v896, 16
        %v953 = vor.u32 %v950, %v951
        %v955 = vshrl.u32 %v897, 16
        %v957 = vrot.slane %v955, 7
        %v958 = vshll.u32 %v897, 16
        %v960 = vor.u32 %v957, %v958
        %v962 = vshrl.u32 %v898, 16
        %v964 = vrot.slane %v962, 7
        %v965 = vshll.u32 %v898, 16
        %v967 = vor.u32 %v964, %v965
        %v969 = vshrl.u32 %v899, 16
        %v971 = vrot.slane %v969, 7
        %v972 = vshll.u32 %v899, 16
        %v974 = vor.u32 %v971, %v972
        %v976 = vshrl.u32 %v900, 16
        %v978 = vrot.slane %v976, 7
        %v979 = vshll.u32 %v900, 16
        %v981 = vor.u32 %v978, %v979
        %v983 = vshrl.u32 %v901, 16
        %v985 = vrot.slane %v983, 7
        %v986 = vshll.u32 %v901, 16
        %v988 = vor.u32 %v985, %v986
        %v990 = vshrl.u32 %v902, 16
        %v992 = vrot.slane %v990, 7
        %v993 = vshll.u32 %v902, 16
        %v995 = vor.u32 %v992, %v993
        %v997 = vshrl.u32 %v903, 16
        %v999 = vrot.slane %v997, 7
        %v1000 = vshll.u32 %v903, 16
        %v1002 = vor.u32 %v999, %v1000
        %v1004 = vshrl.u32 %v904, 16
        %v1006 = vrot.slane %v1004, 7
        %v1007 = vshll.u32 %v904, 16
        %v1009 = vor.u32 %v1006, %v1007
        %s1025 = scalar_lea.vmem [#allocation2], 40
        %vm1026 = vcmask 523264
        %vm1027 = vsmask.f32 7938
        %vm1028 = vmand %vm1026, %vm1027
        %v1029 = vld [vmem:[%s1025] sm:$0xff]
        %v1030 = vsel %vm1028, %v911, %v1029
        %1031 = vst [vmem:[%s1025] sm:$0xff] %v1030
        %v1032 = vld [vmem:[%s1025 + $0x28] sm:$0xff]
        %v1033 = vsel %vm1028, %v918, %v1032
        %1034 = vst [vmem:[%s1025 + $0x28] sm:$0xff] %v1033
        %v1035 = vld [vmem:[%s1025 + $0x50] sm:$0xff]
        %v1036 = vsel %vm1028, %v925, %v1035
        %1037 = vst [vmem:[%s1025 + $0x50] sm:$0xff] %v1036
        %v1038 = vld [vmem:[%s1025 + $0x78] sm:$0xff]
        %v1039 = vsel %vm1028, %v932, %v1038
        %1040 = vst [vmem:[%s1025 + $0x78] sm:$0xff] %v1039
        %v1041 = vld [vmem:[%s1025 + $0xa0] sm:$0xff]
        %v1042 = vsel %vm1028, %v939, %v1041
        %1043 = vst [vmem:[%s1025 + $0xa0] sm:$0xff] %v1042
        %v1044 = vld [vmem:[%s1025 + $0xc8] sm:$0xff]
        %v1045 = vsel %vm1028, %v946, %v1044
        %1046 = vst [vmem:[%s1025 + $0xc8] sm:$0xff] %v1045
        %v1047 = vld [vmem:[%s1025 + $0xf0] sm:$0xff]
        %v1048 = vsel %vm1028, %v953, %v1047
        %1049 = vst [vmem:[%s1025 + $0xf0] sm:$0xff] %v1048
        %v1050 = vld [vmem:[%s1025 + $0x118] sm:$0xff]
        %v1051 = vsel %vm1028, %v960, %v1050
        %1052 = vst [vmem:[%s1025 + $0x118] sm:$0xff] %v1051
        %v1053 = vld [vmem:[%s1025 + $0x140] sm:$0xff]
        %v1054 = vsel %vm1028, %v967, %v1053
        %1055 = vst [vmem:[%s1025 + $0x140] sm:$0xff] %v1054
        %v1056 = vld [vmem:[%s1025 + $0x168] sm:$0xff]
        %v1057 = vsel %vm1028, %v974, %v1056
        %1058 = vst [vmem:[%s1025 + $0x168] sm:$0xff] %v1057
        %v1059 = vld [vmem:[%s1025 + $0x190] sm:$0xff]
        %v1060 = vsel %vm1028, %v981, %v1059
        %1061 = vst [vmem:[%s1025 + $0x190] sm:$0xff] %v1060
        %v1062 = vld [vmem:[%s1025 + $0x1b8] sm:$0xff]
        %v1063 = vsel %vm1028, %v988, %v1062
        %1064 = vst [vmem:[%s1025 + $0x1b8] sm:$0xff] %v1063
        %v1065 = vld [vmem:[%s1025 + $0x1e0] sm:$0xff]
        %v1066 = vsel %vm1028, %v995, %v1065
        %1067 = vst [vmem:[%s1025 + $0x1e0] sm:$0xff] %v1066
        %v1068 = vld [vmem:[%s1025 + $0x208] sm:$0xff]
        %v1069 = vsel %vm1028, %v1002, %v1068
        %1070 = vst [vmem:[%s1025 + $0x208] sm:$0xff] %v1069
        %v1071 = vld [vmem:[%s1025 + $0x230] sm:$0xff]
        %v1072 = vsel %vm1028, %v1009, %v1071
        %1073 = vst [vmem:[%s1025 + $0x230] sm:$0xff] %v1072
        %v1074 = vld [vmem:[%s254] sm:$0xf]
        %v1075 = vld [vmem:[%s254 + $0x4] sm:$0xf]
        %v1076 = vld [vmem:[%s254 + $0x8] sm:$0xf]
        %v1077 = vld [vmem:[%s254 + $0xc] sm:$0xf]
        %v1078 = vld [vmem:[%s254 + $0x10] sm:$0xf]
        %v1079 = vld [vmem:[%s254 + $0x14] sm:$0xf]
        %v1080 = vld [vmem:[%s254 + $0x18] sm:$0xf]
        %v1081 = vld [vmem:[%s254 + $0x1c] sm:$0xf]
        %v1082 = vld [vmem:[%s254 + $0x20] sm:$0xf]
        %v1083 = vld [vmem:[%s254 + $0x24] sm:$0xf]
        %v1084 = vld [vmem:[%s254 + $0x28] sm:$0xf]
        %v1085 = vld [vmem:[%s254 + $0x2c] sm:$0xf]
        %v1086 = vld [vmem:[%s254 + $0x30] sm:$0xf]
        %v1087 = vld [vmem:[%s254 + $0x34] sm:$0xf]
        %v1088 = vld [vmem:[%s254 + $0x38] sm:$0xf]
        %v1089 = vld [vmem:[%s254 + $0x3c] sm:$0xf]
        %v1090 = vld [vmem:[%s254 + $0x40] sm:$0xf]
        %v1091 = vld [vmem:[%s254 + $0x44] sm:$0xf]
        %v1092 = vld [vmem:[%s254 + $0x48] sm:$0xf]
        %v1093 = vld [vmem:[%s254 + $0x4c] sm:$0xf]
        %v1094 = vld [vmem:[%s254 + $0x50] sm:$0xf]
        %v1095 = vld [vmem:[%s254 + $0x54] sm:$0xf]
        %v1096 = vld [vmem:[%s254 + $0x58] sm:$0xf]
        %v1097 = vld [vmem:[%s254 + $0x5c] sm:$0xf]
        %v1098 = vld [vmem:[%s254 + $0x60] sm:$0xf]
        %v1099 = vld [vmem:[%s254 + $0x64] sm:$0xf]
        %v1100 = vld [vmem:[%s254 + $0x68] sm:$0xf]
        %v1101 = vld [vmem:[%s254 + $0x6c] sm:$0xf]
        %v1102 = vld [vmem:[%s254 + $0x70] sm:$0xf]
        %v1103 = vld [vmem:[%s254 + $0x74] sm:$0xf]
        %v1134 = vunpack.c.l.b16 %v1074
        %v1135 = vunpack.c.l.b16 %v1075
        %v1136 = vunpack.c.l.b16 %v1076
        %v1137 = vunpack.c.l.b16 %v1077
        %v1138 = vunpack.c.l.b16 %v1078
        %v1139 = vunpack.c.l.b16 %v1079
        %v1140 = vunpack.c.l.b16 %v1080
        %v1141 = vunpack.c.l.b16 %v1081
        %v1142 = vunpack.c.l.b16 %v1082
        %v1143 = vunpack.c.l.b16 %v1083
        %v1144 = vunpack.c.l.b16 %v1084
        %v1145 = vunpack.c.l.b16 %v1085
        %v1146 = vunpack.c.l.b16 %v1086
        %v1147 = vunpack.c.l.b16 %v1087
        %v1148 = vunpack.c.l.b16 %v1088
        %v1149 = vunpack.c.l.b16 %v1089
        %v1150 = vunpack.c.l.b16 %v1090
        %v1151 = vunpack.c.l.b16 %v1091
        %v1152 = vunpack.c.l.b16 %v1092
        %v1153 = vunpack.c.l.b16 %v1093
        %v1154 = vunpack.c.l.b16 %v1094
        %v1155 = vunpack.c.l.b16 %v1095
        %v1156 = vunpack.c.l.b16 %v1096
        %v1157 = vunpack.c.l.b16 %v1097
        %v1158 = vunpack.c.l.b16 %v1098
        %v1159 = vunpack.c.l.b16 %v1099
        %v1160 = vunpack.c.l.b16 %v1100
        %v1161 = vunpack.c.l.b16 %v1101
        %v1162 = vunpack.c.l.b16 %v1102
        %v1163 = vunpack.c.l.b16 %v1103
        %v1164 = vpack.c.b16 %v1135, %v1134
        %v1165 = vpack.c.b16 %v1137, %v1136
        %v1166 = vpack.c.b16 %v1139, %v1138
        %v1167 = vpack.c.b16 %v1141, %v1140
        %v1168 = vpack.c.b16 %v1143, %v1142
        %v1169 = vpack.c.b16 %v1145, %v1144
        %v1170 = vpack.c.b16 %v1147, %v1146
        %v1171 = vpack.c.b16 %v1149, %v1148
        %v1172 = vpack.c.b16 %v1151, %v1150
        %v1173 = vpack.c.b16 %v1153, %v1152
        %v1174 = vpack.c.b16 %v1155, %v1154
        %v1175 = vpack.c.b16 %v1157, %v1156
        %v1176 = vpack.c.b16 %v1159, %v1158
        %v1177 = vpack.c.b16 %v1161, %v1160
        %v1178 = vpack.c.b16 %v1163, %v1162
        %1179 = vrot.lane.b32.xlu0 %v1164, 64
        %v1180 = vpop.permute.xlu0 %1179
        %1181 = vrot.lane.b32.xlu0 %v1165, 64
        %v1182 = vpop.permute.xlu0 %1181
        %1183 = vrot.lane.b32.xlu0 %v1166, 64
        %v1184 = vpop.permute.xlu0 %1183
        %1185 = vrot.lane.b32.xlu0 %v1167, 64
        %v1186 = vpop.permute.xlu0 %1185
        %1187 = vrot.lane.b32.xlu0 %v1168, 64
        %v1188 = vpop.permute.xlu0 %1187
        %1189 = vrot.lane.b32.xlu0 %v1169, 64
        %v1190 = vpop.permute.xlu0 %1189
        %1191 = vrot.lane.b32.xlu0 %v1170, 64
        %v1192 = vpop.permute.xlu0 %1191
        %1193 = vrot.lane.b32.xlu0 %v1171, 64
        %v1194 = vpop.permute.xlu0 %1193
        %1195 = vrot.lane.b32.xlu0 %v1172, 64
        %v1196 = vpop.permute.xlu0 %1195
        %1197 = vrot.lane.b32.xlu0 %v1173, 64
        %v1198 = vpop.permute.xlu0 %1197
        %1199 = vrot.lane.b32.xlu0 %v1174, 64
        %v1200 = vpop.permute.xlu0 %1199
        %1201 = vrot.lane.b32.xlu0 %v1175, 64
        %v1202 = vpop.permute.xlu0 %1201
        %1203 = vrot.lane.b32.xlu0 %v1176, 64
        %v1204 = vpop.permute.xlu0 %1203
        %1205 = vrot.lane.b32.xlu0 %v1177, 64
        %v1206 = vpop.permute.xlu0 %1205
        %1207 = vrot.lane.b32.xlu0 %v1178, 64
        %v1208 = vpop.permute.xlu0 %1207
        %vm1224 = vcmask 1048064
        %1225 = vst.msk [vmem:[%s1025] sm:$0xff] %vm1224, %v1180
        %1226 = vst.msk [vmem:[%s1025 + $0x28] sm:$0xff] %vm1224, %v1182
        %1227 = vst.msk [vmem:[%s1025 + $0x50] sm:$0xff] %vm1224, %v1184
        %1228 = vst.msk [vmem:[%s1025 + $0x78] sm:$0xff] %vm1224, %v1186
        %1229 = vst.msk [vmem:[%s1025 + $0xa0] sm:$0xff] %vm1224, %v1188
        %1230 = vst.msk [vmem:[%s1025 + $0xc8] sm:$0xff] %vm1224, %v1190
        %1231 = vst.msk [vmem:[%s1025 + $0xf0] sm:$0xff] %vm1224, %v1192
        %1232 = vst.msk [vmem:[%s1025 + $0x118] sm:$0xff] %vm1224, %v1194
        %1233 = vst.msk [vmem:[%s1025 + $0x140] sm:$0xff] %vm1224, %v1196
        %1234 = vst.msk [vmem:[%s1025 + $0x168] sm:$0xff] %vm1224, %v1198
        %1235 = vst.msk [vmem:[%s1025 + $0x190] sm:$0xff] %vm1224, %v1200
        %1236 = vst.msk [vmem:[%s1025 + $0x1b8] sm:$0xff] %vm1224, %v1202
        %1237 = vst.msk [vmem:[%s1025 + $0x1e0] sm:$0xff] %vm1224, %v1204
        %1238 = vst.msk [vmem:[%s1025 + $0x208] sm:$0xff] %vm1224, %v1206
        %1239 = vst.msk [vmem:[%s1025 + $0x230] sm:$0xff] %vm1224, %v1208
        %v1240 = vld [vmem:[%s254] sm:$0xf]
        %v1241 = vld [vmem:[%s254 + $0x4] sm:$0xf]
        %v1242 = vld [vmem:[%s254 + $0x8] sm:$0xf]
        %v1243 = vld [vmem:[%s254 + $0xc] sm:$0xf]
        %v1244 = vld [vmem:[%s254 + $0x10] sm:$0xf]
        %v1245 = vld [vmem:[%s254 + $0x14] sm:$0xf]
        %v1246 = vld [vmem:[%s254 + $0x18] sm:$0xf]
        %v1247 = vld [vmem:[%s254 + $0x1c] sm:$0xf]
        %v1248 = vld [vmem:[%s254 + $0x20] sm:$0xf]
        %v1249 = vld [vmem:[%s254 + $0x24] sm:$0xf]
        %v1250 = vld [vmem:[%s254 + $0x28] sm:$0xf]
        %v1251 = vld [vmem:[%s254 + $0x2c] sm:$0xf]
        %v1252 = vld [vmem:[%s254 + $0x30] sm:$0xf]
        %v1253 = vld [vmem:[%s254 + $0x34] sm:$0xf]
        %v1254 = vld [vmem:[%s254 + $0x38] sm:$0xf]
        %v1255 = vld [vmem:[%s254 + $0x3c] sm:$0xf]
        %v1256 = vld [vmem:[%s254 + $0x40] sm:$0xf]
        %v1257 = vld [vmem:[%s254 + $0x44] sm:$0xf]
        %v1258 = vld [vmem:[%s254 + $0x48] sm:$0xf]
        %v1259 = vld [vmem:[%s254 + $0x4c] sm:$0xf]
        %v1260 = vld [vmem:[%s254 + $0x50] sm:$0xf]
        %v1261 = vld [vmem:[%s254 + $0x54] sm:$0xf]
        %v1262 = vld [vmem:[%s254 + $0x58] sm:$0xf]
        %v1263 = vld [vmem:[%s254 + $0x5c] sm:$0xf]
        %v1264 = vld [vmem:[%s254 + $0x60] sm:$0xf]
        %v1265 = vld [vmem:[%s254 + $0x64] sm:$0xf]
        %v1266 = vld [vmem:[%s254 + $0x68] sm:$0xf]
        %v1267 = vld [vmem:[%s254 + $0x6c] sm:$0xf]
        %v1268 = vld [vmem:[%s254 + $0x70] sm:$0xf]
        %v1269 = vld [vmem:[%s254 + $0x74] sm:$0xf]
        %v1300 = vunpack.c.l.b16 %v1240
        %v1301 = vunpack.c.l.b16 %v1241
        %v1302 = vunpack.c.l.b16 %v1242
        %v1303 = vunpack.c.l.b16 %v1243
        %v1304 = vunpack.c.l.b16 %v1244
        %v1305 = vunpack.c.l.b16 %v1245
        %v1306 = vunpack.c.l.b16 %v1246
        %v1307 = vunpack.c.l.b16 %v1247
        %v1308 = vunpack.c.l.b16 %v1248
        %v1309 = vunpack.c.l.b16 %v1249
        %v1310 = vunpack.c.l.b16 %v1250
        %v1311 = vunpack.c.l.b16 %v1251
        %v1312 = vunpack.c.l.b16 %v1252
        %v1313 = vunpack.c.l.b16 %v1253
        %v1314 = vunpack.c.l.b16 %v1254
        %v1315 = vunpack.c.l.b16 %v1255
        %v1316 = vunpack.c.l.b16 %v1256
        %v1317 = vunpack.c.l.b16 %v1257
        %v1318 = vunpack.c.l.b16 %v1258
        %v1319 = vunpack.c.l.b16 %v1259
        %v1320 = vunpack.c.l.b16 %v1260
        %v1321 = vunpack.c.l.b16 %v1261
        %v1322 = vunpack.c.l.b16 %v1262
        %v1323 = vunpack.c.l.b16 %v1263
        %v1324 = vunpack.c.l.b16 %v1264
        %v1325 = vunpack.c.l.b16 %v1265
        %v1326 = vunpack.c.l.b16 %v1266
        %v1327 = vunpack.c.l.b16 %v1267
        %v1328 = vunpack.c.l.b16 %v1268
        %v1329 = vunpack.c.l.b16 %v1269
        %v1330 = vpack.c.b16 %v1301, %v1300
        %v1331 = vpack.c.b16 %v1303, %v1302
        %v1332 = vpack.c.b16 %v1305, %v1304
        %v1333 = vpack.c.b16 %v1307, %v1306
        %v1334 = vpack.c.b16 %v1309, %v1308
        %v1335 = vpack.c.b16 %v1311, %v1310
        %v1336 = vpack.c.b16 %v1313, %v1312
        %v1337 = vpack.c.b16 %v1315, %v1314
        %v1338 = vpack.c.b16 %v1317, %v1316
        %v1339 = vpack.c.b16 %v1319, %v1318
        %v1340 = vpack.c.b16 %v1321, %v1320
        %v1341 = vpack.c.b16 %v1323, %v1322
        %v1342 = vpack.c.b16 %v1325, %v1324
        %v1343 = vpack.c.b16 %v1327, %v1326
        %v1344 = vpack.c.b16 %v1329, %v1328
        %v1346 = vshrl.u32 %v1330, 16
        %v1348 = vshll.u32 %v1330, 16
        %v1350 = vrot.slane %v1348, 1
        %v1351 = vor.u32 %v1346, %v1350
        %v1353 = vshrl.u32 %v1331, 16
        %v1355 = vshll.u32 %v1331, 16
        %v1357 = vrot.slane %v1355, 1
        %v1358 = vor.u32 %v1353, %v1357
        %v1360 = vshrl.u32 %v1332, 16
        %v1362 = vshll.u32 %v1332, 16
        %v1364 = vrot.slane %v1362, 1
        %v1365 = vor.u32 %v1360, %v1364
        %v1367 = vshrl.u32 %v1333, 16
        %v1369 = vshll.u32 %v1333, 16
        %v1371 = vrot.slane %v1369, 1
        %v1372 = vor.u32 %v1367, %v1371
        %v1374 = vshrl.u32 %v1334, 16
        %v1376 = vshll.u32 %v1334, 16
        %v1378 = vrot.slane %v1376, 1
        %v1379 = vor.u32 %v1374, %v1378
        %v1381 = vshrl.u32 %v1335, 16
        %v1383 = vshll.u32 %v1335, 16
        %v1385 = vrot.slane %v1383, 1
        %v1386 = vor.u32 %v1381, %v1385
        %v1388 = vshrl.u32 %v1336, 16
        %v1390 = vshll.u32 %v1336, 16
        %v1392 = vrot.slane %v1390, 1
        %v1393 = vor.u32 %v1388, %v1392
        %v1395 = vshrl.u32 %v1337, 16
        %v1397 = vshll.u32 %v1337, 16
        %v1399 = vrot.slane %v1397, 1
        %v1400 = vor.u32 %v1395, %v1399
        %v1402 = vshrl.u32 %v1338, 16
        %v1404 = vshll.u32 %v1338, 16
        %v1406 = vrot.slane %v1404, 1
        %v1407 = vor.u32 %v1402, %v1406
        %v1409 = vshrl.u32 %v1339, 16
        %v1411 = vshll.u32 %v1339, 16
        %v1413 = vrot.slane %v1411, 1
        %v1414 = vor.u32 %v1409, %v1413
        %v1416 = vshrl.u32 %v1340, 16
        %v1418 = vshll.u32 %v1340, 16
        %v1420 = vrot.slane %v1418, 1
        %v1421 = vor.u32 %v1416, %v1420
        %v1423 = vshrl.u32 %v1341, 16
        %v1425 = vshll.u32 %v1341, 16
        %v1427 = vrot.slane %v1425, 1
        %v1428 = vor.u32 %v1423, %v1427
        %v1430 = vshrl.u32 %v1342, 16
        %v1432 = vshll.u32 %v1342, 16
        %v1434 = vrot.slane %v1432, 1
        %v1435 = vor.u32 %v1430, %v1434
        %v1437 = vshrl.u32 %v1343, 16
        %v1439 = vshll.u32 %v1343, 16
        %v1441 = vrot.slane %v1439, 1
        %v1442 = vor.u32 %v1437, %v1441
        %v1444 = vshrl.u32 %v1344, 16
        %v1446 = vshll.u32 %v1344, 16
        %v1448 = vrot.slane %v1446, 1
        %v1449 = vor.u32 %v1444, %v1448
        %vm1465 = vsmask.f32 7424
        %vm1466 = vmand %vm1026, %vm1465
        %v1467 = vld [vmem:[%s1025 + $0x8] sm:$0xff]
        %v1468 = vsel %vm1466, %v1351, %v1467
        %1469 = vst [vmem:[%s1025 + $0x8] sm:$0xff] %v1468
        %v1470 = vld [vmem:[%s1025 + $0x30] sm:$0xff]
        %v1471 = vsel %vm1466, %v1358, %v1470
        %1472 = vst [vmem:[%s1025 + $0x30] sm:$0xff] %v1471
        %v1473 = vld [vmem:[%s1025 + $0x58] sm:$0xff]
        %v1474 = vsel %vm1466, %v1365, %v1473
        %1475 = vst [vmem:[%s1025 + $0x58] sm:$0xff] %v1474
        %v1476 = vld [vmem:[%s1025 + $0x80] sm:$0xff]
        %v1477 = vsel %vm1466, %v1372, %v1476
        %1478 = vst [vmem:[%s1025 + $0x80] sm:$0xff] %v1477
        %v1479 = vld [vmem:[%s1025 + $0xa8] sm:$0xff]
        %v1480 = vsel %vm1466, %v1379, %v1479
        %1481 = vst [vmem:[%s1025 + $0xa8] sm:$0xff] %v1480
        %v1482 = vld [vmem:[%s1025 + $0xd0] sm:$0xff]
        %v1483 = vsel %vm1466, %v1386, %v1482
        %1484 = vst [vmem:[%s1025 + $0xd0] sm:$0xff] %v1483
        %v1485 = vld [vmem:[%s1025 + $0xf8] sm:$0xff]
        %v1486 = vsel %vm1466, %v1393, %v1485
        %1487 = vst [vmem:[%s1025 + $0xf8] sm:$0xff] %v1486
        %v1488 = vld [vmem:[%s1025 + $0x120] sm:$0xff]
        %v1489 = vsel %vm1466, %v1400, %v1488
        %1490 = vst [vmem:[%s1025 + $0x120] sm:$0xff] %v1489
        %v1491 = vld [vmem:[%s1025 + $0x148] sm:$0xff]
        %v1492 = vsel %vm1466, %v1407, %v1491
        %1493 = vst [vmem:[%s1025 + $0x148] sm:$0xff] %v1492
        %v1494 = vld [vmem:[%s1025 + $0x170] sm:$0xff]
        %v1495 = vsel %vm1466, %v1414, %v1494
        %1496 = vst [vmem:[%s1025 + $0x170] sm:$0xff] %v1495
        %v1497 = vld [vmem:[%s1025 + $0x198] sm:$0xff]
        %v1498 = vsel %vm1466, %v1421, %v1497
        %1499 = vst [vmem:[%s1025 + $0x198] sm:$0xff] %v1498
        %v1500 = vld [vmem:[%s1025 + $0x1c0] sm:$0xff]
        %v1501 = vsel %vm1466, %v1428, %v1500
        %1502 = vst [vmem:[%s1025 + $0x1c0] sm:$0xff] %v1501
        %v1503 = vld [vmem:[%s1025 + $0x1e8] sm:$0xff]
        %v1504 = vsel %vm1466, %v1435, %v1503
        %1505 = vst [vmem:[%s1025 + $0x1e8] sm:$0xff] %v1504
        %v1506 = vld [vmem:[%s1025 + $0x210] sm:$0xff]
        %v1507 = vsel %vm1466, %v1442, %v1506
        %1508 = vst [vmem:[%s1025 + $0x210] sm:$0xff] %v1507
        %v1509 = vld [vmem:[%s1025 + $0x238] sm:$0xff]
        %v1510 = vsel %vm1466, %v1449, %v1509
        %1511 = vst [vmem:[%s1025 + $0x238] sm:$0xff] %v1510
        %v1512 = vld [vmem:[%s254] sm:$0xf]
        %v1513 = vld [vmem:[%s254 + $0x4] sm:$0xf]
        %v1514 = vld [vmem:[%s254 + $0x8] sm:$0xf]
        %v1515 = vld [vmem:[%s254 + $0xc] sm:$0xf]
        %v1516 = vld [vmem:[%s254 + $0x10] sm:$0xf]
        %v1517 = vld [vmem:[%s254 + $0x14] sm:$0xf]
        %v1518 = vld [vmem:[%s254 + $0x18] sm:$0xf]
        %v1519 = vld [vmem:[%s254 + $0x1c] sm:$0xf]
        %v1520 = vld [vmem:[%s254 + $0x20] sm:$0xf]
        %v1521 = vld [vmem:[%s254 + $0x24] sm:$0xf]
        %v1522 = vld [vmem:[%s254 + $0x28] sm:$0xf]
        %v1523 = vld [vmem:[%s254 + $0x2c] sm:$0xf]
        %v1524 = vld [vmem:[%s254 + $0x30] sm:$0xf]
        %v1525 = vld [vmem:[%s254 + $0x34] sm:$0xf]
        %v1526 = vld [vmem:[%s254 + $0x38] sm:$0xf]
        %v1527 = vld [vmem:[%s254 + $0x3c] sm:$0xf]
        %v1528 = vld [vmem:[%s254 + $0x40] sm:$0xf]
        %v1529 = vld [vmem:[%s254 + $0x44] sm:$0xf]
        %v1530 = vld [vmem:[%s254 + $0x48] sm:$0xf]
        %v1531 = vld [vmem:[%s254 + $0x4c] sm:$0xf]
        %v1532 = vld [vmem:[%s254 + $0x50] sm:$0xf]
        %v1533 = vld [vmem:[%s254 + $0x54] sm:$0xf]
        %v1534 = vld [vmem:[%s254 + $0x58] sm:$0xf]
        %v1535 = vld [vmem:[%s254 + $0x5c] sm:$0xf]
        %v1536 = vld [vmem:[%s254 + $0x60] sm:$0xf]
        %v1537 = vld [vmem:[%s254 + $0x64] sm:$0xf]
        %v1538 = vld [vmem:[%s254 + $0x68] sm:$0xf]
        %v1539 = vld [vmem:[%s254 + $0x6c] sm:$0xf]
        %v1540 = vld [vmem:[%s254 + $0x70] sm:$0xf]
        %v1541 = vld [vmem:[%s254 + $0x74] sm:$0xf]
        %v1542 = vld [vmem:[%s254 + $0x78] sm:$0xf]
        %v1543 = vld [vmem:[%s254 + $0x7c] sm:$0xf]
        %v1576 = vunpack.c.l.b16 %v1512
        %v1577 = vunpack.c.l.b16 %v1513
        %v1578 = vunpack.c.l.b16 %v1514
        %v1579 = vunpack.c.l.b16 %v1515
        %v1580 = vunpack.c.l.b16 %v1516
        %v1581 = vunpack.c.l.b16 %v1517
        %v1582 = vunpack.c.l.b16 %v1518
        %v1583 = vunpack.c.l.b16 %v1519
        %v1584 = vunpack.c.l.b16 %v1520
        %v1585 = vunpack.c.l.b16 %v1521
        %v1586 = vunpack.c.l.b16 %v1522
        %v1587 = vunpack.c.l.b16 %v1523
        %v1588 = vunpack.c.l.b16 %v1524
        %v1589 = vunpack.c.l.b16 %v1525
        %v1590 = vunpack.c.l.b16 %v1526
        %v1591 = vunpack.c.l.b16 %v1527
        %v1592 = vunpack.c.l.b16 %v1528
        %v1593 = vunpack.c.l.b16 %v1529
        %v1594 = vunpack.c.l.b16 %v1530
        %v1595 = vunpack.c.l.b16 %v1531
        %v1596 = vunpack.c.l.b16 %v1532
        %v1597 = vunpack.c.l.b16 %v1533
        %v1598 = vunpack.c.l.b16 %v1534
        %v1599 = vunpack.c.l.b16 %v1535
        %v1600 = vunpack.c.l.b16 %v1536
        %v1601 = vunpack.c.l.b16 %v1537
        %v1602 = vunpack.c.l.b16 %v1538
        %v1603 = vunpack.c.l.b16 %v1539
        %v1604 = vunpack.c.l.b16 %v1540
        %v1605 = vunpack.c.l.b16 %v1541
        %v1606 = vunpack.c.l.b16 %v1542
        %v1607 = vunpack.c.l.b16 %v1543
        %v1608 = vpack.c.b16 %v1577, %v1576
        %v1609 = vpack.c.b16 %v1579, %v1578
        %v1610 = vpack.c.b16 %v1581, %v1580
        %v1611 = vpack.c.b16 %v1583, %v1582
        %v1612 = vpack.c.b16 %v1585, %v1584
        %v1613 = vpack.c.b16 %v1587, %v1586
        %v1614 = vpack.c.b16 %v1589, %v1588
        %v1615 = vpack.c.b16 %v1591, %v1590
        %v1616 = vpack.c.b16 %v1593, %v1592
        %v1617 = vpack.c.b16 %v1595, %v1594
        %v1618 = vpack.c.b16 %v1597, %v1596
        %v1619 = vpack.c.b16 %v1599, %v1598
        %v1620 = vpack.c.b16 %v1601, %v1600
        %v1621 = vpack.c.b16 %v1603, %v1602
        %v1622 = vpack.c.b16 %v1605, %v1604
        %v1623 = vpack.c.b16 %v1607, %v1606
        %v1625 = vshrl.u32 %v1608, 16
        %v1627 = vrot.slane %v1625, 7
        %v1628 = vshll.u32 %v1608, 16
        %v1630 = vor.u32 %v1627, %v1628
        %v1632 = vshrl.u32 %v1609, 16
        %v1634 = vrot.slane %v1632, 7
        %v1635 = vshll.u32 %v1609, 16
        %v1637 = vor.u32 %v1634, %v1635
        %v1639 = vshrl.u32 %v1610, 16
        %v1641 = vrot.slane %v1639, 7
        %v1642 = vshll.u32 %v1610, 16
        %v1644 = vor.u32 %v1641, %v1642
        %v1646 = vshrl.u32 %v1611, 16
        %v1648 = vrot.slane %v1646, 7
        %v1649 = vshll.u32 %v1611, 16
        %v1651 = vor.u32 %v1648, %v1649
        %v1653 = vshrl.u32 %v1612, 16
        %v1655 = vrot.slane %v1653, 7
        %v1656 = vshll.u32 %v1612, 16
        %v1658 = vor.u32 %v1655, %v1656
        %v1660 = vshrl.u32 %v1613, 16
        %v1662 = vrot.slane %v1660, 7
        %v1663 = vshll.u32 %v1613, 16
        %v1665 = vor.u32 %v1662, %v1663
        %v1667 = vshrl.u32 %v1614, 16
        %v1669 = vrot.slane %v1667, 7
        %v1670 = vshll.u32 %v1614, 16
        %v1672 = vor.u32 %v1669, %v1670
        %v1674 = vshrl.u32 %v1615, 16
        %v1676 = vrot.slane %v1674, 7
        %v1677 = vshll.u32 %v1615, 16
        %v1679 = vor.u32 %v1676, %v1677
        %v1681 = vshrl.u32 %v1616, 16
        %v1683 = vrot.slane %v1681, 7
        %v1684 = vshll.u32 %v1616, 16
        %v1686 = vor.u32 %v1683, %v1684
        %v1688 = vshrl.u32 %v1617, 16
        %v1690 = vrot.slane %v1688, 7
        %v1691 = vshll.u32 %v1617, 16
        %v1693 = vor.u32 %v1690, %v1691
        %v1695 = vshrl.u32 %v1618, 16
        %v1697 = vrot.slane %v1695, 7
        %v1698 = vshll.u32 %v1618, 16
        %v1700 = vor.u32 %v1697, %v1698
        %v1702 = vshrl.u32 %v1619, 16
        %v1704 = vrot.slane %v1702, 7
        %v1705 = vshll.u32 %v1619, 16
        %v1707 = vor.u32 %v1704, %v1705
        %v1709 = vshrl.u32 %v1620, 16
        %v1711 = vrot.slane %v1709, 7
        %v1712 = vshll.u32 %v1620, 16
        %v1714 = vor.u32 %v1711, %v1712
        %v1716 = vshrl.u32 %v1621, 16
        %v1718 = vrot.slane %v1716, 7
        %v1719 = vshll.u32 %v1621, 16
        %v1721 = vor.u32 %v1718, %v1719
        %v1723 = vshrl.u32 %v1622, 16
        %v1725 = vrot.slane %v1723, 7
        %v1726 = vshll.u32 %v1622, 16
        %v1728 = vor.u32 %v1725, %v1726
        %v1730 = vshrl.u32 %v1623, 16
        %v1732 = vrot.slane %v1730, 7
        %v1733 = vshll.u32 %v1623, 16
        %v1735 = vor.u32 %v1732, %v1733
        %1736 = vrot.lane.b32.xlu0 %v1630, 64
        %v1737 = vpop.permute.xlu0 %1736
        %1738 = vrot.lane.b32.xlu0 %v1637, 64
        %v1739 = vpop.permute.xlu0 %1738
        %1740 = vrot.lane.b32.xlu0 %v1644, 64
        %v1741 = vpop.permute.xlu0 %1740
        %1742 = vrot.lane.b32.xlu0 %v1651, 64
        %v1743 = vpop.permute.xlu0 %1742
        %1744 = vrot.lane.b32.xlu0 %v1658, 64
        %v1745 = vpop.permute.xlu0 %1744
        %1746 = vrot.lane.b32.xlu0 %v1665, 64
        %v1747 = vpop.permute.xlu0 %1746
        %1748 = vrot.lane.b32.xlu0 %v1672, 64
        %v1749 = vpop.permute.xlu0 %1748
        %1750 = vrot.lane.b32.xlu0 %v1679, 64
        %v1751 = vpop.permute.xlu0 %1750
        %1752 = vrot.lane.b32.xlu0 %v1686, 64
        %v1753 = vpop.permute.xlu0 %1752
        %1754 = vrot.lane.b32.xlu0 %v1693, 64
        %v1755 = vpop.permute.xlu0 %1754
        %1756 = vrot.lane.b32.xlu0 %v1700, 64
        %v1757 = vpop.permute.xlu0 %1756
        %1758 = vrot.lane.b32.xlu0 %v1707, 64
        %v1759 = vpop.permute.xlu0 %1758
        %1760 = vrot.lane.b32.xlu0 %v1714, 64
        %v1761 = vpop.permute.xlu0 %1760
        %1762 = vrot.lane.b32.xlu0 %v1721, 64
        %v1763 = vpop.permute.xlu0 %1762
        %1764 = vrot.lane.b32.xlu0 %v1728, 64
        %v1765 = vpop.permute.xlu0 %1764
        %1766 = vrot.lane.b32.xlu0 %v1735, 64
        %v1767 = vpop.permute.xlu0 %1766
        %vm1784 = vcmask 1048064
        %vm1785 = vmand %vm1784, %vm1027
        %v1786 = vld [vmem:[#allocation2 + $0x8] sm:$0xff]
        %v1787 = vsel %vm1785, %v1737, %v1786
        %1788 = vst [vmem:[#allocation2 + $0x8] sm:$0xff] %v1787
        %v1789 = vld [vmem:[#allocation2 + $0x30] sm:$0xff]
        %v1790 = vsel %vm1785, %v1739, %v1789
        %1791 = vst [vmem:[#allocation2 + $0x30] sm:$0xff] %v1790
        %v1792 = vld [vmem:[#allocation2 + $0x58] sm:$0xff]
        %v1793 = vsel %vm1785, %v1741, %v1792
        %1794 = vst [vmem:[#allocation2 + $0x58] sm:$0xff] %v1793
        %v1795 = vld [vmem:[#allocation2 + $0x80] sm:$0xff]
        %v1796 = vsel %vm1785, %v1743, %v1795
        %1797 = vst [vmem:[#allocation2 + $0x80] sm:$0xff] %v1796
        %v1798 = vld [vmem:[#allocation2 + $0xa8] sm:$0xff]
        %v1799 = vsel %vm1785, %v1745, %v1798
        %1800 = vst [vmem:[#allocation2 + $0xa8] sm:$0xff] %v1799
        %v1801 = vld [vmem:[#allocation2 + $0xd0] sm:$0xff]
        %v1802 = vsel %vm1785, %v1747, %v1801
        %1803 = vst [vmem:[#allocation2 + $0xd0] sm:$0xff] %v1802
        %v1804 = vld [vmem:[#allocation2 + $0xf8] sm:$0xff]
        %v1805 = vsel %vm1785, %v1749, %v1804
        %1806 = vst [vmem:[#allocation2 + $0xf8] sm:$0xff] %v1805
        %v1807 = vld [vmem:[#allocation2 + $0x120] sm:$0xff]
        %v1808 = vsel %vm1785, %v1751, %v1807
        %1809 = vst [vmem:[#allocation2 + $0x120] sm:$0xff] %v1808
        %v1810 = vld [vmem:[#allocation2 + $0x148] sm:$0xff]
        %v1811 = vsel %vm1785, %v1753, %v1810
        %1812 = vst [vmem:[#allocation2 + $0x148] sm:$0xff] %v1811
        %v1813 = vld [vmem:[#allocation2 + $0x170] sm:$0xff]
        %v1814 = vsel %vm1785, %v1755, %v1813
        %1815 = vst [vmem:[#allocation2 + $0x170] sm:$0xff] %v1814
        %v1816 = vld [vmem:[#allocation2 + $0x198] sm:$0xff]
        %v1817 = vsel %vm1785, %v1757, %v1816
        %1818 = vst [vmem:[#allocation2 + $0x198] sm:$0xff] %v1817
        %v1819 = vld [vmem:[#allocation2 + $0x1c0] sm:$0xff]
        %v1820 = vsel %vm1785, %v1759, %v1819
        %1821 = vst [vmem:[#allocation2 + $0x1c0] sm:$0xff] %v1820
        %v1822 = vld [vmem:[#allocation2 + $0x1e8] sm:$0xff]
        %v1823 = vsel %vm1785, %v1761, %v1822
        %1824 = vst [vmem:[#allocation2 + $0x1e8] sm:$0xff] %v1823
        %v1825 = vld [vmem:[#allocation2 + $0x210] sm:$0xff]
        %v1826 = vsel %vm1785, %v1763, %v1825
        %1827 = vst [vmem:[#allocation2 + $0x210] sm:$0xff] %v1826
        %v1828 = vld [vmem:[#allocation2 + $0x238] sm:$0xff]
        %v1829 = vsel %vm1785, %v1765, %v1828
        %1830 = vst [vmem:[#allocation2 + $0x238] sm:$0xff] %v1829
        %v1831 = vld [vmem:[#allocation2 + $0x260] sm:$0xff]
        %v1832 = vsel %vm1785, %v1767, %v1831
        %1833 = vst [vmem:[#allocation2 + $0x260] sm:$0xff] %v1832
        %v1834 = vld [vmem:[%s254] sm:$0xf]
        %v1835 = vld [vmem:[%s254 + $0x4] sm:$0xf]
        %v1836 = vld [vmem:[%s254 + $0x8] sm:$0xf]
        %v1837 = vld [vmem:[%s254 + $0xc] sm:$0xf]
        %v1838 = vld [vmem:[%s254 + $0x10] sm:$0xf]
        %v1839 = vld [vmem:[%s254 + $0x14] sm:$0xf]
        %v1840 = vld [vmem:[%s254 + $0x18] sm:$0xf]
        %v1841 = vld [vmem:[%s254 + $0x1c] sm:$0xf]
        %v1842 = vld [vmem:[%s254 + $0x20] sm:$0xf]
        %v1843 = vld [vmem:[%s254 + $0x24] sm:$0xf]
        %v1844 = vld [vmem:[%s254 + $0x28] sm:$0xf]
        %v1845 = vld [vmem:[%s254 + $0x2c] sm:$0xf]
        %v1846 = vld [vmem:[%s254 + $0x30] sm:$0xf]
        %v1847 = vld [vmem:[%s254 + $0x34] sm:$0xf]
        %v1848 = vld [vmem:[%s254 + $0x38] sm:$0xf]
        %v1849 = vld [vmem:[%s254 + $0x3c] sm:$0xf]
        %v1850 = vld [vmem:[%s254 + $0x40] sm:$0xf]
        %v1851 = vld [vmem:[%s254 + $0x44] sm:$0xf]
        %v1852 = vld [vmem:[%s254 + $0x48] sm:$0xf]
        %v1853 = vld [vmem:[%s254 + $0x4c] sm:$0xf]
        %v1854 = vld [vmem:[%s254 + $0x50] sm:$0xf]
        %v1855 = vld [vmem:[%s254 + $0x54] sm:$0xf]
        %v1856 = vld [vmem:[%s254 + $0x58] sm:$0xf]
        %v1857 = vld [vmem:[%s254 + $0x5c] sm:$0xf]
        %v1858 = vld [vmem:[%s254 + $0x60] sm:$0xf]
        %v1859 = vld [vmem:[%s254 + $0x64] sm:$0xf]
        %v1860 = vld [vmem:[%s254 + $0x68] sm:$0xf]
        %v1861 = vld [vmem:[%s254 + $0x6c] sm:$0xf]
        %v1862 = vld [vmem:[%s254 + $0x70] sm:$0xf]
        %v1863 = vld [vmem:[%s254 + $0x74] sm:$0xf]
        %v1864 = vld [vmem:[%s254 + $0x78] sm:$0xf]
        %v1865 = vld [vmem:[%s254 + $0x7c] sm:$0xf]
        %v1898 = vunpack.c.l.b16 %v1834
        %v1899 = vunpack.c.l.b16 %v1835
        %v1900 = vunpack.c.l.b16 %v1836
        %v1901 = vunpack.c.l.b16 %v1837
        %v1902 = vunpack.c.l.b16 %v1838
        %v1903 = vunpack.c.l.b16 %v1839
        %v1904 = vunpack.c.l.b16 %v1840
        %v1905 = vunpack.c.l.b16 %v1841
        %v1906 = vunpack.c.l.b16 %v1842
        %v1907 = vunpack.c.l.b16 %v1843
        %v1908 = vunpack.c.l.b16 %v1844
        %v1909 = vunpack.c.l.b16 %v1845
        %v1910 = vunpack.c.l.b16 %v1846
        %v1911 = vunpack.c.l.b16 %v1847
        %v1912 = vunpack.c.l.b16 %v1848
        %v1913 = vunpack.c.l.b16 %v1849
        %v1914 = vunpack.c.l.b16 %v1850
        %v1915 = vunpack.c.l.b16 %v1851
        %v1916 = vunpack.c.l.b16 %v1852
        %v1917 = vunpack.c.l.b16 %v1853
        %v1918 = vunpack.c.l.b16 %v1854
        %v1919 = vunpack.c.l.b16 %v1855
        %v1920 = vunpack.c.l.b16 %v1856
        %v1921 = vunpack.c.l.b16 %v1857
        %v1922 = vunpack.c.l.b16 %v1858
        %v1923 = vunpack.c.l.b16 %v1859
        %v1924 = vunpack.c.l.b16 %v1860
        %v1925 = vunpack.c.l.b16 %v1861
        %v1926 = vunpack.c.l.b16 %v1862
        %v1927 = vunpack.c.l.b16 %v1863
        %v1928 = vunpack.c.l.b16 %v1864
        %v1929 = vunpack.c.l.b16 %v1865
        %v1930 = vpack.c.b16 %v1899, %v1898
        %v1931 = vpack.c.b16 %v1901, %v1900
        %v1932 = vpack.c.b16 %v1903, %v1902
        %v1933 = vpack.c.b16 %v1905, %v1904
        %v1934 = vpack.c.b16 %v1907, %v1906
        %v1935 = vpack.c.b16 %v1909, %v1908
        %v1936 = vpack.c.b16 %v1911, %v1910
        %v1937 = vpack.c.b16 %v1913, %v1912
        %v1938 = vpack.c.b16 %v1915, %v1914
        %v1939 = vpack.c.b16 %v1917, %v1916
        %v1940 = vpack.c.b16 %v1919, %v1918
        %v1941 = vpack.c.b16 %v1921, %v1920
        %v1942 = vpack.c.b16 %v1923, %v1922
        %v1943 = vpack.c.b16 %v1925, %v1924
        %v1944 = vpack.c.b16 %v1927, %v1926
        %v1945 = vpack.c.b16 %v1929, %v1928
        %1962 = vst.msk [vmem:[#allocation2 + $0x10] sm:$0xff] %vm302, %v1930
        %1963 = vst.msk [vmem:[#allocation2 + $0x38] sm:$0xff] %vm302, %v1931
        %1964 = vst.msk [vmem:[#allocation2 + $0x60] sm:$0xff] %vm302, %v1932
        %1965 = vst.msk [vmem:[#allocation2 + $0x88] sm:$0xff] %vm302, %v1933
        %1966 = vst.msk [vmem:[#allocation2 + $0xb0] sm:$0xff] %vm302, %v1934
        %1967 = vst.msk [vmem:[#allocation2 + $0xd8] sm:$0xff] %vm302, %v1935
        %1968 = vst.msk [vmem:[#allocation2 + $0x100] sm:$0xff] %vm302, %v1936
        %1969 = vst.msk [vmem:[#allocation2 + $0x128] sm:$0xff] %vm302, %v1937
        %1970 = vst.msk [vmem:[#allocation2 + $0x150] sm:$0xff] %vm302, %v1938
        %1971 = vst.msk [vmem:[#allocation2 + $0x178] sm:$0xff] %vm302, %v1939
        %1972 = vst.msk [vmem:[#allocation2 + $0x1a0] sm:$0xff] %vm302, %v1940
        %1973 = vst.msk [vmem:[#allocation2 + $0x1c8] sm:$0xff] %vm302, %v1941
        %1974 = vst.msk [vmem:[#allocation2 + $0x1f0] sm:$0xff] %vm302, %v1942
        %1975 = vst.msk [vmem:[#allocation2 + $0x218] sm:$0xff] %vm302, %v1943
        %1976 = vst.msk [vmem:[#allocation2 + $0x240] sm:$0xff] %vm302, %v1944
        %1977 = vst.msk [vmem:[#allocation2 + $0x268] sm:$0xff] %vm302, %v1945
        %v1978 = vld [vmem:[%s254] sm:$0xf]
        %v1979 = vld [vmem:[%s254 + $0x4] sm:$0xf]
        %v1980 = vld [vmem:[%s254 + $0x8] sm:$0xf]
        %v1981 = vld [vmem:[%s254 + $0xc] sm:$0xf]
        %v1982 = vld [vmem:[%s254 + $0x10] sm:$0xf]
        %v1983 = vld [vmem:[%s254 + $0x14] sm:$0xf]
        %v1984 = vld [vmem:[%s254 + $0x18] sm:$0xf]
        %v1985 = vld [vmem:[%s254 + $0x1c] sm:$0xf]
        %v1986 = vld [vmem:[%s254 + $0x20] sm:$0xf]
        %v1987 = vld [vmem:[%s254 + $0x24] sm:$0xf]
        %v1988 = vld [vmem:[%s254 + $0x28] sm:$0xf]
        %v1989 = vld [vmem:[%s254 + $0x2c] sm:$0xf]
        %v1990 = vld [vmem:[%s254 + $0x30] sm:$0xf]
        %v1991 = vld [vmem:[%s254 + $0x34] sm:$0xf]
        %v1992 = vld [vmem:[%s254 + $0x38] sm:$0xf]
        %v1993 = vld [vmem:[%s254 + $0x3c] sm:$0xf]
        %v1994 = vld [vmem:[%s254 + $0x40] sm:$0xf]
        %v1995 = vld [vmem:[%s254 + $0x44] sm:$0xf]
        %v1996 = vld [vmem:[%s254 + $0x48] sm:$0xf]
        %v1997 = vld [vmem:[%s254 + $0x4c] sm:$0xf]
        %v1998 = vld [vmem:[%s254 + $0x50] sm:$0xf]
        %v1999 = vld [vmem:[%s254 + $0x54] sm:$0xf]
        %v2000 = vld [vmem:[%s254 + $0x58] sm:$0xf]
        %v2001 = vld [vmem:[%s254 + $0x5c] sm:$0xf]
        %v2002 = vld [vmem:[%s254 + $0x60] sm:$0xf]
        %v2003 = vld [vmem:[%s254 + $0x64] sm:$0xf]
        %v2004 = vld [vmem:[%s254 + $0x68] sm:$0xf]
        %v2005 = vld [vmem:[%s254 + $0x6c] sm:$0xf]
        %v2006 = vld [vmem:[%s254 + $0x70] sm:$0xf]
        %v2007 = vld [vmem:[%s254 + $0x74] sm:$0xf]
        %v2008 = vld [vmem:[%s254 + $0x78] sm:$0xf]
        %v2009 = vld [vmem:[%s254 + $0x7c] sm:$0xf]
        %v2042 = vunpack.c.l.b16 %v1978
        %v2043 = vunpack.c.l.b16 %v1979
        %v2044 = vunpack.c.l.b16 %v1980
        %v2045 = vunpack.c.l.b16 %v1981
        %v2046 = vunpack.c.l.b16 %v1982
        %v2047 = vunpack.c.l.b16 %v1983
        %v2048 = vunpack.c.l.b16 %v1984
        %v2049 = vunpack.c.l.b16 %v1985
        %v2050 = vunpack.c.l.b16 %v1986
        %v2051 = vunpack.c.l.b16 %v1987
        %v2052 = vunpack.c.l.b16 %v1988
        %v2053 = vunpack.c.l.b16 %v1989
        %v2054 = vunpack.c.l.b16 %v1990
        %v2055 = vunpack.c.l.b16 %v1991
        %v2056 = vunpack.c.l.b16 %v1992
        %v2057 = vunpack.c.l.b16 %v1993
        %v2058 = vunpack.c.l.b16 %v1994
        %v2059 = vunpack.c.l.b16 %v1995
        %v2060 = vunpack.c.l.b16 %v1996
        %v2061 = vunpack.c.l.b16 %v1997
        %v2062 = vunpack.c.l.b16 %v1998
        %v2063 = vunpack.c.l.b16 %v1999
        %v2064 = vunpack.c.l.b16 %v2000
        %v2065 = vunpack.c.l.b16 %v2001
        %v2066 = vunpack.c.l.b16 %v2002
        %v2067 = vunpack.c.l.b16 %v2003
        %v2068 = vunpack.c.l.b16 %v2004
        %v2069 = vunpack.c.l.b16 %v2005
        %v2070 = vunpack.c.l.b16 %v2006
        %v2071 = vunpack.c.l.b16 %v2007
        %v2072 = vunpack.c.l.b16 %v2008
        %v2073 = vunpack.c.l.b16 %v2009
        %v2074 = vpack.c.b16 %v2043, %v2042
        %v2075 = vpack.c.b16 %v2045, %v2044
        %v2076 = vpack.c.b16 %v2047, %v2046
        %v2077 = vpack.c.b16 %v2049, %v2048
        %v2078 = vpack.c.b16 %v2051, %v2050
        %v2079 = vpack.c.b16 %v2053, %v2052
        %v2080 = vpack.c.b16 %v2055, %v2054
        %v2081 = vpack.c.b16 %v2057, %v2056
        %v2082 = vpack.c.b16 %v2059, %v2058
        %v2083 = vpack.c.b16 %v2061, %v2060
        %v2084 = vpack.c.b16 %v2063, %v2062
        %v2085 = vpack.c.b16 %v2065, %v2064
        %v2086 = vpack.c.b16 %v2067, %v2066
        %v2087 = vpack.c.b16 %v2069, %v2068
        %v2088 = vpack.c.b16 %v2071, %v2070
        %v2089 = vpack.c.b16 %v2073, %v2072
        %v2091 = vshrl.u32 %v2074, 16
        %v2093 = vshll.u32 %v2074, 16
        %v2095 = vrot.slane %v2093, 1
        %v2096 = vor.u32 %v2091, %v2095
        %v2098 = vshrl.u32 %v2075, 16
        %v2100 = vshll.u32 %v2075, 16
        %v2102 = vrot.slane %v2100, 1
        %v2103 = vor.u32 %v2098, %v2102
        %v2105 = vshrl.u32 %v2076, 16
        %v2107 = vshll.u32 %v2076, 16
        %v2109 = vrot.slane %v2107, 1
        %v2110 = vor.u32 %v2105, %v2109
        %v2112 = vshrl.u32 %v2077, 16
        %v2114 = vshll.u32 %v2077, 16
        %v2116 = vrot.slane %v2114, 1
        %v2117 = vor.u32 %v2112, %v2116
        %v2119 = vshrl.u32 %v2078, 16
        %v2121 = vshll.u32 %v2078, 16
        %v2123 = vrot.slane %v2121, 1
        %v2124 = vor.u32 %v2119, %v2123
        %v2126 = vshrl.u32 %v2079, 16
        %v2128 = vshll.u32 %v2079, 16
        %v2130 = vrot.slane %v2128, 1
        %v2131 = vor.u32 %v2126, %v2130
        %v2133 = vshrl.u32 %v2080, 16
        %v2135 = vshll.u32 %v2080, 16
        %v2137 = vrot.slane %v2135, 1
        %v2138 = vor.u32 %v2133, %v2137
        %v2140 = vshrl.u32 %v2081, 16
        %v2142 = vshll.u32 %v2081, 16
        %v2144 = vrot.slane %v2142, 1
        %v2145 = vor.u32 %v2140, %v2144
        %v2147 = vshrl.u32 %v2082, 16
        %v2149 = vshll.u32 %v2082, 16
        %v2151 = vrot.slane %v2149, 1
        %v2152 = vor.u32 %v2147, %v2151
        %v2154 = vshrl.u32 %v2083, 16
        %v2156 = vshll.u32 %v2083, 16
        %v2158 = vrot.slane %v2156, 1
        %v2159 = vor.u32 %v2154, %v2158
        %v2161 = vshrl.u32 %v2084, 16
        %v2163 = vshll.u32 %v2084, 16
        %v2165 = vrot.slane %v2163, 1
        %v2166 = vor.u32 %v2161, %v2165
        %v2168 = vshrl.u32 %v2085, 16
        %v2170 = vshll.u32 %v2085, 16
        %v2172 = vrot.slane %v2170, 1
        %v2173 = vor.u32 %v2168, %v2172
        %v2175 = vshrl.u32 %v2086, 16
        %v2177 = vshll.u32 %v2086, 16
        %v2179 = vrot.slane %v2177, 1
        %v2180 = vor.u32 %v2175, %v2179
        %v2182 = vshrl.u32 %v2087, 16
        %v2184 = vshll.u32 %v2087, 16
        %v2186 = vrot.slane %v2184, 1
        %v2187 = vor.u32 %v2182, %v2186
        %v2189 = vshrl.u32 %v2088, 16
        %v2191 = vshll.u32 %v2088, 16
        %v2193 = vrot.slane %v2191, 1
        %v2194 = vor.u32 %v2189, %v2193
        %v2196 = vshrl.u32 %v2089, 16
        %v2198 = vshll.u32 %v2089, 16
        %v2200 = vrot.slane %v2198, 1
        %v2201 = vor.u32 %v2196, %v2200
        %2202 = vrot.lane.b32.xlu0 %v2096, 64
        %v2203 = vpop.permute.xlu0 %2202
        %2204 = vrot.lane.b32.xlu0 %v2103, 64
        %v2205 = vpop.permute.xlu0 %2204
        %2206 = vrot.lane.b32.xlu0 %v2110, 64
        %v2207 = vpop.permute.xlu0 %2206
        %2208 = vrot.lane.b32.xlu0 %v2117, 64
        %v2209 = vpop.permute.xlu0 %2208
        %2210 = vrot.lane.b32.xlu0 %v2124, 64
        %v2211 = vpop.permute.xlu0 %2210
        %2212 = vrot.lane.b32.xlu0 %v2131, 64
        %v2213 = vpop.permute.xlu0 %2212
        %2214 = vrot.lane.b32.xlu0 %v2138, 64
        %v2215 = vpop.permute.xlu0 %2214
        %2216 = vrot.lane.b32.xlu0 %v2145, 64
        %v2217 = vpop.permute.xlu0 %2216
        %2218 = vrot.lane.b32.xlu0 %v2152, 64
        %v2219 = vpop.permute.xlu0 %2218
        %2220 = vrot.lane.b32.xlu0 %v2159, 64
        %v2221 = vpop.permute.xlu0 %2220
        %2222 = vrot.lane.b32.xlu0 %v2166, 64
        %v2223 = vpop.permute.xlu0 %2222
        %2224 = vrot.lane.b32.xlu0 %v2173, 64
        %v2225 = vpop.permute.xlu0 %2224
        %2226 = vrot.lane.b32.xlu0 %v2180, 64
        %v2227 = vpop.permute.xlu0 %2226
        %2228 = vrot.lane.b32.xlu0 %v2187, 64
        %v2229 = vpop.permute.xlu0 %2228
        %2230 = vrot.lane.b32.xlu0 %v2194, 64
        %v2231 = vpop.permute.xlu0 %2230
        %2232 = vrot.lane.b32.xlu0 %v2201, 64
        %v2233 = vpop.permute.xlu0 %2232
        %vm2250 = vmand %vm1784, %vm1465
        %v2251 = vld [vmem:[#allocation2 + $0x10] sm:$0xff]
        %v2252 = vsel %vm2250, %v2203, %v2251
        %2253 = vst [vmem:[#allocation2 + $0x10] sm:$0xff] %v2252
        %v2254 = vld [vmem:[#allocation2 + $0x38] sm:$0xff]
        %v2255 = vsel %vm2250, %v2205, %v2254
        %2256 = vst [vmem:[#allocation2 + $0x38] sm:$0xff] %v2255
        %v2257 = vld [vmem:[#allocation2 + $0x60] sm:$0xff]
        %v2258 = vsel %vm2250, %v2207, %v2257
        %2259 = vst [vmem:[#allocation2 + $0x60] sm:$0xff] %v2258
        %v2260 = vld [vmem:[#allocation2 + $0x88] sm:$0xff]
        %v2261 = vsel %vm2250, %v2209, %v2260
        %2262 = vst [vmem:[#allocation2 + $0x88] sm:$0xff] %v2261
        %v2263 = vld [vmem:[#allocation2 + $0xb0] sm:$0xff]
        %v2264 = vsel %vm2250, %v2211, %v2263
        %2265 = vst [vmem:[#allocation2 + $0xb0] sm:$0xff] %v2264
        %v2266 = vld [vmem:[#allocation2 + $0xd8] sm:$0xff]
        %v2267 = vsel %vm2250, %v2213, %v2266
        %2268 = vst [vmem:[#allocation2 + $0xd8] sm:$0xff] %v2267
        %v2269 = vld [vmem:[#allocation2 + $0x100] sm:$0xff]
        %v2270 = vsel %vm2250, %v2215, %v2269
        %2271 = vst [vmem:[#allocation2 + $0x100] sm:$0xff] %v2270
        %v2272 = vld [vmem:[#allocation2 + $0x128] sm:$0xff]
        %v2273 = vsel %vm2250, %v2217, %v2272
        %2274 = vst [vmem:[#allocation2 + $0x128] sm:$0xff] %v2273
        %v2275 = vld [vmem:[#allocation2 + $0x150] sm:$0xff]
        %v2276 = vsel %vm2250, %v2219, %v2275
        %2277 = vst [vmem:[#allocation2 + $0x150] sm:$0xff] %v2276
        %v2278 = vld [vmem:[#allocation2 + $0x178] sm:$0xff]
        %v2279 = vsel %vm2250, %v2221, %v2278
        %2280 = vst [vmem:[#allocation2 + $0x178] sm:$0xff] %v2279
        %v2281 = vld [vmem:[#allocation2 + $0x1a0] sm:$0xff]
        %v2282 = vsel %vm2250, %v2223, %v2281
        %2283 = vst [vmem:[#allocation2 + $0x1a0] sm:$0xff] %v2282
        %v2284 = vld [vmem:[#allocation2 + $0x1c8] sm:$0xff]
        %v2285 = vsel %vm2250, %v2225, %v2284
        %2286 = vst [vmem:[#allocation2 + $0x1c8] sm:$0xff] %v2285
        %v2287 = vld [vmem:[#allocation2 + $0x1f0] sm:$0xff]
        %v2288 = vsel %vm2250, %v2227, %v2287
        %2289 = vst [vmem:[#allocation2 + $0x1f0] sm:$0xff] %v2288
        %v2290 = vld [vmem:[#allocation2 + $0x218] sm:$0xff]
        %v2291 = vsel %vm2250, %v2229, %v2290
        %2292 = vst [vmem:[#allocation2 + $0x218] sm:$0xff] %v2291
        %v2293 = vld [vmem:[#allocation2 + $0x240] sm:$0xff]
        %v2294 = vsel %vm2250, %v2231, %v2293
        %2295 = vst [vmem:[#allocation2 + $0x240] sm:$0xff] %v2294
        %v2296 = vld [vmem:[#allocation2 + $0x268] sm:$0xff]
        %v2297 = vsel %vm2250, %v2233, %v2296
        %2298 = vst [vmem:[#allocation2 + $0x268] sm:$0xff] %v2297
        %s2299 = scalar_lea.vmem %s254, 8 [#allocation5]
        %v2300 = vld [vmem:[%s2299] sm:$0xf]
        %v2301 = vld [vmem:[%s2299 + $0x4] sm:$0xf]
        %v2302 = vld [vmem:[%s2299 + $0x8] sm:$0xf]
        %v2303 = vld [vmem:[%s2299 + $0xc] sm:$0xf]
        %v2304 = vld [vmem:[%s2299 + $0x10] sm:$0xf]
        %v2305 = vld [vmem:[%s2299 + $0x14] sm:$0xf]
        %v2306 = vld [vmem:[%s2299 + $0x18] sm:$0xf]
        %v2307 = vld [vmem:[%s2299 + $0x1c] sm:$0xf]
        %v2308 = vld [vmem:[%s2299 + $0x20] sm:$0xf]
        %v2309 = vld [vmem:[%s2299 + $0x24] sm:$0xf]
        %v2310 = vld [vmem:[%s2299 + $0x28] sm:$0xf]
        %v2311 = vld [vmem:[%s2299 + $0x2c] sm:$0xf]
        %v2312 = vld [vmem:[%s2299 + $0x30] sm:$0xf]
        %v2313 = vld [vmem:[%s2299 + $0x34] sm:$0xf]
        %v2314 = vld [vmem:[%s2299 + $0x38] sm:$0xf]
        %v2315 = vld [vmem:[%s2299 + $0x3c] sm:$0xf]
        %v2316 = vld [vmem:[%s2299 + $0x40] sm:$0xf]
        %v2317 = vld [vmem:[%s2299 + $0x44] sm:$0xf]
        %v2318 = vld [vmem:[%s2299 + $0x48] sm:$0xf]
        %v2319 = vld [vmem:[%s2299 + $0x4c] sm:$0xf]
        %v2320 = vld [vmem:[%s2299 + $0x50] sm:$0xf]
        %v2321 = vld [vmem:[%s2299 + $0x54] sm:$0xf]
        %v2322 = vld [vmem:[%s2299 + $0x58] sm:$0xf]
        %v2323 = vld [vmem:[%s2299 + $0x5c] sm:$0xf]
        %v2324 = vld [vmem:[%s2299 + $0x60] sm:$0xf]
        %v2325 = vld [vmem:[%s2299 + $0x64] sm:$0xf]
        %v2326 = vld [vmem:[%s2299 + $0x68] sm:$0xf]
        %v2327 = vld [vmem:[%s2299 + $0x6c] sm:$0xf]
        %v2328 = vld [vmem:[%s2299 + $0x70] sm:$0xf]
        %v2329 = vld [vmem:[%s2299 + $0x74] sm:$0xf]
        %v2360 = vunpack.c.l.b16 %v2300
        %v2361 = vunpack.c.l.b16 %v2301
        %v2362 = vunpack.c.l.b16 %v2302
        %v2363 = vunpack.c.l.b16 %v2303
        %v2364 = vunpack.c.l.b16 %v2304
        %v2365 = vunpack.c.l.b16 %v2305
        %v2366 = vunpack.c.l.b16 %v2306
        %v2367 = vunpack.c.l.b16 %v2307
        %v2368 = vunpack.c.l.b16 %v2308
        %v2369 = vunpack.c.l.b16 %v2309
        %v2370 = vunpack.c.l.b16 %v2310
        %v2371 = vunpack.c.l.b16 %v2311
        %v2372 = vunpack.c.l.b16 %v2312
        %v2373 = vunpack.c.l.b16 %v2313
        %v2374 = vunpack.c.l.b16 %v2314
        %v2375 = vunpack.c.l.b16 %v2315
        %v2376 = vunpack.c.l.b16 %v2316
        %v2377 = vunpack.c.l.b16 %v2317
        %v2378 = vunpack.c.l.b16 %v2318
        %v2379 = vunpack.c.l.b16 %v2319
        %v2380 = vunpack.c.l.b16 %v2320
        %v2381 = vunpack.c.l.b16 %v2321
        %v2382 = vunpack.c.l.b16 %v2322
        %v2383 = vunpack.c.l.b16 %v2323
        %v2384 = vunpack.c.l.b16 %v2324
        %v2385 = vunpack.c.l.b16 %v2325
        %v2386 = vunpack.c.l.b16 %v2326
        %v2387 = vunpack.c.l.b16 %v2327
        %v2388 = vunpack.c.l.b16 %v2328
        %v2389 = vunpack.c.l.b16 %v2329
        %v2390 = vpack.c.b16 %v2361, %v2360
        %v2391 = vpack.c.b16 %v2363, %v2362
        %v2392 = vpack.c.b16 %v2365, %v2364
        %v2393 = vpack.c.b16 %v2367, %v2366
        %v2394 = vpack.c.b16 %v2369, %v2368
        %v2395 = vpack.c.b16 %v2371, %v2370
        %v2396 = vpack.c.b16 %v2373, %v2372
        %v2397 = vpack.c.b16 %v2375, %v2374
        %v2398 = vpack.c.b16 %v2377, %v2376
        %v2399 = vpack.c.b16 %v2379, %v2378
        %v2400 = vpack.c.b16 %v2381, %v2380
        %v2401 = vpack.c.b16 %v2383, %v2382
        %v2402 = vpack.c.b16 %v2385, %v2384
        %v2403 = vpack.c.b16 %v2387, %v2386
        %v2404 = vpack.c.b16 %v2389, %v2388
        %v2406 = vshrl.u32 %v2390, 16
        %v2408 = vrot.slane %v2406, 7
        %v2409 = vshll.u32 %v2390, 16
        %v2411 = vor.u32 %v2408, %v2409
        %v2413 = vshrl.u32 %v2391, 16
        %v2415 = vrot.slane %v2413, 7
        %v2416 = vshll.u32 %v2391, 16
        %v2418 = vor.u32 %v2415, %v2416
        %v2420 = vshrl.u32 %v2392, 16
        %v2422 = vrot.slane %v2420, 7
        %v2423 = vshll.u32 %v2392, 16
        %v2425 = vor.u32 %v2422, %v2423
        %v2427 = vshrl.u32 %v2393, 16
        %v2429 = vrot.slane %v2427, 7
        %v2430 = vshll.u32 %v2393, 16
        %v2432 = vor.u32 %v2429, %v2430
        %v2434 = vshrl.u32 %v2394, 16
        %v2436 = vrot.slane %v2434, 7
        %v2437 = vshll.u32 %v2394, 16
        %v2439 = vor.u32 %v2436, %v2437
        %v2441 = vshrl.u32 %v2395, 16
        %v2443 = vrot.slane %v2441, 7
        %v2444 = vshll.u32 %v2395, 16
        %v2446 = vor.u32 %v2443, %v2444
        %v2448 = vshrl.u32 %v2396, 16
        %v2450 = vrot.slane %v2448, 7
        %v2451 = vshll.u32 %v2396, 16
        %v2453 = vor.u32 %v2450, %v2451
        %v2455 = vshrl.u32 %v2397, 16
        %v2457 = vrot.slane %v2455, 7
        %v2458 = vshll.u32 %v2397, 16
        %v2460 = vor.u32 %v2457, %v2458
        %v2462 = vshrl.u32 %v2398, 16
        %v2464 = vrot.slane %v2462, 7
        %v2465 = vshll.u32 %v2398, 16
        %v2467 = vor.u32 %v2464, %v2465
        %v2469 = vshrl.u32 %v2399, 16
        %v2471 = vrot.slane %v2469, 7
        %v2472 = vshll.u32 %v2399, 16
        %v2474 = vor.u32 %v2471, %v2472
        %v2476 = vshrl.u32 %v2400, 16
        %v2478 = vrot.slane %v2476, 7
        %v2479 = vshll.u32 %v2400, 16
        %v2481 = vor.u32 %v2478, %v2479
        %v2483 = vshrl.u32 %v2401, 16
        %v2485 = vrot.slane %v2483, 7
        %v2486 = vshll.u32 %v2401, 16
        %v2488 = vor.u32 %v2485, %v2486
        %v2490 = vshrl.u32 %v2402, 16
        %v2492 = vrot.slane %v2490, 7
        %v2493 = vshll.u32 %v2402, 16
        %v2495 = vor.u32 %v2492, %v2493
        %v2497 = vshrl.u32 %v2403, 16
        %v2499 = vrot.slane %v2497, 7
        %v2500 = vshll.u32 %v2403, 16
        %v2502 = vor.u32 %v2499, %v2500
        %v2504 = vshrl.u32 %v2404, 16
        %v2506 = vrot.slane %v2504, 7
        %v2507 = vshll.u32 %v2404, 16
        %v2509 = vor.u32 %v2506, %v2507
        %v2525 = vld [vmem:[#allocation2 + $0x18] sm:$0xff]
        %v2526 = vsel %vm1028, %v2411, %v2525
        %2527 = vst [vmem:[#allocation2 + $0x18] sm:$0xff] %v2526
        %v2528 = vld [vmem:[#allocation2 + $0x40] sm:$0xff]
        %v2529 = vsel %vm1028, %v2418, %v2528
        %2530 = vst [vmem:[#allocation2 + $0x40] sm:$0xff] %v2529
        %v2531 = vld [vmem:[#allocation2 + $0x68] sm:$0xff]
        %v2532 = vsel %vm1028, %v2425, %v2531
        %2533 = vst [vmem:[#allocation2 + $0x68] sm:$0xff] %v2532
        %v2534 = vld [vmem:[#allocation2 + $0x90] sm:$0xff]
        %v2535 = vsel %vm1028, %v2432, %v2534
        %2536 = vst [vmem:[#allocation2 + $0x90] sm:$0xff] %v2535
        %v2537 = vld [vmem:[#allocation2 + $0xb8] sm:$0xff]
        %v2538 = vsel %vm1028, %v2439, %v2537
        %2539 = vst [vmem:[#allocation2 + $0xb8] sm:$0xff] %v2538
        %v2540 = vld [vmem:[#allocation2 + $0xe0] sm:$0xff]
        %v2541 = vsel %vm1028, %v2446, %v2540
        %2542 = vst [vmem:[#allocation2 + $0xe0] sm:$0xff] %v2541
        %v2543 = vld [vmem:[#allocation2 + $0x108] sm:$0xff]
        %v2544 = vsel %vm1028, %v2453, %v2543
        %2545 = vst [vmem:[#allocation2 + $0x108] sm:$0xff] %v2544
        %v2546 = vld [vmem:[#allocation2 + $0x130] sm:$0xff]
        %v2547 = vsel %vm1028, %v2460, %v2546
        %2548 = vst [vmem:[#allocation2 + $0x130] sm:$0xff] %v2547
        %v2549 = vld [vmem:[#allocation2 + $0x158] sm:$0xff]
        %v2550 = vsel %vm1028, %v2467, %v2549
        %2551 = vst [vmem:[#allocation2 + $0x158] sm:$0xff] %v2550
        %v2552 = vld [vmem:[#allocation2 + $0x180] sm:$0xff]
        %v2553 = vsel %vm1028, %v2474, %v2552
        %2554 = vst [vmem:[#allocation2 + $0x180] sm:$0xff] %v2553
        %v2555 = vld [vmem:[#allocation2 + $0x1a8] sm:$0xff]
        %v2556 = vsel %vm1028, %v2481, %v2555
        %2557 = vst [vmem:[#allocation2 + $0x1a8] sm:$0xff] %v2556
        %v2558 = vld [vmem:[#allocation2 + $0x1d0] sm:$0xff]
        %v2559 = vsel %vm1028, %v2488, %v2558
        %2560 = vst [vmem:[#allocation2 + $0x1d0] sm:$0xff] %v2559
        %v2561 = vld [vmem:[#allocation2 + $0x1f8] sm:$0xff]
        %v2562 = vsel %vm1028, %v2495, %v2561
        %2563 = vst [vmem:[#allocation2 + $0x1f8] sm:$0xff] %v2562
        %v2564 = vld [vmem:[#allocation2 + $0x220] sm:$0xff]
        %v2565 = vsel %vm1028, %v2502, %v2564
        %2566 = vst [vmem:[#allocation2 + $0x220] sm:$0xff] %v2565
        %v2567 = vld [vmem:[#allocation2 + $0x248] sm:$0xff]
        %v2568 = vsel %vm1028, %v2509, %v2567
        %2569 = vst [vmem:[#allocation2 + $0x248] sm:$0xff] %v2568
        %v2570 = vld [vmem:[%s2299] sm:$0xf]
        %v2571 = vld [vmem:[%s2299 + $0x4] sm:$0xf]
        %v2572 = vld [vmem:[%s2299 + $0x8] sm:$0xf]
        %v2573 = vld [vmem:[%s2299 + $0xc] sm:$0xf]
        %v2574 = vld [vmem:[%s2299 + $0x10] sm:$0xf]
        %v2575 = vld [vmem:[%s2299 + $0x14] sm:$0xf]
        %v2576 = vld [vmem:[%s2299 + $0x18] sm:$0xf]
        %v2577 = vld [vmem:[%s2299 + $0x1c] sm:$0xf]
        %v2578 = vld [vmem:[%s2299 + $0x20] sm:$0xf]
        %v2579 = vld [vmem:[%s2299 + $0x24] sm:$0xf]
        %v2580 = vld [vmem:[%s2299 + $0x28] sm:$0xf]
        %v2581 = vld [vmem:[%s2299 + $0x2c] sm:$0xf]
        %v2582 = vld [vmem:[%s2299 + $0x30] sm:$0xf]
        %v2583 = vld [vmem:[%s2299 + $0x34] sm:$0xf]
        %v2584 = vld [vmem:[%s2299 + $0x38] sm:$0xf]
        %v2585 = vld [vmem:[%s2299 + $0x3c] sm:$0xf]
        %v2586 = vld [vmem:[%s2299 + $0x40] sm:$0xf]
        %v2587 = vld [vmem:[%s2299 + $0x44] sm:$0xf]
        %v2588 = vld [vmem:[%s2299 + $0x48] sm:$0xf]
        %v2589 = vld [vmem:[%s2299 + $0x4c] sm:$0xf]
        %v2590 = vld [vmem:[%s2299 + $0x50] sm:$0xf]
        %v2591 = vld [vmem:[%s2299 + $0x54] sm:$0xf]
        %v2592 = vld [vmem:[%s2299 + $0x58] sm:$0xf]
        %v2593 = vld [vmem:[%s2299 + $0x5c] sm:$0xf]
        %v2594 = vld [vmem:[%s2299 + $0x60] sm:$0xf]
        %v2595 = vld [vmem:[%s2299 + $0x64] sm:$0xf]
        %v2596 = vld [vmem:[%s2299 + $0x68] sm:$0xf]
        %v2597 = vld [vmem:[%s2299 + $0x6c] sm:$0xf]
        %v2598 = vld [vmem:[%s2299 + $0x70] sm:$0xf]
        %v2599 = vld [vmem:[%s2299 + $0x74] sm:$0xf]
        %v2630 = vunpack.c.l.b16 %v2570
        %v2631 = vunpack.c.l.b16 %v2571
        %v2632 = vunpack.c.l.b16 %v2572
        %v2633 = vunpack.c.l.b16 %v2573
        %v2634 = vunpack.c.l.b16 %v2574
        %v2635 = vunpack.c.l.b16 %v2575
        %v2636 = vunpack.c.l.b16 %v2576
        %v2637 = vunpack.c.l.b16 %v2577
        %v2638 = vunpack.c.l.b16 %v2578
        %v2639 = vunpack.c.l.b16 %v2579
        %v2640 = vunpack.c.l.b16 %v2580
        %v2641 = vunpack.c.l.b16 %v2581
        %v2642 = vunpack.c.l.b16 %v2582
        %v2643 = vunpack.c.l.b16 %v2583
        %v2644 = vunpack.c.l.b16 %v2584
        %v2645 = vunpack.c.l.b16 %v2585
        %v2646 = vunpack.c.l.b16 %v2586
        %v2647 = vunpack.c.l.b16 %v2587
        %v2648 = vunpack.c.l.b16 %v2588
        %v2649 = vunpack.c.l.b16 %v2589
        %v2650 = vunpack.c.l.b16 %v2590
        %v2651 = vunpack.c.l.b16 %v2591
        %v2652 = vunpack.c.l.b16 %v2592
        %v2653 = vunpack.c.l.b16 %v2593
        %v2654 = vunpack.c.l.b16 %v2594
        %v2655 = vunpack.c.l.b16 %v2595
        %v2656 = vunpack.c.l.b16 %v2596
        %v2657 = vunpack.c.l.b16 %v2597
        %v2658 = vunpack.c.l.b16 %v2598
        %v2659 = vunpack.c.l.b16 %v2599
        %v2660 = vpack.c.b16 %v2631, %v2630
        %v2661 = vpack.c.b16 %v2633, %v2632
        %v2662 = vpack.c.b16 %v2635, %v2634
        %v2663 = vpack.c.b16 %v2637, %v2636
        %v2664 = vpack.c.b16 %v2639, %v2638
        %v2665 = vpack.c.b16 %v2641, %v2640
        %v2666 = vpack.c.b16 %v2643, %v2642
        %v2667 = vpack.c.b16 %v2645, %v2644
        %v2668 = vpack.c.b16 %v2647, %v2646
        %v2669 = vpack.c.b16 %v2649, %v2648
        %v2670 = vpack.c.b16 %v2651, %v2650
        %v2671 = vpack.c.b16 %v2653, %v2652
        %v2672 = vpack.c.b16 %v2655, %v2654
        %v2673 = vpack.c.b16 %v2657, %v2656
        %v2674 = vpack.c.b16 %v2659, %v2658
        %2675 = vrot.lane.b32.xlu0 %v2660, 64
        %v2676 = vpop.permute.xlu0 %2675
        %2677 = vrot.lane.b32.xlu0 %v2661, 64
        %v2678 = vpop.permute.xlu0 %2677
        %2679 = vrot.lane.b32.xlu0 %v2662, 64
        %v2680 = vpop.permute.xlu0 %2679
        %2681 = vrot.lane.b32.xlu0 %v2663, 64
        %v2682 = vpop.permute.xlu0 %2681
        %2683 = vrot.lane.b32.xlu0 %v2664, 64
        %v2684 = vpop.permute.xlu0 %2683
        %2685 = vrot.lane.b32.xlu0 %v2665, 64
        %v2686 = vpop.permute.xlu0 %2685
        %2687 = vrot.lane.b32.xlu0 %v2666, 64
        %v2688 = vpop.permute.xlu0 %2687
        %2689 = vrot.lane.b32.xlu0 %v2667, 64
        %v2690 = vpop.permute.xlu0 %2689
        %2691 = vrot.lane.b32.xlu0 %v2668, 64
        %v2692 = vpop.permute.xlu0 %2691
        %2693 = vrot.lane.b32.xlu0 %v2669, 64
        %v2694 = vpop.permute.xlu0 %2693
        %2695 = vrot.lane.b32.xlu0 %v2670, 64
        %v2696 = vpop.permute.xlu0 %2695
        %2697 = vrot.lane.b32.xlu0 %v2671, 64
        %v2698 = vpop.permute.xlu0 %2697
        %2699 = vrot.lane.b32.xlu0 %v2672, 64
        %v2700 = vpop.permute.xlu0 %2699
        %2701 = vrot.lane.b32.xlu0 %v2673, 64
        %v2702 = vpop.permute.xlu0 %2701
        %2703 = vrot.lane.b32.xlu0 %v2674, 64
        %v2704 = vpop.permute.xlu0 %2703
        %2720 = vst.msk [vmem:[#allocation2 + $0x18] sm:$0xff] %vm1224, %v2676
        %2721 = vst.msk [vmem:[#allocation2 + $0x40] sm:$0xff] %vm1224, %v2678
        %2722 = vst.msk [vmem:[#allocation2 + $0x68] sm:$0xff] %vm1224, %v2680
        %2723 = vst.msk [vmem:[#allocation2 + $0x90] sm:$0xff] %vm1224, %v2682
        %2724 = vst.msk [vmem:[#allocation2 + $0xb8] sm:$0xff] %vm1224, %v2684
        %2725 = vst.msk [vmem:[#allocation2 + $0xe0] sm:$0xff] %vm1224, %v2686
        %2726 = vst.msk [vmem:[#allocation2 + $0x108] sm:$0xff] %vm1224, %v2688
        %2727 = vst.msk [vmem:[#allocation2 + $0x130] sm:$0xff] %vm1224, %v2690
        %2728 = vst.msk [vmem:[#allocation2 + $0x158] sm:$0xff] %vm1224, %v2692
        %2729 = vst.msk [vmem:[#allocation2 + $0x180] sm:$0xff] %vm1224, %v2694
        %2730 = vst.msk [vmem:[#allocation2 + $0x1a8] sm:$0xff] %vm1224, %v2696
        %2731 = vst.msk [vmem:[#allocation2 + $0x1d0] sm:$0xff] %vm1224, %v2698
        %2732 = vst.msk [vmem:[#allocation2 + $0x1f8] sm:$0xff] %vm1224, %v2700
        %2733 = vst.msk [vmem:[#allocation2 + $0x220] sm:$0xff] %vm1224, %v2702
        %2734 = vst.msk [vmem:[#allocation2 + $0x248] sm:$0xff] %vm1224, %v2704
        %v2735 = vld [vmem:[%s2299] sm:$0xf]
        %v2736 = vld [vmem:[%s2299 + $0x4] sm:$0xf]
        %v2737 = vld [vmem:[%s2299 + $0x8] sm:$0xf]
        %v2738 = vld [vmem:[%s2299 + $0xc] sm:$0xf]
        %v2739 = vld [vmem:[%s2299 + $0x10] sm:$0xf]
        %v2740 = vld [vmem:[%s2299 + $0x14] sm:$0xf]
        %v2741 = vld [vmem:[%s2299 + $0x18] sm:$0xf]
        %v2742 = vld [vmem:[%s2299 + $0x1c] sm:$0xf]
        %v2743 = vld [vmem:[%s2299 + $0x20] sm:$0xf]
        %v2744 = vld [vmem:[%s2299 + $0x24] sm:$0xf]
        %v2745 = vld [vmem:[%s2299 + $0x28] sm:$0xf]
        %v2746 = vld [vmem:[%s2299 + $0x2c] sm:$0xf]
        %v2747 = vld [vmem:[%s2299 + $0x30] sm:$0xf]
        %v2748 = vld [vmem:[%s2299 + $0x34] sm:$0xf]
        %v2749 = vld [vmem:[%s2299 + $0x38] sm:$0xf]
        %v2750 = vld [vmem:[%s2299 + $0x3c] sm:$0xf]
        %v2751 = vld [vmem:[%s2299 + $0x40] sm:$0xf]
        %v2752 = vld [vmem:[%s2299 + $0x44] sm:$0xf]
        %v2753 = vld [vmem:[%s2299 + $0x48] sm:$0xf]
        %v2754 = vld [vmem:[%s2299 + $0x4c] sm:$0xf]
        %v2755 = vld [vmem:[%s2299 + $0x50] sm:$0xf]
        %v2756 = vld [vmem:[%s2299 + $0x54] sm:$0xf]
        %v2757 = vld [vmem:[%s2299 + $0x58] sm:$0xf]
        %v2758 = vld [vmem:[%s2299 + $0x5c] sm:$0xf]
        %v2759 = vld [vmem:[%s2299 + $0x60] sm:$0xf]
        %v2760 = vld [vmem:[%s2299 + $0x64] sm:$0xf]
        %v2761 = vld [vmem:[%s2299 + $0x68] sm:$0xf]
        %v2762 = vld [vmem:[%s2299 + $0x6c] sm:$0xf]
        %v2763 = vld [vmem:[%s2299 + $0x70] sm:$0xf]
        %v2764 = vld [vmem:[%s2299 + $0x74] sm:$0xf]
        %v2795 = vunpack.c.l.b16 %v2735
        %v2796 = vunpack.c.l.b16 %v2736
        %v2797 = vunpack.c.l.b16 %v2737
        %v2798 = vunpack.c.l.b16 %v2738
        %v2799 = vunpack.c.l.b16 %v2739
        %v2800 = vunpack.c.l.b16 %v2740
        %v2801 = vunpack.c.l.b16 %v2741
        %v2802 = vunpack.c.l.b16 %v2742
        %v2803 = vunpack.c.l.b16 %v2743
        %v2804 = vunpack.c.l.b16 %v2744
        %v2805 = vunpack.c.l.b16 %v2745
        %v2806 = vunpack.c.l.b16 %v2746
        %v2807 = vunpack.c.l.b16 %v2747
        %v2808 = vunpack.c.l.b16 %v2748
        %v2809 = vunpack.c.l.b16 %v2749
        %v2810 = vunpack.c.l.b16 %v2750
        %v2811 = vunpack.c.l.b16 %v2751
        %v2812 = vunpack.c.l.b16 %v2752
        %v2813 = vunpack.c.l.b16 %v2753
        %v2814 = vunpack.c.l.b16 %v2754
        %v2815 = vunpack.c.l.b16 %v2755
        %v2816 = vunpack.c.l.b16 %v2756
        %v2817 = vunpack.c.l.b16 %v2757
        %v2818 = vunpack.c.l.b16 %v2758
        %v2819 = vunpack.c.l.b16 %v2759
        %v2820 = vunpack.c.l.b16 %v2760
        %v2821 = vunpack.c.l.b16 %v2761
        %v2822 = vunpack.c.l.b16 %v2762
        %v2823 = vunpack.c.l.b16 %v2763
        %v2824 = vunpack.c.l.b16 %v2764
        %v2825 = vpack.c.b16 %v2796, %v2795
        %v2826 = vpack.c.b16 %v2798, %v2797
        %v2827 = vpack.c.b16 %v2800, %v2799
        %v2828 = vpack.c.b16 %v2802, %v2801
        %v2829 = vpack.c.b16 %v2804, %v2803
        %v2830 = vpack.c.b16 %v2806, %v2805
        %v2831 = vpack.c.b16 %v2808, %v2807
        %v2832 = vpack.c.b16 %v2810, %v2809
        %v2833 = vpack.c.b16 %v2812, %v2811
        %v2834 = vpack.c.b16 %v2814, %v2813
        %v2835 = vpack.c.b16 %v2816, %v2815
        %v2836 = vpack.c.b16 %v2818, %v2817
        %v2837 = vpack.c.b16 %v2820, %v2819
        %v2838 = vpack.c.b16 %v2822, %v2821
        %v2839 = vpack.c.b16 %v2824, %v2823
        %v2841 = vshrl.u32 %v2825, 16
        %v2843 = vshll.u32 %v2825, 16
        %v2845 = vrot.slane %v2843, 1
        %v2846 = vor.u32 %v2841, %v2845
        %v2848 = vshrl.u32 %v2826, 16
        %v2850 = vshll.u32 %v2826, 16
        %v2852 = vrot.slane %v2850, 1
        %v2853 = vor.u32 %v2848, %v2852
        %v2855 = vshrl.u32 %v2827, 16
        %v2857 = vshll.u32 %v2827, 16
        %v2859 = vrot.slane %v2857, 1
        %v2860 = vor.u32 %v2855, %v2859
        %v2862 = vshrl.u32 %v2828, 16
        %v2864 = vshll.u32 %v2828, 16
        %v2866 = vrot.slane %v2864, 1
        %v2867 = vor.u32 %v2862, %v2866
        %v2869 = vshrl.u32 %v2829, 16
        %v2871 = vshll.u32 %v2829, 16
        %v2873 = vrot.slane %v2871, 1
        %v2874 = vor.u32 %v2869, %v2873
        %v2876 = vshrl.u32 %v2830, 16
        %v2878 = vshll.u32 %v2830, 16
        %v2880 = vrot.slane %v2878, 1
        %v2881 = vor.u32 %v2876, %v2880
        %v2883 = vshrl.u32 %v2831, 16
        %v2885 = vshll.u32 %v2831, 16
        %v2887 = vrot.slane %v2885, 1
        %v2888 = vor.u32 %v2883, %v2887
        %v2890 = vshrl.u32 %v2832, 16
        %v2892 = vshll.u32 %v2832, 16
        %v2894 = vrot.slane %v2892, 1
        %v2895 = vor.u32 %v2890, %v2894
        %v2897 = vshrl.u32 %v2833, 16
        %v2899 = vshll.u32 %v2833, 16
        %v2901 = vrot.slane %v2899, 1
        %v2902 = vor.u32 %v2897, %v2901
        %v2904 = vshrl.u32 %v2834, 16
        %v2906 = vshll.u32 %v2834, 16
        %v2908 = vrot.slane %v2906, 1
        %v2909 = vor.u32 %v2904, %v2908
        %v2911 = vshrl.u32 %v2835, 16
        %v2913 = vshll.u32 %v2835, 16
        %v2915 = vrot.slane %v2913, 1
        %v2916 = vor.u32 %v2911, %v2915
        %v2918 = vshrl.u32 %v2836, 16
        %v2920 = vshll.u32 %v2836, 16
        %v2922 = vrot.slane %v2920, 1
        %v2923 = vor.u32 %v2918, %v2922
        %v2925 = vshrl.u32 %v2837, 16
        %v2927 = vshll.u32 %v2837, 16
        %v2929 = vrot.slane %v2927, 1
        %v2930 = vor.u32 %v2925, %v2929
        %v2932 = vshrl.u32 %v2838, 16
        %v2934 = vshll.u32 %v2838, 16
        %v2936 = vrot.slane %v2934, 1
        %v2937 = vor.u32 %v2932, %v2936
        %v2939 = vshrl.u32 %v2839, 16
        %v2941 = vshll.u32 %v2839, 16
        %v2943 = vrot.slane %v2941, 1
        %v2944 = vor.u32 %v2939, %v2943
        %v2960 = vld [vmem:[#allocation2 + $0x20] sm:$0xff]
        %v2961 = vsel %vm1466, %v2846, %v2960
        %2962 = vst [vmem:[#allocation2 + $0x20] sm:$0xff] %v2961
        %v2963 = vld [vmem:[#allocation2 + $0x48] sm:$0xff]
        %v2964 = vsel %vm1466, %v2853, %v2963
        %2965 = vst [vmem:[#allocation2 + $0x48] sm:$0xff] %v2964
        %v2966 = vld [vmem:[#allocation2 + $0x70] sm:$0xff]
        %v2967 = vsel %vm1466, %v2860, %v2966
        %2968 = vst [vmem:[#allocation2 + $0x70] sm:$0xff] %v2967
        %v2969 = vld [vmem:[#allocation2 + $0x98] sm:$0xff]
        %v2970 = vsel %vm1466, %v2867, %v2969
        %2971 = vst [vmem:[#allocation2 + $0x98] sm:$0xff] %v2970
        %v2972 = vld [vmem:[#allocation2 + $0xc0] sm:$0xff]
        %v2973 = vsel %vm1466, %v2874, %v2972
        %2974 = vst [vmem:[#allocation2 + $0xc0] sm:$0xff] %v2973
        %v2975 = vld [vmem:[#allocation2 + $0xe8] sm:$0xff]
        %v2976 = vsel %vm1466, %v2881, %v2975
        %2977 = vst [vmem:[#allocation2 + $0xe8] sm:$0xff] %v2976
        %v2978 = vld [vmem:[#allocation2 + $0x110] sm:$0xff]
        %v2979 = vsel %vm1466, %v2888, %v2978
        %2980 = vst [vmem:[#allocation2 + $0x110] sm:$0xff] %v2979
        %v2981 = vld [vmem:[#allocation2 + $0x138] sm:$0xff]
        %v2982 = vsel %vm1466, %v2895, %v2981
        %2983 = vst [vmem:[#allocation2 + $0x138] sm:$0xff] %v2982
        %v2984 = vld [vmem:[#allocation2 + $0x160] sm:$0xff]
        %v2985 = vsel %vm1466, %v2902, %v2984
        %2986 = vst [vmem:[#allocation2 + $0x160] sm:$0xff] %v2985
        %v2987 = vld [vmem:[#allocation2 + $0x188] sm:$0xff]
        %v2988 = vsel %vm1466, %v2909, %v2987
        %2989 = vst [vmem:[#allocation2 + $0x188] sm:$0xff] %v2988
        %v2990 = vld [vmem:[#allocation2 + $0x1b0] sm:$0xff]
        %v2991 = vsel %vm1466, %v2916, %v2990
        %2992 = vst [vmem:[#allocation2 + $0x1b0] sm:$0xff] %v2991
        %v2993 = vld [vmem:[#allocation2 + $0x1d8] sm:$0xff]
        %v2994 = vsel %vm1466, %v2923, %v2993
        %2995 = vst [vmem:[#allocation2 + $0x1d8] sm:$0xff] %v2994
        %v2996 = vld [vmem:[#allocation2 + $0x200] sm:$0xff]
        %v2997 = vsel %vm1466, %v2930, %v2996
        %2998 = vst [vmem:[#allocation2 + $0x200] sm:$0xff] %v2997
        %v2999 = vld [vmem:[#allocation2 + $0x228] sm:$0xff]
        %v3000 = vsel %vm1466, %v2937, %v2999
        %3001 = vst [vmem:[#allocation2 + $0x228] sm:$0xff] %v3000
        %v3002 = vld [vmem:[#allocation2 + $0x250] sm:$0xff]
        %v3003 = vsel %vm1466, %v2944, %v3002
        %3004 = vst [vmem:[#allocation2 + $0x250] sm:$0xff] %v3003
        %v3005 = vld [vmem:[#allocation2] sm:$0xff]
        %v3006 = vld [vmem:[#allocation2 + $0x8] sm:$0xff]
        %v3007 = vld [vmem:[#allocation2 + $0x10] sm:$0xff]
        %v3008 = vld [vmem:[#allocation2 + $0x18] sm:$0xff]
        %v3009 = vld [vmem:[#allocation2 + $0x20] sm:$0xff]
        %v3010 = vld [vmem:[#allocation2 + $0x28] sm:$0xff]
        %v3011 = vld [vmem:[#allocation2 + $0x30] sm:$0xff]
        %v3012 = vld [vmem:[#allocation2 + $0x38] sm:$0xff]
        %v3013 = vld [vmem:[#allocation2 + $0x40] sm:$0xff]
        %v3014 = vld [vmem:[#allocation2 + $0x48] sm:$0xff]
        %v3015 = vld [vmem:[#allocation2 + $0x50] sm:$0xff]
        %v3016 = vld [vmem:[#allocation2 + $0x58] sm:$0xff]
        %v3017 = vld [vmem:[#allocation2 + $0x60] sm:$0xff]
        %v3018 = vld [vmem:[#allocation2 + $0x68] sm:$0xff]
        %v3019 = vld [vmem:[#allocation2 + $0x70] sm:$0xff]
        %v3020 = vld [vmem:[#allocation2 + $0x78] sm:$0xff]
        %v3021 = vld [vmem:[#allocation2 + $0x80] sm:$0xff]
        %v3022 = vld [vmem:[#allocation2 + $0x88] sm:$0xff]
        %v3023 = vld [vmem:[#allocation2 + $0x90] sm:$0xff]
        %v3024 = vld [vmem:[#allocation2 + $0x98] sm:$0xff]
        %v3025 = vld [vmem:[#allocation2 + $0xa0] sm:$0xff]
        %v3026 = vld [vmem:[#allocation2 + $0xa8] sm:$0xff]
        %v3027 = vld [vmem:[#allocation2 + $0xb0] sm:$0xff]
        %v3028 = vld [vmem:[#allocation2 + $0xb8] sm:$0xff]
        %v3029 = vld [vmem:[#allocation2 + $0xc0] sm:$0xff]
        %v3030 = vld [vmem:[#allocation2 + $0xc8] sm:$0xff]
        %v3031 = vld [vmem:[#allocation2 + $0xd0] sm:$0xff]
        %v3032 = vld [vmem:[#allocation2 + $0xd8] sm:$0xff]
        %v3033 = vld [vmem:[#allocation2 + $0xe0] sm:$0xff]
        %v3034 = vld [vmem:[#allocation2 + $0xe8] sm:$0xff]
        %v3035 = vld [vmem:[#allocation2 + $0xf0] sm:$0xff]
        %v3036 = vld [vmem:[#allocation2 + $0xf8] sm:$0xff]
        %v3037 = vld [vmem:[#allocation2 + $0x100] sm:$0xff]
        %v3038 = vld [vmem:[#allocation2 + $0x108] sm:$0xff]
        %v3039 = vld [vmem:[#allocation2 + $0x110] sm:$0xff]
        %v3040 = vld [vmem:[#allocation2 + $0x118] sm:$0xff]
        %v3041 = vld [vmem:[#allocation2 + $0x120] sm:$0xff]
        %v3042 = vld [vmem:[#allocation2 + $0x128] sm:$0xff]
        %v3043 = vld [vmem:[#allocation2 + $0x130] sm:$0xff]
        %v3044 = vld [vmem:[#allocation2 + $0x138] sm:$0xff]
        %v3045 = vld [vmem:[#allocation2 + $0x140] sm:$0xff]
        %v3046 = vld [vmem:[#allocation2 + $0x148] sm:$0xff]
        %v3047 = vld [vmem:[#allocation2 + $0x150] sm:$0xff]
        %v3048 = vld [vmem:[#allocation2 + $0x158] sm:$0xff]
        %v3049 = vld [vmem:[#allocation2 + $0x160] sm:$0xff]
        %v3050 = vld [vmem:[#allocation2 + $0x168] sm:$0xff]
        %v3051 = vld [vmem:[#allocation2 + $0x170] sm:$0xff]
        %v3052 = vld [vmem:[#allocation2 + $0x178] sm:$0xff]
        %v3053 = vld [vmem:[#allocation2 + $0x180] sm:$0xff]
        %v3054 = vld [vmem:[#allocation2 + $0x188] sm:$0xff]
        %v3055 = vld [vmem:[#allocation2 + $0x190] sm:$0xff]
        %v3056 = vld [vmem:[#allocation2 + $0x198] sm:$0xff]
        %v3057 = vld [vmem:[#allocation2 + $0x1a0] sm:$0xff]
        %v3058 = vld [vmem:[#allocation2 + $0x1a8] sm:$0xff]
        %v3059 = vld [vmem:[#allocation2 + $0x1b0] sm:$0xff]
        %v3060 = vld [vmem:[#allocation2 + $0x1b8] sm:$0xff]
        %v3061 = vld [vmem:[#allocation2 + $0x1c0] sm:$0xff]
        %v3062 = vld [vmem:[#allocation2 + $0x1c8] sm:$0xff]
        %v3063 = vld [vmem:[#allocation2 + $0x1d0] sm:$0xff]
        %v3064 = vld [vmem:[#allocation2 + $0x1d8] sm:$0xff]
        %v3065 = vld [vmem:[#allocation2 + $0x1e0] sm:$0xff]
        %v3066 = vld [vmem:[#allocation2 + $0x1e8] sm:$0xff]
        %v3067 = vld [vmem:[#allocation2 + $0x1f0] sm:$0xff]
        %v3068 = vld [vmem:[#allocation2 + $0x1f8] sm:$0xff]
        %v3069 = vld [vmem:[#allocation2 + $0x200] sm:$0xff]
        %v3070 = vld [vmem:[#allocation2 + $0x208] sm:$0xff]
        %v3071 = vld [vmem:[#allocation2 + $0x210] sm:$0xff]
        %v3072 = vld [vmem:[#allocation2 + $0x218] sm:$0xff]
        %v3073 = vld [vmem:[#allocation2 + $0x220] sm:$0xff]
        %v3074 = vld [vmem:[#allocation2 + $0x228] sm:$0xff]
        %v3075 = vld [vmem:[#allocation2 + $0x230] sm:$0xff]
        %v3076 = vld [vmem:[#allocation2 + $0x238] sm:$0xff]
        %v3077 = vld [vmem:[#allocation2 + $0x240] sm:$0xff]
        %v3078 = vld [vmem:[#allocation2 + $0x248] sm:$0xff]
        %v3079 = vld [vmem:[#allocation2 + $0x250] sm:$0xff]
        %v3080 = vld [vmem:[#allocation2 + $0x258] sm:$0xff]
        %v3081 = vld [vmem:[#allocation2 + $0x260] sm:$0xff]
        %v3082 = vld [vmem:[#allocation2 + $0x268] sm:$0xff]
        %v3083 = vld [vmem:[#allocation2 + $0x270] sm:$0xff]
        %v3084 = vld [vmem:[#allocation2 + $0x278] sm:$0xff]
        %v3085 = vld [vmem:[#allocation8] sm:$0xf]
        %v3086 = vld [vmem:[#allocation8 + $0x4] sm:$0xf]
        %v3087 = vld [vmem:[#allocation8 + $0x8] sm:$0xf]
        %v3088 = vld [vmem:[#allocation8 + $0xc] sm:$0xf]
        %v3089 = vld [vmem:[#allocation8 + $0x10] sm:$0xf]
        %v3090 = vld [vmem:[#allocation8 + $0x14] sm:$0xf]
        %v3091 = vld [vmem:[#allocation8 + $0x18] sm:$0xf]
        %v3092 = vld [vmem:[#allocation8 + $0x1c] sm:$0xf]
        %v3093 = vld [vmem:[#allocation8 + $0x20] sm:$0xf]
        %v3094 = vld [vmem:[#allocation8 + $0x24] sm:$0xf]
        %v3095 = vld [vmem:[#allocation8 + $0x28] sm:$0xf]
        %v3096 = vld [vmem:[#allocation8 + $0x2c] sm:$0xf]
        %v3097 = vld [vmem:[#allocation8 + $0x30] sm:$0xf]
        %v3098 = vld [vmem:[#allocation8 + $0x34] sm:$0xf]
        %v3099 = vld [vmem:[#allocation8 + $0x38] sm:$0xf]
        %v3100 = vld [vmem:[#allocation8 + $0x3c] sm:$0xf]
        %v3101 = vld [vmem:[#allocation8 + $0x40] sm:$0xf]
        %v3102 = vld [vmem:[#allocation8 + $0x44] sm:$0xf]
        %v3103 = vld [vmem:[#allocation8 + $0x48] sm:$0xf]
        %v3104 = vld [vmem:[#allocation8 + $0x4c] sm:$0xf]
        %v3105 = vld [vmem:[#allocation8 + $0x50] sm:$0xf]
        %v3106 = vld [vmem:[#allocation8 + $0x54] sm:$0xf]
        %v3107 = vld [vmem:[#allocation8 + $0x58] sm:$0xf]
        %v3108 = vld [vmem:[#allocation8 + $0x5c] sm:$0xf]
        %v3109 = vld [vmem:[#allocation8 + $0x60] sm:$0xf]
        %v3110 = vld [vmem:[#allocation8 + $0x64] sm:$0xf]
        %v3111 = vld [vmem:[#allocation8 + $0x68] sm:$0xf]
        %v3112 = vld [vmem:[#allocation8 + $0x6c] sm:$0xf]
        %v3113 = vld [vmem:[#allocation8 + $0x70] sm:$0xf]
        %v3114 = vld [vmem:[#allocation8 + $0x74] sm:$0xf]
        %v3115 = vld [vmem:[#allocation8 + $0x78] sm:$0xf]
        %v3116 = vld [vmem:[#allocation8 + $0x7c] sm:$0xf]
        %v3117 = vld [vmem:[#allocation8 + $0x80] sm:$0xf]
        %v3118 = vld [vmem:[#allocation8 + $0x84] sm:$0xf]
        %v3119 = vld [vmem:[#allocation8 + $0x88] sm:$0xf]
        %v3120 = vld [vmem:[#allocation8 + $0x8c] sm:$0xf]
        %v3121 = vld [vmem:[#allocation8 + $0x90] sm:$0xf]
        %v3122 = vld [vmem:[#allocation8 + $0x94] sm:$0xf]
        %v3123 = vld [vmem:[#allocation8 + $0x98] sm:$0xf]
        %v3124 = vld [vmem:[#allocation8 + $0x9c] sm:$0xf]
        %v3125 = vld [vmem:[#allocation8 + $0xa0] sm:$0xf]
        %v3126 = vld [vmem:[#allocation8 + $0xa4] sm:$0xf]
        %v3127 = vld [vmem:[#allocation8 + $0xa8] sm:$0xf]
        %v3128 = vld [vmem:[#allocation8 + $0xac] sm:$0xf]
        %v3129 = vld [vmem:[#allocation8 + $0xb0] sm:$0xf]
        %v3130 = vld [vmem:[#allocation8 + $0xb4] sm:$0xf]
        %v3131 = vld [vmem:[#allocation8 + $0xb8] sm:$0xf]
        %v3132 = vld [vmem:[#allocation8 + $0xbc] sm:$0xf]
        %v3133 = vld [vmem:[#allocation8 + $0xc0] sm:$0xf]
        %v3134 = vld [vmem:[#allocation8 + $0xc4] sm:$0xf]
        %v3135 = vld [vmem:[#allocation8 + $0xc8] sm:$0xf]
        %v3136 = vld [vmem:[#allocation8 + $0xcc] sm:$0xf]
        %v3137 = vld [vmem:[#allocation8 + $0xd0] sm:$0xf]
        %v3138 = vld [vmem:[#allocation8 + $0xd4] sm:$0xf]
        %v3139 = vld [vmem:[#allocation8 + $0xd8] sm:$0xf]
        %v3140 = vld [vmem:[#allocation8 + $0xdc] sm:$0xf]
        %v3141 = vld [vmem:[#allocation8 + $0xe0] sm:$0xf]
        %v3142 = vld [vmem:[#allocation8 + $0xe4] sm:$0xf]
        %v3143 = vld [vmem:[#allocation8 + $0xe8] sm:$0xf]
        %v3144 = vld [vmem:[#allocation8 + $0xec] sm:$0xf]
        %v3145 = vld [vmem:[#allocation8 + $0xf0] sm:$0xf]
        %v3146 = vld [vmem:[#allocation8 + $0xf4] sm:$0xf]
        %v3147 = vld [vmem:[#allocation8 + $0xf8] sm:$0xf]
        %v3148 = vld [vmem:[#allocation8 + $0xfc] sm:$0xf]
        %v3149 = vld [vmem:[#allocation8 + $0x100] sm:$0xf]
        %v3150 = vld [vmem:[#allocation8 + $0x104] sm:$0xf]
        %v3151 = vld [vmem:[#allocation8 + $0x108] sm:$0xf]
        %v3152 = vld [vmem:[#allocation8 + $0x10c] sm:$0xf]
        %v3153 = vld [vmem:[#allocation8 + $0x110] sm:$0xf]
        %v3154 = vld [vmem:[#allocation8 + $0x114] sm:$0xf]
        %v3155 = vld [vmem:[#allocation8 + $0x118] sm:$0xf]
        %v3156 = vld [vmem:[#allocation8 + $0x11c] sm:$0xf]
        %v3157 = vld [vmem:[#allocation10] sm:$0x1]
        %v3159 = vlaneseq
        %v3160 = vshrl.u32 %v3159, 7
        %v3161 = vsub.s32 0, %v3160
        %v3162 = vrot.slane %v3157, %v3161
        %v3236 = vunpack.c.l.b16 %v3085
        %v3237 = vunpack.c.l.b16 %v3086
        %v3238 = vunpack.c.l.b16 %v3087
        %v3239 = vunpack.c.l.b16 %v3088
        %v3240 = vunpack.c.l.b16 %v3089
        %v3241 = vunpack.c.l.b16 %v3090
        %v3242 = vunpack.c.l.b16 %v3091
        %v3243 = vunpack.c.l.b16 %v3092
        %v3244 = vunpack.c.l.b16 %v3093
        %v3245 = vunpack.c.l.b16 %v3094
        %v3246 = vunpack.c.l.b16 %v3095
        %v3247 = vunpack.c.l.b16 %v3096
        %v3248 = vunpack.c.l.b16 %v3097
        %v3249 = vunpack.c.l.b16 %v3098
        %v3250 = vunpack.c.l.b16 %v3099
        %v3251 = vunpack.c.l.b16 %v3100
        %v3252 = vunpack.c.l.b16 %v3101
        %v3253 = vunpack.c.l.b16 %v3102
        %v3254 = vunpack.c.l.b16 %v3103
        %v3255 = vunpack.c.l.b16 %v3104
        %v3256 = vunpack.c.l.b16 %v3105
        %v3257 = vunpack.c.l.b16 %v3106
        %v3258 = vunpack.c.l.b16 %v3107
        %v3259 = vunpack.c.l.b16 %v3108
        %v3260 = vunpack.c.l.b16 %v3109
        %v3261 = vunpack.c.l.b16 %v3110
        %v3262 = vunpack.c.l.b16 %v3111
        %v3263 = vunpack.c.l.b16 %v3112
        %v3264 = vunpack.c.l.b16 %v3113
        %v3265 = vunpack.c.l.b16 %v3114
        %v3266 = vunpack.c.l.b16 %v3115
        %v3267 = vunpack.c.l.b16 %v3116
        %v3268 = vunpack.c.l.b16 %v3117
        %v3269 = vunpack.c.l.b16 %v3118
        %v3270 = vunpack.c.l.b16 %v3119
        %v3271 = vunpack.c.l.b16 %v3120
        %v3272 = vunpack.c.l.b16 %v3121
        %v3273 = vunpack.c.l.b16 %v3122
        %v3274 = vunpack.c.l.b16 %v3123
        %v3275 = vunpack.c.l.b16 %v3124
        %v3276 = vunpack.c.l.b16 %v3125
        %v3277 = vunpack.c.l.b16 %v3126
        %v3278 = vunpack.c.l.b16 %v3127
        %v3279 = vunpack.c.l.b16 %v3128
        %v3280 = vunpack.c.l.b16 %v3129
        %v3281 = vunpack.c.l.b16 %v3130
        %v3282 = vunpack.c.l.b16 %v3131
        %v3283 = vunpack.c.l.b16 %v3132
        %v3284 = vunpack.c.l.b16 %v3133
        %v3285 = vunpack.c.l.b16 %v3134
        %v3286 = vunpack.c.l.b16 %v3135
        %v3287 = vunpack.c.l.b16 %v3136
        %v3288 = vunpack.c.l.b16 %v3137
        %v3289 = vunpack.c.l.b16 %v3138
        %v3290 = vunpack.c.l.b16 %v3139
        %v3291 = vunpack.c.l.b16 %v3140
        %v3292 = vunpack.c.l.b16 %v3141
        %v3293 = vunpack.c.l.b16 %v3142
        %v3294 = vunpack.c.l.b16 %v3143
        %v3295 = vunpack.c.l.b16 %v3144
        %v3296 = vunpack.c.l.b16 %v3145
        %v3297 = vunpack.c.l.b16 %v3146
        %v3298 = vunpack.c.l.b16 %v3147
        %v3299 = vunpack.c.l.b16 %v3148
        %v3300 = vunpack.c.l.b16 %v3149
        %v3301 = vunpack.c.l.b16 %v3150
        %v3302 = vunpack.c.l.b16 %v3151
        %v3303 = vunpack.c.l.b16 %v3152
        %v3304 = vunpack.c.l.b16 %v3153
        %v3305 = vunpack.c.l.b16 %v3154
        %v3306 = vunpack.c.l.b16 %v3155
        %v3307 = vunpack.c.l.b16 %v3156
        %v3308 = vpack.c.b16 %v3237, %v3236
        %v3309 = vpack.c.b16 %v3239, %v3238
        %v3310 = vpack.c.b16 %v3241, %v3240
        %v3311 = vpack.c.b16 %v3243, %v3242
        %v3312 = vpack.c.b16 %v3245, %v3244
        %v3313 = vpack.c.b16 %v3247, %v3246
        %v3314 = vpack.c.b16 %v3249, %v3248
        %v3315 = vpack.c.b16 %v3251, %v3250
        %v3316 = vpack.c.b16 %v3253, %v3252
        %v3317 = vpack.c.b16 %v3255, %v3254
        %v3318 = vpack.c.b16 %v3257, %v3256
        %v3319 = vpack.c.b16 %v3259, %v3258
        %v3320 = vpack.c.b16 %v3261, %v3260
        %v3321 = vpack.c.b16 %v3263, %v3262
        %v3322 = vpack.c.b16 %v3265, %v3264
        %v3323 = vpack.c.b16 %v3267, %v3266
        %v3324 = vpack.c.b16 %v3269, %v3268
        %v3325 = vpack.c.b16 %v3271, %v3270
        %v3326 = vpack.c.b16 %v3273, %v3272
        %v3327 = vpack.c.b16 %v3275, %v3274
        %v3328 = vpack.c.b16 %v3277, %v3276
        %v3329 = vpack.c.b16 %v3279, %v3278
        %v3330 = vpack.c.b16 %v3281, %v3280
        %v3331 = vpack.c.b16 %v3283, %v3282
        %v3332 = vpack.c.b16 %v3285, %v3284
        %v3333 = vpack.c.b16 %v3287, %v3286
        %v3334 = vpack.c.b16 %v3289, %v3288
        %v3335 = vpack.c.b16 %v3291, %v3290
        %v3336 = vpack.c.b16 %v3293, %v3292
        %v3337 = vpack.c.b16 %v3295, %v3294
        %v3338 = vpack.c.b16 %v3297, %v3296
        %v3339 = vpack.c.b16 %v3299, %v3298
        %v3340 = vpack.c.b16 %v3301, %v3300
        %v3341 = vpack.c.b16 %v3303, %v3302
        %v3342 = vpack.c.b16 %v3305, %v3304
        %v3343 = vpack.c.b16 %v3307, %v3306
        %v3381 = vsel %vm302, %v3009, 0
        %v3384 = vsel %vm302, %v3014, 0
        %v3387 = vsel %vm302, %v3019, 0
        %v3390 = vsel %vm302, %v3024, 0
        %v3393 = vsel %vm302, %v3029, 0
        %v3396 = vsel %vm302, %v3034, 0
        %v3399 = vsel %vm302, %v3039, 0
        %v3402 = vsel %vm302, %v3044, 0
        %v3405 = vsel %vm302, %v3049, 0
        %v3408 = vsel %vm302, %v3054, 0
        %v3411 = vsel %vm302, %v3059, 0
        %v3414 = vsel %vm302, %v3064, 0
        %v3417 = vsel %vm302, %v3069, 0
        %v3420 = vsel %vm302, %v3074, 0
        %v3423 = vsel %vm302, %v3079, 0
        %v3426 = vsel %vm302, %v3084, 0
        %3428 = vmatprep.subr.bf16.mxu0 0
        %3429 = vmatpush1.bf16.msra.mxu0 %v3308
        %3430 = vmatprep.subr.bf16.mxu0 0
        %3431 = vmatpush1.bf16.msra.mxu0 %v3309
        %3432 = vmatprep.subr.bf16.mxu0 0
        %3433 = vmatpush1.bf16.msra.mxu0 %v3310
        %3434 = vmatprep.subr.bf16.mxu0 0
        %3435 = vmatpush1.bf16.msra.mxu0 %v3311
        %3436 = vmatprep.subr.bf16.mxu0 0
        %3437 = vmatpush1.bf16.msra.mxu0 %v3312
        %3438 = vmatprep.subr.bf16.mxu0 0
        %3439 = vmatpush1.bf16.msra.mxu0 %v3313
        %3440 = vmatprep.subr.bf16.mxu0 0
        %3441 = vmatpush1.bf16.msra.mxu0 %v3314
        %3442 = vmatprep.subr.bf16.mxu0 0
        %3443 = vmatpush1.bf16.msra.mxu0 %v3315
        %3444 = vmatprep.subr.bf16.mxu0 0
        %3445 = vmatpush1.bf16.msra.mxu0 %v3316
        %3446 = vmatprep.subr.bf16.mxu0 0
        %3447 = vmatpush1.bf16.msra.mxu0 %v3317
        %3448 = vmatprep.subr.bf16.mxu0 0
        %3449 = vmatpush1.bf16.msra.mxu0 %v3318
        %3450 = vmatprep.subr.bf16.mxu0 0
        %3451 = vmatpush1.bf16.msra.mxu0 %v3319
        %3452 = vmatprep.subr.bf16.mxu0 0
        %3453 = vmatpush1.bf16.msra.mxu0 %v3320
        %3454 = vmatprep.subr.bf16.mxu0 0
        %3455 = vmatpush1.bf16.msra.mxu0 %v3321
        %3456 = vmatprep.subr.bf16.mxu0 0
        %3457 = vmatpush1.bf16.msra.mxu0 %v3322
        %3458 = vmatprep.subr.bf16.mxu0 0
        %3459 = vmatpush1.bf16.msra.mxu0 %v3323
        %3460 = vmatprep.mubr.bf16.mxu0 %v3006
        %3461 = vmatmul.mubr.bf16.gmra.mrb[0].mxu0 %v3005
        %v3462 = vpop.f32.mrb[0].mxu0
        %v3463 = vadd.f32 %v3162, %v3462
        %v3464 = vpop.f32.mrb[0].mxu0
        %v3465 = vpop.f32.mrb[0].mxu0
        %v3466 = vadd.f32 %v3162, %v3465
        %v3467 = vpop.f32.mrb[0].mxu0
        %3468 = vmatprep.mubr.bf16.mxu0 %v3011
        %3469 = vmatmul.mubr.bf16.gmra.mrb[0].mxu0 %v3010
        %v3470 = vpop.f32.mrb[0].mxu0
        %v3471 = vadd.f32 %v3162, %v3470
        %v3472 = vpop.f32.mrb[0].mxu0
        %v3473 = vpop.f32.mrb[0].mxu0
        %v3474 = vadd.f32 %v3162, %v3473
        %v3475 = vpop.f32.mrb[0].mxu0
        %3476 = vmatprep.mubr.bf16.mxu0 %v3016
        %3477 = vmatmul.mubr.bf16.gmra.mrb[0].mxu0 %v3015
        %v3478 = vpop.f32.mrb[0].mxu0
        %v3479 = vadd.f32 %v3162, %v3478
        %v3480 = vpop.f32.mrb[0].mxu0
        %v3481 = vpop.f32.mrb[0].mxu0
        %v3482 = vadd.f32 %v3162, %v3481
        %v3483 = vpop.f32.mrb[0].mxu0
        %3484 = vmatprep.mubr.bf16.mxu0 %v3021
        %3485 = vmatmul.mubr.bf16.gmra.mrb[0].mxu0 %v3020
        %v3486 = vpop.f32.mrb[0].mxu0
        %v3487 = vadd.f32 %v3162, %v3486
        %v3488 = vpop.f32.mrb[0].mxu0
        %v3489 = vpop.f32.mrb[0].mxu0
        %v3490 = vadd.f32 %v3162, %v3489
        %v3491 = vpop.f32.mrb[0].mxu0
        %3492 = vmatprep.mubr.bf16.mxu0 %v3026
        %3493 = vmatmul.mubr.bf16.gmra.mrb[0].mxu0 %v3025
        %v3494 = vpop.f32.mrb[0].mxu0
        %v3495 = vadd.f32 %v3162, %v3494
        %v3496 = vpop.f32.mrb[0].mxu0
        %v3497 = vpop.f32.mrb[0].mxu0
        %v3498 = vadd.f32 %v3162, %v3497
        %v3499 = vpop.f32.mrb[0].mxu0
        %3500 = vmatprep.mubr.bf16.mxu0 %v3031
        %3501 = vmatmul.mubr.bf16.gmra.mrb[0].mxu0 %v3030
        %v3502 = vpop.f32.mrb[0].mxu0
        %v3503 = vadd.f32 %v3162, %v3502
        %v3504 = vpop.f32.mrb[0].mxu0
        %v3505 = vpop.f32.mrb[0].mxu0
        %v3506 = vadd.f32 %v3162, %v3505
        %v3507 = vpop.f32.mrb[0].mxu0
        %3508 = vmatprep.mubr.bf16.mxu0 %v3036
        %3509 = vmatmul.mubr.bf16.gmra.mrb[0].mxu0 %v3035
        %v3510 = vpop.f32.mrb[0].mxu0
        %v3511 = vadd.f32 %v3162, %v3510
        %v3512 = vpop.f32.mrb[0].mxu0
        %v3513 = vpop.f32.mrb[0].mxu0
        %v3514 = vadd.f32 %v3162, %v3513
        %v3515 = vpop.f32.mrb[0].mxu0
        %3516 = vmatprep.mubr.bf16.mxu0 %v3041
        %3517 = vmatmul.mubr.bf16.gmra.mrb[0].mxu0 %v3040
        %v3518 = vpop.f32.mrb[0].mxu0
        %v3519 = vadd.f32 %v3162, %v3518
        %v3520 = vpop.f32.mrb[0].mxu0
        %v3521 = vpop.f32.mrb[0].mxu0
        %v3522 = vadd.f32 %v3162, %v3521
        %v3523 = vpop.f32.mrb[0].mxu0
        %3524 = vmatprep.mubr.bf16.mxu0 %v3046
        %3525 = vmatmul.mubr.bf16.gmra.mrb[0].mxu0 %v3045
        %v3526 = vpop.f32.mrb[0].mxu0
        %v3527 = vadd.f32 %v3162, %v3526
        %v3528 = vpop.f32.mrb[0].mxu0
        %v3529 = vpop.f32.mrb[0].mxu0
        %v3530 = vadd.f32 %v3162, %v3529
        %v3531 = vpop.f32.mrb[0].mxu0
        %3532 = vmatprep.mubr.bf16.mxu0 %v3051
        %3533 = vmatmul.mubr.bf16.gmra.mrb[0].mxu0 %v3050
        %v3534 = vpop.f32.mrb[0].mxu0
        %v3535 = vadd.f32 %v3162, %v3534
        %v3536 = vpop.f32.mrb[0].mxu0
        %v3537 = vpop.f32.mrb[0].mxu0
        %v3538 = vadd.f32 %v3162, %v3537
        %v3539 = vpop.f32.mrb[0].mxu0
        %3540 = vmatprep.mubr.bf16.mxu0 %v3056
        %3541 = vmatmul.mubr.bf16.gmra.mrb[0].mxu0 %v3055
        %v3542 = vpop.f32.mrb[0].mxu0
        %v3543 = vadd.f32 %v3162, %v3542
        %v3544 = vpop.f32.mrb[0].mxu0
        %v3545 = vpop.f32.mrb[0].mxu0
        %v3546 = vadd.f32 %v3162, %v3545
        %v3547 = vpop.f32.mrb[0].mxu0
        %3548 = vmatprep.mubr.bf16.mxu0 %v3061
        %3549 = vmatmul.mubr.bf16.gmra.mrb[0].mxu0 %v3060
        %v3550 = vpop.f32.mrb[0].mxu0
        %v3551 = vadd.f32 %v3162, %v3550
        %v3552 = vpop.f32.mrb[0].mxu0
        %v3553 = vpop.f32.mrb[0].mxu0
        %v3554 = vadd.f32 %v3162, %v3553
        %v3555 = vpop.f32.mrb[0].mxu0
        %3556 = vmatprep.mubr.bf16.mxu0 %v3066
        %3557 = vmatmul.mubr.bf16.gmra.mrb[0].mxu0 %v3065
        %v3558 = vpop.f32.mrb[0].mxu0
        %v3559 = vadd.f32 %v3162, %v3558
        %v3560 = vpop.f32.mrb[0].mxu0
        %v3561 = vpop.f32.mrb[0].mxu0
        %v3562 = vadd.f32 %v3162, %v3561
        %v3563 = vpop.f32.mrb[0].mxu0
        %3564 = vmatprep.mubr.bf16.mxu0 %v3071
        %3565 = vmatmul.mubr.bf16.gmra.mrb[0].mxu0 %v3070
        %v3566 = vpop.f32.mrb[0].mxu0
        %v3567 = vadd.f32 %v3162, %v3566
        %v3568 = vpop.f32.mrb[0].mxu0
        %v3569 = vpop.f32.mrb[0].mxu0
        %v3570 = vadd.f32 %v3162, %v3569
        %v3571 = vpop.f32.mrb[0].mxu0
        %3572 = vmatprep.mubr.bf16.mxu0 %v3076
        %3573 = vmatmul.mubr.bf16.gmra.mrb[0].mxu0 %v3075
        %v3574 = vpop.f32.mrb[0].mxu0
        %v3575 = vadd.f32 %v3162, %v3574
        %v3576 = vpop.f32.mrb[0].mxu0
        %v3577 = vpop.f32.mrb[0].mxu0
        %v3578 = vadd.f32 %v3162, %v3577
        %v3579 = vpop.f32.mrb[0].mxu0
        %3580 = vmatprep.mubr.bf16.mxu0 %v3081
        %3581 = vmatmul.mubr.bf16.gmra.mrb[0].mxu0 %v3080
        %v3582 = vpop.f32.mrb[0].mxu0
        %v3583 = vadd.f32 %v3162, %v3582
        %v3584 = vpop.f32.mrb[0].mxu0
        %v3585 = vpop.f32.mrb[0].mxu0
        %v3586 = vadd.f32 %v3162, %v3585
        %v3587 = vpop.f32.mrb[0].mxu0
        %3588 = vdwg.mxu0
        %3589 = vmatprep.subr.bf16.mxu0 0
        %3590 = vmatpush1.bf16.msra.mxu0 %v3324
        %3591 = vmatprep.subr.bf16.mxu0 0
        %3592 = vmatpush1.bf16.msra.mxu0 %v3325
        %3593 = vmatprep.subr.bf16.mxu0 0
        %3594 = vmatpush1.bf16.msra.mxu0 %v3326
        %3595 = vmatprep.subr.bf16.mxu0 0
        %3596 = vmatpush1.bf16.msra.mxu0 %v3327
        %3597 = vmatprep.subr.bf16.mxu0 0
        %3598 = vmatpush1.bf16.msra.mxu0 %v3328
        %3599 = vmatprep.subr.bf16.mxu0 0
        %3600 = vmatpush1.bf16.msra.mxu0 %v3329
        %3601 = vmatprep.subr.bf16.mxu0 0
        %3602 = vmatpush1.bf16.msra.mxu0 %v3330
        %3603 = vmatprep.subr.bf16.mxu0 0
        %3604 = vmatpush1.bf16.msra.mxu0 %v3331
        %3605 = vmatprep.subr.bf16.mxu0 0
        %3606 = vmatpush1.bf16.msra.mxu0 %v3332
        %3607 = vmatprep.subr.bf16.mxu0 0
        %3608 = vmatpush1.bf16.msra.mxu0 %v3333
        %3609 = vmatprep.subr.bf16.mxu0 0
        %3610 = vmatpush1.bf16.msra.mxu0 %v3334
        %3611 = vmatprep.subr.bf16.mxu0 0
        %3612 = vmatpush1.bf16.msra.mxu0 %v3335
        %3613 = vmatprep.subr.bf16.mxu0 0
        %3614 = vmatpush1.bf16.msra.mxu0 %v3336
        %3615 = vmatprep.subr.bf16.mxu0 0
        %3616 = vmatpush1.bf16.msra.mxu0 %v3337
        %3617 = vmatprep.subr.bf16.mxu0 0
        %3618 = vmatpush1.bf16.msra.mxu0 %v3338
        %3619 = vmatprep.subr.bf16.mxu0 0
        %3620 = vmatpush1.bf16.msra.mxu0 %v3339
        %3621 = vmatprep.mubr.bf16.mxu0 %v3008
        %3622 = vmatmul.mubr.bf16.gmra.mrb[0].mxu0 %v3007
        %v3623 = vpop.f32.mrb[0].mxu0
        %v3624 = vadd.f32 %v3463, %v3623
        %v3625 = vpop.f32.mrb[0].mxu0
        %v3626 = vpop.f32.mrb[0].mxu0
        %v3627 = vadd.f32 %v3466, %v3626
        %v3628 = vpop.f32.mrb[0].mxu0
        %3629 = vmatprep.mubr.bf16.mxu0 %v3013
        %3630 = vmatmul.mubr.bf16.gmra.mrb[0].mxu0 %v3012
        %v3631 = vpop.f32.mrb[0].mxu0
        %v3632 = vadd.f32 %v3471, %v3631
        %v3633 = vpop.f32.mrb[0].mxu0
        %v3634 = vpop.f32.mrb[0].mxu0
        %v3635 = vadd.f32 %v3474, %v3634
        %v3636 = vpop.f32.mrb[0].mxu0
        %3637 = vmatprep.mubr.bf16.mxu0 %v3018
        %3638 = vmatmul.mubr.bf16.gmra.mrb[0].mxu0 %v3017
        %v3639 = vpop.f32.mrb[0].mxu0
        %v3640 = vadd.f32 %v3479, %v3639
        %v3641 = vpop.f32.mrb[0].mxu0
        %v3642 = vpop.f32.mrb[0].mxu0
        %v3643 = vadd.f32 %v3482, %v3642
        %v3644 = vpop.f32.mrb[0].mxu0
        %3645 = vmatprep.mubr.bf16.mxu0 %v3023
        %3646 = vmatmul.mubr.bf16.gmra.mrb[0].mxu0 %v3022
        %v3647 = vpop.f32.mrb[0].mxu0
        %v3648 = vadd.f32 %v3487, %v3647
        %v3649 = vpop.f32.mrb[0].mxu0
        %v3650 = vpop.f32.mrb[0].mxu0
        %v3651 = vadd.f32 %v3490, %v3650
        %v3652 = vpop.f32.mrb[0].mxu0
        %3653 = vmatprep.mubr.bf16.mxu0 %v3028
        %3654 = vmatmul.mubr.bf16.gmra.mrb[0].mxu0 %v3027
        %v3655 = vpop.f32.mrb[0].mxu0
        %v3656 = vadd.f32 %v3495, %v3655
        %v3657 = vpop.f32.mrb[0].mxu0
        %v3658 = vpop.f32.mrb[0].mxu0
        %v3659 = vadd.f32 %v3498, %v3658
        %v3660 = vpop.f32.mrb[0].mxu0
        %3661 = vmatprep.mubr.bf16.mxu0 %v3033
        %3662 = vmatmul.mubr.bf16.gmra.mrb[0].mxu0 %v3032
        %v3663 = vpop.f32.mrb[0].mxu0
        %v3664 = vadd.f32 %v3503, %v3663
        %v3665 = vpop.f32.mrb[0].mxu0
        %v3666 = vpop.f32.mrb[0].mxu0
        %v3667 = vadd.f32 %v3506, %v3666
        %v3668 = vpop.f32.mrb[0].mxu0
        %3669 = vmatprep.mubr.bf16.mxu0 %v3038
        %3670 = vmatmul.mubr.bf16.gmra.mrb[0].mxu0 %v3037
        %v3671 = vpop.f32.mrb[0].mxu0
        %v3672 = vadd.f32 %v3511, %v3671
        %v3673 = vpop.f32.mrb[0].mxu0
        %v3674 = vpop.f32.mrb[0].mxu0
        %v3675 = vadd.f32 %v3514, %v3674
        %v3676 = vpop.f32.mrb[0].mxu0
        %3677 = vmatprep.mubr.bf16.mxu0 %v3043
        %3678 = vmatmul.mubr.bf16.gmra.mrb[0].mxu0 %v3042
        %v3679 = vpop.f32.mrb[0].mxu0
        %v3680 = vadd.f32 %v3519, %v3679
        %v3681 = vpop.f32.mrb[0].mxu0
        %v3682 = vpop.f32.mrb[0].mxu0
        %v3683 = vadd.f32 %v3522, %v3682
        %v3684 = vpop.f32.mrb[0].mxu0
        %3685 = vmatprep.mubr.bf16.mxu0 %v3048
        %3686 = vmatmul.mubr.bf16.gmra.mrb[0].mxu0 %v3047
        %v3687 = vpop.f32.mrb[0].mxu0
        %v3688 = vadd.f32 %v3527, %v3687
        %v3689 = vpop.f32.mrb[0].mxu0
        %v3690 = vpop.f32.mrb[0].mxu0
        %v3691 = vadd.f32 %v3530, %v3690
        %v3692 = vpop.f32.mrb[0].mxu0
        %3693 = vmatprep.mubr.bf16.mxu0 %v3053
        %3694 = vmatmul.mubr.bf16.gmra.mrb[0].mxu0 %v3052
        %v3695 = vpop.f32.mrb[0].mxu0
        %v3696 = vadd.f32 %v3535, %v3695
        %v3697 = vpop.f32.mrb[0].mxu0
        %v3698 = vpop.f32.mrb[0].mxu0
        %v3699 = vadd.f32 %v3538, %v3698
        %v3700 = vpop.f32.mrb[0].mxu0
        %3701 = vmatprep.mubr.bf16.mxu0 %v3058
        %3702 = vmatmul.mubr.bf16.gmra.mrb[0].mxu0 %v3057
        %v3703 = vpop.f32.mrb[0].mxu0
        %v3704 = vadd.f32 %v3543, %v3703
        %v3705 = vpop.f32.mrb[0].mxu0
        %v3706 = vpop.f32.mrb[0].mxu0
        %v3707 = vadd.f32 %v3546, %v3706
        %v3708 = vpop.f32.mrb[0].mxu0
        %3709 = vmatprep.mubr.bf16.mxu0 %v3063
        %3710 = vmatmul.mubr.bf16.gmra.mrb[0].mxu0 %v3062
        %v3711 = vpop.f32.mrb[0].mxu0
        %v3712 = vadd.f32 %v3551, %v3711
        %v3713 = vpop.f32.mrb[0].mxu0
        %v3714 = vpop.f32.mrb[0].mxu0
        %v3715 = vadd.f32 %v3554, %v3714
        %v3716 = vpop.f32.mrb[0].mxu0
        %3717 = vmatprep.mubr.bf16.mxu0 %v3068
        %3718 = vmatmul.mubr.bf16.gmra.mrb[0].mxu0 %v3067
        %v3719 = vpop.f32.mrb[0].mxu0
        %v3720 = vadd.f32 %v3559, %v3719
        %v3721 = vpop.f32.mrb[0].mxu0
        %v3722 = vpop.f32.mrb[0].mxu0
        %v3723 = vadd.f32 %v3562, %v3722
        %v3724 = vpop.f32.mrb[0].mxu0
        %3725 = vmatprep.mubr.bf16.mxu0 %v3073
        %3726 = vmatmul.mubr.bf16.gmra.mrb[0].mxu0 %v3072
        %v3727 = vpop.f32.mrb[0].mxu0
        %v3728 = vadd.f32 %v3567, %v3727
        %v3729 = vpop.f32.mrb[0].mxu0
        %v3730 = vpop.f32.mrb[0].mxu0
        %v3731 = vadd.f32 %v3570, %v3730
        %v3732 = vpop.f32.mrb[0].mxu0
        %3733 = vmatprep.mubr.bf16.mxu0 %v3078
        %3734 = vmatmul.mubr.bf16.gmra.mrb[0].mxu0 %v3077
        %v3735 = vpop.f32.mrb[0].mxu0
        %v3736 = vadd.f32 %v3575, %v3735
        %v3737 = vpop.f32.mrb[0].mxu0
        %v3738 = vpop.f32.mrb[0].mxu0
        %v3739 = vadd.f32 %v3578, %v3738
        %v3740 = vpop.f32.mrb[0].mxu0
        %3741 = vmatprep.mubr.bf16.mxu0 %v3083
        %3742 = vmatmul.mubr.bf16.gmra.mrb[0].mxu0 %v3082
        %v3743 = vpop.f32.mrb[0].mxu0
        %v3744 = vadd.f32 %v3583, %v3743
        %v3745 = vpop.f32.mrb[0].mxu0
        %v3746 = vpop.f32.mrb[0].mxu0
        %v3747 = vadd.f32 %v3586, %v3746
        %v3748 = vpop.f32.mrb[0].mxu0
        %3749 = vdwg.mxu0
        %3750 = vmatprep.subr.bf16.mxu0 0
        %3751 = vmatpush1.bf16.msra.mxu0 %v3340
        %3752 = vmatprep.subr.bf16.mxu0 0
        %3753 = vmatpush1.bf16.msra.mxu0 %v3341
        %3754 = vmatprep.subr.bf16.mxu0 0
        %3755 = vmatpush1.bf16.msra.mxu0 %v3342
        %3756 = vmatprep.subr.bf16.mxu0 0
        %3757 = vmatpush1.bf16.msra.mxu0 %v3343
        %3758 = vmatprep.subr.bf16.mxu0 0
        %3759 = vmatpush1.bf16.msra.mxu0 0
        %3760 = vmatprep.subr.bf16.mxu0 0
        %3761 = vmatpush1.bf16.msra.mxu0 0
        %3762 = vmatprep.subr.bf16.mxu0 0
        %3763 = vmatpush1.bf16.msra.mxu0 0
        %3764 = vmatprep.subr.bf16.mxu0 0
        %3765 = vmatpush1.bf16.msra.mxu0 0
        %3766 = vmatprep.subr.bf16.mxu0 0
        %3767 = vmatpush1.bf16.msra.mxu0 0
        %3768 = vmatprep.subr.bf16.mxu0 0
        %3769 = vmatpush1.bf16.msra.mxu0 0
        %3770 = vmatprep.subr.bf16.mxu0 0
        %3771 = vmatpush1.bf16.msra.mxu0 0
        %3772 = vmatprep.subr.bf16.mxu0 0
        %3773 = vmatpush1.bf16.msra.mxu0 0
        %3774 = vmatprep.subr.bf16.mxu0 0
        %3775 = vmatpush1.bf16.msra.mxu0 0
        %3776 = vmatprep.subr.bf16.mxu0 0
        %3777 = vmatpush1.bf16.msra.mxu0 0
        %3778 = vmatprep.subr.bf16.mxu0 0
        %3779 = vmatpush1.bf16.msra.mxu0 0
        %3780 = vmatprep.subr.bf16.mxu0 0
        %3781 = vmatpush1.bf16.msra.mxu0 0
        %3782 = vmatprep.mubr.bf16.mxu0 0
        %3783 = vmatmul.mubr.bf16.gmra.mrb[0].mxu0 %v3381
        %v3784 = vpop.f32.mrb[0].mxu0
        %v3785 = vadd.f32 %v3624, %v3784
        %v3786 = vpop.f32.mrb[0].mxu0
        %v3787 = vpop.f32.mrb[0].mxu0
        %v3788 = vadd.f32 %v3627, %v3787
        %v3789 = vpop.f32.mrb[0].mxu0
        %3790 = vmatprep.mubr.bf16.mxu0 0
        %3791 = vmatmul.mubr.bf16.gmra.mrb[0].mxu0 %v3384
        %v3792 = vpop.f32.mrb[0].mxu0
        %v3793 = vadd.f32 %v3632, %v3792
        %v3794 = vpop.f32.mrb[0].mxu0
        %v3795 = vpop.f32.mrb[0].mxu0
        %v3796 = vadd.f32 %v3635, %v3795
        %v3797 = vpop.f32.mrb[0].mxu0
        %3798 = vmatprep.mubr.bf16.mxu0 0
        %3799 = vmatmul.mubr.bf16.gmra.mrb[0].mxu0 %v3387
        %v3800 = vpop.f32.mrb[0].mxu0
        %v3801 = vadd.f32 %v3640, %v3800
        %v3802 = vpop.f32.mrb[0].mxu0
        %v3803 = vpop.f32.mrb[0].mxu0
        %v3804 = vadd.f32 %v3643, %v3803
        %v3805 = vpop.f32.mrb[0].mxu0
        %3806 = vmatprep.mubr.bf16.mxu0 0
        %3807 = vmatmul.mubr.bf16.gmra.mrb[0].mxu0 %v3390
        %v3808 = vpop.f32.mrb[0].mxu0
        %v3809 = vadd.f32 %v3648, %v3808
        %v3810 = vpop.f32.mrb[0].mxu0
        %v3811 = vpop.f32.mrb[0].mxu0
        %v3812 = vadd.f32 %v3651, %v3811
        %v3813 = vpop.f32.mrb[0].mxu0
        %3814 = vmatprep.mubr.bf16.mxu0 0
        %3815 = vmatmul.mubr.bf16.gmra.mrb[0].mxu0 %v3393
        %v3816 = vpop.f32.mrb[0].mxu0
        %v3817 = vadd.f32 %v3656, %v3816
        %v3818 = vpop.f32.mrb[0].mxu0
        %v3819 = vpop.f32.mrb[0].mxu0
        %v3820 = vadd.f32 %v3659, %v3819
        %v3821 = vpop.f32.mrb[0].mxu0
        %3822 = vmatprep.mubr.bf16.mxu0 0
        %3823 = vmatmul.mubr.bf16.gmra.mrb[0].mxu0 %v3396
        %v3824 = vpop.f32.mrb[0].mxu0
        %v3825 = vadd.f32 %v3664, %v3824
        %v3826 = vpop.f32.mrb[0].mxu0
        %v3827 = vpop.f32.mrb[0].mxu0
        %v3828 = vadd.f32 %v3667, %v3827
        %v3829 = vpop.f32.mrb[0].mxu0
        %3830 = vmatprep.mubr.bf16.mxu0 0
        %3831 = vmatmul.mubr.bf16.gmra.mrb[0].mxu0 %v3399
        %v3832 = vpop.f32.mrb[0].mxu0
        %v3833 = vadd.f32 %v3672, %v3832
        %v3834 = vpop.f32.mrb[0].mxu0
        %v3835 = vpop.f32.mrb[0].mxu0
        %v3836 = vadd.f32 %v3675, %v3835
        %v3837 = vpop.f32.mrb[0].mxu0
        %3838 = vmatprep.mubr.bf16.mxu0 0
        %3839 = vmatmul.mubr.bf16.gmra.mrb[0].mxu0 %v3402
        %v3840 = vpop.f32.mrb[0].mxu0
        %v3841 = vadd.f32 %v3680, %v3840
        %v3842 = vpop.f32.mrb[0].mxu0
        %v3843 = vpop.f32.mrb[0].mxu0
        %v3844 = vadd.f32 %v3683, %v3843
        %v3845 = vpop.f32.mrb[0].mxu0
        %3846 = vmatprep.mubr.bf16.mxu0 0
        %3847 = vmatmul.mubr.bf16.gmra.mrb[0].mxu0 %v3405
        %v3848 = vpop.f32.mrb[0].mxu0
        %v3849 = vadd.f32 %v3688, %v3848
        %v3850 = vpop.f32.mrb[0].mxu0
        %v3851 = vpop.f32.mrb[0].mxu0
        %v3852 = vadd.f32 %v3691, %v3851
        %v3853 = vpop.f32.mrb[0].mxu0
        %3854 = vmatprep.mubr.bf16.mxu0 0
        %3855 = vmatmul.mubr.bf16.gmra.mrb[0].mxu0 %v3408
        %v3856 = vpop.f32.mrb[0].mxu0
        %v3857 = vadd.f32 %v3696, %v3856
        %v3858 = vpop.f32.mrb[0].mxu0
        %v3859 = vpop.f32.mrb[0].mxu0
        %v3860 = vadd.f32 %v3699, %v3859
        %v3861 = vpop.f32.mrb[0].mxu0
        %3862 = vmatprep.mubr.bf16.mxu0 0
        %3863 = vmatmul.mubr.bf16.gmra.mrb[0].mxu0 %v3411
        %v3864 = vpop.f32.mrb[0].mxu0
        %v3865 = vadd.f32 %v3704, %v3864
        %v3866 = vpop.f32.mrb[0].mxu0
        %v3867 = vpop.f32.mrb[0].mxu0
        %v3868 = vadd.f32 %v3707, %v3867
        %v3869 = vpop.f32.mrb[0].mxu0
        %3870 = vmatprep.mubr.bf16.mxu0 0
        %3871 = vmatmul.mubr.bf16.gmra.mrb[0].mxu0 %v3414
        %v3872 = vpop.f32.mrb[0].mxu0
        %v3873 = vadd.f32 %v3712, %v3872
        %v3874 = vpop.f32.mrb[0].mxu0
        %v3875 = vpop.f32.mrb[0].mxu0
        %v3876 = vadd.f32 %v3715, %v3875
        %v3877 = vpop.f32.mrb[0].mxu0
        %3878 = vmatprep.mubr.bf16.mxu0 0
        %3879 = vmatmul.mubr.bf16.gmra.mrb[0].mxu0 %v3417
        %v3880 = vpop.f32.mrb[0].mxu0
        %v3881 = vadd.f32 %v3720, %v3880
        %v3882 = vpop.f32.mrb[0].mxu0
        %v3883 = vpop.f32.mrb[0].mxu0
        %v3884 = vadd.f32 %v3723, %v3883
        %v3885 = vpop.f32.mrb[0].mxu0
        %3886 = vmatprep.mubr.bf16.mxu0 0
        %3887 = vmatmul.mubr.bf16.gmra.mrb[0].mxu0 %v3420
        %v3888 = vpop.f32.mrb[0].mxu0
        %v3889 = vadd.f32 %v3728, %v3888
        %v3890 = vpop.f32.mrb[0].mxu0
        %v3891 = vpop.f32.mrb[0].mxu0
        %v3892 = vadd.f32 %v3731, %v3891
        %v3893 = vpop.f32.mrb[0].mxu0
        %3894 = vmatprep.mubr.bf16.mxu0 0
        %3895 = vmatmul.mubr.bf16.gmra.mrb[0].mxu0 %v3423
        %v3896 = vpop.f32.mrb[0].mxu0
        %v3897 = vadd.f32 %v3736, %v3896
        %v3898 = vpop.f32.mrb[0].mxu0
        %v3899 = vpop.f32.mrb[0].mxu0
        %v3900 = vadd.f32 %v3739, %v3899
        %v3901 = vpop.f32.mrb[0].mxu0
        %3902 = vmatprep.mubr.bf16.mxu0 0
        %3903 = vmatmul.mubr.bf16.gmra.mrb[0].mxu0 %v3426
        %v3904 = vpop.f32.mrb[0].mxu0
        %v3905 = vadd.f32 %v3744, %v3904
        %v3906 = vpop.f32.mrb[0].mxu0
        %v3907 = vpop.f32.mrb[0].mxu0
        %v3908 = vadd.f32 %v3747, %v3907
        %v3909 = vpop.f32.mrb[0].mxu0
        %3910 = vdwg.mxu0
        %v3911 = vmax.f32 %v3785, 0.0
        %v3912 = vmax.f32 %v3788, 0.0
        %v3913 = vmax.f32 %v3793, 0.0
        %v3914 = vmax.f32 %v3796, 0.0
        %v3915 = vmax.f32 %v3801, 0.0
        %v3916 = vmax.f32 %v3804, 0.0
        %v3917 = vmax.f32 %v3809, 0.0
        %v3918 = vmax.f32 %v3812, 0.0
        %v3919 = vmax.f32 %v3817, 0.0
        %v3920 = vmax.f32 %v3820, 0.0
        %v3921 = vmax.f32 %v3825, 0.0
        %v3922 = vmax.f32 %v3828, 0.0
        %v3923 = vmax.f32 %v3833, 0.0
        %v3924 = vmax.f32 %v3836, 0.0
        %v3925 = vmax.f32 %v3841, 0.0
        %v3926 = vmax.f32 %v3844, 0.0
        %v3927 = vmax.f32 %v3849, 0.0
        %v3928 = vmax.f32 %v3852, 0.0
        %v3929 = vmax.f32 %v3857, 0.0
        %v3930 = vmax.f32 %v3860, 0.0
        %v3931 = vmax.f32 %v3865, 0.0
        %v3932 = vmax.f32 %v3868, 0.0
        %v3933 = vmax.f32 %v3873, 0.0
        %v3934 = vmax.f32 %v3876, 0.0
        %v3935 = vmax.f32 %v3881, 0.0
        %v3936 = vmax.f32 %v3884, 0.0
        %v3937 = vmax.f32 %v3889, 0.0
        %v3938 = vmax.f32 %v3892, 0.0
        %v3939 = vmax.f32 %v3897, 0.0
        %v3940 = vmax.f32 %v3900, 0.0
        %v3941 = vmax.f32 %v3905, 0.0
        %v3942 = vmax.f32 %v3908, 0.0
        %v3943 = vpack.c.bf16 %v3912, %v3911
        %v3944 = vpack.c.bf16 %v3914, %v3913
        %v3945 = vpack.c.bf16 %v3916, %v3915
        %v3946 = vpack.c.bf16 %v3918, %v3917
        %v3947 = vpack.c.bf16 %v3920, %v3919
        %v3948 = vpack.c.bf16 %v3922, %v3921
        %v3949 = vpack.c.bf16 %v3924, %v3923
        %v3950 = vpack.c.bf16 %v3926, %v3925
        %v3951 = vpack.c.bf16 %v3928, %v3927
        %v3952 = vpack.c.bf16 %v3930, %v3929
        %v3953 = vpack.c.bf16 %v3932, %v3931
        %v3954 = vpack.c.bf16 %v3934, %v3933
        %v3955 = vpack.c.bf16 %v3936, %v3935
        %v3956 = vpack.c.bf16 %v3938, %v3937
        %v3957 = vpack.c.bf16 %v3940, %v3939
        %v3958 = vpack.c.bf16 %v3942, %v3941
        %3959 = vst.msk [vmem:[#allocation3] sm:$0xff] %vm302, %v3943
        %3960 = vst.msk [vmem:[#allocation3 + $0x8] sm:$0xff] %vm302, %v3944
        %3961 = vst.msk [vmem:[#allocation3 + $0x10] sm:$0xff] %vm302, %v3945
        %3962 = vst.msk [vmem:[#allocation3 + $0x18] sm:$0xff] %vm302, %v3946
        %3963 = vst.msk [vmem:[#allocation3 + $0x20] sm:$0xff] %vm302, %v3947
        %3964 = vst.msk [vmem:[#allocation3 + $0x28] sm:$0xff] %vm302, %v3948
        %3965 = vst.msk [vmem:[#allocation3 + $0x30] sm:$0xff] %vm302, %v3949
        %3966 = vst.msk [vmem:[#allocation3 + $0x38] sm:$0xff] %vm302, %v3950
        %3967 = vst.msk [vmem:[#allocation3 + $0x40] sm:$0xff] %vm302, %v3951
        %3968 = vst.msk [vmem:[#allocation3 + $0x48] sm:$0xff] %vm302, %v3952
        %3969 = vst.msk [vmem:[#allocation3 + $0x50] sm:$0xff] %vm302, %v3953
        %3970 = vst.msk [vmem:[#allocation3 + $0x58] sm:$0xff] %vm302, %v3954
        %3971 = vst.msk [vmem:[#allocation3 + $0x60] sm:$0xff] %vm302, %v3955
        %3972 = vst.msk [vmem:[#allocation3 + $0x68] sm:$0xff] %vm302, %v3956
        %3973 = vst.msk [vmem:[#allocation3 + $0x70] sm:$0xff] %vm302, %v3957
        %3974 = vst.msk [vmem:[#allocation3 + $0x78] sm:$0xff] %vm302, %v3958
        %3975 = vst [vmem:[#allocation4] sm:$0xff] 0
        %3976 = vst [vmem:[#allocation4 + $0x8] sm:$0xff] 0
        %3977 = vst [vmem:[#allocation4 + $0x10] sm:$0xff] 0
        %3978 = vst [vmem:[#allocation4 + $0x18] sm:$0xff] 0
        %3979 = vst.msk [vmem:[#allocation4 + $0x20] sm:$0xff] %vm302, 0
        %s3980 = scalar_lea.vmem [#allocation4], 600
        %3981 = vst [vmem:[%s3980] sm:$0xff] 0
        %3982 = vst [vmem:[%s3980 + $0x8] sm:$0xff] 0
        %3983 = vst [vmem:[%s3980 + $0x10] sm:$0xff] 0
        %3984 = vst [vmem:[%s3980 + $0x18] sm:$0xff] 0
        %3985 = vst.msk [vmem:[%s3980 + $0x20] sm:$0xff] %vm302, 0
        %v3986 = vld [vmem:[#allocation4] sm:$0x1]
        %v3987 = vsel %vm312, 0, %v3986
        %3988 = vst [vmem:[#allocation4] sm:$0x1] %v3987
        %v3989 = vld [vmem:[#allocation4 + $0x8] sm:$0x1]
        %v3990 = vsel %vm312, 0, %v3989
        %3991 = vst [vmem:[#allocation4 + $0x8] sm:$0x1] %v3990
        %v3992 = vld [vmem:[#allocation4 + $0x10] sm:$0x1]
        %v3993 = vsel %vm312, 0, %v3992
        %3994 = vst [vmem:[#allocation4 + $0x10] sm:$0x1] %v3993
        %v3995 = vld [vmem:[#allocation4 + $0x18] sm:$0x1]
        %v3996 = vsel %vm312, 0, %v3995
        %3997 = vst [vmem:[#allocation4 + $0x18] sm:$0x1] %v3996
        %v3998 = vld [vmem:[#allocation4 + $0x20] sm:$0x1]
        %v3999 = vsel %vm326, 0, %v3998
        %4000 = vst [vmem:[#allocation4 + $0x20] sm:$0x1] %v3999
        %v4001 = vld [vmem:[#allocation4 + $0x28] sm:$0x1]
        %v4002 = vsel %vm312, 0, %v4001
        %4003 = vst [vmem:[#allocation4 + $0x28] sm:$0x1] %v4002
        %v4004 = vld [vmem:[#allocation4 + $0x30] sm:$0x1]
        %v4005 = vsel %vm312, 0, %v4004
        %4006 = vst [vmem:[#allocation4 + $0x30] sm:$0x1] %v4005
        %v4007 = vld [vmem:[#allocation4 + $0x38] sm:$0x1]
        %v4008 = vsel %vm312, 0, %v4007
        %4009 = vst [vmem:[#allocation4 + $0x38] sm:$0x1] %v4008
        %v4010 = vld [vmem:[#allocation4 + $0x40] sm:$0x1]
        %v4011 = vsel %vm312, 0, %v4010
        %4012 = vst [vmem:[#allocation4 + $0x40] sm:$0x1] %v4011
        %v4013 = vld [vmem:[#allocation4 + $0x48] sm:$0x1]
        %v4014 = vsel %vm326, 0, %v4013
        %4015 = vst [vmem:[#allocation4 + $0x48] sm:$0x1] %v4014
        %v4016 = vld [vmem:[#allocation4 + $0x50] sm:$0x1]
        %v4017 = vsel %vm312, 0, %v4016
        %4018 = vst [vmem:[#allocation4 + $0x50] sm:$0x1] %v4017
        %v4019 = vld [vmem:[#allocation4 + $0x58] sm:$0x1]
        %v4020 = vsel %vm312, 0, %v4019
        %4021 = vst [vmem:[#allocation4 + $0x58] sm:$0x1] %v4020
        %v4022 = vld [vmem:[#allocation4 + $0x60] sm:$0x1]
        %v4023 = vsel %vm312, 0, %v4022
        %4024 = vst [vmem:[#allocation4 + $0x60] sm:$0x1] %v4023
        %v4025 = vld [vmem:[#allocation4 + $0x68] sm:$0x1]
        %v4026 = vsel %vm312, 0, %v4025
        %4027 = vst [vmem:[#allocation4 + $0x68] sm:$0x1] %v4026
        %v4028 = vld [vmem:[#allocation4 + $0x70] sm:$0x1]
        %v4029 = vsel %vm326, 0, %v4028
        %4030 = vst [vmem:[#allocation4 + $0x70] sm:$0x1] %v4029
        %v4031 = vld [vmem:[#allocation4 + $0x78] sm:$0x1]
        %v4032 = vsel %vm312, 0, %v4031
        %4033 = vst [vmem:[#allocation4 + $0x78] sm:$0x1] %v4032
        %v4034 = vld [vmem:[#allocation4 + $0x80] sm:$0x1]
        %v4035 = vsel %vm312, 0, %v4034
        %4036 = vst [vmem:[#allocation4 + $0x80] sm:$0x1] %v4035
        %v4037 = vld [vmem:[#allocation4 + $0x88] sm:$0x1]
        %v4038 = vsel %vm312, 0, %v4037
        %4039 = vst [vmem:[#allocation4 + $0x88] sm:$0x1] %v4038
        %v4040 = vld [vmem:[#allocation4 + $0x90] sm:$0x1]
        %v4041 = vsel %vm312, 0, %v4040
        %4042 = vst [vmem:[#allocation4 + $0x90] sm:$0x1] %v4041
        %v4043 = vld [vmem:[#allocation4 + $0x98] sm:$0x1]
        %v4044 = vsel %vm326, 0, %v4043
        %4045 = vst [vmem:[#allocation4 + $0x98] sm:$0x1] %v4044
        %v4046 = vld [vmem:[#allocation4 + $0xa0] sm:$0x1]
        %v4047 = vsel %vm312, 0, %v4046
        %4048 = vst [vmem:[#allocation4 + $0xa0] sm:$0x1] %v4047
        %v4049 = vld [vmem:[#allocation4 + $0xa8] sm:$0x1]
        %v4050 = vsel %vm312, 0, %v4049
        %4051 = vst [vmem:[#allocation4 + $0xa8] sm:$0x1] %v4050
        %v4052 = vld [vmem:[#allocation4 + $0xb0] sm:$0x1]
        %v4053 = vsel %vm312, 0, %v4052
        %4054 = vst [vmem:[#allocation4 + $0xb0] sm:$0x1] %v4053
        %v4055 = vld [vmem:[#allocation4 + $0xb8] sm:$0x1]
        %v4056 = vsel %vm312, 0, %v4055
        %4057 = vst [vmem:[#allocation4 + $0xb8] sm:$0x1] %v4056
        %v4058 = vld [vmem:[#allocation4 + $0xc0] sm:$0x1]
        %v4059 = vsel %vm326, 0, %v4058
        %4060 = vst [vmem:[#allocation4 + $0xc0] sm:$0x1] %v4059
        %v4061 = vld [vmem:[#allocation4 + $0xc8] sm:$0x1]
        %v4062 = vsel %vm312, 0, %v4061
        %4063 = vst [vmem:[#allocation4 + $0xc8] sm:$0x1] %v4062
        %v4064 = vld [vmem:[#allocation4 + $0xd0] sm:$0x1]
        %v4065 = vsel %vm312, 0, %v4064
        %4066 = vst [vmem:[#allocation4 + $0xd0] sm:$0x1] %v4065
        %v4067 = vld [vmem:[#allocation4 + $0xd8] sm:$0x1]
        %v4068 = vsel %vm312, 0, %v4067
        %4069 = vst [vmem:[#allocation4 + $0xd8] sm:$0x1] %v4068
        %v4070 = vld [vmem:[#allocation4 + $0xe0] sm:$0x1]
        %v4071 = vsel %vm312, 0, %v4070
        %4072 = vst [vmem:[#allocation4 + $0xe0] sm:$0x1] %v4071
        %v4073 = vld [vmem:[#allocation4 + $0xe8] sm:$0x1]
        %v4074 = vsel %vm326, 0, %v4073
        %4075 = vst [vmem:[#allocation4 + $0xe8] sm:$0x1] %v4074
        %v4076 = vld [vmem:[#allocation4 + $0xf0] sm:$0x1]
        %v4077 = vsel %vm312, 0, %v4076
        %4078 = vst [vmem:[#allocation4 + $0xf0] sm:$0x1] %v4077
        %v4079 = vld [vmem:[#allocation4 + $0xf8] sm:$0x1]
        %v4080 = vsel %vm312, 0, %v4079
        %4081 = vst [vmem:[#allocation4 + $0xf8] sm:$0x1] %v4080
        %v4082 = vld [vmem:[#allocation4 + $0x100] sm:$0x1]
        %v4083 = vsel %vm312, 0, %v4082
        %4084 = vst [vmem:[#allocation4 + $0x100] sm:$0x1] %v4083
        %v4085 = vld [vmem:[#allocation4 + $0x108] sm:$0x1]
        %v4086 = vsel %vm312, 0, %v4085
        %4087 = vst [vmem:[#allocation4 + $0x108] sm:$0x1] %v4086
        %v4088 = vld [vmem:[#allocation4 + $0x110] sm:$0x1]
        %v4089 = vsel %vm326, 0, %v4088
        %4090 = vst [vmem:[#allocation4 + $0x110] sm:$0x1] %v4089
        %v4091 = vld [vmem:[#allocation4 + $0x118] sm:$0x1]
        %v4092 = vsel %vm312, 0, %v4091
        %4093 = vst [vmem:[#allocation4 + $0x118] sm:$0x1] %v4092
        %v4094 = vld [vmem:[#allocation4 + $0x120] sm:$0x1]
        %v4095 = vsel %vm312, 0, %v4094
        %4096 = vst [vmem:[#allocation4 + $0x120] sm:$0x1] %v4095
        %v4097 = vld [vmem:[#allocation4 + $0x128] sm:$0x1]
        %v4098 = vsel %vm312, 0, %v4097
        %4099 = vst [vmem:[#allocation4 + $0x128] sm:$0x1] %v4098
        %v4100 = vld [vmem:[#allocation4 + $0x130] sm:$0x1]
        %v4101 = vsel %vm312, 0, %v4100
        %4102 = vst [vmem:[#allocation4 + $0x130] sm:$0x1] %v4101
        %v4103 = vld [vmem:[#allocation4 + $0x138] sm:$0x1]
        %v4104 = vsel %vm326, 0, %v4103
        %4105 = vst [vmem:[#allocation4 + $0x138] sm:$0x1] %v4104
        %v4106 = vld [vmem:[#allocation4 + $0x140] sm:$0x1]
        %v4107 = vsel %vm312, 0, %v4106
        %4108 = vst [vmem:[#allocation4 + $0x140] sm:$0x1] %v4107
        %v4109 = vld [vmem:[#allocation4 + $0x148] sm:$0x1]
        %v4110 = vsel %vm312, 0, %v4109
        %4111 = vst [vmem:[#allocation4 + $0x148] sm:$0x1] %v4110
        %v4112 = vld [vmem:[#allocation4 + $0x150] sm:$0x1]
        %v4113 = vsel %vm312, 0, %v4112
        %4114 = vst [vmem:[#allocation4 + $0x150] sm:$0x1] %v4113
        %v4115 = vld [vmem:[#allocation4 + $0x158] sm:$0x1]
        %v4116 = vsel %vm312, 0, %v4115
        %4117 = vst [vmem:[#allocation4 + $0x158] sm:$0x1] %v4116
        %v4118 = vld [vmem:[#allocation4 + $0x160] sm:$0x1]
        %v4119 = vsel %vm326, 0, %v4118
        %4120 = vst [vmem:[#allocation4 + $0x160] sm:$0x1] %v4119
        %v4121 = vld [vmem:[#allocation4 + $0x168] sm:$0x1]
        %v4122 = vsel %vm312, 0, %v4121
        %4123 = vst [vmem:[#allocation4 + $0x168] sm:$0x1] %v4122
        %v4124 = vld [vmem:[#allocation4 + $0x170] sm:$0x1]
        %v4125 = vsel %vm312, 0, %v4124
        %4126 = vst [vmem:[#allocation4 + $0x170] sm:$0x1] %v4125
        %v4127 = vld [vmem:[#allocation4 + $0x178] sm:$0x1]
        %v4128 = vsel %vm312, 0, %v4127
        %4129 = vst [vmem:[#allocation4 + $0x178] sm:$0x1] %v4128
        %v4130 = vld [vmem:[#allocation4 + $0x180] sm:$0x1]
        %v4131 = vsel %vm312, 0, %v4130
        %4132 = vst [vmem:[#allocation4 + $0x180] sm:$0x1] %v4131
        %v4133 = vld [vmem:[#allocation4 + $0x188] sm:$0x1]
        %v4134 = vsel %vm326, 0, %v4133
        %4135 = vst [vmem:[#allocation4 + $0x188] sm:$0x1] %v4134
        %v4136 = vld [vmem:[#allocation4 + $0x190] sm:$0x1]
        %v4137 = vsel %vm312, 0, %v4136
        %4138 = vst [vmem:[#allocation4 + $0x190] sm:$0x1] %v4137
        %v4139 = vld [vmem:[#allocation4 + $0x198] sm:$0x1]
        %v4140 = vsel %vm312, 0, %v4139
        %4141 = vst [vmem:[#allocation4 + $0x198] sm:$0x1] %v4140
        %v4142 = vld [vmem:[#allocation4 + $0x1a0] sm:$0x1]
        %v4143 = vsel %vm312, 0, %v4142
        %4144 = vst [vmem:[#allocation4 + $0x1a0] sm:$0x1] %v4143
        %v4145 = vld [vmem:[#allocation4 + $0x1a8] sm:$0x1]
        %v4146 = vsel %vm312, 0, %v4145
        %4147 = vst [vmem:[#allocation4 + $0x1a8] sm:$0x1] %v4146
        %v4148 = vld [vmem:[#allocation4 + $0x1b0] sm:$0x1]
        %v4149 = vsel %vm326, 0, %v4148
        %4150 = vst [vmem:[#allocation4 + $0x1b0] sm:$0x1] %v4149
        %v4151 = vld [vmem:[#allocation4 + $0x1b8] sm:$0x1]
        %v4152 = vsel %vm312, 0, %v4151
        %4153 = vst [vmem:[#allocation4 + $0x1b8] sm:$0x1] %v4152
        %v4154 = vld [vmem:[#allocation4 + $0x1c0] sm:$0x1]
        %v4155 = vsel %vm312, 0, %v4154
        %4156 = vst [vmem:[#allocation4 + $0x1c0] sm:$0x1] %v4155
        %v4157 = vld [vmem:[#allocation4 + $0x1c8] sm:$0x1]
        %v4158 = vsel %vm312, 0, %v4157
        %4159 = vst [vmem:[#allocation4 + $0x1c8] sm:$0x1] %v4158
        %v4160 = vld [vmem:[#allocation4 + $0x1d0] sm:$0x1]
        %v4161 = vsel %vm312, 0, %v4160
        %4162 = vst [vmem:[#allocation4 + $0x1d0] sm:$0x1] %v4161
        %v4163 = vld [vmem:[#allocation4 + $0x1d8] sm:$0x1]
        %v4164 = vsel %vm326, 0, %v4163
        %4165 = vst [vmem:[#allocation4 + $0x1d8] sm:$0x1] %v4164
        %v4166 = vld [vmem:[#allocation4 + $0x1e0] sm:$0x1]
        %v4167 = vsel %vm312, 0, %v4166
        %4168 = vst [vmem:[#allocation4 + $0x1e0] sm:$0x1] %v4167
        %v4169 = vld [vmem:[#allocation4 + $0x1e8] sm:$0x1]
        %v4170 = vsel %vm312, 0, %v4169
        %4171 = vst [vmem:[#allocation4 + $0x1e8] sm:$0x1] %v4170
        %v4172 = vld [vmem:[#allocation4 + $0x1f0] sm:$0x1]
        %v4173 = vsel %vm312, 0, %v4172
        %4174 = vst [vmem:[#allocation4 + $0x1f0] sm:$0x1] %v4173
        %v4175 = vld [vmem:[#allocation4 + $0x1f8] sm:$0x1]
        %v4176 = vsel %vm312, 0, %v4175
        %4177 = vst [vmem:[#allocation4 + $0x1f8] sm:$0x1] %v4176
        %v4178 = vld [vmem:[#allocation4 + $0x200] sm:$0x1]
        %v4179 = vsel %vm326, 0, %v4178
        %4180 = vst [vmem:[#allocation4 + $0x200] sm:$0x1] %v4179
        %v4181 = vld [vmem:[#allocation4 + $0x208] sm:$0x1]
        %v4182 = vsel %vm312, 0, %v4181
        %4183 = vst [vmem:[#allocation4 + $0x208] sm:$0x1] %v4182
        %v4184 = vld [vmem:[#allocation4 + $0x210] sm:$0x1]
        %v4185 = vsel %vm312, 0, %v4184
        %4186 = vst [vmem:[#allocation4 + $0x210] sm:$0x1] %v4185
        %v4187 = vld [vmem:[#allocation4 + $0x218] sm:$0x1]
        %v4188 = vsel %vm312, 0, %v4187
        %4189 = vst [vmem:[#allocation4 + $0x218] sm:$0x1] %v4188
        %v4190 = vld [vmem:[#allocation4 + $0x220] sm:$0x1]
        %v4191 = vsel %vm312, 0, %v4190
        %4192 = vst [vmem:[#allocation4 + $0x220] sm:$0x1] %v4191
        %v4193 = vld [vmem:[#allocation4 + $0x228] sm:$0x1]
        %v4194 = vsel %vm326, 0, %v4193
        %4195 = vst [vmem:[#allocation4 + $0x228] sm:$0x1] %v4194
        %v4196 = vld [vmem:[#allocation4 + $0x230] sm:$0x1]
        %v4197 = vsel %vm312, 0, %v4196
        %4198 = vst [vmem:[#allocation4 + $0x230] sm:$0x1] %v4197
        %v4199 = vld [vmem:[#allocation4 + $0x238] sm:$0x1]
        %v4200 = vsel %vm312, 0, %v4199
        %4201 = vst [vmem:[#allocation4 + $0x238] sm:$0x1] %v4200
        %v4202 = vld [vmem:[#allocation4 + $0x240] sm:$0x1]
        %v4203 = vsel %vm312, 0, %v4202
        %4204 = vst [vmem:[#allocation4 + $0x240] sm:$0x1] %v4203
        %v4205 = vld [vmem:[#allocation4 + $0x248] sm:$0x1]
        %v4206 = vsel %vm312, 0, %v4205
        %4207 = vst [vmem:[#allocation4 + $0x248] sm:$0x1] %v4206
        %v4208 = vld [vmem:[#allocation4 + $0x250] sm:$0x1]
        %v4209 = vsel %vm326, 0, %v4208
        %4210 = vst [vmem:[#allocation4 + $0x250] sm:$0x1] %v4209
        %v4211 = vld [vmem:[#allocation4 + $0x258] sm:$0x1]
        %v4212 = vsel %vm312, 0, %v4211
        %4213 = vst [vmem:[#allocation4 + $0x258] sm:$0x1] %v4212
        %v4214 = vld [vmem:[#allocation4 + $0x260] sm:$0x1]
        %v4215 = vsel %vm312, 0, %v4214
        %4216 = vst [vmem:[#allocation4 + $0x260] sm:$0x1] %v4215
        %v4217 = vld [vmem:[#allocation4 + $0x268] sm:$0x1]
        %v4218 = vsel %vm312, 0, %v4217
        %4219 = vst [vmem:[#allocation4 + $0x268] sm:$0x1] %v4218
        %v4220 = vld [vmem:[#allocation4 + $0x270] sm:$0x1]
        %v4221 = vsel %vm312, 0, %v4220
        %4222 = vst [vmem:[#allocation4 + $0x270] sm:$0x1] %v4221
        %v4223 = vld [vmem:[#allocation4 + $0x278] sm:$0x1]
        %v4224 = vsel %vm326, 0, %v4223
        %4225 = vst [vmem:[#allocation4 + $0x278] sm:$0x1] %v4224
        %v4226 = vld [vmem:[#allocation4] sm:$0x80]
        %v4227 = vsel %vm557, 0, %v4226
        %4228 = vst [vmem:[#allocation4] sm:$0x80] %v4227
        %v4229 = vld [vmem:[#allocation4 + $0x8] sm:$0x80]
        %v4230 = vsel %vm557, 0, %v4229
        %4231 = vst [vmem:[#allocation4 + $0x8] sm:$0x80] %v4230
        %v4232 = vld [vmem:[#allocation4 + $0x10] sm:$0x80]
        %v4233 = vsel %vm557, 0, %v4232
        %4234 = vst [vmem:[#allocation4 + $0x10] sm:$0x80] %v4233
        %v4235 = vld [vmem:[#allocation4 + $0x18] sm:$0x80]
        %v4236 = vsel %vm557, 0, %v4235
        %4237 = vst [vmem:[#allocation4 + $0x18] sm:$0x80] %v4236
        %v4238 = vld [vmem:[#allocation4 + $0x20] sm:$0x80]
        %v4239 = vsel %vm571, 0, %v4238
        %4240 = vst [vmem:[#allocation4 + $0x20] sm:$0x80] %v4239
        %v4241 = vld [vmem:[#allocation4 + $0x28] sm:$0x80]
        %v4242 = vsel %vm557, 0, %v4241
        %4243 = vst [vmem:[#allocation4 + $0x28] sm:$0x80] %v4242
        %v4244 = vld [vmem:[#allocation4 + $0x30] sm:$0x80]
        %v4245 = vsel %vm557, 0, %v4244
        %4246 = vst [vmem:[#allocation4 + $0x30] sm:$0x80] %v4245
        %v4247 = vld [vmem:[#allocation4 + $0x38] sm:$0x80]
        %v4248 = vsel %vm557, 0, %v4247
        %4249 = vst [vmem:[#allocation4 + $0x38] sm:$0x80] %v4248
        %v4250 = vld [vmem:[#allocation4 + $0x40] sm:$0x80]
        %v4251 = vsel %vm557, 0, %v4250
        %4252 = vst [vmem:[#allocation4 + $0x40] sm:$0x80] %v4251
        %v4253 = vld [vmem:[#allocation4 + $0x48] sm:$0x80]
        %v4254 = vsel %vm571, 0, %v4253
        %4255 = vst [vmem:[#allocation4 + $0x48] sm:$0x80] %v4254
        %v4256 = vld [vmem:[#allocation4 + $0x50] sm:$0x80]
        %v4257 = vsel %vm557, 0, %v4256
        %4258 = vst [vmem:[#allocation4 + $0x50] sm:$0x80] %v4257
        %v4259 = vld [vmem:[#allocation4 + $0x58] sm:$0x80]
        %v4260 = vsel %vm557, 0, %v4259
        %4261 = vst [vmem:[#allocation4 + $0x58] sm:$0x80] %v4260
        %v4262 = vld [vmem:[#allocation4 + $0x60] sm:$0x80]
        %v4263 = vsel %vm557, 0, %v4262
        %4264 = vst [vmem:[#allocation4 + $0x60] sm:$0x80] %v4263
        %v4265 = vld [vmem:[#allocation4 + $0x68] sm:$0x80]
        %v4266 = vsel %vm557, 0, %v4265
        %4267 = vst [vmem:[#allocation4 + $0x68] sm:$0x80] %v4266
        %v4268 = vld [vmem:[#allocation4 + $0x70] sm:$0x80]
        %v4269 = vsel %vm571, 0, %v4268
        %4270 = vst [vmem:[#allocation4 + $0x70] sm:$0x80] %v4269
        %v4271 = vld [vmem:[#allocation4 + $0x78] sm:$0x80]
        %v4272 = vsel %vm557, 0, %v4271
        %4273 = vst [vmem:[#allocation4 + $0x78] sm:$0x80] %v4272
        %v4274 = vld [vmem:[#allocation4 + $0x80] sm:$0x80]
        %v4275 = vsel %vm557, 0, %v4274
        %4276 = vst [vmem:[#allocation4 + $0x80] sm:$0x80] %v4275
        %v4277 = vld [vmem:[#allocation4 + $0x88] sm:$0x80]
        %v4278 = vsel %vm557, 0, %v4277
        %4279 = vst [vmem:[#allocation4 + $0x88] sm:$0x80] %v4278
        %v4280 = vld [vmem:[#allocation4 + $0x90] sm:$0x80]
        %v4281 = vsel %vm557, 0, %v4280
        %4282 = vst [vmem:[#allocation4 + $0x90] sm:$0x80] %v4281
        %v4283 = vld [vmem:[#allocation4 + $0x98] sm:$0x80]
        %v4284 = vsel %vm571, 0, %v4283
        %4285 = vst [vmem:[#allocation4 + $0x98] sm:$0x80] %v4284
        %v4286 = vld [vmem:[#allocation4 + $0xa0] sm:$0x80]
        %v4287 = vsel %vm557, 0, %v4286
        %4288 = vst [vmem:[#allocation4 + $0xa0] sm:$0x80] %v4287
        %v4289 = vld [vmem:[#allocation4 + $0xa8] sm:$0x80]
        %v4290 = vsel %vm557, 0, %v4289
        %4291 = vst [vmem:[#allocation4 + $0xa8] sm:$0x80] %v4290
        %v4292 = vld [vmem:[#allocation4 + $0xb0] sm:$0x80]
        %v4293 = vsel %vm557, 0, %v4292
        %4294 = vst [vmem:[#allocation4 + $0xb0] sm:$0x80] %v4293
        %v4295 = vld [vmem:[#allocation4 + $0xb8] sm:$0x80]
        %v4296 = vsel %vm557, 0, %v4295
        %4297 = vst [vmem:[#allocation4 + $0xb8] sm:$0x80] %v4296
        %v4298 = vld [vmem:[#allocation4 + $0xc0] sm:$0x80]
        %v4299 = vsel %vm571, 0, %v4298
        %4300 = vst [vmem:[#allocation4 + $0xc0] sm:$0x80] %v4299
        %v4301 = vld [vmem:[#allocation4 + $0xc8] sm:$0x80]
        %v4302 = vsel %vm557, 0, %v4301
        %4303 = vst [vmem:[#allocation4 + $0xc8] sm:$0x80] %v4302
        %v4304 = vld [vmem:[#allocation4 + $0xd0] sm:$0x80]
        %v4305 = vsel %vm557, 0, %v4304
        %4306 = vst [vmem:[#allocation4 + $0xd0] sm:$0x80] %v4305
        %v4307 = vld [vmem:[#allocation4 + $0xd8] sm:$0x80]
        %v4308 = vsel %vm557, 0, %v4307
        %4309 = vst [vmem:[#allocation4 + $0xd8] sm:$0x80] %v4308
        %v4310 = vld [vmem:[#allocation4 + $0xe0] sm:$0x80]
        %v4311 = vsel %vm557, 0, %v4310
        %4312 = vst [vmem:[#allocation4 + $0xe0] sm:$0x80] %v4311
        %v4313 = vld [vmem:[#allocation4 + $0xe8] sm:$0x80]
        %v4314 = vsel %vm571, 0, %v4313
        %4315 = vst [vmem:[#allocation4 + $0xe8] sm:$0x80] %v4314
        %v4316 = vld [vmem:[#allocation4 + $0xf0] sm:$0x80]
        %v4317 = vsel %vm557, 0, %v4316
        %4318 = vst [vmem:[#allocation4 + $0xf0] sm:$0x80] %v4317
        %v4319 = vld [vmem:[#allocation4 + $0xf8] sm:$0x80]
        %v4320 = vsel %vm557, 0, %v4319
        %4321 = vst [vmem:[#allocation4 + $0xf8] sm:$0x80] %v4320
        %v4322 = vld [vmem:[#allocation4 + $0x100] sm:$0x80]
        %v4323 = vsel %vm557, 0, %v4322
        %4324 = vst [vmem:[#allocation4 + $0x100] sm:$0x80] %v4323
        %v4325 = vld [vmem:[#allocation4 + $0x108] sm:$0x80]
        %v4326 = vsel %vm557, 0, %v4325
        %4327 = vst [vmem:[#allocation4 + $0x108] sm:$0x80] %v4326
        %v4328 = vld [vmem:[#allocation4 + $0x110] sm:$0x80]
        %v4329 = vsel %vm571, 0, %v4328
        %4330 = vst [vmem:[#allocation4 + $0x110] sm:$0x80] %v4329
        %v4331 = vld [vmem:[#allocation4 + $0x118] sm:$0x80]
        %v4332 = vsel %vm557, 0, %v4331
        %4333 = vst [vmem:[#allocation4 + $0x118] sm:$0x80] %v4332
        %v4334 = vld [vmem:[#allocation4 + $0x120] sm:$0x80]
        %v4335 = vsel %vm557, 0, %v4334
        %4336 = vst [vmem:[#allocation4 + $0x120] sm:$0x80] %v4335
        %v4337 = vld [vmem:[#allocation4 + $0x128] sm:$0x80]
        %v4338 = vsel %vm557, 0, %v4337
        %4339 = vst [vmem:[#allocation4 + $0x128] sm:$0x80] %v4338
        %v4340 = vld [vmem:[#allocation4 + $0x130] sm:$0x80]
        %v4341 = vsel %vm557, 0, %v4340
        %4342 = vst [vmem:[#allocation4 + $0x130] sm:$0x80] %v4341
        %v4343 = vld [vmem:[#allocation4 + $0x138] sm:$0x80]
        %v4344 = vsel %vm571, 0, %v4343
        %4345 = vst [vmem:[#allocation4 + $0x138] sm:$0x80] %v4344
        %v4346 = vld [vmem:[#allocation4 + $0x140] sm:$0x80]
        %v4347 = vsel %vm557, 0, %v4346
        %4348 = vst [vmem:[#allocation4 + $0x140] sm:$0x80] %v4347
        %v4349 = vld [vmem:[#allocation4 + $0x148] sm:$0x80]
        %v4350 = vsel %vm557, 0, %v4349
        %4351 = vst [vmem:[#allocation4 + $0x148] sm:$0x80] %v4350
        %v4352 = vld [vmem:[#allocation4 + $0x150] sm:$0x80]
        %v4353 = vsel %vm557, 0, %v4352
        %4354 = vst [vmem:[#allocation4 + $0x150] sm:$0x80] %v4353
        %v4355 = vld [vmem:[#allocation4 + $0x158] sm:$0x80]
        %v4356 = vsel %vm557, 0, %v4355
        %4357 = vst [vmem:[#allocation4 + $0x158] sm:$0x80] %v4356
        %v4358 = vld [vmem:[#allocation4 + $0x160] sm:$0x80]
        %v4359 = vsel %vm571, 0, %v4358
        %4360 = vst [vmem:[#allocation4 + $0x160] sm:$0x80] %v4359
        %v4361 = vld [vmem:[#allocation4 + $0x168] sm:$0x80]
        %v4362 = vsel %vm557, 0, %v4361
        %4363 = vst [vmem:[#allocation4 + $0x168] sm:$0x80] %v4362
        %v4364 = vld [vmem:[#allocation4 + $0x170] sm:$0x80]
        %v4365 = vsel %vm557, 0, %v4364
        %4366 = vst [vmem:[#allocation4 + $0x170] sm:$0x80] %v4365
        %v4367 = vld [vmem:[#allocation4 + $0x178] sm:$0x80]
        %v4368 = vsel %vm557, 0, %v4367
        %4369 = vst [vmem:[#allocation4 + $0x178] sm:$0x80] %v4368
        %v4370 = vld [vmem:[#allocation4 + $0x180] sm:$0x80]
        %v4371 = vsel %vm557, 0, %v4370
        %4372 = vst [vmem:[#allocation4 + $0x180] sm:$0x80] %v4371
        %v4373 = vld [vmem:[#allocation4 + $0x188] sm:$0x80]
        %v4374 = vsel %vm571, 0, %v4373
        %4375 = vst [vmem:[#allocation4 + $0x188] sm:$0x80] %v4374
        %v4376 = vld [vmem:[#allocation4 + $0x190] sm:$0x80]
        %v4377 = vsel %vm557, 0, %v4376
        %4378 = vst [vmem:[#allocation4 + $0x190] sm:$0x80] %v4377
        %v4379 = vld [vmem:[#allocation4 + $0x198] sm:$0x80]
        %v4380 = vsel %vm557, 0, %v4379
        %4381 = vst [vmem:[#allocation4 + $0x198] sm:$0x80] %v4380
        %v4382 = vld [vmem:[#allocation4 + $0x1a0] sm:$0x80]
        %v4383 = vsel %vm557, 0, %v4382
        %4384 = vst [vmem:[#allocation4 + $0x1a0] sm:$0x80] %v4383
        %v4385 = vld [vmem:[#allocation4 + $0x1a8] sm:$0x80]
        %v4386 = vsel %vm557, 0, %v4385
        %4387 = vst [vmem:[#allocation4 + $0x1a8] sm:$0x80] %v4386
        %v4388 = vld [vmem:[#allocation4 + $0x1b0] sm:$0x80]
        %v4389 = vsel %vm571, 0, %v4388
        %4390 = vst [vmem:[#allocation4 + $0x1b0] sm:$0x80] %v4389
        %v4391 = vld [vmem:[#allocation4 + $0x1b8] sm:$0x80]
        %v4392 = vsel %vm557, 0, %v4391
        %4393 = vst [vmem:[#allocation4 + $0x1b8] sm:$0x80] %v4392
        %v4394 = vld [vmem:[#allocation4 + $0x1c0] sm:$0x80]
        %v4395 = vsel %vm557, 0, %v4394
        %4396 = vst [vmem:[#allocation4 + $0x1c0] sm:$0x80] %v4395
        %v4397 = vld [vmem:[#allocation4 + $0x1c8] sm:$0x80]
        %v4398 = vsel %vm557, 0, %v4397
        %4399 = vst [vmem:[#allocation4 + $0x1c8] sm:$0x80] %v4398
        %v4400 = vld [vmem:[#allocation4 + $0x1d0] sm:$0x80]
        %v4401 = vsel %vm557, 0, %v4400
        %4402 = vst [vmem:[#allocation4 + $0x1d0] sm:$0x80] %v4401
        %v4403 = vld [vmem:[#allocation4 + $0x1d8] sm:$0x80]
        %v4404 = vsel %vm571, 0, %v4403
        %4405 = vst [vmem:[#allocation4 + $0x1d8] sm:$0x80] %v4404
        %v4406 = vld [vmem:[#allocation4 + $0x1e0] sm:$0x80]
        %v4407 = vsel %vm557, 0, %v4406
        %4408 = vst [vmem:[#allocation4 + $0x1e0] sm:$0x80] %v4407
        %v4409 = vld [vmem:[#allocation4 + $0x1e8] sm:$0x80]
        %v4410 = vsel %vm557, 0, %v4409
        %4411 = vst [vmem:[#allocation4 + $0x1e8] sm:$0x80] %v4410
        %v4412 = vld [vmem:[#allocation4 + $0x1f0] sm:$0x80]
        %v4413 = vsel %vm557, 0, %v4412
        %4414 = vst [vmem:[#allocation4 + $0x1f0] sm:$0x80] %v4413
        %v4415 = vld [vmem:[#allocation4 + $0x1f8] sm:$0x80]
        %v4416 = vsel %vm557, 0, %v4415
        %4417 = vst [vmem:[#allocation4 + $0x1f8] sm:$0x80] %v4416
        %v4418 = vld [vmem:[#allocation4 + $0x200] sm:$0x80]
        %v4419 = vsel %vm571, 0, %v4418
        %4420 = vst [vmem:[#allocation4 + $0x200] sm:$0x80] %v4419
        %v4421 = vld [vmem:[#allocation4 + $0x208] sm:$0x80]
        %v4422 = vsel %vm557, 0, %v4421
        %4423 = vst [vmem:[#allocation4 + $0x208] sm:$0x80] %v4422
        %v4424 = vld [vmem:[#allocation4 + $0x210] sm:$0x80]
        %v4425 = vsel %vm557, 0, %v4424
        %4426 = vst [vmem:[#allocation4 + $0x210] sm:$0x80] %v4425
        %v4427 = vld [vmem:[#allocation4 + $0x218] sm:$0x80]
        %v4428 = vsel %vm557, 0, %v4427
        %4429 = vst [vmem:[#allocation4 + $0x218] sm:$0x80] %v4428
        %v4430 = vld [vmem:[#allocation4 + $0x220] sm:$0x80]
        %v4431 = vsel %vm557, 0, %v4430
        %4432 = vst [vmem:[#allocation4 + $0x220] sm:$0x80] %v4431
        %v4433 = vld [vmem:[#allocation4 + $0x228] sm:$0x80]
        %v4434 = vsel %vm571, 0, %v4433
        %4435 = vst [vmem:[#allocation4 + $0x228] sm:$0x80] %v4434
        %v4436 = vld [vmem:[#allocation4 + $0x230] sm:$0x80]
        %v4437 = vsel %vm557, 0, %v4436
        %4438 = vst [vmem:[#allocation4 + $0x230] sm:$0x80] %v4437
        %v4439 = vld [vmem:[#allocation4 + $0x238] sm:$0x80]
        %v4440 = vsel %vm557, 0, %v4439
        %4441 = vst [vmem:[#allocation4 + $0x238] sm:$0x80] %v4440
        %v4442 = vld [vmem:[#allocation4 + $0x240] sm:$0x80]
        %v4443 = vsel %vm557, 0, %v4442
        %4444 = vst [vmem:[#allocation4 + $0x240] sm:$0x80] %v4443
        %v4445 = vld [vmem:[#allocation4 + $0x248] sm:$0x80]
        %v4446 = vsel %vm557, 0, %v4445
        %4447 = vst [vmem:[#allocation4 + $0x248] sm:$0x80] %v4446
        %v4448 = vld [vmem:[#allocation4 + $0x250] sm:$0x80]
        %v4449 = vsel %vm571, 0, %v4448
        %4450 = vst [vmem:[#allocation4 + $0x250] sm:$0x80] %v4449
        %v4451 = vld [vmem:[#allocation4 + $0x258] sm:$0x80]
        %v4452 = vsel %vm557, 0, %v4451
        %4453 = vst [vmem:[#allocation4 + $0x258] sm:$0x80] %v4452
        %v4454 = vld [vmem:[#allocation4 + $0x260] sm:$0x80]
        %v4455 = vsel %vm557, 0, %v4454
        %4456 = vst [vmem:[#allocation4 + $0x260] sm:$0x80] %v4455
        %v4457 = vld [vmem:[#allocation4 + $0x268] sm:$0x80]
        %v4458 = vsel %vm557, 0, %v4457
        %4459 = vst [vmem:[#allocation4 + $0x268] sm:$0x80] %v4458
        %v4460 = vld [vmem:[#allocation4 + $0x270] sm:$0x80]
        %v4461 = vsel %vm557, 0, %v4460
        %4462 = vst [vmem:[#allocation4 + $0x270] sm:$0x80] %v4461
        %v4463 = vld [vmem:[#allocation4 + $0x278] sm:$0x80]
        %v4464 = vsel %vm571, 0, %v4463
        %4465 = vst [vmem:[#allocation4 + $0x278] sm:$0x80] %v4464
        %v4466 = vld [vmem:[#allocation3] sm:$0xff]
        %v4467 = vld [vmem:[#allocation3 + $0x8] sm:$0xff]
        %v4468 = vld [vmem:[#allocation3 + $0x10] sm:$0xff]
        %v4469 = vld [vmem:[#allocation3 + $0x18] sm:$0xff]
        %v4470 = vld [vmem:[#allocation3 + $0x20] sm:$0xff]
        %v4471 = vld [vmem:[#allocation3 + $0x28] sm:$0xff]
        %v4472 = vld [vmem:[#allocation3 + $0x30] sm:$0xff]
        %v4473 = vld [vmem:[#allocation3 + $0x38] sm:$0xff]
        %v4474 = vld [vmem:[#allocation3 + $0x40] sm:$0xff]
        %v4475 = vld [vmem:[#allocation3 + $0x48] sm:$0xff]
        %v4476 = vld [vmem:[#allocation3 + $0x50] sm:$0xff]
        %v4477 = vld [vmem:[#allocation3 + $0x58] sm:$0xff]
        %v4478 = vld [vmem:[#allocation3 + $0x60] sm:$0xff]
        %v4479 = vld [vmem:[#allocation3 + $0x68] sm:$0xff]
        %v4480 = vld [vmem:[#allocation3 + $0x70] sm:$0xff]
        %v4482 = vshrl.u32 %v4466, 16
        %v4484 = vrot.slane %v4482, 7
        %v4485 = vshll.u32 %v4466, 16
        %v4487 = vor.u32 %v4484, %v4485
        %v4489 = vshrl.u32 %v4467, 16
        %v4491 = vrot.slane %v4489, 7
        %v4492 = vshll.u32 %v4467, 16
        %v4494 = vor.u32 %v4491, %v4492
        %v4496 = vshrl.u32 %v4468, 16
        %v4498 = vrot.slane %v4496, 7
        %v4499 = vshll.u32 %v4468, 16
        %v4501 = vor.u32 %v4498, %v4499
        %v4503 = vshrl.u32 %v4469, 16
        %v4505 = vrot.slane %v4503, 7
        %v4506 = vshll.u32 %v4469, 16
        %v4508 = vor.u32 %v4505, %v4506
        %v4510 = vshrl.u32 %v4470, 16
        %v4512 = vrot.slane %v4510, 7
        %v4513 = vshll.u32 %v4470, 16
        %v4515 = vor.u32 %v4512, %v4513
        %v4517 = vshrl.u32 %v4471, 16
        %v4519 = vrot.slane %v4517, 7
        %v4520 = vshll.u32 %v4471, 16
        %v4522 = vor.u32 %v4519, %v4520
        %v4524 = vshrl.u32 %v4472, 16
        %v4526 = vrot.slane %v4524, 7
        %v4527 = vshll.u32 %v4472, 16
        %v4529 = vor.u32 %v4526, %v4527
        %v4531 = vshrl.u32 %v4473, 16
        %v4533 = vrot.slane %v4531, 7
        %v4534 = vshll.u32 %v4473, 16
        %v4536 = vor.u32 %v4533, %v4534
        %v4538 = vshrl.u32 %v4474, 16
        %v4540 = vrot.slane %v4538, 7
        %v4541 = vshll.u32 %v4474, 16
        %v4543 = vor.u32 %v4540, %v4541
        %v4545 = vshrl.u32 %v4475, 16
        %v4547 = vrot.slane %v4545, 7
        %v4548 = vshll.u32 %v4475, 16
        %v4550 = vor.u32 %v4547, %v4548
        %v4552 = vshrl.u32 %v4476, 16
        %v4554 = vrot.slane %v4552, 7
        %v4555 = vshll.u32 %v4476, 16
        %v4557 = vor.u32 %v4554, %v4555
        %v4559 = vshrl.u32 %v4477, 16
        %v4561 = vrot.slane %v4559, 7
        %v4562 = vshll.u32 %v4477, 16
        %v4564 = vor.u32 %v4561, %v4562
        %v4566 = vshrl.u32 %v4478, 16
        %v4568 = vrot.slane %v4566, 7
        %v4569 = vshll.u32 %v4478, 16
        %v4571 = vor.u32 %v4568, %v4569
        %v4573 = vshrl.u32 %v4479, 16
        %v4575 = vrot.slane %v4573, 7
        %v4576 = vshll.u32 %v4479, 16
        %v4578 = vor.u32 %v4575, %v4576
        %v4580 = vshrl.u32 %v4480, 16
        %v4582 = vrot.slane %v4580, 7
        %v4583 = vshll.u32 %v4480, 16
        %v4585 = vor.u32 %v4582, %v4583
        %s4601 = scalar_lea.vmem [#allocation4], 40
        %v4602 = vld [vmem:[%s4601] sm:$0xff]
        %v4603 = vsel %vm1028, %v4487, %v4602
        %4604 = vst [vmem:[%s4601] sm:$0xff] %v4603
        %v4605 = vld [vmem:[%s4601 + $0x28] sm:$0xff]
        %v4606 = vsel %vm1028, %v4494, %v4605
        %4607 = vst [vmem:[%s4601 + $0x28] sm:$0xff] %v4606
        %v4608 = vld [vmem:[%s4601 + $0x50] sm:$0xff]
        %v4609 = vsel %vm1028, %v4501, %v4608
        %4610 = vst [vmem:[%s4601 + $0x50] sm:$0xff] %v4609
        %v4611 = vld [vmem:[%s4601 + $0x78] sm:$0xff]
        %v4612 = vsel %vm1028, %v4508, %v4611
        %4613 = vst [vmem:[%s4601 + $0x78] sm:$0xff] %v4612
        %v4614 = vld [vmem:[%s4601 + $0xa0] sm:$0xff]
        %v4615 = vsel %vm1028, %v4515, %v4614
        %4616 = vst [vmem:[%s4601 + $0xa0] sm:$0xff] %v4615
        %v4617 = vld [vmem:[%s4601 + $0xc8] sm:$0xff]
        %v4618 = vsel %vm1028, %v4522, %v4617
        %4619 = vst [vmem:[%s4601 + $0xc8] sm:$0xff] %v4618
        %v4620 = vld [vmem:[%s4601 + $0xf0] sm:$0xff]
        %v4621 = vsel %vm1028, %v4529, %v4620
        %4622 = vst [vmem:[%s4601 + $0xf0] sm:$0xff] %v4621
        %v4623 = vld [vmem:[%s4601 + $0x118] sm:$0xff]
        %v4624 = vsel %vm1028, %v4536, %v4623
        %4625 = vst [vmem:[%s4601 + $0x118] sm:$0xff] %v4624
        %v4626 = vld [vmem:[%s4601 + $0x140] sm:$0xff]
        %v4627 = vsel %vm1028, %v4543, %v4626
        %4628 = vst [vmem:[%s4601 + $0x140] sm:$0xff] %v4627
        %v4629 = vld [vmem:[%s4601 + $0x168] sm:$0xff]
        %v4630 = vsel %vm1028, %v4550, %v4629
        %4631 = vst [vmem:[%s4601 + $0x168] sm:$0xff] %v4630
        %v4632 = vld [vmem:[%s4601 + $0x190] sm:$0xff]
        %v4633 = vsel %vm1028, %v4557, %v4632
        %4634 = vst [vmem:[%s4601 + $0x190] sm:$0xff] %v4633
        %v4635 = vld [vmem:[%s4601 + $0x1b8] sm:$0xff]
        %v4636 = vsel %vm1028, %v4564, %v4635
        %4637 = vst [vmem:[%s4601 + $0x1b8] sm:$0xff] %v4636
        %v4638 = vld [vmem:[%s4601 + $0x1e0] sm:$0xff]
        %v4639 = vsel %vm1028, %v4571, %v4638
        %4640 = vst [vmem:[%s4601 + $0x1e0] sm:$0xff] %v4639
        %v4641 = vld [vmem:[%s4601 + $0x208] sm:$0xff]
        %v4642 = vsel %vm1028, %v4578, %v4641
        %4643 = vst [vmem:[%s4601 + $0x208] sm:$0xff] %v4642
        %v4644 = vld [vmem:[%s4601 + $0x230] sm:$0xff]
        %v4645 = vsel %vm1028, %v4585, %v4644
        %4646 = vst [vmem:[%s4601 + $0x230] sm:$0xff] %v4645
        %v4647 = vld [vmem:[#allocation3] sm:$0xff]
        %v4648 = vld [vmem:[#allocation3 + $0x8] sm:$0xff]
        %v4649 = vld [vmem:[#allocation3 + $0x10] sm:$0xff]
        %v4650 = vld [vmem:[#allocation3 + $0x18] sm:$0xff]
        %v4651 = vld [vmem:[#allocation3 + $0x20] sm:$0xff]
        %v4652 = vld [vmem:[#allocation3 + $0x28] sm:$0xff]
        %v4653 = vld [vmem:[#allocation3 + $0x30] sm:$0xff]
        %v4654 = vld [vmem:[#allocation3 + $0x38] sm:$0xff]
        %v4655 = vld [vmem:[#allocation3 + $0x40] sm:$0xff]
        %v4656 = vld [vmem:[#allocation3 + $0x48] sm:$0xff]
        %v4657 = vld [vmem:[#allocation3 + $0x50] sm:$0xff]
        %v4658 = vld [vmem:[#allocation3 + $0x58] sm:$0xff]
        %v4659 = vld [vmem:[#allocation3 + $0x60] sm:$0xff]
        %v4660 = vld [vmem:[#allocation3 + $0x68] sm:$0xff]
        %v4661 = vld [vmem:[#allocation3 + $0x70] sm:$0xff]
        %4677 = vrot.lane.b32.xlu0 %v4647, 64
        %v4678 = vpop.permute.xlu0 %4677
        %4679 = vrot.lane.b32.xlu0 %v4648, 64
        %v4680 = vpop.permute.xlu0 %4679
        %4681 = vrot.lane.b32.xlu0 %v4649, 64
        %v4682 = vpop.permute.xlu0 %4681
        %4683 = vrot.lane.b32.xlu0 %v4650, 64
        %v4684 = vpop.permute.xlu0 %4683
        %4685 = vrot.lane.b32.xlu0 %v4651, 64
        %v4686 = vpop.permute.xlu0 %4685
        %4687 = vrot.lane.b32.xlu0 %v4652, 64
        %v4688 = vpop.permute.xlu0 %4687
        %4689 = vrot.lane.b32.xlu0 %v4653, 64
        %v4690 = vpop.permute.xlu0 %4689
        %4691 = vrot.lane.b32.xlu0 %v4654, 64
        %v4692 = vpop.permute.xlu0 %4691
        %4693 = vrot.lane.b32.xlu0 %v4655, 64
        %v4694 = vpop.permute.xlu0 %4693
        %4695 = vrot.lane.b32.xlu0 %v4656, 64
        %v4696 = vpop.permute.xlu0 %4695
        %4697 = vrot.lane.b32.xlu0 %v4657, 64
        %v4698 = vpop.permute.xlu0 %4697
        %4699 = vrot.lane.b32.xlu0 %v4658, 64
        %v4700 = vpop.permute.xlu0 %4699
        %4701 = vrot.lane.b32.xlu0 %v4659, 64
        %v4702 = vpop.permute.xlu0 %4701
        %4703 = vrot.lane.b32.xlu0 %v4660, 64
        %v4704 = vpop.permute.xlu0 %4703
        %4705 = vrot.lane.b32.xlu0 %v4661, 64
        %v4706 = vpop.permute.xlu0 %4705
        %4722 = vst.msk [vmem:[%s4601] sm:$0xff] %vm1224, %v4678
        %4723 = vst.msk [vmem:[%s4601 + $0x28] sm:$0xff] %vm1224, %v4680
        %4724 = vst.msk [vmem:[%s4601 + $0x50] sm:$0xff] %vm1224, %v4682
        %4725 = vst.msk [vmem:[%s4601 + $0x78] sm:$0xff] %vm1224, %v4684
        %4726 = vst.msk [vmem:[%s4601 + $0xa0] sm:$0xff] %vm1224, %v4686
        %4727 = vst.msk [vmem:[%s4601 + $0xc8] sm:$0xff] %vm1224, %v4688
        %4728 = vst.msk [vmem:[%s4601 + $0xf0] sm:$0xff] %vm1224, %v4690
        %4729 = vst.msk [vmem:[%s4601 + $0x118] sm:$0xff] %vm1224, %v4692
        %4730 = vst.msk [vmem:[%s4601 + $0x140] sm:$0xff] %vm1224, %v4694
        %4731 = vst.msk [vmem:[%s4601 + $0x168] sm:$0xff] %vm1224, %v4696
        %4732 = vst.msk [vmem:[%s4601 + $0x190] sm:$0xff] %vm1224, %v4698
        %4733 = vst.msk [vmem:[%s4601 + $0x1b8] sm:$0xff] %vm1224, %v4700
        %4734 = vst.msk [vmem:[%s4601 + $0x1e0] sm:$0xff] %vm1224, %v4702
        %4735 = vst.msk [vmem:[%s4601 + $0x208] sm:$0xff] %vm1224, %v4704
        %4736 = vst.msk [vmem:[%s4601 + $0x230] sm:$0xff] %vm1224, %v4706
        %v4737 = vld [vmem:[#allocation3] sm:$0xff]
        %v4738 = vld [vmem:[#allocation3 + $0x8] sm:$0xff]
        %v4739 = vld [vmem:[#allocation3 + $0x10] sm:$0xff]
        %v4740 = vld [vmem:[#allocation3 + $0x18] sm:$0xff]
        %v4741 = vld [vmem:[#allocation3 + $0x20] sm:$0xff]
        %v4742 = vld [vmem:[#allocation3 + $0x28] sm:$0xff]
        %v4743 = vld [vmem:[#allocation3 + $0x30] sm:$0xff]
        %v4744 = vld [vmem:[#allocation3 + $0x38] sm:$0xff]
        %v4745 = vld [vmem:[#allocation3 + $0x40] sm:$0xff]
        %v4746 = vld [vmem:[#allocation3 + $0x48] sm:$0xff]
        %v4747 = vld [vmem:[#allocation3 + $0x50] sm:$0xff]
        %v4748 = vld [vmem:[#allocation3 + $0x58] sm:$0xff]
        %v4749 = vld [vmem:[#allocation3 + $0x60] sm:$0xff]
        %v4750 = vld [vmem:[#allocation3 + $0x68] sm:$0xff]
        %v4751 = vld [vmem:[#allocation3 + $0x70] sm:$0xff]
        %v4753 = vshrl.u32 %v4737, 16
        %v4755 = vshll.u32 %v4737, 16
        %v4757 = vrot.slane %v4755, 1
        %v4758 = vor.u32 %v4753, %v4757
        %v4760 = vshrl.u32 %v4738, 16
        %v4762 = vshll.u32 %v4738, 16
        %v4764 = vrot.slane %v4762, 1
        %v4765 = vor.u32 %v4760, %v4764
        %v4767 = vshrl.u32 %v4739, 16
        %v4769 = vshll.u32 %v4739, 16
        %v4771 = vrot.slane %v4769, 1
        %v4772 = vor.u32 %v4767, %v4771
        %v4774 = vshrl.u32 %v4740, 16
        %v4776 = vshll.u32 %v4740, 16
        %v4778 = vrot.slane %v4776, 1
        %v4779 = vor.u32 %v4774, %v4778
        %v4781 = vshrl.u32 %v4741, 16
        %v4783 = vshll.u32 %v4741, 16
        %v4785 = vrot.slane %v4783, 1
        %v4786 = vor.u32 %v4781, %v4785
        %v4788 = vshrl.u32 %v4742, 16
        %v4790 = vshll.u32 %v4742, 16
        %v4792 = vrot.slane %v4790, 1
        %v4793 = vor.u32 %v4788, %v4792
        %v4795 = vshrl.u32 %v4743, 16
        %v4797 = vshll.u32 %v4743, 16
        %v4799 = vrot.slane %v4797, 1
        %v4800 = vor.u32 %v4795, %v4799
        %v4802 = vshrl.u32 %v4744, 16
        %v4804 = vshll.u32 %v4744, 16
        %v4806 = vrot.slane %v4804, 1
        %v4807 = vor.u32 %v4802, %v4806
        %v4809 = vshrl.u32 %v4745, 16
        %v4811 = vshll.u32 %v4745, 16
        %v4813 = vrot.slane %v4811, 1
        %v4814 = vor.u32 %v4809, %v4813
        %v4816 = vshrl.u32 %v4746, 16
        %v4818 = vshll.u32 %v4746, 16
        %v4820 = vrot.slane %v4818, 1
        %v4821 = vor.u32 %v4816, %v4820
        %v4823 = vshrl.u32 %v4747, 16
        %v4825 = vshll.u32 %v4747, 16
        %v4827 = vrot.slane %v4825, 1
        %v4828 = vor.u32 %v4823, %v4827
        %v4830 = vshrl.u32 %v4748, 16
        %v4832 = vshll.u32 %v4748, 16
        %v4834 = vrot.slane %v4832, 1
        %v4835 = vor.u32 %v4830, %v4834
        %v4837 = vshrl.u32 %v4749, 16
        %v4839 = vshll.u32 %v4749, 16
        %v4841 = vrot.slane %v4839, 1
        %v4842 = vor.u32 %v4837, %v4841
        %v4844 = vshrl.u32 %v4750, 16
        %v4846 = vshll.u32 %v4750, 16
        %v4848 = vrot.slane %v4846, 1
        %v4849 = vor.u32 %v4844, %v4848
        %v4851 = vshrl.u32 %v4751, 16
        %v4853 = vshll.u32 %v4751, 16
        %v4855 = vrot.slane %v4853, 1
        %v4856 = vor.u32 %v4851, %v4855
        %v4872 = vld [vmem:[%s4601 + $0x8] sm:$0xff]
        %v4873 = vsel %vm1466, %v4758, %v4872
        %4874 = vst [vmem:[%s4601 + $0x8] sm:$0xff] %v4873
        %v4875 = vld [vmem:[%s4601 + $0x30] sm:$0xff]
        %v4876 = vsel %vm1466, %v4765, %v4875
        %4877 = vst [vmem:[%s4601 + $0x30] sm:$0xff] %v4876
        %v4878 = vld [vmem:[%s4601 + $0x58] sm:$0xff]
        %v4879 = vsel %vm1466, %v4772, %v4878
        %4880 = vst [vmem:[%s4601 + $0x58] sm:$0xff] %v4879
        %v4881 = vld [vmem:[%s4601 + $0x80] sm:$0xff]
        %v4882 = vsel %vm1466, %v4779, %v4881
        %4883 = vst [vmem:[%s4601 + $0x80] sm:$0xff] %v4882
        %v4884 = vld [vmem:[%s4601 + $0xa8] sm:$0xff]
        %v4885 = vsel %vm1466, %v4786, %v4884
        %4886 = vst [vmem:[%s4601 + $0xa8] sm:$0xff] %v4885
        %v4887 = vld [vmem:[%s4601 + $0xd0] sm:$0xff]
        %v4888 = vsel %vm1466, %v4793, %v4887
        %4889 = vst [vmem:[%s4601 + $0xd0] sm:$0xff] %v4888
        %v4890 = vld [vmem:[%s4601 + $0xf8] sm:$0xff]
        %v4891 = vsel %vm1466, %v4800, %v4890
        %4892 = vst [vmem:[%s4601 + $0xf8] sm:$0xff] %v4891
        %v4893 = vld [vmem:[%s4601 + $0x120] sm:$0xff]
        %v4894 = vsel %vm1466, %v4807, %v4893
        %4895 = vst [vmem:[%s4601 + $0x120] sm:$0xff] %v4894
        %v4896 = vld [vmem:[%s4601 + $0x148] sm:$0xff]
        %v4897 = vsel %vm1466, %v4814, %v4896
        %4898 = vst [vmem:[%s4601 + $0x148] sm:$0xff] %v4897
        %v4899 = vld [vmem:[%s4601 + $0x170] sm:$0xff]
        %v4900 = vsel %vm1466, %v4821, %v4899
        %4901 = vst [vmem:[%s4601 + $0x170] sm:$0xff] %v4900
        %v4902 = vld [vmem:[%s4601 + $0x198] sm:$0xff]
        %v4903 = vsel %vm1466, %v4828, %v4902
        %4904 = vst [vmem:[%s4601 + $0x198] sm:$0xff] %v4903
        %v4905 = vld [vmem:[%s4601 + $0x1c0] sm:$0xff]
        %v4906 = vsel %vm1466, %v4835, %v4905
        %4907 = vst [vmem:[%s4601 + $0x1c0] sm:$0xff] %v4906
        %v4908 = vld [vmem:[%s4601 + $0x1e8] sm:$0xff]
        %v4909 = vsel %vm1466, %v4842, %v4908
        %4910 = vst [vmem:[%s4601 + $0x1e8] sm:$0xff] %v4909
        %v4911 = vld [vmem:[%s4601 + $0x210] sm:$0xff]
        %v4912 = vsel %vm1466, %v4849, %v4911
        %4913 = vst [vmem:[%s4601 + $0x210] sm:$0xff] %v4912
        %v4914 = vld [vmem:[%s4601 + $0x238] sm:$0xff]
        %v4915 = vsel %vm1466, %v4856, %v4914
        %4916 = vst [vmem:[%s4601 + $0x238] sm:$0xff] %v4915
        %v4917 = vld [vmem:[#allocation3] sm:$0xff]
        %v4918 = vld [vmem:[#allocation3 + $0x8] sm:$0xff]
        %v4919 = vld [vmem:[#allocation3 + $0x10] sm:$0xff]
        %v4920 = vld [vmem:[#allocation3 + $0x18] sm:$0xff]
        %v4921 = vld [vmem:[#allocation3 + $0x20] sm:$0xff]
        %v4922 = vld [vmem:[#allocation3 + $0x28] sm:$0xff]
        %v4923 = vld [vmem:[#allocation3 + $0x30] sm:$0xff]
        %v4924 = vld [vmem:[#allocation3 + $0x38] sm:$0xff]
        %v4925 = vld [vmem:[#allocation3 + $0x40] sm:$0xff]
        %v4926 = vld [vmem:[#allocation3 + $0x48] sm:$0xff]
        %v4927 = vld [vmem:[#allocation3 + $0x50] sm:$0xff]
        %v4928 = vld [vmem:[#allocation3 + $0x58] sm:$0xff]
        %v4929 = vld [vmem:[#allocation3 + $0x60] sm:$0xff]
        %v4930 = vld [vmem:[#allocation3 + $0x68] sm:$0xff]
        %v4931 = vld [vmem:[#allocation3 + $0x70] sm:$0xff]
        %v4932 = vld [vmem:[#allocation3 + $0x78] sm:$0xff]
        %v4934 = vshrl.u32 %v4917, 16
        %v4936 = vrot.slane %v4934, 7
        %v4937 = vshll.u32 %v4917, 16
        %v4939 = vor.u32 %v4936, %v4937
        %v4941 = vshrl.u32 %v4918, 16
        %v4943 = vrot.slane %v4941, 7
        %v4944 = vshll.u32 %v4918, 16
        %v4946 = vor.u32 %v4943, %v4944
        %v4948 = vshrl.u32 %v4919, 16
        %v4950 = vrot.slane %v4948, 7
        %v4951 = vshll.u32 %v4919, 16
        %v4953 = vor.u32 %v4950, %v4951
        %v4955 = vshrl.u32 %v4920, 16
        %v4957 = vrot.slane %v4955, 7
        %v4958 = vshll.u32 %v4920, 16
        %v4960 = vor.u32 %v4957, %v4958
        %v4962 = vshrl.u32 %v4921, 16
        %v4964 = vrot.slane %v4962, 7
        %v4965 = vshll.u32 %v4921, 16
        %v4967 = vor.u32 %v4964, %v4965
        %v4969 = vshrl.u32 %v4922, 16
        %v4971 = vrot.slane %v4969, 7
        %v4972 = vshll.u32 %v4922, 16
        %v4974 = vor.u32 %v4971, %v4972
        %v4976 = vshrl.u32 %v4923, 16
        %v4978 = vrot.slane %v4976, 7
        %v4979 = vshll.u32 %v4923, 16
        %v4981 = vor.u32 %v4978, %v4979
        %v4983 = vshrl.u32 %v4924, 16
        %v4985 = vrot.slane %v4983, 7
        %v4986 = vshll.u32 %v4924, 16
        %v4988 = vor.u32 %v4985, %v4986
        %v4990 = vshrl.u32 %v4925, 16
        %v4992 = vrot.slane %v4990, 7
        %v4993 = vshll.u32 %v4925, 16
        %v4995 = vor.u32 %v4992, %v4993
        %v4997 = vshrl.u32 %v4926, 16
        %v4999 = vrot.slane %v4997, 7
        %v5000 = vshll.u32 %v4926, 16
        %v5002 = vor.u32 %v4999, %v5000
        %v5004 = vshrl.u32 %v4927, 16
        %v5006 = vrot.slane %v5004, 7
        %v5007 = vshll.u32 %v4927, 16
        %v5009 = vor.u32 %v5006, %v5007
        %v5011 = vshrl.u32 %v4928, 16
        %v5013 = vrot.slane %v5011, 7
        %v5014 = vshll.u32 %v4928, 16
        %v5016 = vor.u32 %v5013, %v5014
        %v5018 = vshrl.u32 %v4929, 16
        %v5020 = vrot.slane %v5018, 7
        %v5021 = vshll.u32 %v4929, 16
        %v5023 = vor.u32 %v5020, %v5021
        %v5025 = vshrl.u32 %v4930, 16
        %v5027 = vrot.slane %v5025, 7
        %v5028 = vshll.u32 %v4930, 16
        %v5030 = vor.u32 %v5027, %v5028
        %v5032 = vshrl.u32 %v4931, 16
        %v5034 = vrot.slane %v5032, 7
        %v5035 = vshll.u32 %v4931, 16
        %v5037 = vor.u32 %v5034, %v5035
        %v5039 = vshrl.u32 %v4932, 16
        %v5041 = vrot.slane %v5039, 7
        %v5042 = vshll.u32 %v4932, 16
        %v5044 = vor.u32 %v5041, %v5042
        %5045 = vrot.lane.b32.xlu0 %v4939, 64
        %v5046 = vpop.permute.xlu0 %5045
        %5047 = vrot.lane.b32.xlu0 %v4946, 64
        %v5048 = vpop.permute.xlu0 %5047
        %5049 = vrot.lane.b32.xlu0 %v4953, 64
        %v5050 = vpop.permute.xlu0 %5049
        %5051 = vrot.lane.b32.xlu0 %v4960, 64
        %v5052 = vpop.permute.xlu0 %5051
        %5053 = vrot.lane.b32.xlu0 %v4967, 64
        %v5054 = vpop.permute.xlu0 %5053
        %5055 = vrot.lane.b32.xlu0 %v4974, 64
        %v5056 = vpop.permute.xlu0 %5055
        %5057 = vrot.lane.b32.xlu0 %v4981, 64
        %v5058 = vpop.permute.xlu0 %5057
        %5059 = vrot.lane.b32.xlu0 %v4988, 64
        %v5060 = vpop.permute.xlu0 %5059
        %5061 = vrot.lane.b32.xlu0 %v4995, 64
        %v5062 = vpop.permute.xlu0 %5061
        %5063 = vrot.lane.b32.xlu0 %v5002, 64
        %v5064 = vpop.permute.xlu0 %5063
        %5065 = vrot.lane.b32.xlu0 %v5009, 64
        %v5066 = vpop.permute.xlu0 %5065
        %5067 = vrot.lane.b32.xlu0 %v5016, 64
        %v5068 = vpop.permute.xlu0 %5067
        %5069 = vrot.lane.b32.xlu0 %v5023, 64
        %v5070 = vpop.permute.xlu0 %5069
        %5071 = vrot.lane.b32.xlu0 %v5030, 64
        %v5072 = vpop.permute.xlu0 %5071
        %5073 = vrot.lane.b32.xlu0 %v5037, 64
        %v5074 = vpop.permute.xlu0 %5073
        %5075 = vrot.lane.b32.xlu0 %v5044, 64
        %v5076 = vpop.permute.xlu0 %5075
        %v5093 = vld [vmem:[#allocation4 + $0x8] sm:$0xff]
        %v5094 = vsel %vm1785, %v5046, %v5093
        %5095 = vst [vmem:[#allocation4 + $0x8] sm:$0xff] %v5094
        %v5096 = vld [vmem:[#allocation4 + $0x30] sm:$0xff]
        %v5097 = vsel %vm1785, %v5048, %v5096
        %5098 = vst [vmem:[#allocation4 + $0x30] sm:$0xff] %v5097
        %v5099 = vld [vmem:[#allocation4 + $0x58] sm:$0xff]
        %v5100 = vsel %vm1785, %v5050, %v5099
        %5101 = vst [vmem:[#allocation4 + $0x58] sm:$0xff] %v5100
        %v5102 = vld [vmem:[#allocation4 + $0x80] sm:$0xff]
        %v5103 = vsel %vm1785, %v5052, %v5102
        %5104 = vst [vmem:[#allocation4 + $0x80] sm:$0xff] %v5103
        %v5105 = vld [vmem:[#allocation4 + $0xa8] sm:$0xff]
        %v5106 = vsel %vm1785, %v5054, %v5105
        %5107 = vst [vmem:[#allocation4 + $0xa8] sm:$0xff] %v5106
        %v5108 = vld [vmem:[#allocation4 + $0xd0] sm:$0xff]
        %v5109 = vsel %vm1785, %v5056, %v5108
        %5110 = vst [vmem:[#allocation4 + $0xd0] sm:$0xff] %v5109
        %v5111 = vld [vmem:[#allocation4 + $0xf8] sm:$0xff]
        %v5112 = vsel %vm1785, %v5058, %v5111
        %5113 = vst [vmem:[#allocation4 + $0xf8] sm:$0xff] %v5112
        %v5114 = vld [vmem:[#allocation4 + $0x120] sm:$0xff]
        %v5115 = vsel %vm1785, %v5060, %v5114
        %5116 = vst [vmem:[#allocation4 + $0x120] sm:$0xff] %v5115
        %v5117 = vld [vmem:[#allocation4 + $0x148] sm:$0xff]
        %v5118 = vsel %vm1785, %v5062, %v5117
        %5119 = vst [vmem:[#allocation4 + $0x148] sm:$0xff] %v5118
        %v5120 = vld [vmem:[#allocation4 + $0x170] sm:$0xff]
        %v5121 = vsel %vm1785, %v5064, %v5120
        %5122 = vst [vmem:[#allocation4 + $0x170] sm:$0xff] %v5121
        %v5123 = vld [vmem:[#allocation4 + $0x198] sm:$0xff]
        %v5124 = vsel %vm1785, %v5066, %v5123
        %5125 = vst [vmem:[#allocation4 + $0x198] sm:$0xff] %v5124
        %v5126 = vld [vmem:[#allocation4 + $0x1c0] sm:$0xff]
        %v5127 = vsel %vm1785, %v5068, %v5126
        %5128 = vst [vmem:[#allocation4 + $0x1c0] sm:$0xff] %v5127
        %v5129 = vld [vmem:[#allocation4 + $0x1e8] sm:$0xff]
        %v5130 = vsel %vm1785, %v5070, %v5129
        %5131 = vst [vmem:[#allocation4 + $0x1e8] sm:$0xff] %v5130
        %v5132 = vld [vmem:[#allocation4 + $0x210] sm:$0xff]
        %v5133 = vsel %vm1785, %v5072, %v5132
        %5134 = vst [vmem:[#allocation4 + $0x210] sm:$0xff] %v5133
        %v5135 = vld [vmem:[#allocation4 + $0x238] sm:$0xff]
        %v5136 = vsel %vm1785, %v5074, %v5135
        %5137 = vst [vmem:[#allocation4 + $0x238] sm:$0xff] %v5136
        %v5138 = vld [vmem:[#allocation4 + $0x260] sm:$0xff]
        %v5139 = vsel %vm1785, %v5076, %v5138
        %5140 = vst [vmem:[#allocation4 + $0x260] sm:$0xff] %v5139
        %v5141 = vld [vmem:[#allocation3] sm:$0xff]
        %v5142 = vld [vmem:[#allocation3 + $0x8] sm:$0xff]
        %v5143 = vld [vmem:[#allocation3 + $0x10] sm:$0xff]
        %v5144 = vld [vmem:[#allocation3 + $0x18] sm:$0xff]
        %v5145 = vld [vmem:[#allocation3 + $0x20] sm:$0xff]
        %v5146 = vld [vmem:[#allocation3 + $0x28] sm:$0xff]
        %v5147 = vld [vmem:[#allocation3 + $0x30] sm:$0xff]
        %v5148 = vld [vmem:[#allocation3 + $0x38] sm:$0xff]
        %v5149 = vld [vmem:[#allocation3 + $0x40] sm:$0xff]
        %v5150 = vld [vmem:[#allocation3 + $0x48] sm:$0xff]
        %v5151 = vld [vmem:[#allocation3 + $0x50] sm:$0xff]
        %v5152 = vld [vmem:[#allocation3 + $0x58] sm:$0xff]
        %v5153 = vld [vmem:[#allocation3 + $0x60] sm:$0xff]
        %v5154 = vld [vmem:[#allocation3 + $0x68] sm:$0xff]
        %v5155 = vld [vmem:[#allocation3 + $0x70] sm:$0xff]
        %v5156 = vld [vmem:[#allocation3 + $0x78] sm:$0xff]
        %5157 = vst.msk [vmem:[#allocation4 + $0x10] sm:$0xff] %vm302, %v5141
        %5158 = vst.msk [vmem:[#allocation4 + $0x38] sm:$0xff] %vm302, %v5142
        %5159 = vst.msk [vmem:[#allocation4 + $0x60] sm:$0xff] %vm302, %v5143
        %5160 = vst.msk [vmem:[#allocation4 + $0x88] sm:$0xff] %vm302, %v5144
        %5161 = vst.msk [vmem:[#allocation4 + $0xb0] sm:$0xff] %vm302, %v5145
        %5162 = vst.msk [vmem:[#allocation4 + $0xd8] sm:$0xff] %vm302, %v5146
        %5163 = vst.msk [vmem:[#allocation4 + $0x100] sm:$0xff] %vm302, %v5147
        %5164 = vst.msk [vmem:[#allocation4 + $0x128] sm:$0xff] %vm302, %v5148
        %5165 = vst.msk [vmem:[#allocation4 + $0x150] sm:$0xff] %vm302, %v5149
        %5166 = vst.msk [vmem:[#allocation4 + $0x178] sm:$0xff] %vm302, %v5150
        %5167 = vst.msk [vmem:[#allocation4 + $0x1a0] sm:$0xff] %vm302, %v5151
        %5168 = vst.msk [vmem:[#allocation4 + $0x1c8] sm:$0xff] %vm302, %v5152
        %5169 = vst.msk [vmem:[#allocation4 + $0x1f0] sm:$0xff] %vm302, %v5153
        %5170 = vst.msk [vmem:[#allocation4 + $0x218] sm:$0xff] %vm302, %v5154
        %5171 = vst.msk [vmem:[#allocation4 + $0x240] sm:$0xff] %vm302, %v5155
        %5172 = vst.msk [vmem:[#allocation4 + $0x268] sm:$0xff] %vm302, %v5156
        %v5173 = vld [vmem:[#allocation3] sm:$0xff]
        %v5174 = vld [vmem:[#allocation3 + $0x8] sm:$0xff]
        %v5175 = vld [vmem:[#allocation3 + $0x10] sm:$0xff]
        %v5176 = vld [vmem:[#allocation3 + $0x18] sm:$0xff]
        %v5177 = vld [vmem:[#allocation3 + $0x20] sm:$0xff]
        %v5178 = vld [vmem:[#allocation3 + $0x28] sm:$0xff]
        %v5179 = vld [vmem:[#allocation3 + $0x30] sm:$0xff]
        %v5180 = vld [vmem:[#allocation3 + $0x38] sm:$0xff]
        %v5181 = vld [vmem:[#allocation3 + $0x40] sm:$0xff]
        %v5182 = vld [vmem:[#allocation3 + $0x48] sm:$0xff]
        %v5183 = vld [vmem:[#allocation3 + $0x50] sm:$0xff]
        %v5184 = vld [vmem:[#allocation3 + $0x58] sm:$0xff]
        %v5185 = vld [vmem:[#allocation3 + $0x60] sm:$0xff]
        %v5186 = vld [vmem:[#allocation3 + $0x68] sm:$0xff]
        %v5187 = vld [vmem:[#allocation3 + $0x70] sm:$0xff]
        %v5188 = vld [vmem:[#allocation3 + $0x78] sm:$0xff]
        %v5190 = vshrl.u32 %v5173, 16
        %v5192 = vshll.u32 %v5173, 16
        %v5194 = vrot.slane %v5192, 1
        %v5195 = vor.u32 %v5190, %v5194
        %v5197 = vshrl.u32 %v5174, 16
        %v5199 = vshll.u32 %v5174, 16
        %v5201 = vrot.slane %v5199, 1
        %v5202 = vor.u32 %v5197, %v5201
        %v5204 = vshrl.u32 %v5175, 16
        %v5206 = vshll.u32 %v5175, 16
        %v5208 = vrot.slane %v5206, 1
        %v5209 = vor.u32 %v5204, %v5208
        %v5211 = vshrl.u32 %v5176, 16
        %v5213 = vshll.u32 %v5176, 16
        %v5215 = vrot.slane %v5213, 1
        %v5216 = vor.u32 %v5211, %v5215
        %v5218 = vshrl.u32 %v5177, 16
        %v5220 = vshll.u32 %v5177, 16
        %v5222 = vrot.slane %v5220, 1
        %v5223 = vor.u32 %v5218, %v5222
        %v5225 = vshrl.u32 %v5178, 16
        %v5227 = vshll.u32 %v5178, 16
        %v5229 = vrot.slane %v5227, 1
        %v5230 = vor.u32 %v5225, %v5229
        %v5232 = vshrl.u32 %v5179, 16
        %v5234 = vshll.u32 %v5179, 16
        %v5236 = vrot.slane %v5234, 1
        %v5237 = vor.u32 %v5232, %v5236
        %v5239 = vshrl.u32 %v5180, 16
        %v5241 = vshll.u32 %v5180, 16
        %v5243 = vrot.slane %v5241, 1
        %v5244 = vor.u32 %v5239, %v5243
        %v5246 = vshrl.u32 %v5181, 16
        %v5248 = vshll.u32 %v5181, 16
        %v5250 = vrot.slane %v5248, 1
        %v5251 = vor.u32 %v5246, %v5250
        %v5253 = vshrl.u32 %v5182, 16
        %v5255 = vshll.u32 %v5182, 16
        %v5257 = vrot.slane %v5255, 1
        %v5258 = vor.u32 %v5253, %v5257
        %v5260 = vshrl.u32 %v5183, 16
        %v5262 = vshll.u32 %v5183, 16
        %v5264 = vrot.slane %v5262, 1
        %v5265 = vor.u32 %v5260, %v5264
        %v5267 = vshrl.u32 %v5184, 16
        %v5269 = vshll.u32 %v5184, 16
        %v5271 = vrot.slane %v5269, 1
        %v5272 = vor.u32 %v5267, %v5271
        %v5274 = vshrl.u32 %v5185, 16
        %v5276 = vshll.u32 %v5185, 16
        %v5278 = vrot.slane %v5276, 1
        %v5279 = vor.u32 %v5274, %v5278
        %v5281 = vshrl.u32 %v5186, 16
        %v5283 = vshll.u32 %v5186, 16
        %v5285 = vrot.slane %v5283, 1
        %v5286 = vor.u32 %v5281, %v5285
        %v5288 = vshrl.u32 %v5187, 16
        %v5290 = vshll.u32 %v5187, 16
        %v5292 = vrot.slane %v5290, 1
        %v5293 = vor.u32 %v5288, %v5292
        %v5295 = vshrl.u32 %v5188, 16
        %v5297 = vshll.u32 %v5188, 16
        %v5299 = vrot.slane %v5297, 1
        %v5300 = vor.u32 %v5295, %v5299
        %5301 = vrot.lane.b32.xlu0 %v5195, 64
        %v5302 = vpop.permute.xlu0 %5301
        %5303 = vrot.lane.b32.xlu0 %v5202, 64
        %v5304 = vpop.permute.xlu0 %5303
        %5305 = vrot.lane.b32.xlu0 %v5209, 64
        %v5306 = vpop.permute.xlu0 %5305
        %5307 = vrot.lane.b32.xlu0 %v5216, 64
        %v5308 = vpop.permute.xlu0 %5307
        %5309 = vrot.lane.b32.xlu0 %v5223, 64
        %v5310 = vpop.permute.xlu0 %5309
        %5311 = vrot.lane.b32.xlu0 %v5230, 64
        %v5312 = vpop.permute.xlu0 %5311
        %5313 = vrot.lane.b32.xlu0 %v5237, 64
        %v5314 = vpop.permute.xlu0 %5313
        %5315 = vrot.lane.b32.xlu0 %v5244, 64
        %v5316 = vpop.permute.xlu0 %5315
        %5317 = vrot.lane.b32.xlu0 %v5251, 64
        %v5318 = vpop.permute.xlu0 %5317
        %5319 = vrot.lane.b32.xlu0 %v5258, 64
        %v5320 = vpop.permute.xlu0 %5319
        %5321 = vrot.lane.b32.xlu0 %v5265, 64
        %v5322 = vpop.permute.xlu0 %5321
        %5323 = vrot.lane.b32.xlu0 %v5272, 64
        %v5324 = vpop.permute.xlu0 %5323
        %5325 = vrot.lane.b32.xlu0 %v5279, 64
        %v5326 = vpop.permute.xlu0 %5325
        %5327 = vrot.lane.b32.xlu0 %v5286, 64
        %v5328 = vpop.permute.xlu0 %5327
        %5329 = vrot.lane.b32.xlu0 %v5293, 64
        %v5330 = vpop.permute.xlu0 %5329
        %5331 = vrot.lane.b32.xlu0 %v5300, 64
        %v5332 = vpop.permute.xlu0 %5331
        %v5349 = vld [vmem:[#allocation4 + $0x10] sm:$0xff]
        %v5350 = vsel %vm2250, %v5302, %v5349
        %5351 = vst [vmem:[#allocation4 + $0x10] sm:$0xff] %v5350
        %v5352 = vld [vmem:[#allocation4 + $0x38] sm:$0xff]
        %v5353 = vsel %vm2250, %v5304, %v5352
        %5354 = vst [vmem:[#allocation4 + $0x38] sm:$0xff] %v5353
        %v5355 = vld [vmem:[#allocation4 + $0x60] sm:$0xff]
        %v5356 = vsel %vm2250, %v5306, %v5355
        %5357 = vst [vmem:[#allocation4 + $0x60] sm:$0xff] %v5356
        %v5358 = vld [vmem:[#allocation4 + $0x88] sm:$0xff]
        %v5359 = vsel %vm2250, %v5308, %v5358
        %5360 = vst [vmem:[#allocation4 + $0x88] sm:$0xff] %v5359
        %v5361 = vld [vmem:[#allocation4 + $0xb0] sm:$0xff]
        %v5362 = vsel %vm2250, %v5310, %v5361
        %5363 = vst [vmem:[#allocation4 + $0xb0] sm:$0xff] %v5362
        %v5364 = vld [vmem:[#allocation4 + $0xd8] sm:$0xff]
        %v5365 = vsel %vm2250, %v5312, %v5364
        %5366 = vst [vmem:[#allocation4 + $0xd8] sm:$0xff] %v5365
        %v5367 = vld [vmem:[#allocation4 + $0x100] sm:$0xff]
        %v5368 = vsel %vm2250, %v5314, %v5367
        %5369 = vst [vmem:[#allocation4 + $0x100] sm:$0xff] %v5368
        %v5370 = vld [vmem:[#allocation4 + $0x128] sm:$0xff]
        %v5371 = vsel %vm2250, %v5316, %v5370
        %5372 = vst [vmem:[#allocation4 + $0x128] sm:$0xff] %v5371
        %v5373 = vld [vmem:[#allocation4 + $0x150] sm:$0xff]
        %v5374 = vsel %vm2250, %v5318, %v5373
        %5375 = vst [vmem:[#allocation4 + $0x150] sm:$0xff] %v5374
        %v5376 = vld [vmem:[#allocation4 + $0x178] sm:$0xff]
        %v5377 = vsel %vm2250, %v5320, %v5376
        %5378 = vst [vmem:[#allocation4 + $0x178] sm:$0xff] %v5377
        %v5379 = vld [vmem:[#allocation4 + $0x1a0] sm:$0xff]
        %v5380 = vsel %vm2250, %v5322, %v5379
        %5381 = vst [vmem:[#allocation4 + $0x1a0] sm:$0xff] %v5380
        %v5382 = vld [vmem:[#allocation4 + $0x1c8] sm:$0xff]
        %v5383 = vsel %vm2250, %v5324, %v5382
        %5384 = vst [vmem:[#allocation4 + $0x1c8] sm:$0xff] %v5383
        %v5385 = vld [vmem:[#allocation4 + $0x1f0] sm:$0xff]
        %v5386 = vsel %vm2250, %v5326, %v5385
        %5387 = vst [vmem:[#allocation4 + $0x1f0] sm:$0xff] %v5386
        %v5388 = vld [vmem:[#allocation4 + $0x218] sm:$0xff]
        %v5389 = vsel %vm2250, %v5328, %v5388
        %5390 = vst [vmem:[#allocation4 + $0x218] sm:$0xff] %v5389
        %v5391 = vld [vmem:[#allocation4 + $0x240] sm:$0xff]
        %v5392 = vsel %vm2250, %v5330, %v5391
        %5393 = vst [vmem:[#allocation4 + $0x240] sm:$0xff] %v5392
        %v5394 = vld [vmem:[#allocation4 + $0x268] sm:$0xff]
        %v5395 = vsel %vm2250, %v5332, %v5394
        %5396 = vst [vmem:[#allocation4 + $0x268] sm:$0xff] %v5395
        %s5397 = scalar_lea.vmem [#allocation3], 8
        %v5398 = vld [vmem:[%s5397] sm:$0xff]
        %v5399 = vld [vmem:[%s5397 + $0x8] sm:$0xff]
        %v5400 = vld [vmem:[%s5397 + $0x10] sm:$0xff]
        %v5401 = vld [vmem:[%s5397 + $0x18] sm:$0xff]
        %v5402 = vld [vmem:[%s5397 + $0x20] sm:$0xff]
        %v5403 = vld [vmem:[%s5397 + $0x28] sm:$0xff]
        %v5404 = vld [vmem:[%s5397 + $0x30] sm:$0xff]
        %v5405 = vld [vmem:[%s5397 + $0x38] sm:$0xff]
        %v5406 = vld [vmem:[%s5397 + $0x40] sm:$0xff]
        %v5407 = vld [vmem:[%s5397 + $0x48] sm:$0xff]
        %v5408 = vld [vmem:[%s5397 + $0x50] sm:$0xff]
        %v5409 = vld [vmem:[%s5397 + $0x58] sm:$0xff]
        %v5410 = vld [vmem:[%s5397 + $0x60] sm:$0xff]
        %v5411 = vld [vmem:[%s5397 + $0x68] sm:$0xff]
        %v5412 = vld [vmem:[%s5397 + $0x70] sm:$0xff]
        %v5414 = vshrl.u32 %v5398, 16
        %v5416 = vrot.slane %v5414, 7
        %v5417 = vshll.u32 %v5398, 16
        %v5419 = vor.u32 %v5416, %v5417
        %v5421 = vshrl.u32 %v5399, 16
        %v5423 = vrot.slane %v5421, 7
        %v5424 = vshll.u32 %v5399, 16
        %v5426 = vor.u32 %v5423, %v5424
        %v5428 = vshrl.u32 %v5400, 16
        %v5430 = vrot.slane %v5428, 7
        %v5431 = vshll.u32 %v5400, 16
        %v5433 = vor.u32 %v5430, %v5431
        %v5435 = vshrl.u32 %v5401, 16
        %v5437 = vrot.slane %v5435, 7
        %v5438 = vshll.u32 %v5401, 16
        %v5440 = vor.u32 %v5437, %v5438
        %v5442 = vshrl.u32 %v5402, 16
        %v5444 = vrot.slane %v5442, 7
        %v5445 = vshll.u32 %v5402, 16
        %v5447 = vor.u32 %v5444, %v5445
        %v5449 = vshrl.u32 %v5403, 16
        %v5451 = vrot.slane %v5449, 7
        %v5452 = vshll.u32 %v5403, 16
        %v5454 = vor.u32 %v5451, %v5452
        %v5456 = vshrl.u32 %v5404, 16
        %v5458 = vrot.slane %v5456, 7
        %v5459 = vshll.u32 %v5404, 16
        %v5461 = vor.u32 %v5458, %v5459
        %v5463 = vshrl.u32 %v5405, 16
        %v5465 = vrot.slane %v5463, 7
        %v5466 = vshll.u32 %v5405, 16
        %v5468 = vor.u32 %v5465, %v5466
        %v5470 = vshrl.u32 %v5406, 16
        %v5472 = vrot.slane %v5470, 7
        %v5473 = vshll.u32 %v5406, 16
        %v5475 = vor.u32 %v5472, %v5473
        %v5477 = vshrl.u32 %v5407, 16
        %v5479 = vrot.slane %v5477, 7
        %v5480 = vshll.u32 %v5407, 16
        %v5482 = vor.u32 %v5479, %v5480
        %v5484 = vshrl.u32 %v5408, 16
        %v5486 = vrot.slane %v5484, 7
        %v5487 = vshll.u32 %v5408, 16
        %v5489 = vor.u32 %v5486, %v5487
        %v5491 = vshrl.u32 %v5409, 16
        %v5493 = vrot.slane %v5491, 7
        %v5494 = vshll.u32 %v5409, 16
        %v5496 = vor.u32 %v5493, %v5494
        %v5498 = vshrl.u32 %v5410, 16
        %v5500 = vrot.slane %v5498, 7
        %v5501 = vshll.u32 %v5410, 16
        %v5503 = vor.u32 %v5500, %v5501
        %v5505 = vshrl.u32 %v5411, 16
        %v5507 = vrot.slane %v5505, 7
        %v5508 = vshll.u32 %v5411, 16
        %v5510 = vor.u32 %v5507, %v5508
        %v5512 = vshrl.u32 %v5412, 16
        %v5514 = vrot.slane %v5512, 7
        %v5515 = vshll.u32 %v5412, 16
        %v5517 = vor.u32 %v5514, %v5515
        %v5533 = vld [vmem:[#allocation4 + $0x18] sm:$0xff]
        %v5534 = vsel %vm1028, %v5419, %v5533
        %5535 = vst [vmem:[#allocation4 + $0x18] sm:$0xff] %v5534
        %v5536 = vld [vmem:[#allocation4 + $0x40] sm:$0xff]
        %v5537 = vsel %vm1028, %v5426, %v5536
        %5538 = vst [vmem:[#allocation4 + $0x40] sm:$0xff] %v5537
        %v5539 = vld [vmem:[#allocation4 + $0x68] sm:$0xff]
        %v5540 = vsel %vm1028, %v5433, %v5539
        %5541 = vst [vmem:[#allocation4 + $0x68] sm:$0xff] %v5540
        %v5542 = vld [vmem:[#allocation4 + $0x90] sm:$0xff]
        %v5543 = vsel %vm1028, %v5440, %v5542
        %5544 = vst [vmem:[#allocation4 + $0x90] sm:$0xff] %v5543
        %v5545 = vld [vmem:[#allocation4 + $0xb8] sm:$0xff]
        %v5546 = vsel %vm1028, %v5447, %v5545
        %5547 = vst [vmem:[#allocation4 + $0xb8] sm:$0xff] %v5546
        %v5548 = vld [vmem:[#allocation4 + $0xe0] sm:$0xff]
        %v5549 = vsel %vm1028, %v5454, %v5548
        %5550 = vst [vmem:[#allocation4 + $0xe0] sm:$0xff] %v5549
        %v5551 = vld [vmem:[#allocation4 + $0x108] sm:$0xff]
        %v5552 = vsel %vm1028, %v5461, %v5551
        %5553 = vst [vmem:[#allocation4 + $0x108] sm:$0xff] %v5552
        %v5554 = vld [vmem:[#allocation4 + $0x130] sm:$0xff]
        %v5555 = vsel %vm1028, %v5468, %v5554
        %5556 = vst [vmem:[#allocation4 + $0x130] sm:$0xff] %v5555
        %v5557 = vld [vmem:[#allocation4 + $0x158] sm:$0xff]
        %v5558 = vsel %vm1028, %v5475, %v5557
        %5559 = vst [vmem:[#allocation4 + $0x158] sm:$0xff] %v5558
        %v5560 = vld [vmem:[#allocation4 + $0x180] sm:$0xff]
        %v5561 = vsel %vm1028, %v5482, %v5560
        %5562 = vst [vmem:[#allocation4 + $0x180] sm:$0xff] %v5561
        %v5563 = vld [vmem:[#allocation4 + $0x1a8] sm:$0xff]
        %v5564 = vsel %vm1028, %v5489, %v5563
        %5565 = vst [vmem:[#allocation4 + $0x1a8] sm:$0xff] %v5564
        %v5566 = vld [vmem:[#allocation4 + $0x1d0] sm:$0xff]
        %v5567 = vsel %vm1028, %v5496, %v5566
        %5568 = vst [vmem:[#allocation4 + $0x1d0] sm:$0xff] %v5567
        %v5569 = vld [vmem:[#allocation4 + $0x1f8] sm:$0xff]
        %v5570 = vsel %vm1028, %v5503, %v5569
        %5571 = vst [vmem:[#allocation4 + $0x1f8] sm:$0xff] %v5570
        %v5572 = vld [vmem:[#allocation4 + $0x220] sm:$0xff]
        %v5573 = vsel %vm1028, %v5510, %v5572
        %5574 = vst [vmem:[#allocation4 + $0x220] sm:$0xff] %v5573
        %v5575 = vld [vmem:[#allocation4 + $0x248] sm:$0xff]
        %v5576 = vsel %vm1028, %v5517, %v5575
        %5577 = vst [vmem:[#allocation4 + $0x248] sm:$0xff] %v5576
        %v5578 = vld [vmem:[%s5397] sm:$0xff]
        %v5579 = vld [vmem:[%s5397 + $0x8] sm:$0xff]
        %v5580 = vld [vmem:[%s5397 + $0x10] sm:$0xff]
        %v5581 = vld [vmem:[%s5397 + $0x18] sm:$0xff]
        %v5582 = vld [vmem:[%s5397 + $0x20] sm:$0xff]
        %v5583 = vld [vmem:[%s5397 + $0x28] sm:$0xff]
        %v5584 = vld [vmem:[%s5397 + $0x30] sm:$0xff]
        %v5585 = vld [vmem:[%s5397 + $0x38] sm:$0xff]
        %v5586 = vld [vmem:[%s5397 + $0x40] sm:$0xff]
        %v5587 = vld [vmem:[%s5397 + $0x48] sm:$0xff]
        %v5588 = vld [vmem:[%s5397 + $0x50] sm:$0xff]
        %v5589 = vld [vmem:[%s5397 + $0x58] sm:$0xff]
        %v5590 = vld [vmem:[%s5397 + $0x60] sm:$0xff]
        %v5591 = vld [vmem:[%s5397 + $0x68] sm:$0xff]
        %v5592 = vld [vmem:[%s5397 + $0x70] sm:$0xff]
        %5608 = vrot.lane.b32.xlu0 %v5578, 64
        %v5609 = vpop.permute.xlu0 %5608
        %5610 = vrot.lane.b32.xlu0 %v5579, 64
        %v5611 = vpop.permute.xlu0 %5610
        %5612 = vrot.lane.b32.xlu0 %v5580, 64
        %v5613 = vpop.permute.xlu0 %5612
        %5614 = vrot.lane.b32.xlu0 %v5581, 64
        %v5615 = vpop.permute.xlu0 %5614
        %5616 = vrot.lane.b32.xlu0 %v5582, 64
        %v5617 = vpop.permute.xlu0 %5616
        %5618 = vrot.lane.b32.xlu0 %v5583, 64
        %v5619 = vpop.permute.xlu0 %5618
        %5620 = vrot.lane.b32.xlu0 %v5584, 64
        %v5621 = vpop.permute.xlu0 %5620
        %5622 = vrot.lane.b32.xlu0 %v5585, 64
        %v5623 = vpop.permute.xlu0 %5622
        %5624 = vrot.lane.b32.xlu0 %v5586, 64
        %v5625 = vpop.permute.xlu0 %5624
        %5626 = vrot.lane.b32.xlu0 %v5587, 64
        %v5627 = vpop.permute.xlu0 %5626
        %5628 = vrot.lane.b32.xlu0 %v5588, 64
        %v5629 = vpop.permute.xlu0 %5628
        %5630 = vrot.lane.b32.xlu0 %v5589, 64
        %v5631 = vpop.permute.xlu0 %5630
        %5632 = vrot.lane.b32.xlu0 %v5590, 64
        %v5633 = vpop.permute.xlu0 %5632
        %5634 = vrot.lane.b32.xlu0 %v5591, 64
        %v5635 = vpop.permute.xlu0 %5634
        %5636 = vrot.lane.b32.xlu0 %v5592, 64
        %v5637 = vpop.permute.xlu0 %5636
        %5653 = vst.msk [vmem:[#allocation4 + $0x18] sm:$0xff] %vm1224, %v5609
        %5654 = vst.msk [vmem:[#allocation4 + $0x40] sm:$0xff] %vm1224, %v5611
        %5655 = vst.msk [vmem:[#allocation4 + $0x68] sm:$0xff] %vm1224, %v5613
        %5656 = vst.msk [vmem:[#allocation4 + $0x90] sm:$0xff] %vm1224, %v5615
        %5657 = vst.msk [vmem:[#allocation4 + $0xb8] sm:$0xff] %vm1224, %v5617
        %5658 = vst.msk [vmem:[#allocation4 + $0xe0] sm:$0xff] %vm1224, %v5619
        %5659 = vst.msk [vmem:[#allocation4 + $0x108] sm:$0xff] %vm1224, %v5621
        %5660 = vst.msk [vmem:[#allocation4 + $0x130] sm:$0xff] %vm1224, %v5623
        %5661 = vst.msk [vmem:[#allocation4 + $0x158] sm:$0xff] %vm1224, %v5625
        %5662 = vst.msk [vmem:[#allocation4 + $0x180] sm:$0xff] %vm1224, %v5627
        %5663 = vst.msk [vmem:[#allocation4 + $0x1a8] sm:$0xff] %vm1224, %v5629
        %5664 = vst.msk [vmem:[#allocation4 + $0x1d0] sm:$0xff] %vm1224, %v5631
        %5665 = vst.msk [vmem:[#allocation4 + $0x1f8] sm:$0xff] %vm1224, %v5633
        %5666 = vst.msk [vmem:[#allocation4 + $0x220] sm:$0xff] %vm1224, %v5635
        %5667 = vst.msk [vmem:[#allocation4 + $0x248] sm:$0xff] %vm1224, %v5637
        %v5668 = vld [vmem:[%s5397] sm:$0xff]
        %v5669 = vld [vmem:[%s5397 + $0x8] sm:$0xff]
        %v5670 = vld [vmem:[%s5397 + $0x10] sm:$0xff]
        %v5671 = vld [vmem:[%s5397 + $0x18] sm:$0xff]
        %v5672 = vld [vmem:[%s5397 + $0x20] sm:$0xff]
        %v5673 = vld [vmem:[%s5397 + $0x28] sm:$0xff]
        %v5674 = vld [vmem:[%s5397 + $0x30] sm:$0xff]
        %v5675 = vld [vmem:[%s5397 + $0x38] sm:$0xff]
        %v5676 = vld [vmem:[%s5397 + $0x40] sm:$0xff]
        %v5677 = vld [vmem:[%s5397 + $0x48] sm:$0xff]
        %v5678 = vld [vmem:[%s5397 + $0x50] sm:$0xff]
        %v5679 = vld [vmem:[%s5397 + $0x58] sm:$0xff]
        %v5680 = vld [vmem:[%s5397 + $0x60] sm:$0xff]
        %v5681 = vld [vmem:[%s5397 + $0x68] sm:$0xff]
        %v5682 = vld [vmem:[%s5397 + $0x70] sm:$0xff]
        %v5684 = vshrl.u32 %v5668, 16
        %v5686 = vshll.u32 %v5668, 16
        %v5688 = vrot.slane %v5686, 1
        %v5689 = vor.u32 %v5684, %v5688
        %v5691 = vshrl.u32 %v5669, 16
        %v5693 = vshll.u32 %v5669, 16
        %v5695 = vrot.slane %v5693, 1
        %v5696 = vor.u32 %v5691, %v5695
        %v5698 = vshrl.u32 %v5670, 16
        %v5700 = vshll.u32 %v5670, 16
        %v5702 = vrot.slane %v5700, 1
        %v5703 = vor.u32 %v5698, %v5702
        %v5705 = vshrl.u32 %v5671, 16
        %v5707 = vshll.u32 %v5671, 16
        %v5709 = vrot.slane %v5707, 1
        %v5710 = vor.u32 %v5705, %v5709
        %v5712 = vshrl.u32 %v5672, 16
        %v5714 = vshll.u32 %v5672, 16
        %v5716 = vrot.slane %v5714, 1
        %v5717 = vor.u32 %v5712, %v5716
        %v5719 = vshrl.u32 %v5673, 16
        %v5721 = vshll.u32 %v5673, 16
        %v5723 = vrot.slane %v5721, 1
        %v5724 = vor.u32 %v5719, %v5723
        %v5726 = vshrl.u32 %v5674, 16
        %v5728 = vshll.u32 %v5674, 16
        %v5730 = vrot.slane %v5728, 1
        %v5731 = vor.u32 %v5726, %v5730
        %v5733 = vshrl.u32 %v5675, 16
        %v5735 = vshll.u32 %v5675, 16
        %v5737 = vrot.slane %v5735, 1
        %v5738 = vor.u32 %v5733, %v5737
        %v5740 = vshrl.u32 %v5676, 16
        %v5742 = vshll.u32 %v5676, 16
        %v5744 = vrot.slane %v5742, 1
        %v5745 = vor.u32 %v5740, %v5744
        %v5747 = vshrl.u32 %v5677, 16
        %v5749 = vshll.u32 %v5677, 16
        %v5751 = vrot.slane %v5749, 1
        %v5752 = vor.u32 %v5747, %v5751
        %v5754 = vshrl.u32 %v5678, 16
        %v5756 = vshll.u32 %v5678, 16
        %v5758 = vrot.slane %v5756, 1
        %v5759 = vor.u32 %v5754, %v5758
        %v5761 = vshrl.u32 %v5679, 16
        %v5763 = vshll.u32 %v5679, 16
        %v5765 = vrot.slane %v5763, 1
        %v5766 = vor.u32 %v5761, %v5765
        %v5768 = vshrl.u32 %v5680, 16
        %v5770 = vshll.u32 %v5680, 16
        %v5772 = vrot.slane %v5770, 1
        %v5773 = vor.u32 %v5768, %v5772
        %v5775 = vshrl.u32 %v5681, 16
        %v5777 = vshll.u32 %v5681, 16
        %v5779 = vrot.slane %v5777, 1
        %v5780 = vor.u32 %v5775, %v5779
        %v5782 = vshrl.u32 %v5682, 16
        %v5784 = vshll.u32 %v5682, 16
        %v5786 = vrot.slane %v5784, 1
        %v5787 = vor.u32 %v5782, %v5786
        %v5803 = vld [vmem:[#allocation4 + $0x20] sm:$0xff]
        %v5804 = vsel %vm1466, %v5689, %v5803
        %5805 = vst [vmem:[#allocation4 + $0x20] sm:$0xff] %v5804
        %v5806 = vld [vmem:[#allocation4 + $0x48] sm:$0xff]
        %v5807 = vsel %vm1466, %v5696, %v5806
        %5808 = vst [vmem:[#allocation4 + $0x48] sm:$0xff] %v5807
        %v5809 = vld [vmem:[#allocation4 + $0x70] sm:$0xff]
        %v5810 = vsel %vm1466, %v5703, %v5809
        %5811 = vst [vmem:[#allocation4 + $0x70] sm:$0xff] %v5810
        %v5812 = vld [vmem:[#allocation4 + $0x98] sm:$0xff]
        %v5813 = vsel %vm1466, %v5710, %v5812
        %5814 = vst [vmem:[#allocation4 + $0x98] sm:$0xff] %v5813
        %v5815 = vld [vmem:[#allocation4 + $0xc0] sm:$0xff]
        %v5816 = vsel %vm1466, %v5717, %v5815
        %5817 = vst [vmem:[#allocation4 + $0xc0] sm:$0xff] %v5816
        %v5818 = vld [vmem:[#allocation4 + $0xe8] sm:$0xff]
        %v5819 = vsel %vm1466, %v5724, %v5818
        %5820 = vst [vmem:[#allocation4 + $0xe8] sm:$0xff] %v5819
        %v5821 = vld [vmem:[#allocation4 + $0x110] sm:$0xff]
        %v5822 = vsel %vm1466, %v5731, %v5821
        %5823 = vst [vmem:[#allocation4 + $0x110] sm:$0xff] %v5822
        %v5824 = vld [vmem:[#allocation4 + $0x138] sm:$0xff]
        %v5825 = vsel %vm1466, %v5738, %v5824
        %5826 = vst [vmem:[#allocation4 + $0x138] sm:$0xff] %v5825
        %v5827 = vld [vmem:[#allocation4 + $0x160] sm:$0xff]
        %v5828 = vsel %vm1466, %v5745, %v5827
        %5829 = vst [vmem:[#allocation4 + $0x160] sm:$0xff] %v5828
        %v5830 = vld [vmem:[#allocation4 + $0x188] sm:$0xff]
        %v5831 = vsel %vm1466, %v5752, %v5830
        %5832 = vst [vmem:[#allocation4 + $0x188] sm:$0xff] %v5831
        %v5833 = vld [vmem:[#allocation4 + $0x1b0] sm:$0xff]
        %v5834 = vsel %vm1466, %v5759, %v5833
        %5835 = vst [vmem:[#allocation4 + $0x1b0] sm:$0xff] %v5834
        %v5836 = vld [vmem:[#allocation4 + $0x1d8] sm:$0xff]
        %v5837 = vsel %vm1466, %v5766, %v5836
        %5838 = vst [vmem:[#allocation4 + $0x1d8] sm:$0xff] %v5837
        %v5839 = vld [vmem:[#allocation4 + $0x200] sm:$0xff]
        %v5840 = vsel %vm1466, %v5773, %v5839
        %5841 = vst [vmem:[#allocation4 + $0x200] sm:$0xff] %v5840
        %v5842 = vld [vmem:[#allocation4 + $0x228] sm:$0xff]
        %v5843 = vsel %vm1466, %v5780, %v5842
        %5844 = vst [vmem:[#allocation4 + $0x228] sm:$0xff] %v5843
        %v5845 = vld [vmem:[#allocation4 + $0x250] sm:$0xff]
        %v5846 = vsel %vm1466, %v5787, %v5845
        %5847 = vst [vmem:[#allocation4 + $0x250] sm:$0xff] %v5846
        %v5848 = vld [vmem:[#allocation4] sm:$0xff]
        %v5849 = vld [vmem:[#allocation4 + $0x8] sm:$0xff]
        %v5850 = vld [vmem:[#allocation4 + $0x10] sm:$0xff]
        %v5851 = vld [vmem:[#allocation4 + $0x18] sm:$0xff]
        %v5852 = vld [vmem:[#allocation4 + $0x20] sm:$0xff]
        %v5853 = vld [vmem:[#allocation4 + $0x28] sm:$0xff]
        %v5854 = vld [vmem:[#allocation4 + $0x30] sm:$0xff]
        %v5855 = vld [vmem:[#allocation4 + $0x38] sm:$0xff]
        %v5856 = vld [vmem:[#allocation4 + $0x40] sm:$0xff]
        %v5857 = vld [vmem:[#allocation4 + $0x48] sm:$0xff]
        %v5858 = vld [vmem:[#allocation4 + $0x50] sm:$0xff]
        %v5859 = vld [vmem:[#allocation4 + $0x58] sm:$0xff]
        %v5860 = vld [vmem:[#allocation4 + $0x60] sm:$0xff]
        %v5861 = vld [vmem:[#allocation4 + $0x68] sm:$0xff]
        %v5862 = vld [vmem:[#allocation4 + $0x70] sm:$0xff]
        %v5863 = vld [vmem:[#allocation4 + $0x78] sm:$0xff]
        %v5864 = vld [vmem:[#allocation4 + $0x80] sm:$0xff]
        %v5865 = vld [vmem:[#allocation4 + $0x88] sm:$0xff]
        %v5866 = vld [vmem:[#allocation4 + $0x90] sm:$0xff]
        %v5867 = vld [vmem:[#allocation4 + $0x98] sm:$0xff]
        %v5868 = vld [vmem:[#allocation4 + $0xa0] sm:$0xff]
        %v5869 = vld [vmem:[#allocation4 + $0xa8] sm:$0xff]
        %v5870 = vld [vmem:[#allocation4 + $0xb0] sm:$0xff]
        %v5871 = vld [vmem:[#allocation4 + $0xb8] sm:$0xff]
        %v5872 = vld [vmem:[#allocation4 + $0xc0] sm:$0xff]
        %v5873 = vld [vmem:[#allocation4 + $0xc8] sm:$0xff]
        %v5874 = vld [vmem:[#allocation4 + $0xd0] sm:$0xff]
        %v5875 = vld [vmem:[#allocation4 + $0xd8] sm:$0xff]
        %v5876 = vld [vmem:[#allocation4 + $0xe0] sm:$0xff]
        %v5877 = vld [vmem:[#allocation4 + $0xe8] sm:$0xff]
        %v5878 = vld [vmem:[#allocation4 + $0xf0] sm:$0xff]
        %v5879 = vld [vmem:[#allocation4 + $0xf8] sm:$0xff]
        %v5880 = vld [vmem:[#allocation4 + $0x100] sm:$0xff]
        %v5881 = vld [vmem:[#allocation4 + $0x108] sm:$0xff]
        %v5882 = vld [vmem:[#allocation4 + $0x110] sm:$0xff]
        %v5883 = vld [vmem:[#allocation4 + $0x118] sm:$0xff]
        %v5884 = vld [vmem:[#allocation4 + $0x120] sm:$0xff]
        %v5885 = vld [vmem:[#allocation4 + $0x128] sm:$0xff]
        %v5886 = vld [vmem:[#allocation4 + $0x130] sm:$0xff]
        %v5887 = vld [vmem:[#allocation4 + $0x138] sm:$0xff]
        %v5888 = vld [vmem:[#allocation4 + $0x140] sm:$0xff]
        %v5889 = vld [vmem:[#allocation4 + $0x148] sm:$0xff]
        %v5890 = vld [vmem:[#allocation4 + $0x150] sm:$0xff]
        %v5891 = vld [vmem:[#allocation4 + $0x158] sm:$0xff]
        %v5892 = vld [vmem:[#allocation4 + $0x160] sm:$0xff]
        %v5893 = vld [vmem:[#allocation4 + $0x168] sm:$0xff]
        %v5894 = vld [vmem:[#allocation4 + $0x170] sm:$0xff]
        %v5895 = vld [vmem:[#allocation4 + $0x178] sm:$0xff]
        %v5896 = vld [vmem:[#allocation4 + $0x180] sm:$0xff]
        %v5897 = vld [vmem:[#allocation4 + $0x188] sm:$0xff]
        %v5898 = vld [vmem:[#allocation4 + $0x190] sm:$0xff]
        %v5899 = vld [vmem:[#allocation4 + $0x198] sm:$0xff]
        %v5900 = vld [vmem:[#allocation4 + $0x1a0] sm:$0xff]
        %v5901 = vld [vmem:[#allocation4 + $0x1a8] sm:$0xff]
        %v5902 = vld [vmem:[#allocation4 + $0x1b0] sm:$0xff]
        %v5903 = vld [vmem:[#allocation4 + $0x1b8] sm:$0xff]
        %v5904 = vld [vmem:[#allocation4 + $0x1c0] sm:$0xff]
        %v5905 = vld [vmem:[#allocation4 + $0x1c8] sm:$0xff]
        %v5906 = vld [vmem:[#allocation4 + $0x1d0] sm:$0xff]
        %v5907 = vld [vmem:[#allocation4 + $0x1d8] sm:$0xff]
        %v5908 = vld [vmem:[#allocation4 + $0x1e0] sm:$0xff]
        %v5909 = vld [vmem:[#allocation4 + $0x1e8] sm:$0xff]
        %v5910 = vld [vmem:[#allocation4 + $0x1f0] sm:$0xff]
        %v5911 = vld [vmem:[#allocation4 + $0x1f8] sm:$0xff]
        %v5912 = vld [vmem:[#allocation4 + $0x200] sm:$0xff]
        %v5913 = vld [vmem:[#allocation4 + $0x208] sm:$0xff]
        %v5914 = vld [vmem:[#allocation4 + $0x210] sm:$0xff]
        %v5915 = vld [vmem:[#allocation4 + $0x218] sm:$0xff]
        %v5916 = vld [vmem:[#allocation4 + $0x220] sm:$0xff]
        %v5917 = vld [vmem:[#allocation4 + $0x228] sm:$0xff]
        %v5918 = vld [vmem:[#allocation4 + $0x230] sm:$0xff]
        %v5919 = vld [vmem:[#allocation4 + $0x238] sm:$0xff]
        %v5920 = vld [vmem:[#allocation4 + $0x240] sm:$0xff]
        %v5921 = vld [vmem:[#allocation4 + $0x248] sm:$0xff]
        %v5922 = vld [vmem:[#allocation4 + $0x250] sm:$0xff]
        %v5923 = vld [vmem:[#allocation4 + $0x258] sm:$0xff]
        %v5924 = vld [vmem:[#allocation4 + $0x260] sm:$0xff]
        %v5925 = vld [vmem:[#allocation4 + $0x268] sm:$0xff]
        %v5926 = vld [vmem:[#allocation4 + $0x270] sm:$0xff]
        %v5927 = vld [vmem:[#allocation4 + $0x278] sm:$0xff]
        %v5928 = vld [vmem:[#allocation11] sm:$0xf]
        %v5929 = vld [vmem:[#allocation11 + $0x4] sm:$0xf]
        %v5930 = vld [vmem:[#allocation11 + $0x8] sm:$0xf]
        %v5931 = vld [vmem:[#allocation11 + $0xc] sm:$0xf]
        %v5932 = vld [vmem:[#allocation11 + $0x10] sm:$0xf]
        %v5933 = vld [vmem:[#allocation11 + $0x14] sm:$0xf]
        %v5934 = vld [vmem:[#allocation11 + $0x18] sm:$0xf]
        %v5935 = vld [vmem:[#allocation11 + $0x1c] sm:$0xf]
        %v5936 = vld [vmem:[#allocation11 + $0x20] sm:$0xf]
        %v5937 = vld [vmem:[#allocation11 + $0x24] sm:$0xf]
        %v5938 = vld [vmem:[#allocation11 + $0x28] sm:$0xf]
        %v5939 = vld [vmem:[#allocation11 + $0x2c] sm:$0xf]
        %v5940 = vld [vmem:[#allocation11 + $0x30] sm:$0xf]
        %v5941 = vld [vmem:[#allocation11 + $0x34] sm:$0xf]
        %v5942 = vld [vmem:[#allocation11 + $0x38] sm:$0xf]
        %v5943 = vld [vmem:[#allocation11 + $0x3c] sm:$0xf]
        %v5944 = vld [vmem:[#allocation11 + $0x40] sm:$0xf]
        %v5945 = vld [vmem:[#allocation11 + $0x44] sm:$0xf]
        %v5946 = vld [vmem:[#allocation11 + $0x48] sm:$0xf]
        %v5947 = vld [vmem:[#allocation11 + $0x4c] sm:$0xf]
        %v5948 = vld [vmem:[#allocation11 + $0x50] sm:$0xf]
        %v5949 = vld [vmem:[#allocation11 + $0x54] sm:$0xf]
        %v5950 = vld [vmem:[#allocation11 + $0x58] sm:$0xf]
        %v5951 = vld [vmem:[#allocation11 + $0x5c] sm:$0xf]
        %v5952 = vld [vmem:[#allocation11 + $0x60] sm:$0xf]
        %v5953 = vld [vmem:[#allocation11 + $0x64] sm:$0xf]
        %v5954 = vld [vmem:[#allocation11 + $0x68] sm:$0xf]
        %v5955 = vld [vmem:[#allocation11 + $0x6c] sm:$0xf]
        %v5956 = vld [vmem:[#allocation11 + $0x70] sm:$0xf]
        %v5957 = vld [vmem:[#allocation11 + $0x74] sm:$0xf]
        %v5958 = vld [vmem:[#allocation11 + $0x78] sm:$0xf]
        %v5959 = vld [vmem:[#allocation11 + $0x7c] sm:$0xf]
        %v5960 = vld [vmem:[#allocation11 + $0x80] sm:$0xf]
        %v5961 = vld [vmem:[#allocation11 + $0x84] sm:$0xf]
        %v5962 = vld [vmem:[#allocation11 + $0x88] sm:$0xf]
        %v5963 = vld [vmem:[#allocation11 + $0x8c] sm:$0xf]
        %v5964 = vld [vmem:[#allocation11 + $0x90] sm:$0xf]
        %v5965 = vld [vmem:[#allocation11 + $0x94] sm:$0xf]
        %v5966 = vld [vmem:[#allocation11 + $0x98] sm:$0xf]
        %v5967 = vld [vmem:[#allocation11 + $0x9c] sm:$0xf]
        %v5968 = vld [vmem:[#allocation11 + $0xa0] sm:$0xf]
        %v5969 = vld [vmem:[#allocation11 + $0xa4] sm:$0xf]
        %v5970 = vld [vmem:[#allocation11 + $0xa8] sm:$0xf]
        %v5971 = vld [vmem:[#allocation11 + $0xac] sm:$0xf]
        %v5972 = vld [vmem:[#allocation11 + $0xb0] sm:$0xf]
        %v5973 = vld [vmem:[#allocation11 + $0xb4] sm:$0xf]
        %v5974 = vld [vmem:[#allocation11 + $0xb8] sm:$0xf]
        %v5975 = vld [vmem:[#allocation11 + $0xbc] sm:$0xf]
        %v5976 = vld [vmem:[#allocation11 + $0xc0] sm:$0xf]
        %v5977 = vld [vmem:[#allocation11 + $0xc4] sm:$0xf]
        %v5978 = vld [vmem:[#allocation11 + $0xc8] sm:$0xf]
        %v5979 = vld [vmem:[#allocation11 + $0xcc] sm:$0xf]
        %v5980 = vld [vmem:[#allocation11 + $0xd0] sm:$0xf]
        %v5981 = vld [vmem:[#allocation11 + $0xd4] sm:$0xf]
        %v5982 = vld [vmem:[#allocation11 + $0xd8] sm:$0xf]
        %v5983 = vld [vmem:[#allocation11 + $0xdc] sm:$0xf]
        %v5984 = vld [vmem:[#allocation11 + $0xe0] sm:$0xf]
        %v5985 = vld [vmem:[#allocation11 + $0xe4] sm:$0xf]
        %v5986 = vld [vmem:[#allocation11 + $0xe8] sm:$0xf]
        %v5987 = vld [vmem:[#allocation11 + $0xec] sm:$0xf]
        %v5988 = vld [vmem:[#allocation11 + $0xf0] sm:$0xf]
        %v5989 = vld [vmem:[#allocation11 + $0xf4] sm:$0xf]
        %v5990 = vld [vmem:[#allocation11 + $0xf8] sm:$0xf]
        %v5991 = vld [vmem:[#allocation11 + $0xfc] sm:$0xf]
        %v5992 = vld [vmem:[#allocation11 + $0x100] sm:$0xf]
        %v5993 = vld [vmem:[#allocation11 + $0x104] sm:$0xf]
        %v5994 = vld [vmem:[#allocation11 + $0x108] sm:$0xf]
        %v5995 = vld [vmem:[#allocation11 + $0x10c] sm:$0xf]
        %v5996 = vld [vmem:[#allocation11 + $0x110] sm:$0xf]
        %v5997 = vld [vmem:[#allocation11 + $0x114] sm:$0xf]
        %v5998 = vld [vmem:[#allocation11 + $0x118] sm:$0xf]
        %v5999 = vld [vmem:[#allocation11 + $0x11c] sm:$0xf]
        %v6000 = vld [vmem:[#allocation13] sm:$0x1]
        %v6002 = vlaneseq
        %v6003 = vshrl.u32 %v6002, 7
        %v6004 = vsub.s32 0, %v6003
        %v6005 = vrot.slane %v6000, %v6004
        %v6079 = vunpack.c.l.b16 %v5928
        %v6080 = vunpack.c.l.b16 %v5929
        %v6081 = vunpack.c.l.b16 %v5930
        %v6082 = vunpack.c.l.b16 %v5931
        %v6083 = vunpack.c.l.b16 %v5932
        %v6084 = vunpack.c.l.b16 %v5933
        %v6085 = vunpack.c.l.b16 %v5934
        %v6086 = vunpack.c.l.b16 %v5935
        %v6087 = vunpack.c.l.b16 %v5936
        %v6088 = vunpack.c.l.b16 %v5937
        %v6089 = vunpack.c.l.b16 %v5938
        %v6090 = vunpack.c.l.b16 %v5939
        %v6091 = vunpack.c.l.b16 %v5940
        %v6092 = vunpack.c.l.b16 %v5941
        %v6093 = vunpack.c.l.b16 %v5942
        %v6094 = vunpack.c.l.b16 %v5943
        %v6095 = vunpack.c.l.b16 %v5944
        %v6096 = vunpack.c.l.b16 %v5945
        %v6097 = vunpack.c.l.b16 %v5946
        %v6098 = vunpack.c.l.b16 %v5947
        %v6099 = vunpack.c.l.b16 %v5948
        %v6100 = vunpack.c.l.b16 %v5949
        %v6101 = vunpack.c.l.b16 %v5950
        %v6102 = vunpack.c.l.b16 %v5951
        %v6103 = vunpack.c.l.b16 %v5952
        %v6104 = vunpack.c.l.b16 %v5953
        %v6105 = vunpack.c.l.b16 %v5954
        %v6106 = vunpack.c.l.b16 %v5955
        %v6107 = vunpack.c.l.b16 %v5956
        %v6108 = vunpack.c.l.b16 %v5957
        %v6109 = vunpack.c.l.b16 %v5958
        %v6110 = vunpack.c.l.b16 %v5959
        %v6111 = vunpack.c.l.b16 %v5960
        %v6112 = vunpack.c.l.b16 %v5961
        %v6113 = vunpack.c.l.b16 %v5962
        %v6114 = vunpack.c.l.b16 %v5963
        %v6115 = vunpack.c.l.b16 %v5964
        %v6116 = vunpack.c.l.b16 %v5965
        %v6117 = vunpack.c.l.b16 %v5966
        %v6118 = vunpack.c.l.b16 %v5967
        %v6119 = vunpack.c.l.b16 %v5968
        %v6120 = vunpack.c.l.b16 %v5969
        %v6121 = vunpack.c.l.b16 %v5970
        %v6122 = vunpack.c.l.b16 %v5971
        %v6123 = vunpack.c.l.b16 %v5972
        %v6124 = vunpack.c.l.b16 %v5973
        %v6125 = vunpack.c.l.b16 %v5974
        %v6126 = vunpack.c.l.b16 %v5975
        %v6127 = vunpack.c.l.b16 %v5976
        %v6128 = vunpack.c.l.b16 %v5977
        %v6129 = vunpack.c.l.b16 %v5978
        %v6130 = vunpack.c.l.b16 %v5979
        %v6131 = vunpack.c.l.b16 %v5980
        %v6132 = vunpack.c.l.b16 %v5981
        %v6133 = vunpack.c.l.b16 %v5982
        %v6134 = vunpack.c.l.b16 %v5983
        %v6135 = vunpack.c.l.b16 %v5984
        %v6136 = vunpack.c.l.b16 %v5985
        %v6137 = vunpack.c.l.b16 %v5986
        %v6138 = vunpack.c.l.b16 %v5987
        %v6139 = vunpack.c.l.b16 %v5988
        %v6140 = vunpack.c.l.b16 %v5989
        %v6141 = vunpack.c.l.b16 %v5990
        %v6142 = vunpack.c.l.b16 %v5991
        %v6143 = vunpack.c.l.b16 %v5992
        %v6144 = vunpack.c.l.b16 %v5993
        %v6145 = vunpack.c.l.b16 %v5994
        %v6146 = vunpack.c.l.b16 %v5995
        %v6147 = vunpack.c.l.b16 %v5996
        %v6148 = vunpack.c.l.b16 %v5997
        %v6149 = vunpack.c.l.b16 %v5998
        %v6150 = vunpack.c.l.b16 %v5999
        %v6151 = vpack.c.b16 %v6080, %v6079
        %v6152 = vpack.c.b16 %v6082, %v6081
        %v6153 = vpack.c.b16 %v6084, %v6083
        %v6154 = vpack.c.b16 %v6086, %v6085
        %v6155 = vpack.c.b16 %v6088, %v6087
        %v6156 = vpack.c.b16 %v6090, %v6089
        %v6157 = vpack.c.b16 %v6092, %v6091
        %v6158 = vpack.c.b16 %v6094, %v6093
        %v6159 = vpack.c.b16 %v6096, %v6095
        %v6160 = vpack.c.b16 %v6098, %v6097
        %v6161 = vpack.c.b16 %v6100, %v6099
        %v6162 = vpack.c.b16 %v6102, %v6101
        %v6163 = vpack.c.b16 %v6104, %v6103
        %v6164 = vpack.c.b16 %v6106, %v6105
        %v6165 = vpack.c.b16 %v6108, %v6107
        %v6166 = vpack.c.b16 %v6110, %v6109
        %v6167 = vpack.c.b16 %v6112, %v6111
        %v6168 = vpack.c.b16 %v6114, %v6113
        %v6169 = vpack.c.b16 %v6116, %v6115
        %v6170 = vpack.c.b16 %v6118, %v6117
        %v6171 = vpack.c.b16 %v6120, %v6119
        %v6172 = vpack.c.b16 %v6122, %v6121
        %v6173 = vpack.c.b16 %v6124, %v6123
        %v6174 = vpack.c.b16 %v6126, %v6125
        %v6175 = vpack.c.b16 %v6128, %v6127
        %v6176 = vpack.c.b16 %v6130, %v6129
        %v6177 = vpack.c.b16 %v6132, %v6131
        %v6178 = vpack.c.b16 %v6134, %v6133
        %v6179 = vpack.c.b16 %v6136, %v6135
        %v6180 = vpack.c.b16 %v6138, %v6137
        %v6181 = vpack.c.b16 %v6140, %v6139
        %v6182 = vpack.c.b16 %v6142, %v6141
        %v6183 = vpack.c.b16 %v6144, %v6143
        %v6184 = vpack.c.b16 %v6146, %v6145
        %v6185 = vpack.c.b16 %v6148, %v6147
        %v6186 = vpack.c.b16 %v6150, %v6149
        %v6224 = vsel %vm302, %v5852, 0
        %v6227 = vsel %vm302, %v5857, 0
        %v6230 = vsel %vm302, %v5862, 0
        %v6233 = vsel %vm302, %v5867, 0
        %v6236 = vsel %vm302, %v5872, 0
        %v6239 = vsel %vm302, %v5877, 0
        %v6242 = vsel %vm302, %v5882, 0
        %v6245 = vsel %vm302, %v5887, 0
        %v6248 = vsel %vm302, %v5892, 0
        %v6251 = vsel %vm302, %v5897, 0
        %v6254 = vsel %vm302, %v5902, 0
        %v6257 = vsel %vm302, %v5907, 0
        %v6260 = vsel %vm302, %v5912, 0
        %v6263 = vsel %vm302, %v5917, 0
        %v6266 = vsel %vm302, %v5922, 0
        %v6269 = vsel %vm302, %v5927, 0
        %6271 = vmatprep.subr.bf16.mxu0 0
        %6272 = vmatpush1.bf16.msra.mxu0 %v6151
        %6273 = vmatprep.subr.bf16.mxu0 0
        %6274 = vmatpush1.bf16.msra.mxu0 %v6152
        %6275 = vmatprep.subr.bf16.mxu0 0
        %6276 = vmatpush1.bf16.msra.mxu0 %v6153
        %6277 = vmatprep.subr.bf16.mxu0 0
        %6278 = vmatpush1.bf16.msra.mxu0 %v6154
        %6279 = vmatprep.subr.bf16.mxu0 0
        %6280 = vmatpush1.bf16.msra.mxu0 %v6155
        %6281 = vmatprep.subr.bf16.mxu0 0
        %6282 = vmatpush1.bf16.msra.mxu0 %v6156
        %6283 = vmatprep.subr.bf16.mxu0 0
        %6284 = vmatpush1.bf16.msra.mxu0 %v6157
        %6285 = vmatprep.subr.bf16.mxu0 0
        %6286 = vmatpush1.bf16.msra.mxu0 %v6158
        %6287 = vmatprep.subr.bf16.mxu0 0
        %6288 = vmatpush1.bf16.msra.mxu0 %v6159
        %6289 = vmatprep.subr.bf16.mxu0 0
        %6290 = vmatpush1.bf16.msra.mxu0 %v6160
        %6291 = vmatprep.subr.bf16.mxu0 0
        %6292 = vmatpush1.bf16.msra.mxu0 %v6161
        %6293 = vmatprep.subr.bf16.mxu0 0
        %6294 = vmatpush1.bf16.msra.mxu0 %v6162
        %6295 = vmatprep.subr.bf16.mxu0 0
        %6296 = vmatpush1.bf16.msra.mxu0 %v6163
        %6297 = vmatprep.subr.bf16.mxu0 0
        %6298 = vmatpush1.bf16.msra.mxu0 %v6164
        %6299 = vmatprep.subr.bf16.mxu0 0
        %6300 = vmatpush1.bf16.msra.mxu0 %v6165
        %6301 = vmatprep.subr.bf16.mxu0 0
        %6302 = vmatpush1.bf16.msra.mxu0 %v6166
        %6303 = vmatprep.mubr.bf16.mxu0 %v5849
        %6304 = vmatmul.mubr.bf16.gmra.mrb[0].mxu0 %v5848
        %v6305 = vpop.f32.mrb[0].mxu0
        %v6306 = vadd.f32 %v6005, %v6305
        %v6307 = vpop.f32.mrb[0].mxu0
        %v6308 = vpop.f32.mrb[0].mxu0
        %v6309 = vadd.f32 %v6005, %v6308
        %v6310 = vpop.f32.mrb[0].mxu0
        %6311 = vmatprep.mubr.bf16.mxu0 %v5854
        %6312 = vmatmul.mubr.bf16.gmra.mrb[0].mxu0 %v5853
        %v6313 = vpop.f32.mrb[0].mxu0
        %v6314 = vadd.f32 %v6005, %v6313
        %v6315 = vpop.f32.mrb[0].mxu0
        %v6316 = vpop.f32.mrb[0].mxu0
        %v6317 = vadd.f32 %v6005, %v6316
        %v6318 = vpop.f32.mrb[0].mxu0
        %6319 = vmatprep.mubr.bf16.mxu0 %v5859
        %6320 = vmatmul.mubr.bf16.gmra.mrb[0].mxu0 %v5858
        %v6321 = vpop.f32.mrb[0].mxu0
        %v6322 = vadd.f32 %v6005, %v6321
        %v6323 = vpop.f32.mrb[0].mxu0
        %v6324 = vpop.f32.mrb[0].mxu0
        %v6325 = vadd.f32 %v6005, %v6324
        %v6326 = vpop.f32.mrb[0].mxu0
        %6327 = vmatprep.mubr.bf16.mxu0 %v5864
        %6328 = vmatmul.mubr.bf16.gmra.mrb[0].mxu0 %v5863
        %v6329 = vpop.f32.mrb[0].mxu0
        %v6330 = vadd.f32 %v6005, %v6329
        %v6331 = vpop.f32.mrb[0].mxu0
        %v6332 = vpop.f32.mrb[0].mxu0
        %v6333 = vadd.f32 %v6005, %v6332
        %v6334 = vpop.f32.mrb[0].mxu0
        %6335 = vmatprep.mubr.bf16.mxu0 %v5869
        %6336 = vmatmul.mubr.bf16.gmra.mrb[0].mxu0 %v5868
        %v6337 = vpop.f32.mrb[0].mxu0
        %v6338 = vadd.f32 %v6005, %v6337
        %v6339 = vpop.f32.mrb[0].mxu0
        %v6340 = vpop.f32.mrb[0].mxu0
        %v6341 = vadd.f32 %v6005, %v6340
        %v6342 = vpop.f32.mrb[0].mxu0
        %6343 = vmatprep.mubr.bf16.mxu0 %v5874
        %6344 = vmatmul.mubr.bf16.gmra.mrb[0].mxu0 %v5873
        %v6345 = vpop.f32.mrb[0].mxu0
        %v6346 = vadd.f32 %v6005, %v6345
        %v6347 = vpop.f32.mrb[0].mxu0
        %v6348 = vpop.f32.mrb[0].mxu0
        %v6349 = vadd.f32 %v6005, %v6348
        %v6350 = vpop.f32.mrb[0].mxu0
        %6351 = vmatprep.mubr.bf16.mxu0 %v5879
        %6352 = vmatmul.mubr.bf16.gmra.mrb[0].mxu0 %v5878
        %v6353 = vpop.f32.mrb[0].mxu0
        %v6354 = vadd.f32 %v6005, %v6353
        %v6355 = vpop.f32.mrb[0].mxu0
        %v6356 = vpop.f32.mrb[0].mxu0
        %v6357 = vadd.f32 %v6005, %v6356
        %v6358 = vpop.f32.mrb[0].mxu0
        %6359 = vmatprep.mubr.bf16.mxu0 %v5884
        %6360 = vmatmul.mubr.bf16.gmra.mrb[0].mxu0 %v5883
        %v6361 = vpop.f32.mrb[0].mxu0
        %v6362 = vadd.f32 %v6005, %v6361
        %v6363 = vpop.f32.mrb[0].mxu0
        %v6364 = vpop.f32.mrb[0].mxu0
        %v6365 = vadd.f32 %v6005, %v6364
        %v6366 = vpop.f32.mrb[0].mxu0
        %6367 = vmatprep.mubr.bf16.mxu0 %v5889
        %6368 = vmatmul.mubr.bf16.gmra.mrb[0].mxu0 %v5888
        %v6369 = vpop.f32.mrb[0].mxu0
        %v6370 = vadd.f32 %v6005, %v6369
        %v6371 = vpop.f32.mrb[0].mxu0
        %v6372 = vpop.f32.mrb[0].mxu0
        %v6373 = vadd.f32 %v6005, %v6372
        %v6374 = vpop.f32.mrb[0].mxu0
        %6375 = vmatprep.mubr.bf16.mxu0 %v5894
        %6376 = vmatmul.mubr.bf16.gmra.mrb[0].mxu0 %v5893
        %v6377 = vpop.f32.mrb[0].mxu0
        %v6378 = vadd.f32 %v6005, %v6377
        %v6379 = vpop.f32.mrb[0].mxu0
        %v6380 = vpop.f32.mrb[0].mxu0
        %v6381 = vadd.f32 %v6005, %v6380
        %v6382 = vpop.f32.mrb[0].mxu0
        %6383 = vmatprep.mubr.bf16.mxu0 %v5899
        %6384 = vmatmul.mubr.bf16.gmra.mrb[0].mxu0 %v5898
        %v6385 = vpop.f32.mrb[0].mxu0
        %v6386 = vadd.f32 %v6005, %v6385
        %v6387 = vpop.f32.mrb[0].mxu0
        %v6388 = vpop.f32.mrb[0].mxu0
        %v6389 = vadd.f32 %v6005, %v6388
        %v6390 = vpop.f32.mrb[0].mxu0
        %6391 = vmatprep.mubr.bf16.mxu0 %v5904
        %6392 = vmatmul.mubr.bf16.gmra.mrb[0].mxu0 %v5903
        %v6393 = vpop.f32.mrb[0].mxu0
        %v6394 = vadd.f32 %v6005, %v6393
        %v6395 = vpop.f32.mrb[0].mxu0
        %v6396 = vpop.f32.mrb[0].mxu0
        %v6397 = vadd.f32 %v6005, %v6396
        %v6398 = vpop.f32.mrb[0].mxu0
        %6399 = vmatprep.mubr.bf16.mxu0 %v5909
        %6400 = vmatmul.mubr.bf16.gmra.mrb[0].mxu0 %v5908
        %v6401 = vpop.f32.mrb[0].mxu0
        %v6402 = vadd.f32 %v6005, %v6401
        %v6403 = vpop.f32.mrb[0].mxu0
        %v6404 = vpop.f32.mrb[0].mxu0
        %v6405 = vadd.f32 %v6005, %v6404
        %v6406 = vpop.f32.mrb[0].mxu0
        %6407 = vmatprep.mubr.bf16.mxu0 %v5914
        %6408 = vmatmul.mubr.bf16.gmra.mrb[0].mxu0 %v5913
        %v6409 = vpop.f32.mrb[0].mxu0
        %v6410 = vadd.f32 %v6005, %v6409
        %v6411 = vpop.f32.mrb[0].mxu0
        %v6412 = vpop.f32.mrb[0].mxu0
        %v6413 = vadd.f32 %v6005, %v6412
        %v6414 = vpop.f32.mrb[0].mxu0
        %6415 = vmatprep.mubr.bf16.mxu0 %v5919
        %6416 = vmatmul.mubr.bf16.gmra.mrb[0].mxu0 %v5918
        %v6417 = vpop.f32.mrb[0].mxu0
        %v6418 = vadd.f32 %v6005, %v6417
        %v6419 = vpop.f32.mrb[0].mxu0
        %v6420 = vpop.f32.mrb[0].mxu0
        %v6421 = vadd.f32 %v6005, %v6420
        %v6422 = vpop.f32.mrb[0].mxu0
        %6423 = vmatprep.mubr.bf16.mxu0 %v5924
        %6424 = vmatmul.mubr.bf16.gmra.mrb[0].mxu0 %v5923
        %v6425 = vpop.f32.mrb[0].mxu0
        %v6426 = vadd.f32 %v6005, %v6425
        %v6427 = vpop.f32.mrb[0].mxu0
        %v6428 = vpop.f32.mrb[0].mxu0
        %v6429 = vadd.f32 %v6005, %v6428
        %v6430 = vpop.f32.mrb[0].mxu0
        %6431 = vdwg.mxu0
        %6432 = vmatprep.subr.bf16.mxu0 0
        %6433 = vmatpush1.bf16.msra.mxu0 %v6167
        %6434 = vmatprep.subr.bf16.mxu0 0
        %6435 = vmatpush1.bf16.msra.mxu0 %v6168
        %6436 = vmatprep.subr.bf16.mxu0 0
        %6437 = vmatpush1.bf16.msra.mxu0 %v6169
        %6438 = vmatprep.subr.bf16.mxu0 0
        %6439 = vmatpush1.bf16.msra.mxu0 %v6170
        %6440 = vmatprep.subr.bf16.mxu0 0
        %6441 = vmatpush1.bf16.msra.mxu0 %v6171
        %6442 = vmatprep.subr.bf16.mxu0 0
        %6443 = vmatpush1.bf16.msra.mxu0 %v6172
        %6444 = vmatprep.subr.bf16.mxu0 0
        %6445 = vmatpush1.bf16.msra.mxu0 %v6173
        %6446 = vmatprep.subr.bf16.mxu0 0
        %6447 = vmatpush1.bf16.msra.mxu0 %v6174
        %6448 = vmatprep.subr.bf16.mxu0 0
        %6449 = vmatpush1.bf16.msra.mxu0 %v6175
        %6450 = vmatprep.subr.bf16.mxu0 0
        %6451 = vmatpush1.bf16.msra.mxu0 %v6176
        %6452 = vmatprep.subr.bf16.mxu0 0
        %6453 = vmatpush1.bf16.msra.mxu0 %v6177
        %6454 = vmatprep.subr.bf16.mxu0 0
        %6455 = vmatpush1.bf16.msra.mxu0 %v6178
        %6456 = vmatprep.subr.bf16.mxu0 0
        %6457 = vmatpush1.bf16.msra.mxu0 %v6179
        %6458 = vmatprep.subr.bf16.mxu0 0
        %6459 = vmatpush1.bf16.msra.mxu0 %v6180
        %6460 = vmatprep.subr.bf16.mxu0 0
        %6461 = vmatpush1.bf16.msra.mxu0 %v6181
        %6462 = vmatprep.subr.bf16.mxu0 0
        %6463 = vmatpush1.bf16.msra.mxu0 %v6182
        %6464 = vmatprep.mubr.bf16.mxu0 %v5851
        %6465 = vmatmul.mubr.bf16.gmra.mrb[0].mxu0 %v5850
        %v6466 = vpop.f32.mrb[0].mxu0
        %v6467 = vadd.f32 %v6306, %v6466
        %v6468 = vpop.f32.mrb[0].mxu0
        %v6469 = vpop.f32.mrb[0].mxu0
        %v6470 = vadd.f32 %v6309, %v6469
        %v6471 = vpop.f32.mrb[0].mxu0
        %6472 = vmatprep.mubr.bf16.mxu0 %v5856
        %6473 = vmatmul.mubr.bf16.gmra.mrb[0].mxu0 %v5855
        %v6474 = vpop.f32.mrb[0].mxu0
        %v6475 = vadd.f32 %v6314, %v6474
        %v6476 = vpop.f32.mrb[0].mxu0
        %v6477 = vpop.f32.mrb[0].mxu0
        %v6478 = vadd.f32 %v6317, %v6477
        %v6479 = vpop.f32.mrb[0].mxu0
        %6480 = vmatprep.mubr.bf16.mxu0 %v5861
        %6481 = vmatmul.mubr.bf16.gmra.mrb[0].mxu0 %v5860
        %v6482 = vpop.f32.mrb[0].mxu0
        %v6483 = vadd.f32 %v6322, %v6482
        %v6484 = vpop.f32.mrb[0].mxu0
        %v6485 = vpop.f32.mrb[0].mxu0
        %v6486 = vadd.f32 %v6325, %v6485
        %v6487 = vpop.f32.mrb[0].mxu0
        %6488 = vmatprep.mubr.bf16.mxu0 %v5866
        %6489 = vmatmul.mubr.bf16.gmra.mrb[0].mxu0 %v5865
        %v6490 = vpop.f32.mrb[0].mxu0
        %v6491 = vadd.f32 %v6330, %v6490
        %v6492 = vpop.f32.mrb[0].mxu0
        %v6493 = vpop.f32.mrb[0].mxu0
        %v6494 = vadd.f32 %v6333, %v6493
        %v6495 = vpop.f32.mrb[0].mxu0
        %6496 = vmatprep.mubr.bf16.mxu0 %v5871
        %6497 = vmatmul.mubr.bf16.gmra.mrb[0].mxu0 %v5870
        %v6498 = vpop.f32.mrb[0].mxu0
        %v6499 = vadd.f32 %v6338, %v6498
        %v6500 = vpop.f32.mrb[0].mxu0
        %v6501 = vpop.f32.mrb[0].mxu0
        %v6502 = vadd.f32 %v6341, %v6501
        %v6503 = vpop.f32.mrb[0].mxu0
        %6504 = vmatprep.mubr.bf16.mxu0 %v5876
        %6505 = vmatmul.mubr.bf16.gmra.mrb[0].mxu0 %v5875
        %v6506 = vpop.f32.mrb[0].mxu0
        %v6507 = vadd.f32 %v6346, %v6506
        %v6508 = vpop.f32.mrb[0].mxu0
        %v6509 = vpop.f32.mrb[0].mxu0
        %v6510 = vadd.f32 %v6349, %v6509
        %v6511 = vpop.f32.mrb[0].mxu0
        %6512 = vmatprep.mubr.bf16.mxu0 %v5881
        %6513 = vmatmul.mubr.bf16.gmra.mrb[0].mxu0 %v5880
        %v6514 = vpop.f32.mrb[0].mxu0
        %v6515 = vadd.f32 %v6354, %v6514
        %v6516 = vpop.f32.mrb[0].mxu0
        %v6517 = vpop.f32.mrb[0].mxu0
        %v6518 = vadd.f32 %v6357, %v6517
        %v6519 = vpop.f32.mrb[0].mxu0
        %6520 = vmatprep.mubr.bf16.mxu0 %v5886
        %6521 = vmatmul.mubr.bf16.gmra.mrb[0].mxu0 %v5885
        %v6522 = vpop.f32.mrb[0].mxu0
        %v6523 = vadd.f32 %v6362, %v6522
        %v6524 = vpop.f32.mrb[0].mxu0
        %v6525 = vpop.f32.mrb[0].mxu0
        %v6526 = vadd.f32 %v6365, %v6525
        %v6527 = vpop.f32.mrb[0].mxu0
        %6528 = vmatprep.mubr.bf16.mxu0 %v5891
        %6529 = vmatmul.mubr.bf16.gmra.mrb[0].mxu0 %v5890
        %v6530 = vpop.f32.mrb[0].mxu0
        %v6531 = vadd.f32 %v6370, %v6530
        %v6532 = vpop.f32.mrb[0].mxu0
        %v6533 = vpop.f32.mrb[0].mxu0
        %v6534 = vadd.f32 %v6373, %v6533
        %v6535 = vpop.f32.mrb[0].mxu0
        %6536 = vmatprep.mubr.bf16.mxu0 %v5896
        %6537 = vmatmul.mubr.bf16.gmra.mrb[0].mxu0 %v5895
        %v6538 = vpop.f32.mrb[0].mxu0
        %v6539 = vadd.f32 %v6378, %v6538
        %v6540 = vpop.f32.mrb[0].mxu0
        %v6541 = vpop.f32.mrb[0].mxu0
        %v6542 = vadd.f32 %v6381, %v6541
        %v6543 = vpop.f32.mrb[0].mxu0
        %6544 = vmatprep.mubr.bf16.mxu0 %v5901
        %6545 = vmatmul.mubr.bf16.gmra.mrb[0].mxu0 %v5900
        %v6546 = vpop.f32.mrb[0].mxu0
        %v6547 = vadd.f32 %v6386, %v6546
        %v6548 = vpop.f32.mrb[0].mxu0
        %v6549 = vpop.f32.mrb[0].mxu0
        %v6550 = vadd.f32 %v6389, %v6549
        %v6551 = vpop.f32.mrb[0].mxu0
        %6552 = vmatprep.mubr.bf16.mxu0 %v5906
        %6553 = vmatmul.mubr.bf16.gmra.mrb[0].mxu0 %v5905
        %v6554 = vpop.f32.mrb[0].mxu0
        %v6555 = vadd.f32 %v6394, %v6554
        %v6556 = vpop.f32.mrb[0].mxu0
        %v6557 = vpop.f32.mrb[0].mxu0
        %v6558 = vadd.f32 %v6397, %v6557
        %v6559 = vpop.f32.mrb[0].mxu0
        %6560 = vmatprep.mubr.bf16.mxu0 %v5911
        %6561 = vmatmul.mubr.bf16.gmra.mrb[0].mxu0 %v5910
        %v6562 = vpop.f32.mrb[0].mxu0
        %v6563 = vadd.f32 %v6402, %v6562
        %v6564 = vpop.f32.mrb[0].mxu0
        %v6565 = vpop.f32.mrb[0].mxu0
        %v6566 = vadd.f32 %v6405, %v6565
        %v6567 = vpop.f32.mrb[0].mxu0
        %6568 = vmatprep.mubr.bf16.mxu0 %v5916
        %6569 = vmatmul.mubr.bf16.gmra.mrb[0].mxu0 %v5915
        %v6570 = vpop.f32.mrb[0].mxu0
        %v6571 = vadd.f32 %v6410, %v6570
        %v6572 = vpop.f32.mrb[0].mxu0
        %v6573 = vpop.f32.mrb[0].mxu0
        %v6574 = vadd.f32 %v6413, %v6573
        %v6575 = vpop.f32.mrb[0].mxu0
        %6576 = vmatprep.mubr.bf16.mxu0 %v5921
        %6577 = vmatmul.mubr.bf16.gmra.mrb[0].mxu0 %v5920
        %v6578 = vpop.f32.mrb[0].mxu0
        %v6579 = vadd.f32 %v6418, %v6578
        %v6580 = vpop.f32.mrb[0].mxu0
        %v6581 = vpop.f32.mrb[0].mxu0
        %v6582 = vadd.f32 %v6421, %v6581
        %v6583 = vpop.f32.mrb[0].mxu0
        %6584 = vmatprep.mubr.bf16.mxu0 %v5926
        %6585 = vmatmul.mubr.bf16.gmra.mrb[0].mxu0 %v5925
        %v6586 = vpop.f32.mrb[0].mxu0
        %v6587 = vadd.f32 %v6426, %v6586
        %v6588 = vpop.f32.mrb[0].mxu0
        %v6589 = vpop.f32.mrb[0].mxu0
        %v6590 = vadd.f32 %v6429, %v6589
        %v6591 = vpop.f32.mrb[0].mxu0
        %6592 = vdwg.mxu0
        %6593 = vmatprep.subr.bf16.mxu0 0
        %6594 = vmatpush1.bf16.msra.mxu0 %v6183
        %6595 = vmatprep.subr.bf16.mxu0 0
        %6596 = vmatpush1.bf16.msra.mxu0 %v6184
        %6597 = vmatprep.subr.bf16.mxu0 0
        %6598 = vmatpush1.bf16.msra.mxu0 %v6185
        %6599 = vmatprep.subr.bf16.mxu0 0
        %6600 = vmatpush1.bf16.msra.mxu0 %v6186
        %6601 = vmatprep.subr.bf16.mxu0 0
        %6602 = vmatpush1.bf16.msra.mxu0 0
        %6603 = vmatprep.subr.bf16.mxu0 0
        %6604 = vmatpush1.bf16.msra.mxu0 0
        %6605 = vmatprep.subr.bf16.mxu0 0
        %6606 = vmatpush1.bf16.msra.mxu0 0
        %6607 = vmatprep.subr.bf16.mxu0 0
        %6608 = vmatpush1.bf16.msra.mxu0 0
        %6609 = vmatprep.subr.bf16.mxu0 0
        %6610 = vmatpush1.bf16.msra.mxu0 0
        %6611 = vmatprep.subr.bf16.mxu0 0
        %6612 = vmatpush1.bf16.msra.mxu0 0
        %6613 = vmatprep.subr.bf16.mxu0 0
        %6614 = vmatpush1.bf16.msra.mxu0 0
        %6615 = vmatprep.subr.bf16.mxu0 0
        %6616 = vmatpush1.bf16.msra.mxu0 0
        %6617 = vmatprep.subr.bf16.mxu0 0
        %6618 = vmatpush1.bf16.msra.mxu0 0
        %6619 = vmatprep.subr.bf16.mxu0 0
        %6620 = vmatpush1.bf16.msra.mxu0 0
        %6621 = vmatprep.subr.bf16.mxu0 0
        %6622 = vmatpush1.bf16.msra.mxu0 0
        %6623 = vmatprep.subr.bf16.mxu0 0
        %6624 = vmatpush1.bf16.msra.mxu0 0
        %6625 = vmatprep.mubr.bf16.mxu0 0
        %6626 = vmatmul.mubr.bf16.gmra.mrb[0].mxu0 %v6224
        %v6627 = vpop.f32.mrb[0].mxu0
        %v6628 = vadd.f32 %v6467, %v6627
        %v6629 = vpop.f32.mrb[0].mxu0
        %v6630 = vpop.f32.mrb[0].mxu0
        %v6631 = vadd.f32 %v6470, %v6630
        %v6632 = vpop.f32.mrb[0].mxu0
        %6633 = vmatprep.mubr.bf16.mxu0 0
        %6634 = vmatmul.mubr.bf16.gmra.mrb[0].mxu0 %v6227
        %v6635 = vpop.f32.mrb[0].mxu0
        %v6636 = vadd.f32 %v6475, %v6635
        %v6637 = vpop.f32.mrb[0].mxu0
        %v6638 = vpop.f32.mrb[0].mxu0
        %v6639 = vadd.f32 %v6478, %v6638
        %v6640 = vpop.f32.mrb[0].mxu0
        %6641 = vmatprep.mubr.bf16.mxu0 0
        %6642 = vmatmul.mubr.bf16.gmra.mrb[0].mxu0 %v6230
        %v6643 = vpop.f32.mrb[0].mxu0
        %v6644 = vadd.f32 %v6483, %v6643
        %v6645 = vpop.f32.mrb[0].mxu0
        %v6646 = vpop.f32.mrb[0].mxu0
        %v6647 = vadd.f32 %v6486, %v6646
        %v6648 = vpop.f32.mrb[0].mxu0
        %6649 = vmatprep.mubr.bf16.mxu0 0
        %6650 = vmatmul.mubr.bf16.gmra.mrb[0].mxu0 %v6233
        %v6651 = vpop.f32.mrb[0].mxu0
        %v6652 = vadd.f32 %v6491, %v6651
        %v6653 = vpop.f32.mrb[0].mxu0
        %v6654 = vpop.f32.mrb[0].mxu0
        %v6655 = vadd.f32 %v6494, %v6654
        %v6656 = vpop.f32.mrb[0].mxu0
        %6657 = vmatprep.mubr.bf16.mxu0 0
        %6658 = vmatmul.mubr.bf16.gmra.mrb[0].mxu0 %v6236
        %v6659 = vpop.f32.mrb[0].mxu0
        %v6660 = vadd.f32 %v6499, %v6659
        %v6661 = vpop.f32.mrb[0].mxu0
        %v6662 = vpop.f32.mrb[0].mxu0
        %v6663 = vadd.f32 %v6502, %v6662
        %v6664 = vpop.f32.mrb[0].mxu0
        %6665 = vmatprep.mubr.bf16.mxu0 0
        %6666 = vmatmul.mubr.bf16.gmra.mrb[0].mxu0 %v6239
        %v6667 = vpop.f32.mrb[0].mxu0
        %v6668 = vadd.f32 %v6507, %v6667
        %v6669 = vpop.f32.mrb[0].mxu0
        %v6670 = vpop.f32.mrb[0].mxu0
        %v6671 = vadd.f32 %v6510, %v6670
        %v6672 = vpop.f32.mrb[0].mxu0
        %6673 = vmatprep.mubr.bf16.mxu0 0
        %6674 = vmatmul.mubr.bf16.gmra.mrb[0].mxu0 %v6242
        %v6675 = vpop.f32.mrb[0].mxu0
        %v6676 = vadd.f32 %v6515, %v6675
        %v6677 = vpop.f32.mrb[0].mxu0
        %v6678 = vpop.f32.mrb[0].mxu0
        %v6679 = vadd.f32 %v6518, %v6678
        %v6680 = vpop.f32.mrb[0].mxu0
        %6681 = vmatprep.mubr.bf16.mxu0 0
        %6682 = vmatmul.mubr.bf16.gmra.mrb[0].mxu0 %v6245
        %v6683 = vpop.f32.mrb[0].mxu0
        %v6684 = vadd.f32 %v6523, %v6683
        %v6685 = vpop.f32.mrb[0].mxu0
        %v6686 = vpop.f32.mrb[0].mxu0
        %v6687 = vadd.f32 %v6526, %v6686
        %v6688 = vpop.f32.mrb[0].mxu0
        %6689 = vmatprep.mubr.bf16.mxu0 0
        %6690 = vmatmul.mubr.bf16.gmra.mrb[0].mxu0 %v6248
        %v6691 = vpop.f32.mrb[0].mxu0
        %v6692 = vadd.f32 %v6531, %v6691
        %v6693 = vpop.f32.mrb[0].mxu0
        %v6694 = vpop.f32.mrb[0].mxu0
        %v6695 = vadd.f32 %v6534, %v6694
        %v6696 = vpop.f32.mrb[0].mxu0
        %6697 = vmatprep.mubr.bf16.mxu0 0
        %6698 = vmatmul.mubr.bf16.gmra.mrb[0].mxu0 %v6251
        %v6699 = vpop.f32.mrb[0].mxu0
        %v6700 = vadd.f32 %v6539, %v6699
        %v6701 = vpop.f32.mrb[0].mxu0
        %v6702 = vpop.f32.mrb[0].mxu0
        %v6703 = vadd.f32 %v6542, %v6702
        %v6704 = vpop.f32.mrb[0].mxu0
        %6705 = vmatprep.mubr.bf16.mxu0 0
        %6706 = vmatmul.mubr.bf16.gmra.mrb[0].mxu0 %v6254
        %v6707 = vpop.f32.mrb[0].mxu0
        %v6708 = vadd.f32 %v6547, %v6707
        %v6709 = vpop.f32.mrb[0].mxu0
        %v6710 = vpop.f32.mrb[0].mxu0
        %v6711 = vadd.f32 %v6550, %v6710
        %v6712 = vpop.f32.mrb[0].mxu0
        %6713 = vmatprep.mubr.bf16.mxu0 0
        %6714 = vmatmul.mubr.bf16.gmra.mrb[0].mxu0 %v6257
        %v6715 = vpop.f32.mrb[0].mxu0
        %v6716 = vadd.f32 %v6555, %v6715
        %v6717 = vpop.f32.mrb[0].mxu0
        %v6718 = vpop.f32.mrb[0].mxu0
        %v6719 = vadd.f32 %v6558, %v6718
        %v6720 = vpop.f32.mrb[0].mxu0
        %6721 = vmatprep.mubr.bf16.mxu0 0
        %6722 = vmatmul.mubr.bf16.gmra.mrb[0].mxu0 %v6260
        %v6723 = vpop.f32.mrb[0].mxu0
        %v6724 = vadd.f32 %v6563, %v6723
        %v6725 = vpop.f32.mrb[0].mxu0
        %v6726 = vpop.f32.mrb[0].mxu0
        %v6727 = vadd.f32 %v6566, %v6726
        %v6728 = vpop.f32.mrb[0].mxu0
        %6729 = vmatprep.mubr.bf16.mxu0 0
        %6730 = vmatmul.mubr.bf16.gmra.mrb[0].mxu0 %v6263
        %v6731 = vpop.f32.mrb[0].mxu0
        %v6732 = vadd.f32 %v6571, %v6731
        %v6733 = vpop.f32.mrb[0].mxu0
        %v6734 = vpop.f32.mrb[0].mxu0
        %v6735 = vadd.f32 %v6574, %v6734
        %v6736 = vpop.f32.mrb[0].mxu0
        %6737 = vmatprep.mubr.bf16.mxu0 0
        %6738 = vmatmul.mubr.bf16.gmra.mrb[0].mxu0 %v6266
        %v6739 = vpop.f32.mrb[0].mxu0
        %v6740 = vadd.f32 %v6579, %v6739
        %v6741 = vpop.f32.mrb[0].mxu0
        %v6742 = vpop.f32.mrb[0].mxu0
        %v6743 = vadd.f32 %v6582, %v6742
        %v6744 = vpop.f32.mrb[0].mxu0
        %6745 = vmatprep.mubr.bf16.mxu0 0
        %6746 = vmatmul.mubr.bf16.gmra.mrb[0].mxu0 %v6269
        %v6747 = vpop.f32.mrb[0].mxu0
        %v6748 = vadd.f32 %v6587, %v6747
        %v6749 = vpop.f32.mrb[0].mxu0
        %v6750 = vpop.f32.mrb[0].mxu0
        %v6751 = vadd.f32 %v6590, %v6750
        %v6752 = vpop.f32.mrb[0].mxu0
        %6753 = vdwg.mxu0
        %v6754 = vld [vmem:[%s254] sm:$0xf]
        %v6755 = vld [vmem:[%s254 + $0x4] sm:$0xf]
        %v6756 = vld [vmem:[%s254 + $0x8] sm:$0xf]
        %v6757 = vld [vmem:[%s254 + $0xc] sm:$0xf]
        %v6758 = vld [vmem:[%s254 + $0x10] sm:$0xf]
        %v6759 = vld [vmem:[%s254 + $0x14] sm:$0xf]
        %v6760 = vld [vmem:[%s254 + $0x18] sm:$0xf]
        %v6761 = vld [vmem:[%s254 + $0x1c] sm:$0xf]
        %v6762 = vld [vmem:[%s254 + $0x20] sm:$0xf]
        %v6763 = vld [vmem:[%s254 + $0x24] sm:$0xf]
        %v6764 = vld [vmem:[%s254 + $0x28] sm:$0xf]
        %v6765 = vld [vmem:[%s254 + $0x2c] sm:$0xf]
        %v6766 = vld [vmem:[%s254 + $0x30] sm:$0xf]
        %v6767 = vld [vmem:[%s254 + $0x34] sm:$0xf]
        %v6768 = vld [vmem:[%s254 + $0x38] sm:$0xf]
        %v6769 = vld [vmem:[%s254 + $0x3c] sm:$0xf]
        %v6770 = vld [vmem:[%s254 + $0x40] sm:$0xf]
        %v6771 = vld [vmem:[%s254 + $0x44] sm:$0xf]
        %v6772 = vld [vmem:[%s254 + $0x48] sm:$0xf]
        %v6773 = vld [vmem:[%s254 + $0x4c] sm:$0xf]
        %v6774 = vld [vmem:[%s254 + $0x50] sm:$0xf]
        %v6775 = vld [vmem:[%s254 + $0x54] sm:$0xf]
        %v6776 = vld [vmem:[%s254 + $0x58] sm:$0xf]
        %v6777 = vld [vmem:[%s254 + $0x5c] sm:$0xf]
        %v6778 = vld [vmem:[%s254 + $0x60] sm:$0xf]
        %v6779 = vld [vmem:[%s254 + $0x64] sm:$0xf]
        %v6780 = vld [vmem:[%s254 + $0x68] sm:$0xf]
        %v6781 = vld [vmem:[%s254 + $0x6c] sm:$0xf]
        %v6782 = vld [vmem:[%s254 + $0x70] sm:$0xf]
        %v6783 = vld [vmem:[%s254 + $0x74] sm:$0xf]
        %v6784 = vld [vmem:[%s254 + $0x78] sm:$0xf]
        %v6785 = vld [vmem:[%s254 + $0x7c] sm:$0xf]
        %v6786 = vunpack.c.l.bf16 %v6754
        %v6787 = vunpack.c.l.bf16 %v6755
        %v6788 = vunpack.c.l.bf16 %v6756
        %v6789 = vunpack.c.l.bf16 %v6757
        %v6790 = vunpack.c.l.bf16 %v6758
        %v6791 = vunpack.c.l.bf16 %v6759
        %v6792 = vunpack.c.l.bf16 %v6760
        %v6793 = vunpack.c.l.bf16 %v6761
        %v6794 = vunpack.c.l.bf16 %v6762
        %v6795 = vunpack.c.l.bf16 %v6763
        %v6796 = vunpack.c.l.bf16 %v6764
        %v6797 = vunpack.c.l.bf16 %v6765
        %v6798 = vunpack.c.l.bf16 %v6766
        %v6799 = vunpack.c.l.bf16 %v6767
        %v6800 = vunpack.c.l.bf16 %v6768
        %v6801 = vunpack.c.l.bf16 %v6769
        %v6802 = vunpack.c.l.bf16 %v6770
        %v6803 = vunpack.c.l.bf16 %v6771
        %v6804 = vunpack.c.l.bf16 %v6772
        %v6805 = vunpack.c.l.bf16 %v6773
        %v6806 = vunpack.c.l.bf16 %v6774
        %v6807 = vunpack.c.l.bf16 %v6775
        %v6808 = vunpack.c.l.bf16 %v6776
        %v6809 = vunpack.c.l.bf16 %v6777
        %v6810 = vunpack.c.l.bf16 %v6778
        %v6811 = vunpack.c.l.bf16 %v6779
        %v6812 = vunpack.c.l.bf16 %v6780
        %v6813 = vunpack.c.l.bf16 %v6781
        %v6814 = vunpack.c.l.bf16 %v6782
        %v6815 = vunpack.c.l.bf16 %v6783
        %v6816 = vunpack.c.l.bf16 %v6784
        %v6817 = vunpack.c.l.bf16 %v6785
        %v6818 = vadd.f32 %v6628, %v6786
        %v6819 = vadd.f32 %v6631, %v6787
        %v6820 = vadd.f32 %v6636, %v6788
        %v6821 = vadd.f32 %v6639, %v6789
        %v6822 = vadd.f32 %v6644, %v6790
        %v6823 = vadd.f32 %v6647, %v6791
        %v6824 = vadd.f32 %v6652, %v6792
        %v6825 = vadd.f32 %v6655, %v6793
        %v6826 = vadd.f32 %v6660, %v6794
        %v6827 = vadd.f32 %v6663, %v6795
        %v6828 = vadd.f32 %v6668, %v6796
        %v6829 = vadd.f32 %v6671, %v6797
        %v6830 = vadd.f32 %v6676, %v6798
        %v6831 = vadd.f32 %v6679, %v6799
        %v6832 = vadd.f32 %v6684, %v6800
        %v6833 = vadd.f32 %v6687, %v6801
        %v6834 = vadd.f32 %v6692, %v6802
        %v6835 = vadd.f32 %v6695, %v6803
        %v6836 = vadd.f32 %v6700, %v6804
        %v6837 = vadd.f32 %v6703, %v6805
        %v6838 = vadd.f32 %v6708, %v6806
        %v6839 = vadd.f32 %v6711, %v6807
        %v6840 = vadd.f32 %v6716, %v6808
        %v6841 = vadd.f32 %v6719, %v6809
        %v6842 = vadd.f32 %v6724, %v6810
        %v6843 = vadd.f32 %v6727, %v6811
        %v6844 = vadd.f32 %v6732, %v6812
        %v6845 = vadd.f32 %v6735, %v6813
        %v6846 = vadd.f32 %v6740, %v6814
        %v6847 = vadd.f32 %v6743, %v6815
        %v6848 = vadd.f32 %v6748, %v6816
        %v6849 = vadd.f32 %v6751, %v6817
        %v6850 = vmax.f32 %v6818, 0.0
        %v6851 = vmax.f32 %v6819, 0.0
        %v6852 = vmax.f32 %v6820, 0.0
        %v6853 = vmax.f32 %v6821, 0.0
        %v6854 = vmax.f32 %v6822, 0.0
        %v6855 = vmax.f32 %v6823, 0.0
        %v6856 = vmax.f32 %v6824, 0.0
        %v6857 = vmax.f32 %v6825, 0.0
        %v6858 = vmax.f32 %v6826, 0.0
        %v6859 = vmax.f32 %v6827, 0.0
        %v6860 = vmax.f32 %v6828, 0.0
        %v6861 = vmax.f32 %v6829, 0.0
        %v6862 = vmax.f32 %v6830, 0.0
        %v6863 = vmax.f32 %v6831, 0.0
        %v6864 = vmax.f32 %v6832, 0.0
        %v6865 = vmax.f32 %v6833, 0.0
        %v6866 = vmax.f32 %v6834, 0.0
        %v6867 = vmax.f32 %v6835, 0.0
        %v6868 = vmax.f32 %v6836, 0.0
        %v6869 = vmax.f32 %v6837, 0.0
        %v6870 = vmax.f32 %v6838, 0.0
        %v6871 = vmax.f32 %v6839, 0.0
        %v6872 = vmax.f32 %v6840, 0.0
        %v6873 = vmax.f32 %v6841, 0.0
        %v6874 = vmax.f32 %v6842, 0.0
        %v6875 = vmax.f32 %v6843, 0.0
        %v6876 = vmax.f32 %v6844, 0.0
        %v6877 = vmax.f32 %v6845, 0.0
        %v6878 = vmax.f32 %v6846, 0.0
        %v6879 = vmax.f32 %v6847, 0.0
        %v6880 = vmax.f32 %v6848, 0.0
        %v6881 = vmax.f32 %v6849, 0.0
        %v6882 = vpack.c.bf16 %v6851, %v6850
        %v6883 = vpack.c.bf16 %v6853, %v6852
        %v6884 = vpack.c.bf16 %v6855, %v6854
        %v6885 = vpack.c.bf16 %v6857, %v6856
        %v6886 = vpack.c.bf16 %v6859, %v6858
        %v6887 = vpack.c.bf16 %v6861, %v6860
        %v6888 = vpack.c.bf16 %v6863, %v6862
        %v6889 = vpack.c.bf16 %v6865, %v6864
        %v6890 = vpack.c.bf16 %v6867, %v6866
        %v6891 = vpack.c.bf16 %v6869, %v6868
        %v6892 = vpack.c.bf16 %v6871, %v6870
        %v6893 = vpack.c.bf16 %v6873, %v6872
        %v6894 = vpack.c.bf16 %v6875, %v6874
        %v6895 = vpack.c.bf16 %v6877, %v6876
        %v6896 = vpack.c.bf16 %v6879, %v6878
        %v6897 = vpack.c.bf16 %v6881, %v6880
        %v6914 = vunpack.c.l.b16 %v6882
        %v6915 = vunpack.c.h.b16 %v6882
        %v6916 = vunpack.c.l.b16 %v6883
        %v6917 = vunpack.c.h.b16 %v6883
        %v6918 = vunpack.c.l.b16 %v6884
        %v6919 = vunpack.c.h.b16 %v6884
        %v6920 = vunpack.c.l.b16 %v6885
        %v6921 = vunpack.c.h.b16 %v6885
        %v6922 = vunpack.c.l.b16 %v6886
        %v6923 = vunpack.c.h.b16 %v6886
        %v6924 = vunpack.c.l.b16 %v6887
        %v6925 = vunpack.c.h.b16 %v6887
        %v6926 = vunpack.c.l.b16 %v6888
        %v6927 = vunpack.c.h.b16 %v6888
        %v6928 = vunpack.c.l.b16 %v6889
        %v6929 = vunpack.c.h.b16 %v6889
        %v6930 = vunpack.c.l.b16 %v6890
        %v6931 = vunpack.c.h.b16 %v6890
        %v6932 = vunpack.c.l.b16 %v6891
        %v6933 = vunpack.c.h.b16 %v6891
        %v6934 = vunpack.c.l.b16 %v6892
        %v6935 = vunpack.c.h.b16 %v6892
        %v6936 = vunpack.c.l.b16 %v6893
        %v6937 = vunpack.c.h.b16 %v6893
        %v6938 = vunpack.c.l.b16 %v6894
        %v6939 = vunpack.c.h.b16 %v6894
        %v6940 = vunpack.c.l.b16 %v6895
        %v6941 = vunpack.c.h.b16 %v6895
        %v6942 = vunpack.c.l.b16 %v6896
        %v6943 = vunpack.c.h.b16 %v6896
        %v6944 = vunpack.c.l.b16 %v6897
        %v6945 = vunpack.c.h.b16 %v6897
        %v6946 = vpack.c.b16 %v6914, %v6914
        %v6947 = vpack.c.b16 %v6915, %v6915
        %v6948 = vpack.c.b16 %v6916, %v6916
        %v6949 = vpack.c.b16 %v6917, %v6917
        %v6950 = vpack.c.b16 %v6918, %v6918
        %v6951 = vpack.c.b16 %v6919, %v6919
        %v6952 = vpack.c.b16 %v6920, %v6920
        %v6953 = vpack.c.b16 %v6921, %v6921
        %v6954 = vpack.c.b16 %v6922, %v6922
        %v6955 = vpack.c.b16 %v6923, %v6923
        %v6956 = vpack.c.b16 %v6924, %v6924
        %v6957 = vpack.c.b16 %v6925, %v6925
        %v6958 = vpack.c.b16 %v6926, %v6926
        %v6959 = vpack.c.b16 %v6927, %v6927
        %v6960 = vpack.c.b16 %v6928, %v6928
        %v6961 = vpack.c.b16 %v6929, %v6929
        %v6962 = vpack.c.b16 %v6930, %v6930
        %v6963 = vpack.c.b16 %v6931, %v6931
        %v6964 = vpack.c.b16 %v6932, %v6932
        %v6965 = vpack.c.b16 %v6933, %v6933
        %v6966 = vpack.c.b16 %v6934, %v6934
        %v6967 = vpack.c.b16 %v6935, %v6935
        %v6968 = vpack.c.b16 %v6936, %v6936
        %v6969 = vpack.c.b16 %v6937, %v6937
        %v6970 = vpack.c.b16 %v6938, %v6938
        %v6971 = vpack.c.b16 %v6939, %v6939
        %v6972 = vpack.c.b16 %v6940, %v6940
        %v6973 = vpack.c.b16 %v6941, %v6941
        %v6974 = vpack.c.b16 %v6942, %v6942
        %v6975 = vpack.c.b16 %v6943, %v6943
        %v6976 = vpack.c.b16 %v6944, %v6944
        %v6977 = vpack.c.b16 %v6945, %v6945
        %vm7010 = vcmask 519168
        %7011 = vst.msk [vmem:[%s296] sm:$0xf] %vm7010, %v6946
        %7012 = vst.msk [vmem:[%s296 + $0x4] sm:$0xf] %vm7010, %v6947
        %7013 = vst.msk [vmem:[%s296 + $0x8] sm:$0xf] %vm7010, %v6948
        %7014 = vst.msk [vmem:[%s296 + $0xc] sm:$0xf] %vm7010, %v6949
        %7015 = vst.msk [vmem:[%s296 + $0x10] sm:$0xf] %vm7010, %v6950
        %7016 = vst.msk [vmem:[%s296 + $0x14] sm:$0xf] %vm7010, %v6951
        %7017 = vst.msk [vmem:[%s296 + $0x18] sm:$0xf] %vm7010, %v6952
        %7018 = vst.msk [vmem:[%s296 + $0x1c] sm:$0xf] %vm7010, %v6953
        %7019 = vst.msk [vmem:[%s296 + $0x20] sm:$0xf] %vm7010, %v6954
        %7020 = vst.msk [vmem:[%s296 + $0x24] sm:$0xf] %vm7010, %v6955
        %7021 = vst.msk [vmem:[%s296 + $0x28] sm:$0xf] %vm7010, %v6956
        %7022 = vst.msk [vmem:[%s296 + $0x2c] sm:$0xf] %vm7010, %v6957
        %7023 = vst.msk [vmem:[%s296 + $0x30] sm:$0xf] %vm7010, %v6958
        %7024 = vst.msk [vmem:[%s296 + $0x34] sm:$0xf] %vm7010, %v6959
        %7025 = vst.msk [vmem:[%s296 + $0x38] sm:$0xf] %vm7010, %v6960
        %7026 = vst.msk [vmem:[%s296 + $0x3c] sm:$0xf] %vm7010, %v6961
        %7027 = vst.msk [vmem:[%s296 + $0x40] sm:$0xf] %vm7010, %v6962
        %7028 = vst.msk [vmem:[%s296 + $0x44] sm:$0xf] %vm7010, %v6963
        %7029 = vst.msk [vmem:[%s296 + $0x48] sm:$0xf] %vm7010, %v6964
        %7030 = vst.msk [vmem:[%s296 + $0x4c] sm:$0xf] %vm7010, %v6965
        %7031 = vst.msk [vmem:[%s296 + $0x50] sm:$0xf] %vm7010, %v6966
        %7032 = vst.msk [vmem:[%s296 + $0x54] sm:$0xf] %vm7010, %v6967
        %7033 = vst.msk [vmem:[%s296 + $0x58] sm:$0xf] %vm7010, %v6968
        %7034 = vst.msk [vmem:[%s296 + $0x5c] sm:$0xf] %vm7010, %v6969
        %7035 = vst.msk [vmem:[%s296 + $0x60] sm:$0xf] %vm7010, %v6970
        %7036 = vst.msk [vmem:[%s296 + $0x64] sm:$0xf] %vm7010, %v6971
        %7037 = vst.msk [vmem:[%s296 + $0x68] sm:$0xf] %vm7010, %v6972
        %7038 = vst.msk [vmem:[%s296 + $0x6c] sm:$0xf] %vm7010, %v6973
        %7039 = vst.msk [vmem:[%s296 + $0x70] sm:$0xf] %vm7010, %v6974
        %7040 = vst.msk [vmem:[%s296 + $0x74] sm:$0xf] %vm7010, %v6975
        %7041 = vst.msk [vmem:[%s296 + $0x78] sm:$0xf] %vm7010, %v6976
        %7042 = vst.msk [vmem:[%s296 + $0x7c] sm:$0xf] %vm7010, %v6977
        %s7043 = sand.u32 %s142, 1
        %s7044 = scalar_lea.sflag [#allocation7], %s7043
        %s7045 = sand.u32 %s142, 1
        %s7046 = smul.addr %s7045, 128
        %s7047 = scalar_lea.vmem [#allocation14], %s7046
        // Predicated region
        $region61: #{basic_block_forward.1} parent=39 // pred_check
          %p7048 = pneg %p152
        $region62: #{basic_block_forward.1} parent=39 // pred_check_branch
          %7050 = sbr.rel (%p7048) target = $region64
        $region63: #{basic_block_forward.1} parent=39 // pred_region
          %s7052 = ssub.s32 2048, 2048
          %7053 = vsyncadd %s7044, %s7052
          %s7054 = smul.addr %s24, 32
          %s7055 = smul.addr %s7054, 64
          %s7056 = scalar_lea.hbm %s5, %s7055
          %s7057 = sshll.u32 %s7047, 4
          %s7058 = int_to_ptr.vmem [resolvable:$true] %s7057
          %7063 = dma.vmem_to_hbm [thread:$0]  %s7058, 2048, %s7056, %s7044, 64, 64, 4
        $region64: #{basic_block_forward.1} parent=39 // pred_fallthru
          _
      $region40: #{basic_block_forward.1} parent=5 // pred_fallthru
        _
      %p7064 = scmp.le.s32.totalorder 2, %s19
      // Predicated region
      $region65: #{basic_block_forward.1} parent=5 // pred_check
        %p7065 = pneg %p7064
      $region66: #{basic_block_forward.1} parent=5 // pred_check_branch
        %7067 = sbr.rel (%p7065) target = $region68
      $region67: #{basic_block_forward.1} parent=5 // pred_region
        %s7068 = ssub.s32 %s19, 2
        // Predicated region
        $region69: #{basic_block_forward.1} parent=67 // pred_check
          %p7069 = pneg %p158
        $region70: #{basic_block_forward.1} parent=67 // pred_check_branch
          %7071 = sbr.rel (%p7069) target = $region72
        $region71: #{basic_block_forward.1} parent=67 // pred_region
          %s7072 = sand.u32 %s143, 1
          %s7073 = scalar_lea.sflag [#allocation7], %s7072
          %s7074 = sand.u32 %s143, 1
          %s7075 = smul.addr %s7074, 128
          %s7076 = scalar_lea.vmem [#allocation14], %s7075
          %7077 = dma.done %s7073, 2048
        $region72: #{basic_block_forward.1} parent=67 // pred_fallthru
          _
      $region68: #{basic_block_forward.1} parent=5 // pred_fallthru
        _
    $region6: #{basic_block_forward.1} parent=1 // loop_footer
      %s23 = sadd.s32 1, %s19
    $region7: #{basic_block_forward.1} parent=1 // loop_footer_branch
      %18 = sbr.rel target = $region3
    $region8: #{basic_block_forward.1} parent=1 // loop_exit
      _
    %7078 = vsyncpa [#allocation6], 1
    %s7079 = scalar_lea.sflag [#allocation6], 1
    %7080 = vsyncpa %s7079, 1
    %7081 = vsyncpa [#allocation9], 1
    %7082 = vsyncpa [#allocation12], 1
    %7083 = vsyncpa [#allocation7], 1
    %s7084 = scalar_lea.sflag [#allocation7], 1
    %7085 = vsyncpa %s7084, 1

</llo_original>
